<compile_context>
chip_gen: v7x
topology: tpu7x:2x2x1
jax: 0.10.0
libtpu: 0.0.40
codegen_flags: <defaults>
</compile_context>

<pallas_src>
import functools

import jax
import jax.numpy as jnp
from jax.experimental import pallas as pl
from jax.experimental.pallas import tpu as pltpu

NEG_SLOPE = 0.01  # nn.LeakyReLU() default, as in the spec module.


# ----------------------------------------------------------------------------
# Fused RDB kernel
# ----------------------------------------------------------------------------
def _rdb_kernel(x_ref, mask_ref,
                w1_ref, b1_ref, w2_ref, b2_ref, w3_ref, b3_ref,
                w4_ref, b4_ref, w5_ref, b5_ref,
                o_ref, buf_ref, *, nf, gc, w_pad, npad, res_scale, neg_slope):
    # x_ref   : (nf, npad)         zero-padded, flattened input image (f32)
    # mask_ref: (1, npad)          1.0 at interior pixels, 0.0 at padding lanes
    # wi_ref  : (9*cout_i, cin_i)  tap-major conv weights (bf16)
    # bi_ref  : (cout_i, 1)        bias (f32)
    # o_ref   : (nf, npad)         output, same flattened layout as x
    # buf_ref : (nf+4*gc, npad)    f32 VMEM dense-feature buffer (scratch)

    # Put x into the first nf channel rows of the dense buffer.
    buf_ref[pl.ds(0, nf), :] = x_ref[...].astype(buf_ref.dtype)
    mask = mask_ref[...]                                     # (1, npad)

    # Flattened-spatial offset of each of the 9 taps (ky, kx), tap = ky*3+kx.
    offsets = [(ky - 1) * w_pad + (kx - 1) for ky in range(3) for kx in range(3)]

    ws = (w1_ref, w2_ref, w3_ref, w4_ref, w5_ref)
    bs = (b1_ref, b2_ref, b3_ref, b4_ref, b5_ref)

    for i in range(5):
        w_ref, b_ref = ws[i], bs[i]
        cout = w_ref.shape[0] // 9
        cin = w_ref.shape[1]

        # All channels produced so far; bf16 operands for the MXU.
        slab = buf_ref[pl.ds(0, cin), :].astype(jnp.bfloat16)   # (cin, npad)

        acc = jnp.zeros((cout, npad), jnp.float32)
        for t in range(9):                                      # static unroll
            wt = w_ref[pl.ds(t * cout, cout), :]                # (cout, cin) bf16
            part = jnp.dot(wt, slab, preferred_element_type=jnp.float32)
            if offsets[t] != 0:
                # out[:, p] needs partial[:, p + offset]  ->  roll by -offset.
                part = pltpu.roll(part, shift=(-offsets[t]) % npad, axis=1)
            acc = acc + part

        y = acc + b_ref[...]                                    # (cout,1) bcast
        y = jnp.where(y >= 0, y, neg_slope * y)                 # LeakyReLU

        if i < 4:
            # Dense concat: next gc channel rows.  Mask re-zeroes the padding
            # lanes so later convs still see exact zero padding.
            buf_ref[pl.ds(nf + i * gc, cout), :] = (y * mask).astype(buf_ref.dtype)
        else:
            # layer5 * res_scale + x   (x still lives in buf rows [0, nf)).
            o_ref[...] = (y * res_scale + buf_ref[pl.ds(0, nf), :]).astype(o_ref.dtype)


# ----------------------------------------------------------------------------
# Wrapper: NCHW in / NCHW out, one pallas_call for the whole block
# ----------------------------------------------------------------------------
def residual_dense_block(x_nchw, params, res_scale=0.2):
    """x: (N, nf, H, W) NCHW.  params: w1..w5 OIHW (cout,cin,3,3), b1..b5 (cout,)."""
    N, nf, H, W = x_nchw.shape
    gc = params["w1"].shape[0]
    c_total = nf + 4 * gc
    w_pad = W + 2
    n_spatial = (H + 2) * w_pad
    npad = pl.cdiv(n_spatial, 128) * 128

    # One spatial zero-pad of x (only nf channels, once), flattened, lane-padded.
    xp = jnp.pad(x_nchw, ((0, 0), (0, 0), (1, 1), (1, 1)))
    x_flat = jnp.pad(xp.reshape(N, nf, n_spatial).astype(jnp.float32),
                     ((0, 0), (0, 0), (0, npad - n_spatial)))

    # Interior-pixel mask in the flattened padded layout.
    p = jnp.arange(npad)
    row, col = p // w_pad, p % w_pad
    interior = (p < n_spatial) & (row >= 1) & (row <= H) & (col >= 1) & (col <= W)
    mask = interior.astype(jnp.float32).reshape(1, npad)

    # Weights: OIHW -> tap-major (9*cout, cin) bf16.  Biases -> (cout, 1) f32.
    def prep_w(w):
        co, ci, _, _ = w.shape
        return jnp.transpose(w, (2, 3, 0, 1)).reshape(9 * co, ci).astype(jnp.bfloat16)

    def prep_b(b):
        return b.reshape(-1, 1).astype(jnp.float32)

    ws = [prep_w(params[f"w{i}"]) for i in range(1, 6)]
    bs = [prep_b(params[f"b{i}"]) for i in range(1, 6)]

    kernel = functools.partial(
        _rdb_kernel, nf=nf, gc=gc, w_pad=w_pad, npad=npad,
        res_scale=res_scale, neg_slope=NEG_SLOPE)

    in_specs = [
        pl.BlockSpec((None, nf, npad), lambda n: (n, 0, 0)),   # x (per-image)
        pl.BlockSpec((1, npad), lambda n: (0, 0)),             # interior mask
    ]
    inputs = [x_flat, mask]
    for w, b in zip(ws, bs):
        in_specs.append(pl.BlockSpec(w.shape, lambda n: (0, 0)))
        in_specs.append(pl.BlockSpec(b.shape, lambda n: (0, 0)))
        inputs.extend([w, b])

    out_flat = pl.pallas_call(
        kernel,
        out_shape=jax.ShapeDtypeStruct((N, nf, npad), x_nchw.dtype),
        grid_spec=pltpu.PrefetchScalarGridSpec(
            num_scalar_prefetch=0,
            grid=(N,),
            in_specs=in_specs,
            out_specs=pl.BlockSpec((None, nf, npad), lambda n: (n, 0, 0)),
            scratch_shapes=[pltpu.VMEM((c_total, npad), jnp.float32)],
        ),
        compiler_params=pltpu.CompilerParams(
            dimension_semantics=("parallel",)),
    )(*inputs)

    # Drop lane padding + spatial halo -> NCHW (cheap XLA slice/reshape).
    out = out_flat[:, :, :n_spatial].reshape(N, nf, H + 2, w_pad)
    return out[:, :, 1:H + 1, 1:W + 1]


# ----------------------------------------------------------------------------
# Params + pure-JAX (f32) reference for a correctness check
# ----------------------------------------------------------------------------
def init_rdb_params(key, nf, gc, dtype=jnp.float32):
    params = {}
    cins = [nf + i * gc for i in range(5)]
    couts = [gc, gc, gc, gc, nf]
    for i, (ci, co) in enumerate(zip(cins, couts), start=1):
        key, kw, kb = jax.random.split(key, 3)
        params[f"w{i}"] = (0.05 * jax.random.normal(kw, (co, ci, 3, 3))).astype(dtype)
        params[f"b{i}"] = (0.05 * jax.random.normal(kb, (co,))).astype(dtype)
    return params


def _ref_conv_lrelu(x, w, b):
    y = jax.lax.conv_general_dilated(
        x, w, window_strides=(1, 1), padding="SAME",
        dimension_numbers=("NCHW", "OIHW", "NCHW"),
        precision=jax.lax.Precision.HIGHEST)
    y = y + b.reshape(1, -1, 1, 1)
    return jnp.where(y >= 0, y, NEG_SLOPE * y)


def residual_dense_block_ref(x, params, res_scale=0.2):
    l1 = _ref_conv_lrelu(x, params["w1"], params["b1"])
    l2 = _ref_conv_lrelu(jnp.concatenate([x, l1], 1), params["w2"], params["b2"])
    l3 = _ref_conv_lrelu(jnp.concatenate([x, l1, l2], 1), params["w3"], params["b3"])
    l4 = _ref_conv_lrelu(jnp.concatenate([x, l1, l2, l3], 1), params["w4"], params["b4"])
    l5 = _ref_conv_lrelu(jnp.concatenate([x, l1, l2, l3, l4], 1),
                         params["w5"], params["b5"])
    return l5 * res_scale + x


if __name__ == "__main__":
    N, NF, GC, HW = 2, 32, 32, 16          # nf=32, gc=32 (module default), 16x16
    key = jax.random.PRNGKey(0)
    kx, kp = jax.random.split(key)
    x = jax.random.normal(kx, (N, NF, HW, HW), dtype=jnp.float32)   # NCHW input
    params = init_rdb_params(kp, NF, GC)

    out = jax.block_until_ready(residual_dense_block(x, params, res_scale=0.2))
    ref = jax.block_until_ready(residual_dense_block_ref(x, params, res_scale=0.2))

    assert out.shape == x.shape and out.dtype == x.dtype
    # bf16 MXU operands (f32 accumulation) -> small numeric drift vs f32 reference.
    max_diff = float(jnp.max(jnp.abs(out - ref)))
    assert bool(jnp.allclose(out, ref, atol=2e-2, rtol=2e-2)), (
        f"mismatch vs reference, max abs diff = {max_diff}")

    print("KERNEL_OK")
</pallas_src>

<mosaic_0001>
module attributes {stable_mosaic.version = 11 : i64} {
  func.func @_rdb_kernel(%arg0: i32, %arg1: memref<1x32x384xf32, #tpu.memory_space<vmem>>, %arg2: memref<1x384xf32, #tpu.memory_space<vmem>>, %arg3: memref<288x32xbf16, #tpu.memory_space<vmem>>, %arg4: memref<32x1xf32, #tpu.memory_space<vmem>>, %arg5: memref<288x64xbf16, #tpu.memory_space<vmem>>, %arg6: memref<32x1xf32, #tpu.memory_space<vmem>>, %arg7: memref<288x96xbf16, #tpu.memory_space<vmem>>, %arg8: memref<32x1xf32, #tpu.memory_space<vmem>>, %arg9: memref<288x128xbf16, #tpu.memory_space<vmem>>, %arg10: memref<32x1xf32, #tpu.memory_space<vmem>>, %arg11: memref<288x160xbf16, #tpu.memory_space<vmem>>, %arg12: memref<32x1xf32, #tpu.memory_space<vmem>>, %arg13: memref<1x32x384xf32, #tpu.memory_space<vmem>>, %arg14: memref<160x384xf32, #tpu.memory_space<vmem>>) attributes {dimension_semantics = [#tpu.dimension_semantics<parallel>], iteration_bounds = array<i64: 2>, scalar_prefetch = 0 : i64, scratch_operands = 1 : i64, tpu.core_type = #tpu.core_type<tc>, window_params = [{transform_indices = @transform_0, window_bounds = array<i64: 1, 32, 384>}, {pipeline_mode = #tpu.pipeline_mode<synchronous>, transform_indices = @transform_1, window_bounds = array<i64: 1, 384>}, {pipeline_mode = #tpu.pipeline_mode<synchronous>, transform_indices = @transform_2, window_bounds = array<i64: 288, 32>}, {pipeline_mode = #tpu.pipeline_mode<synchronous>, transform_indices = @transform_3, window_bounds = array<i64: 32, 1>}, {pipeline_mode = #tpu.pipeline_mode<synchronous>, transform_indices = @transform_4, window_bounds = array<i64: 288, 64>}, {pipeline_mode = #tpu.pipeline_mode<synchronous>, transform_indices = @transform_5, window_bounds = array<i64: 32, 1>}, {pipeline_mode = #tpu.pipeline_mode<synchronous>, transform_indices = @transform_6, window_bounds = array<i64: 288, 96>}, {pipeline_mode = #tpu.pipeline_mode<synchronous>, transform_indices = @transform_7, window_bounds = array<i64: 32, 1>}, {pipeline_mode = #tpu.pipeline_mode<synchronous>, transform_indices = @transform_8, window_bounds = array<i64: 288, 128>}, {pipeline_mode = #tpu.pipeline_mode<synchronous>, transform_indices = @transform_9, window_bounds = array<i64: 32, 1>}, {pipeline_mode = #tpu.pipeline_mode<synchronous>, transform_indices = @transform_10, window_bounds = array<i64: 288, 160>}, {pipeline_mode = #tpu.pipeline_mode<synchronous>, transform_indices = @transform_11, window_bounds = array<i64: 32, 1>}, {transform_indices = @transform_12, window_bounds = array<i64: 1, 32, 384>}]} {
    %c0 = arith.constant 0 : index
    %c0_0 = arith.constant 0 : index
    %c0_1 = arith.constant 0 : index
    %0 = vector.load %arg1[%c0, %c0_0, %c0_1] : memref<1x32x384xf32, #tpu.memory_space<vmem>>, vector<1x32x384xf32>
    %1 = vector.shape_cast %0 : vector<1x32x384xf32> to vector<32x384xf32>
    %c0_2 = arith.constant 0 : index
    %c0_3 = arith.constant 0 : index
    %2 = vector.load %arg14[%c0_2, %c0_3] : memref<160x384xf32, #tpu.memory_space<vmem>>, vector<32x384xf32>
    tpu.vector_store %arg14[%c0_2, %c0_3], %1 {strides = array<i32>} : memref<160x384xf32, #tpu.memory_space<vmem>>, vector<32x384xf32>,
    %c0_4 = arith.constant 0 : index
    %c0_5 = arith.constant 0 : index
    %3 = vector.load %arg2[%c0_4, %c0_5] : memref<1x384xf32, #tpu.memory_space<vmem>>, vector<1x384xf32>
    %c0_6 = arith.constant 0 : index
    %c0_7 = arith.constant 0 : index
    %4 = vector.load %arg14[%c0_6, %c0_7] : memref<160x384xf32, #tpu.memory_space<vmem>>, vector<32x384xf32>
    %5 = arith.truncf %4 : vector<32x384xf32> to vector<32x384xbf16>
    %cst = arith.constant 0.000000e+00 : f32
    %6 = vector.broadcast %cst : f32 to vector<32x384xf32>
    %c0_8 = arith.constant 0 : index
    %c0_9 = arith.constant 0 : index
    %7 = vector.load %arg3[%c0_8, %c0_9] : memref<288x32xbf16, #tpu.memory_space<vmem>>, vector<32x32xbf16>
    %cst_10 = arith.constant dense<0.000000e+00> : vector<32x384xf32>
    %8 = tpu.matmul %7, %5, %cst_10 {dimension_numbers = #tpu.dot_dimension_numbers<[1], [0], [0], [1], [0, 0, 1, 1], [], []>} : vector<32x32xbf16>, vector<32x384xbf16>, vector<32x384xf32> -> vector<32x384xf32>
    %c19_i32 = arith.constant 19 : i32
    %9 = tpu.dynamic_rotate %8 by %c19_i32 dim 1 : vector<32x384xf32>, i32 -> vector<32x384xf32>
    %10 = arith.addf %6, %9 : vector<32x384xf32>
    %c32 = arith.constant 32 : index
    %c0_11 = arith.constant 0 : index
    %11 = vector.load %arg3[%c32, %c0_11] : memref<288x32xbf16, #tpu.memory_space<vmem>>, vector<32x32xbf16>
    %cst_12 = arith.constant dense<0.000000e+00> : vector<32x384xf32>
    %12 = tpu.matmul %11, %5, %cst_12 {dimension_numbers = #tpu.dot_dimension_numbers<[1], [0], [0], [1], [0, 0, 1, 1], [], []>} : vector<32x32xbf16>, vector<32x384xbf16>, vector<32x384xf32> -> vector<32x384xf32>
    %c18_i32 = arith.constant 18 : i32
    %13 = tpu.dynamic_rotate %12 by %c18_i32 dim 1 : vector<32x384xf32>, i32 -> vector<32x384xf32>
    %14 = arith.addf %10, %13 : vector<32x384xf32>
    %c64 = arith.constant 64 : index
    %c0_13 = arith.constant 0 : index
    %15 = vector.load %arg3[%c64, %c0_13] : memref<288x32xbf16, #tpu.memory_space<vmem>>, vector<32x32xbf16>
    %cst_14 = arith.constant dense<0.000000e+00> : vector<32x384xf32>
    %16 = tpu.matmul %15, %5, %cst_14 {dimension_numbers = #tpu.dot_dimension_numbers<[1], [0], [0], [1], [0, 0, 1, 1], [], []>} : vector<32x32xbf16>, vector<32x384xbf16>, vector<32x384xf32> -> vector<32x384xf32>
    %c17_i32 = arith.constant 17 : i32
    %17 = tpu.dynamic_rotate %16 by %c17_i32 dim 1 : vector<32x384xf32>, i32 -> vector<32x384xf32>
    %18 = arith.addf %14, %17 : vector<32x384xf32>
    %c96 = arith.constant 96 : index
    %c0_15 = arith.constant 0 : index
    %19 = vector.load %arg3[%c96, %c0_15] : memref<288x32xbf16, #tpu.memory_space<vmem>>, vector<32x32xbf16>
    %cst_16 = arith.constant dense<0.000000e+00> : vector<32x384xf32>
    %20 = tpu.matmul %19, %5, %cst_16 {dimension_numbers = #tpu.dot_dimension_numbers<[1], [0], [0], [1], [0, 0, 1, 1], [], []>} : vector<32x32xbf16>, vector<32x384xbf16>, vector<32x384xf32> -> vector<32x384xf32>
    %c1_i32 = arith.constant 1 : i32
    %21 = tpu.dynamic_rotate %20 by %c1_i32 dim 1 : vector<32x384xf32>, i32 -> vector<32x384xf32>
    %22 = arith.addf %18, %21 : vector<32x384xf32>
    %c128 = arith.constant 128 : index
    %c0_17 = arith.constant 0 : index
    %23 = vector.load %arg3[%c128, %c0_17] : memref<288x32xbf16, #tpu.memory_space<vmem>>, vector<32x32xbf16>
    %cst_18 = arith.constant dense<0.000000e+00> : vector<32x384xf32>
    %24 = tpu.matmul %23, %5, %cst_18 {dimension_numbers = #tpu.dot_dimension_numbers<[1], [0], [0], [1], [0, 0, 1, 1], [], []>} : vector<32x32xbf16>, vector<32x384xbf16>, vector<32x384xf32> -> vector<32x384xf32>
    %25 = arith.addf %22, %24 : vector<32x384xf32>
    %c160 = arith.constant 160 : index
    %c0_19 = arith.constant 0 : index
    %26 = vector.load %arg3[%c160, %c0_19] : memref<288x32xbf16, #tpu.memory_space<vmem>>, vector<32x32xbf16>
    %cst_20 = arith.constant dense<0.000000e+00> : vector<32x384xf32>
    %27 = tpu.matmul %26, %5, %cst_20 {dimension_numbers = #tpu.dot_dimension_numbers<[1], [0], [0], [1], [0, 0, 1, 1], [], []>} : vector<32x32xbf16>, vector<32x384xbf16>, vector<32x384xf32> -> vector<32x384xf32>
    %c383_i32 = arith.constant 383 : i32
    %28 = tpu.dynamic_rotate %27 by %c383_i32 dim 1 : vector<32x384xf32>, i32 -> vector<32x384xf32>
    %29 = arith.addf %25, %28 : vector<32x384xf32>
    %c192 = arith.constant 192 : index
    %c0_21 = arith.constant 0 : index
    %30 = vector.load %arg3[%c192, %c0_21] : memref<288x32xbf16, #tpu.memory_space<vmem>>, vector<32x32xbf16>
    %cst_22 = arith.constant dense<0.000000e+00> : vector<32x384xf32>
    %31 = tpu.matmul %30, %5, %cst_22 {dimension_numbers = #tpu.dot_dimension_numbers<[1], [0], [0], [1], [0, 0, 1, 1], [], []>} : vector<32x32xbf16>, vector<32x384xbf16>, vector<32x384xf32> -> vector<32x384xf32>
    %c367_i32 = arith.constant 367 : i32
    %32 = tpu.dynamic_rotate %31 by %c367_i32 dim 1 : vector<32x384xf32>, i32 -> vector<32x384xf32>
    %33 = arith.addf %29, %32 : vector<32x384xf32>
    %c224 = arith.constant 224 : index
    %c0_23 = arith.constant 0 : index
    %34 = vector.load %arg3[%c224, %c0_23] : memref<288x32xbf16, #tpu.memory_space<vmem>>, vector<32x32xbf16>
    %cst_24 = arith.constant dense<0.000000e+00> : vector<32x384xf32>
    %35 = tpu.matmul %34, %5, %cst_24 {dimension_numbers = #tpu.dot_dimension_numbers<[1], [0], [0], [1], [0, 0, 1, 1], [], []>} : vector<32x32xbf16>, vector<32x384xbf16>, vector<32x384xf32> -> vector<32x384xf32>
    %c366_i32 = arith.constant 366 : i32
    %36 = tpu.dynamic_rotate %35 by %c366_i32 dim 1 : vector<32x384xf32>, i32 -> vector<32x384xf32>
    %37 = arith.addf %33, %36 : vector<32x384xf32>
    %c256 = arith.constant 256 : index
    %c0_25 = arith.constant 0 : index
    %38 = vector.load %arg3[%c256, %c0_25] : memref<288x32xbf16, #tpu.memory_space<vmem>>, vector<32x32xbf16>
    %cst_26 = arith.constant dense<0.000000e+00> : vector<32x384xf32>
    %39 = tpu.matmul %38, %5, %cst_26 {dimension_numbers = #tpu.dot_dimension_numbers<[1], [0], [0], [1], [0, 0, 1, 1], [], []>} : vector<32x32xbf16>, vector<32x384xbf16>, vector<32x384xf32> -> vector<32x384xf32>
    %c365_i32 = arith.constant 365 : i32
    %40 = tpu.dynamic_rotate %39 by %c365_i32 dim 1 : vector<32x384xf32>, i32 -> vector<32x384xf32>
    %41 = arith.addf %37, %40 : vector<32x384xf32>
    %c0_27 = arith.constant 0 : index
    %c0_28 = arith.constant 0 : index
    %42 = vector.load %arg4[%c0_27, %c0_28] : memref<32x1xf32, #tpu.memory_space<vmem>>, vector<32x1xf32>
    %43 = vector.broadcast %42 : vector<32x1xf32> to vector<32x384xf32>
    %44 = arith.addf %41, %43 : vector<32x384xf32>
    %cst_29 = arith.constant 0.000000e+00 : f32
    %45 = vector.broadcast %cst_29 : f32 to vector<32x384xf32>
    %46 = arith.cmpf oge, %44, %45 : vector<32x384xf32>
    %cst_30 = arith.constant 0.00999999977 : f32
    %47 = vector.broadcast %cst_30 : f32 to vector<32x384xf32>
    %48 = arith.mulf %47, %44 : vector<32x384xf32>
    %49 = arith.select %46, %44, %48 : vector<32x384xi1>, vector<32x384xf32>
    %50 = vector.broadcast %3 : vector<1x384xf32> to vector<32x384xf32>
    %51 = arith.mulf %49, %50 : vector<32x384xf32>
    %c32_31 = arith.constant 32 : index
    %c0_32 = arith.constant 0 : index
    %52 = vector.load %arg14[%c32_31, %c0_32] : memref<160x384xf32, #tpu.memory_space<vmem>>, vector<32x384xf32>
    tpu.vector_store %arg14[%c32_31, %c0_32], %51 {strides = array<i32>} : memref<160x384xf32, #tpu.memory_space<vmem>>, vector<32x384xf32>,
    %c0_33 = arith.constant 0 : index
    %c0_34 = arith.constant 0 : index
    %53 = vector.load %arg14[%c0_33, %c0_34] : memref<160x384xf32, #tpu.memory_space<vmem>>, vector<64x384xf32>
    %54 = arith.truncf %53 : vector<64x384xf32> to vector<64x384xbf16>
    %cst_35 = arith.constant 0.000000e+00 : f32
    %55 = vector.broadcast %cst_35 : f32 to vector<32x384xf32>
    %c0_36 = arith.constant 0 : index
    %c0_37 = arith.constant 0 : index
    %56 = vector.load %arg5[%c0_36, %c0_37] : memref<288x64xbf16, #tpu.memory_space<vmem>>, vector<32x64xbf16>
    %cst_38 = arith.constant dense<0.000000e+00> : vector<32x384xf32>
    %57 = tpu.matmul %56, %54, %cst_38 {dimension_numbers = #tpu.dot_dimension_numbers<[1], [0], [0], [1], [0, 0, 1, 1], [], []>} : vector<32x64xbf16>, vector<64x384xbf16>, vector<32x384xf32> -> vector<32x384xf32>
    %c19_i32_39 = arith.constant 19 : i32
    %58 = tpu.dynamic_rotate %57 by %c19_i32_39 dim 1 : vector<32x384xf32>, i32 -> vector<32x384xf32>
    %59 = arith.addf %55, %58 : vector<32x384xf32>
    %c32_40 = arith.constant 32 : index
    %c0_41 = arith.constant 0 : index
    %60 = vector.load %arg5[%c32_40, %c0_41] : memref<288x64xbf16, #tpu.memory_space<vmem>>, vector<32x64xbf16>
    %cst_42 = arith.constant dense<0.000000e+00> : vector<32x384xf32>
    %61 = tpu.matmul %60, %54, %cst_42 {dimension_numbers = #tpu.dot_dimension_numbers<[1], [0], [0], [1], [0, 0, 1, 1], [], []>} : vector<32x64xbf16>, vector<64x384xbf16>, vector<32x384xf32> -> vector<32x384xf32>
    %c18_i32_43 = arith.constant 18 : i32
    %62 = tpu.dynamic_rotate %61 by %c18_i32_43 dim 1 : vector<32x384xf32>, i32 -> vector<32x384xf32>
    %63 = arith.addf %59, %62 : vector<32x384xf32>
    %c64_44 = arith.constant 64 : index
    %c0_45 = arith.constant 0 : index
    %64 = vector.load %arg5[%c64_44, %c0_45] : memref<288x64xbf16, #tpu.memory_space<vmem>>, vector<32x64xbf16>
    %cst_46 = arith.constant dense<0.000000e+00> : vector<32x384xf32>
    %65 = tpu.matmul %64, %54, %cst_46 {dimension_numbers = #tpu.dot_dimension_numbers<[1], [0], [0], [1], [0, 0, 1, 1], [], []>} : vector<32x64xbf16>, vector<64x384xbf16>, vector<32x384xf32> -> vector<32x384xf32>
    %c17_i32_47 = arith.constant 17 : i32
    %66 = tpu.dynamic_rotate %65 by %c17_i32_47 dim 1 : vector<32x384xf32>, i32 -> vector<32x384xf32>
    %67 = arith.addf %63, %66 : vector<32x384xf32>
    %c96_48 = arith.constant 96 : index
    %c0_49 = arith.constant 0 : index
    %68 = vector.load %arg5[%c96_48, %c0_49] : memref<288x64xbf16, #tpu.memory_space<vmem>>, vector<32x64xbf16>
    %cst_50 = arith.constant dense<0.000000e+00> : vector<32x384xf32>
    %69 = tpu.matmul %68, %54, %cst_50 {dimension_numbers = #tpu.dot_dimension_numbers<[1], [0], [0], [1], [0, 0, 1, 1], [], []>} : vector<32x64xbf16>, vector<64x384xbf16>, vector<32x384xf32> -> vector<32x384xf32>
    %c1_i32_51 = arith.constant 1 : i32
    %70 = tpu.dynamic_rotate %69 by %c1_i32_51 dim 1 : vector<32x384xf32>, i32 -> vector<32x384xf32>
    %71 = arith.addf %67, %70 : vector<32x384xf32>
    %c128_52 = arith.constant 128 : index
    %c0_53 = arith.constant 0 : index
    %72 = vector.load %arg5[%c128_52, %c0_53] : memref<288x64xbf16, #tpu.memory_space<vmem>>, vector<32x64xbf16>
    %cst_54 = arith.constant dense<0.000000e+00> : vector<32x384xf32>
    %73 = tpu.matmul %72, %54, %cst_54 {dimension_numbers = #tpu.dot_dimension_numbers<[1], [0], [0], [1], [0, 0, 1, 1], [], []>} : vector<32x64xbf16>, vector<64x384xbf16>, vector<32x384xf32> -> vector<32x384xf32>
    %74 = arith.addf %71, %73 : vector<32x384xf32>
    %c160_55 = arith.constant 160 : index
    %c0_56 = arith.constant 0 : index
    %75 = vector.load %arg5[%c160_55, %c0_56] : memref<288x64xbf16, #tpu.memory_space<vmem>>, vector<32x64xbf16>
    %cst_57 = arith.constant dense<0.000000e+00> : vector<32x384xf32>
    %76 = tpu.matmul %75, %54, %cst_57 {dimension_numbers = #tpu.dot_dimension_numbers<[1], [0], [0], [1], [0, 0, 1, 1], [], []>} : vector<32x64xbf16>, vector<64x384xbf16>, vector<32x384xf32> -> vector<32x384xf32>
    %c383_i32_58 = arith.constant 383 : i32
    %77 = tpu.dynamic_rotate %76 by %c383_i32_58 dim 1 : vector<32x384xf32>, i32 -> vector<32x384xf32>
    %78 = arith.addf %74, %77 : vector<32x384xf32>
    %c192_59 = arith.constant 192 : index
    %c0_60 = arith.constant 0 : index
    %79 = vector.load %arg5[%c192_59, %c0_60] : memref<288x64xbf16, #tpu.memory_space<vmem>>, vector<32x64xbf16>
    %cst_61 = arith.constant dense<0.000000e+00> : vector<32x384xf32>
    %80 = tpu.matmul %79, %54, %cst_61 {dimension_numbers = #tpu.dot_dimension_numbers<[1], [0], [0], [1], [0, 0, 1, 1], [], []>} : vector<32x64xbf16>, vector<64x384xbf16>, vector<32x384xf32> -> vector<32x384xf32>
    %c367_i32_62 = arith.constant 367 : i32
    %81 = tpu.dynamic_rotate %80 by %c367_i32_62 dim 1 : vector<32x384xf32>, i32 -> vector<32x384xf32>
    %82 = arith.addf %78, %81 : vector<32x384xf32>
    %c224_63 = arith.constant 224 : index
    %c0_64 = arith.constant 0 : index
    %83 = vector.load %arg5[%c224_63, %c0_64] : memref<288x64xbf16, #tpu.memory_space<vmem>>, vector<32x64xbf16>
    %cst_65 = arith.constant dense<0.000000e+00> : vector<32x384xf32>
    %84 = tpu.matmul %83, %54, %cst_65 {dimension_numbers = #tpu.dot_dimension_numbers<[1], [0], [0], [1], [0, 0, 1, 1], [], []>} : vector<32x64xbf16>, vector<64x384xbf16>, vector<32x384xf32> -> vector<32x384xf32>
    %c366_i32_66 = arith.constant 366 : i32
    %85 = tpu.dynamic_rotate %84 by %c366_i32_66 dim 1 : vector<32x384xf32>, i32 -> vector<32x384xf32>
    %86 = arith.addf %82, %85 : vector<32x384xf32>
    %c256_67 = arith.constant 256 : index
    %c0_68 = arith.constant 0 : index
    %87 = vector.load %arg5[%c256_67, %c0_68] : memref<288x64xbf16, #tpu.memory_space<vmem>>, vector<32x64xbf16>
    %cst_69 = arith.constant dense<0.000000e+00> : vector<32x384xf32>
    %88 = tpu.matmul %87, %54, %cst_69 {dimension_numbers = #tpu.dot_dimension_numbers<[1], [0], [0], [1], [0, 0, 1, 1], [], []>} : vector<32x64xbf16>, vector<64x384xbf16>, vector<32x384xf32> -> vector<32x384xf32>
    %c365_i32_70 = arith.constant 365 : i32
    %89 = tpu.dynamic_rotate %88 by %c365_i32_70 dim 1 : vector<32x384xf32>, i32 -> vector<32x384xf32>
    %90 = arith.addf %86, %89 : vector<32x384xf32>
    %c0_71 = arith.constant 0 : index
    %c0_72 = arith.constant 0 : index
    %91 = vector.load %arg6[%c0_71, %c0_72] : memref<32x1xf32, #tpu.memory_space<vmem>>, vector<32x1xf32>
    %92 = vector.broadcast %91 : vector<32x1xf32> to vector<32x384xf32>
    %93 = arith.addf %90, %92 : vector<32x384xf32>
    %cst_73 = arith.constant 0.000000e+00 : f32
    %94 = vector.broadcast %cst_73 : f32 to vector<32x384xf32>
    %95 = arith.cmpf oge, %93, %94 : vector<32x384xf32>
    %cst_74 = arith.constant 0.00999999977 : f32
    %96 = vector.broadcast %cst_74 : f32 to vector<32x384xf32>
    %97 = arith.mulf %96, %93 : vector<32x384xf32>
    %98 = arith.select %95, %93, %97 : vector<32x384xi1>, vector<32x384xf32>
    %99 = vector.broadcast %3 : vector<1x384xf32> to vector<32x384xf32>
    %100 = arith.mulf %98, %99 : vector<32x384xf32>
    %c64_75 = arith.constant 64 : index
    %c0_76 = arith.constant 0 : index
    %101 = vector.load %arg14[%c64_75, %c0_76] : memref<160x384xf32, #tpu.memory_space<vmem>>, vector<32x384xf32>
    tpu.vector_store %arg14[%c64_75, %c0_76], %100 {strides = array<i32>} : memref<160x384xf32, #tpu.memory_space<vmem>>, vector<32x384xf32>,
    %c0_77 = arith.constant 0 : index
    %c0_78 = arith.constant 0 : index
    %102 = vector.load %arg14[%c0_77, %c0_78] : memref<160x384xf32, #tpu.memory_space<vmem>>, vector<96x384xf32>
    %103 = arith.truncf %102 : vector<96x384xf32> to vector<96x384xbf16>
    %cst_79 = arith.constant 0.000000e+00 : f32
    %104 = vector.broadcast %cst_79 : f32 to vector<32x384xf32>
    %c0_80 = arith.constant 0 : index
    %c0_81 = arith.constant 0 : index
    %105 = vector.load %arg7[%c0_80, %c0_81] : memref<288x96xbf16, #tpu.memory_space<vmem>>, vector<32x96xbf16>
    %cst_82 = arith.constant dense<0.000000e+00> : vector<32x384xf32>
    %106 = tpu.matmul %105, %103, %cst_82 {dimension_numbers = #tpu.dot_dimension_numbers<[1], [0], [0], [1], [0, 0, 1, 1], [], []>} : vector<32x96xbf16>, vector<96x384xbf16>, vector<32x384xf32> -> vector<32x384xf32>
    %c19_i32_83 = arith.constant 19 : i32
    %107 = tpu.dynamic_rotate %106 by %c19_i32_83 dim 1 : vector<32x384xf32>, i32 -> vector<32x384xf32>
    %108 = arith.addf %104, %107 : vector<32x384xf32>
    %c32_84 = arith.constant 32 : index
    %c0_85 = arith.constant 0 : index
    %109 = vector.load %arg7[%c32_84, %c0_85] : memref<288x96xbf16, #tpu.memory_space<vmem>>, vector<32x96xbf16>
    %cst_86 = arith.constant dense<0.000000e+00> : vector<32x384xf32>
    %110 = tpu.matmul %109, %103, %cst_86 {dimension_numbers = #tpu.dot_dimension_numbers<[1], [0], [0], [1], [0, 0, 1, 1], [], []>} : vector<32x96xbf16>, vector<96x384xbf16>, vector<32x384xf32> -> vector<32x384xf32>
    %c18_i32_87 = arith.constant 18 : i32
    %111 = tpu.dynamic_rotate %110 by %c18_i32_87 dim 1 : vector<32x384xf32>, i32 -> vector<32x384xf32>
    %112 = arith.addf %108, %111 : vector<32x384xf32>
    %c64_88 = arith.constant 64 : index
    %c0_89 = arith.constant 0 : index
    %113 = vector.load %arg7[%c64_88, %c0_89] : memref<288x96xbf16, #tpu.memory_space<vmem>>, vector<32x96xbf16>
    %cst_90 = arith.constant dense<0.000000e+00> : vector<32x384xf32>
    %114 = tpu.matmul %113, %103, %cst_90 {dimension_numbers = #tpu.dot_dimension_numbers<[1], [0], [0], [1], [0, 0, 1, 1], [], []>} : vector<32x96xbf16>, vector<96x384xbf16>, vector<32x384xf32> -> vector<32x384xf32>
    %c17_i32_91 = arith.constant 17 : i32
    %115 = tpu.dynamic_rotate %114 by %c17_i32_91 dim 1 : vector<32x384xf32>, i32 -> vector<32x384xf32>
    %116 = arith.addf %112, %115 : vector<32x384xf32>
    %c96_92 = arith.constant 96 : index
    %c0_93 = arith.constant 0 : index
    %117 = vector.load %arg7[%c96_92, %c0_93] : memref<288x96xbf16, #tpu.memory_space<vmem>>, vector<32x96xbf16>
    %cst_94 = arith.constant dense<0.000000e+00> : vector<32x384xf32>
    %118 = tpu.matmul %117, %103, %cst_94 {dimension_numbers = #tpu.dot_dimension_numbers<[1], [0], [0], [1], [0, 0, 1, 1], [], []>} : vector<32x96xbf16>, vector<96x384xbf16>, vector<32x384xf32> -> vector<32x384xf32>
    %c1_i32_95 = arith.constant 1 : i32
    %119 = tpu.dynamic_rotate %118 by %c1_i32_95 dim 1 : vector<32x384xf32>, i32 -> vector<32x384xf32>
    %120 = arith.addf %116, %119 : vector<32x384xf32>
    %c128_96 = arith.constant 128 : index
    %c0_97 = arith.constant 0 : index
    %121 = vector.load %arg7[%c128_96, %c0_97] : memref<288x96xbf16, #tpu.memory_space<vmem>>, vector<32x96xbf16>
    %cst_98 = arith.constant dense<0.000000e+00> : vector<32x384xf32>
    %122 = tpu.matmul %121, %103, %cst_98 {dimension_numbers = #tpu.dot_dimension_numbers<[1], [0], [0], [1], [0, 0, 1, 1], [], []>} : vector<32x96xbf16>, vector<96x384xbf16>, vector<32x384xf32> -> vector<32x384xf32>
    %123 = arith.addf %120, %122 : vector<32x384xf32>
    %c160_99 = arith.constant 160 : index
    %c0_100 = arith.constant 0 : index
    %124 = vector.load %arg7[%c160_99, %c0_100] : memref<288x96xbf16, #tpu.memory_space<vmem>>, vector<32x96xbf16>
    %cst_101 = arith.constant dense<0.000000e+00> : vector<32x384xf32>
    %125 = tpu.matmul %124, %103, %cst_101 {dimension_numbers = #tpu.dot_dimension_numbers<[1], [0], [0], [1], [0, 0, 1, 1], [], []>} : vector<32x96xbf16>, vector<96x384xbf16>, vector<32x384xf32> -> vector<32x384xf32>
    %c383_i32_102 = arith.constant 383 : i32
    %126 = tpu.dynamic_rotate %125 by %c383_i32_102 dim 1 : vector<32x384xf32>, i32 -> vector<32x384xf32>
    %127 = arith.addf %123, %126 : vector<32x384xf32>
    %c192_103 = arith.constant 192 : index
    %c0_104 = arith.constant 0 : index
    %128 = vector.load %arg7[%c192_103, %c0_104] : memref<288x96xbf16, #tpu.memory_space<vmem>>, vector<32x96xbf16>
    %cst_105 = arith.constant dense<0.000000e+00> : vector<32x384xf32>
    %129 = tpu.matmul %128, %103, %cst_105 {dimension_numbers = #tpu.dot_dimension_numbers<[1], [0], [0], [1], [0, 0, 1, 1], [], []>} : vector<32x96xbf16>, vector<96x384xbf16>, vector<32x384xf32> -> vector<32x384xf32>
    %c367_i32_106 = arith.constant 367 : i32
    %130 = tpu.dynamic_rotate %129 by %c367_i32_106 dim 1 : vector<32x384xf32>, i32 -> vector<32x384xf32>
    %131 = arith.addf %127, %130 : vector<32x384xf32>
    %c224_107 = arith.constant 224 : index
    %c0_108 = arith.constant 0 : index
    %132 = vector.load %arg7[%c224_107, %c0_108] : memref<288x96xbf16, #tpu.memory_space<vmem>>, vector<32x96xbf16>
    %cst_109 = arith.constant dense<0.000000e+00> : vector<32x384xf32>
    %133 = tpu.matmul %132, %103, %cst_109 {dimension_numbers = #tpu.dot_dimension_numbers<[1], [0], [0], [1], [0, 0, 1, 1], [], []>} : vector<32x96xbf16>, vector<96x384xbf16>, vector<32x384xf32> -> vector<32x384xf32>
    %c366_i32_110 = arith.constant 366 : i32
    %134 = tpu.dynamic_rotate %133 by %c366_i32_110 dim 1 : vector<32x384xf32>, i32 -> vector<32x384xf32>
    %135 = arith.addf %131, %134 : vector<32x384xf32>
    %c256_111 = arith.constant 256 : index
    %c0_112 = arith.constant 0 : index
    %136 = vector.load %arg7[%c256_111, %c0_112] : memref<288x96xbf16, #tpu.memory_space<vmem>>, vector<32x96xbf16>
    %cst_113 = arith.constant dense<0.000000e+00> : vector<32x384xf32>
    %137 = tpu.matmul %136, %103, %cst_113 {dimension_numbers = #tpu.dot_dimension_numbers<[1], [0], [0], [1], [0, 0, 1, 1], [], []>} : vector<32x96xbf16>, vector<96x384xbf16>, vector<32x384xf32> -> vector<32x384xf32>
    %c365_i32_114 = arith.constant 365 : i32
    %138 = tpu.dynamic_rotate %137 by %c365_i32_114 dim 1 : vector<32x384xf32>, i32 -> vector<32x384xf32>
    %139 = arith.addf %135, %138 : vector<32x384xf32>
    %c0_115 = arith.constant 0 : index
    %c0_116 = arith.constant 0 : index
    %140 = vector.load %arg8[%c0_115, %c0_116] : memref<32x1xf32, #tpu.memory_space<vmem>>, vector<32x1xf32>
    %141 = vector.broadcast %140 : vector<32x1xf32> to vector<32x384xf32>
    %142 = arith.addf %139, %141 : vector<32x384xf32>
    %cst_117 = arith.constant 0.000000e+00 : f32
    %143 = vector.broadcast %cst_117 : f32 to vector<32x384xf32>
    %144 = arith.cmpf oge, %142, %143 : vector<32x384xf32>
    %cst_118 = arith.constant 0.00999999977 : f32
    %145 = vector.broadcast %cst_118 : f32 to vector<32x384xf32>
    %146 = arith.mulf %145, %142 : vector<32x384xf32>
    %147 = arith.select %144, %142, %146 : vector<32x384xi1>, vector<32x384xf32>
    %148 = vector.broadcast %3 : vector<1x384xf32> to vector<32x384xf32>
    %149 = arith.mulf %147, %148 : vector<32x384xf32>
    %c96_119 = arith.constant 96 : index
    %c0_120 = arith.constant 0 : index
    %150 = vector.load %arg14[%c96_119, %c0_120] : memref<160x384xf32, #tpu.memory_space<vmem>>, vector<32x384xf32>
    tpu.vector_store %arg14[%c96_119, %c0_120], %149 {strides = array<i32>} : memref<160x384xf32, #tpu.memory_space<vmem>>, vector<32x384xf32>,
    %c0_121 = arith.constant 0 : index
    %c0_122 = arith.constant 0 : index
    %151 = vector.load %arg14[%c0_121, %c0_122] : memref<160x384xf32, #tpu.memory_space<vmem>>, vector<128x384xf32>
    %152 = arith.truncf %151 : vector<128x384xf32> to vector<128x384xbf16>
    %cst_123 = arith.constant 0.000000e+00 : f32
    %153 = vector.broadcast %cst_123 : f32 to vector<32x384xf32>
    %c0_124 = arith.constant 0 : index
    %c0_125 = arith.constant 0 : index
    %154 = vector.load %arg9[%c0_124, %c0_125] : memref<288x128xbf16, #tpu.memory_space<vmem>>, vector<32x128xbf16>
    %cst_126 = arith.constant dense<0.000000e+00> : vector<32x384xf32>
    %155 = tpu.matmul %154, %152, %cst_126 {dimension_numbers = #tpu.dot_dimension_numbers<[1], [0], [0], [1], [0, 0, 1, 1], [], []>} : vector<32x128xbf16>, vector<128x384xbf16>, vector<32x384xf32> -> vector<32x384xf32>
    %c19_i32_127 = arith.constant 19 : i32
    %156 = tpu.dynamic_rotate %155 by %c19_i32_127 dim 1 : vector<32x384xf32>, i32 -> vector<32x384xf32>
    %157 = arith.addf %153, %156 : vector<32x384xf32>
    %c32_128 = arith.constant 32 : index
    %c0_129 = arith.constant 0 : index
    %158 = vector.load %arg9[%c32_128, %c0_129] : memref<288x128xbf16, #tpu.memory_space<vmem>>, vector<32x128xbf16>
    %cst_130 = arith.constant dense<0.000000e+00> : vector<32x384xf32>
    %159 = tpu.matmul %158, %152, %cst_130 {dimension_numbers = #tpu.dot_dimension_numbers<[1], [0], [0], [1], [0, 0, 1, 1], [], []>} : vector<32x128xbf16>, vector<128x384xbf16>, vector<32x384xf32> -> vector<32x384xf32>
    %c18_i32_131 = arith.constant 18 : i32
    %160 = tpu.dynamic_rotate %159 by %c18_i32_131 dim 1 : vector<32x384xf32>, i32 -> vector<32x384xf32>
    %161 = arith.addf %157, %160 : vector<32x384xf32>
    %c64_132 = arith.constant 64 : index
    %c0_133 = arith.constant 0 : index
    %162 = vector.load %arg9[%c64_132, %c0_133] : memref<288x128xbf16, #tpu.memory_space<vmem>>, vector<32x128xbf16>
    %cst_134 = arith.constant dense<0.000000e+00> : vector<32x384xf32>
    %163 = tpu.matmul %162, %152, %cst_134 {dimension_numbers = #tpu.dot_dimension_numbers<[1], [0], [0], [1], [0, 0, 1, 1], [], []>} : vector<32x128xbf16>, vector<128x384xbf16>, vector<32x384xf32> -> vector<32x384xf32>
    %c17_i32_135 = arith.constant 17 : i32
    %164 = tpu.dynamic_rotate %163 by %c17_i32_135 dim 1 : vector<32x384xf32>, i32 -> vector<32x384xf32>
    %165 = arith.addf %161, %164 : vector<32x384xf32>
    %c96_136 = arith.constant 96 : index
    %c0_137 = arith.constant 0 : index
    %166 = vector.load %arg9[%c96_136, %c0_137] : memref<288x128xbf16, #tpu.memory_space<vmem>>, vector<32x128xbf16>
    %cst_138 = arith.constant dense<0.000000e+00> : vector<32x384xf32>
    %167 = tpu.matmul %166, %152, %cst_138 {dimension_numbers = #tpu.dot_dimension_numbers<[1], [0], [0], [1], [0, 0, 1, 1], [], []>} : vector<32x128xbf16>, vector<128x384xbf16>, vector<32x384xf32> -> vector<32x384xf32>
    %c1_i32_139 = arith.constant 1 : i32
    %168 = tpu.dynamic_rotate %167 by %c1_i32_139 dim 1 : vector<32x384xf32>, i32 -> vector<32x384xf32>
    %169 = arith.addf %165, %168 : vector<32x384xf32>
    %c128_140 = arith.constant 128 : index
    %c0_141 = arith.constant 0 : index
    %170 = vector.load %arg9[%c128_140, %c0_141] : memref<288x128xbf16, #tpu.memory_space<vmem>>, vector<32x128xbf16>
    %cst_142 = arith.constant dense<0.000000e+00> : vector<32x384xf32>
    %171 = tpu.matmul %170, %152, %cst_142 {dimension_numbers = #tpu.dot_dimension_numbers<[1], [0], [0], [1], [0, 0, 1, 1], [], []>} : vector<32x128xbf16>, vector<128x384xbf16>, vector<32x384xf32> -> vector<32x384xf32>
    %172 = arith.addf %169, %171 : vector<32x384xf32>
    %c160_143 = arith.constant 160 : index
    %c0_144 = arith.constant 0 : index
    %173 = vector.load %arg9[%c160_143, %c0_144] : memref<288x128xbf16, #tpu.memory_space<vmem>>, vector<32x128xbf16>
    %cst_145 = arith.constant dense<0.000000e+00> : vector<32x384xf32>
    %174 = tpu.matmul %173, %152, %cst_145 {dimension_numbers = #tpu.dot_dimension_numbers<[1], [0], [0], [1], [0, 0, 1, 1], [], []>} : vector<32x128xbf16>, vector<128x384xbf16>, vector<32x384xf32> -> vector<32x384xf32>
    %c383_i32_146 = arith.constant 383 : i32
    %175 = tpu.dynamic_rotate %174 by %c383_i32_146 dim 1 : vector<32x384xf32>, i32 -> vector<32x384xf32>
    %176 = arith.addf %172, %175 : vector<32x384xf32>
    %c192_147 = arith.constant 192 : index
    %c0_148 = arith.constant 0 : index
    %177 = vector.load %arg9[%c192_147, %c0_148] : memref<288x128xbf16, #tpu.memory_space<vmem>>, vector<32x128xbf16>
    %cst_149 = arith.constant dense<0.000000e+00> : vector<32x384xf32>
    %178 = tpu.matmul %177, %152, %cst_149 {dimension_numbers = #tpu.dot_dimension_numbers<[1], [0], [0], [1], [0, 0, 1, 1], [], []>} : vector<32x128xbf16>, vector<128x384xbf16>, vector<32x384xf32> -> vector<32x384xf32>
    %c367_i32_150 = arith.constant 367 : i32
    %179 = tpu.dynamic_rotate %178 by %c367_i32_150 dim 1 : vector<32x384xf32>, i32 -> vector<32x384xf32>
    %180 = arith.addf %176, %179 : vector<32x384xf32>
    %c224_151 = arith.constant 224 : index
    %c0_152 = arith.constant 0 : index
    %181 = vector.load %arg9[%c224_151, %c0_152] : memref<288x128xbf16, #tpu.memory_space<vmem>>, vector<32x128xbf16>
    %cst_153 = arith.constant dense<0.000000e+00> : vector<32x384xf32>
    %182 = tpu.matmul %181, %152, %cst_153 {dimension_numbers = #tpu.dot_dimension_numbers<[1], [0], [0], [1], [0, 0, 1, 1], [], []>} : vector<32x128xbf16>, vector<128x384xbf16>, vector<32x384xf32> -> vector<32x384xf32>
    %c366_i32_154 = arith.constant 366 : i32
    %183 = tpu.dynamic_rotate %182 by %c366_i32_154 dim 1 : vector<32x384xf32>, i32 -> vector<32x384xf32>
    %184 = arith.addf %180, %183 : vector<32x384xf32>
    %c256_155 = arith.constant 256 : index
    %c0_156 = arith.constant 0 : index
    %185 = vector.load %arg9[%c256_155, %c0_156] : memref<288x128xbf16, #tpu.memory_space<vmem>>, vector<32x128xbf16>
    %cst_157 = arith.constant dense<0.000000e+00> : vector<32x384xf32>
    %186 = tpu.matmul %185, %152, %cst_157 {dimension_numbers = #tpu.dot_dimension_numbers<[1], [0], [0], [1], [0, 0, 1, 1], [], []>} : vector<32x128xbf16>, vector<128x384xbf16>, vector<32x384xf32> -> vector<32x384xf32>
    %c365_i32_158 = arith.constant 365 : i32
    %187 = tpu.dynamic_rotate %186 by %c365_i32_158 dim 1 : vector<32x384xf32>, i32 -> vector<32x384xf32>
    %188 = arith.addf %184, %187 : vector<32x384xf32>
    %c0_159 = arith.constant 0 : index
    %c0_160 = arith.constant 0 : index
    %189 = vector.load %arg10[%c0_159, %c0_160] : memref<32x1xf32, #tpu.memory_space<vmem>>, vector<32x1xf32>
    %190 = vector.broadcast %189 : vector<32x1xf32> to vector<32x384xf32>
    %191 = arith.addf %188, %190 : vector<32x384xf32>
    %cst_161 = arith.constant 0.000000e+00 : f32
    %192 = vector.broadcast %cst_161 : f32 to vector<32x384xf32>
    %193 = arith.cmpf oge, %191, %192 : vector<32x384xf32>
    %cst_162 = arith.constant 0.00999999977 : f32
    %194 = vector.broadcast %cst_162 : f32 to vector<32x384xf32>
    %195 = arith.mulf %194, %191 : vector<32x384xf32>
    %196 = arith.select %193, %191, %195 : vector<32x384xi1>, vector<32x384xf32>
    %197 = vector.broadcast %3 : vector<1x384xf32> to vector<32x384xf32>
    %198 = arith.mulf %196, %197 : vector<32x384xf32>
    %c128_163 = arith.constant 128 : index
    %c0_164 = arith.constant 0 : index
    %199 = vector.load %arg14[%c128_163, %c0_164] : memref<160x384xf32, #tpu.memory_space<vmem>>, vector<32x384xf32>
    tpu.vector_store %arg14[%c128_163, %c0_164], %198 {strides = array<i32>} : memref<160x384xf32, #tpu.memory_space<vmem>>, vector<32x384xf32>,
    %c0_165 = arith.constant 0 : index
    %c0_166 = arith.constant 0 : index
    %200 = vector.load %arg14[%c0_165, %c0_166] : memref<160x384xf32, #tpu.memory_space<vmem>>, vector<160x384xf32>
    %201 = arith.truncf %200 : vector<160x384xf32> to vector<160x384xbf16>
    %cst_167 = arith.constant 0.000000e+00 : f32
    %202 = vector.broadcast %cst_167 : f32 to vector<32x384xf32>
    %c0_168 = arith.constant 0 : index
    %c0_169 = arith.constant 0 : index
    %203 = vector.load %arg11[%c0_168, %c0_169] : memref<288x160xbf16, #tpu.memory_space<vmem>>, vector<32x160xbf16>
    %cst_170 = arith.constant dense<0.000000e+00> : vector<32x384xf32>
    %204 = tpu.matmul %203, %201, %cst_170 {dimension_numbers = #tpu.dot_dimension_numbers<[1], [0], [0], [1], [0, 0, 1, 1], [], []>} : vector<32x160xbf16>, vector<160x384xbf16>, vector<32x384xf32> -> vector<32x384xf32>
    %c19_i32_171 = arith.constant 19 : i32
    %205 = tpu.dynamic_rotate %204 by %c19_i32_171 dim 1 : vector<32x384xf32>, i32 -> vector<32x384xf32>
    %206 = arith.addf %202, %205 : vector<32x384xf32>
    %c32_172 = arith.constant 32 : index
    %c0_173 = arith.constant 0 : index
    %207 = vector.load %arg11[%c32_172, %c0_173] : memref<288x160xbf16, #tpu.memory_space<vmem>>, vector<32x160xbf16>
    %cst_174 = arith.constant dense<0.000000e+00> : vector<32x384xf32>
    %208 = tpu.matmul %207, %201, %cst_174 {dimension_numbers = #tpu.dot_dimension_numbers<[1], [0], [0], [1], [0, 0, 1, 1], [], []>} : vector<32x160xbf16>, vector<160x384xbf16>, vector<32x384xf32> -> vector<32x384xf32>
    %c18_i32_175 = arith.constant 18 : i32
    %209 = tpu.dynamic_rotate %208 by %c18_i32_175 dim 1 : vector<32x384xf32>, i32 -> vector<32x384xf32>
    %210 = arith.addf %206, %209 : vector<32x384xf32>
    %c64_176 = arith.constant 64 : index
    %c0_177 = arith.constant 0 : index
    %211 = vector.load %arg11[%c64_176, %c0_177] : memref<288x160xbf16, #tpu.memory_space<vmem>>, vector<32x160xbf16>
    %cst_178 = arith.constant dense<0.000000e+00> : vector<32x384xf32>
    %212 = tpu.matmul %211, %201, %cst_178 {dimension_numbers = #tpu.dot_dimension_numbers<[1], [0], [0], [1], [0, 0, 1, 1], [], []>} : vector<32x160xbf16>, vector<160x384xbf16>, vector<32x384xf32> -> vector<32x384xf32>
    %c17_i32_179 = arith.constant 17 : i32
    %213 = tpu.dynamic_rotate %212 by %c17_i32_179 dim 1 : vector<32x384xf32>, i32 -> vector<32x384xf32>
    %214 = arith.addf %210, %213 : vector<32x384xf32>
    %c96_180 = arith.constant 96 : index
    %c0_181 = arith.constant 0 : index
    %215 = vector.load %arg11[%c96_180, %c0_181] : memref<288x160xbf16, #tpu.memory_space<vmem>>, vector<32x160xbf16>
    %cst_182 = arith.constant dense<0.000000e+00> : vector<32x384xf32>
    %216 = tpu.matmul %215, %201, %cst_182 {dimension_numbers = #tpu.dot_dimension_numbers<[1], [0], [0], [1], [0, 0, 1, 1], [], []>} : vector<32x160xbf16>, vector<160x384xbf16>, vector<32x384xf32> -> vector<32x384xf32>
    %c1_i32_183 = arith.constant 1 : i32
    %217 = tpu.dynamic_rotate %216 by %c1_i32_183 dim 1 : vector<32x384xf32>, i32 -> vector<32x384xf32>
    %218 = arith.addf %214, %217 : vector<32x384xf32>
    %c128_184 = arith.constant 128 : index
    %c0_185 = arith.constant 0 : index
    %219 = vector.load %arg11[%c128_184, %c0_185] : memref<288x160xbf16, #tpu.memory_space<vmem>>, vector<32x160xbf16>
    %cst_186 = arith.constant dense<0.000000e+00> : vector<32x384xf32>
    %220 = tpu.matmul %219, %201, %cst_186 {dimension_numbers = #tpu.dot_dimension_numbers<[1], [0], [0], [1], [0, 0, 1, 1], [], []>} : vector<32x160xbf16>, vector<160x384xbf16>, vector<32x384xf32> -> vector<32x384xf32>
    %221 = arith.addf %218, %220 : vector<32x384xf32>
    %c160_187 = arith.constant 160 : index
    %c0_188 = arith.constant 0 : index
    %222 = vector.load %arg11[%c160_187, %c0_188] : memref<288x160xbf16, #tpu.memory_space<vmem>>, vector<32x160xbf16>
    %cst_189 = arith.constant dense<0.000000e+00> : vector<32x384xf32>
    %223 = tpu.matmul %222, %201, %cst_189 {dimension_numbers = #tpu.dot_dimension_numbers<[1], [0], [0], [1], [0, 0, 1, 1], [], []>} : vector<32x160xbf16>, vector<160x384xbf16>, vector<32x384xf32> -> vector<32x384xf32>
    %c383_i32_190 = arith.constant 383 : i32
    %224 = tpu.dynamic_rotate %223 by %c383_i32_190 dim 1 : vector<32x384xf32>, i32 -> vector<32x384xf32>
    %225 = arith.addf %221, %224 : vector<32x384xf32>
    %c192_191 = arith.constant 192 : index
    %c0_192 = arith.constant 0 : index
    %226 = vector.load %arg11[%c192_191, %c0_192] : memref<288x160xbf16, #tpu.memory_space<vmem>>, vector<32x160xbf16>
    %cst_193 = arith.constant dense<0.000000e+00> : vector<32x384xf32>
    %227 = tpu.matmul %226, %201, %cst_193 {dimension_numbers = #tpu.dot_dimension_numbers<[1], [0], [0], [1], [0, 0, 1, 1], [], []>} : vector<32x160xbf16>, vector<160x384xbf16>, vector<32x384xf32> -> vector<32x384xf32>
    %c367_i32_194 = arith.constant 367 : i32
    %228 = tpu.dynamic_rotate %227 by %c367_i32_194 dim 1 : vector<32x384xf32>, i32 -> vector<32x384xf32>
    %229 = arith.addf %225, %228 : vector<32x384xf32>
    %c224_195 = arith.constant 224 : index
    %c0_196 = arith.constant 0 : index
    %230 = vector.load %arg11[%c224_195, %c0_196] : memref<288x160xbf16, #tpu.memory_space<vmem>>, vector<32x160xbf16>
    %cst_197 = arith.constant dense<0.000000e+00> : vector<32x384xf32>
    %231 = tpu.matmul %230, %201, %cst_197 {dimension_numbers = #tpu.dot_dimension_numbers<[1], [0], [0], [1], [0, 0, 1, 1], [], []>} : vector<32x160xbf16>, vector<160x384xbf16>, vector<32x384xf32> -> vector<32x384xf32>
    %c366_i32_198 = arith.constant 366 : i32
    %232 = tpu.dynamic_rotate %231 by %c366_i32_198 dim 1 : vector<32x384xf32>, i32 -> vector<32x384xf32>
    %233 = arith.addf %229, %232 : vector<32x384xf32>
    %c256_199 = arith.constant 256 : index
    %c0_200 = arith.constant 0 : index
    %234 = vector.load %arg11[%c256_199, %c0_200] : memref<288x160xbf16, #tpu.memory_space<vmem>>, vector<32x160xbf16>
    %cst_201 = arith.constant dense<0.000000e+00> : vector<32x384xf32>
    %235 = tpu.matmul %234, %201, %cst_201 {dimension_numbers = #tpu.dot_dimension_numbers<[1], [0], [0], [1], [0, 0, 1, 1], [], []>} : vector<32x160xbf16>, vector<160x384xbf16>, vector<32x384xf32> -> vector<32x384xf32>
    %c365_i32_202 = arith.constant 365 : i32
    %236 = tpu.dynamic_rotate %235 by %c365_i32_202 dim 1 : vector<32x384xf32>, i32 -> vector<32x384xf32>
    %237 = arith.addf %233, %236 : vector<32x384xf32>
    %c0_203 = arith.constant 0 : index
    %c0_204 = arith.constant 0 : index
    %238 = vector.load %arg12[%c0_203, %c0_204] : memref<32x1xf32, #tpu.memory_space<vmem>>, vector<32x1xf32>
    %239 = vector.broadcast %238 : vector<32x1xf32> to vector<32x384xf32>
    %240 = arith.addf %237, %239 : vector<32x384xf32>
    %cst_205 = arith.constant 0.000000e+00 : f32
    %241 = vector.broadcast %cst_205 : f32 to vector<32x384xf32>
    %242 = arith.cmpf oge, %240, %241 : vector<32x384xf32>
    %cst_206 = arith.constant 0.00999999977 : f32
    %243 = vector.broadcast %cst_206 : f32 to vector<32x384xf32>
    %244 = arith.mulf %243, %240 : vector<32x384xf32>
    %245 = arith.select %242, %240, %244 : vector<32x384xi1>, vector<32x384xf32>
    %cst_207 = arith.constant 2.000000e-01 : f32
    %246 = vector.broadcast %cst_207 : f32 to vector<32x384xf32>
    %247 = arith.mulf %245, %246 : vector<32x384xf32>
    %c0_208 = arith.constant 0 : index
    %c0_209 = arith.constant 0 : index
    %248 = vector.load %arg14[%c0_208, %c0_209] : memref<160x384xf32, #tpu.memory_space<vmem>>, vector<32x384xf32>
    %249 = arith.addf %247, %248 : vector<32x384xf32>
    %c0_210 = arith.constant 0 : index
    %c0_211 = arith.constant 0 : index
    %c0_212 = arith.constant 0 : index
    %250 = vector.load %arg13[%c0_210, %c0_211, %c0_212] : memref<1x32x384xf32, #tpu.memory_space<vmem>>, vector<1x32x384xf32>
    %251 = vector.shape_cast %250 : vector<1x32x384xf32> to vector<32x384xf32>
    %252 = vector.shape_cast %249 : vector<32x384xf32> to vector<1x32x384xf32>
    tpu.vector_store %arg13[%c0_210, %c0_211, %c0_212], %252 {strides = array<i32>} : memref<1x32x384xf32, #tpu.memory_space<vmem>>, vector<1x32x384xf32>,
    return
  }
  func.func @transform_0(%arg0: i32) -> (i32, i32, i32) {
    %c0_i32 = arith.constant 0 : i32
    %c0_i32_0 = arith.constant 0 : i32
    %c0_i32_1 = arith.constant 0 : i32
    return %arg0, %c0_i32, %c0_i32_0 : i32, i32, i32
  }
  func.func @transform_1(%arg0: i32) -> (i32, i32) {
    %c0_i32 = arith.constant 0 : i32
    %c0_i32_0 = arith.constant 0 : i32
    %c0_i32_1 = arith.constant 0 : i32
    return %c0_i32, %c0_i32_0 : i32, i32
  }
  func.func @transform_2(%arg0: i32) -> (i32, i32) {
    %c0_i32 = arith.constant 0 : i32
    %c0_i32_0 = arith.constant 0 : i32
    %c0_i32_1 = arith.constant 0 : i32
    return %c0_i32, %c0_i32_0 : i32, i32
  }
  func.func @transform_3(%arg0: i32) -> (i32, i32) {
    %c0_i32 = arith.constant 0 : i32
    %c0_i32_0 = arith.constant 0 : i32
    %c0_i32_1 = arith.constant 0 : i32
    return %c0_i32, %c0_i32_0 : i32, i32
  }
  func.func @transform_4(%arg0: i32) -> (i32, i32) {
    %c0_i32 = arith.constant 0 : i32
    %c0_i32_0 = arith.constant 0 : i32
    %c0_i32_1 = arith.constant 0 : i32
    return %c0_i32, %c0_i32_0 : i32, i32
  }
  func.func @transform_5(%arg0: i32) -> (i32, i32) {
    %c0_i32 = arith.constant 0 : i32
    %c0_i32_0 = arith.constant 0 : i32
    %c0_i32_1 = arith.constant 0 : i32
    return %c0_i32, %c0_i32_0 : i32, i32
  }
  func.func @transform_6(%arg0: i32) -> (i32, i32) {
    %c0_i32 = arith.constant 0 : i32
    %c0_i32_0 = arith.constant 0 : i32
    %c0_i32_1 = arith.constant 0 : i32
    return %c0_i32, %c0_i32_0 : i32, i32
  }
  func.func @transform_7(%arg0: i32) -> (i32, i32) {
    %c0_i32 = arith.constant 0 : i32
    %c0_i32_0 = arith.constant 0 : i32
    %c0_i32_1 = arith.constant 0 : i32
    return %c0_i32, %c0_i32_0 : i32, i32
  }
  func.func @transform_8(%arg0: i32) -> (i32, i32) {
    %c0_i32 = arith.constant 0 : i32
    %c0_i32_0 = arith.constant 0 : i32
    %c0_i32_1 = arith.constant 0 : i32
    return %c0_i32, %c0_i32_0 : i32, i32
  }
  func.func @transform_9(%arg0: i32) -> (i32, i32) {
    %c0_i32 = arith.constant 0 : i32
    %c0_i32_0 = arith.constant 0 : i32
    %c0_i32_1 = arith.constant 0 : i32
    return %c0_i32, %c0_i32_0 : i32, i32
  }
  func.func @transform_10(%arg0: i32) -> (i32, i32) {
    %c0_i32 = arith.constant 0 : i32
    %c0_i32_0 = arith.constant 0 : i32
    %c0_i32_1 = arith.constant 0 : i32
    return %c0_i32, %c0_i32_0 : i32, i32
  }
  func.func @transform_11(%arg0: i32) -> (i32, i32) {
    %c0_i32 = arith.constant 0 : i32
    %c0_i32_0 = arith.constant 0 : i32
    %c0_i32_1 = arith.constant 0 : i32
    return %c0_i32, %c0_i32_0 : i32, i32
  }
  func.func @transform_12(%arg0: i32) -> (i32, i32, i32) {
    %c0_i32 = arith.constant 0 : i32
    %c0_i32_0 = arith.constant 0 : i32
    %c0_i32_1 = arith.constant 0 : i32
    return %arg0, %c0_i32, %c0_i32_0 : i32, i32, i32
  }
}

</mosaic_0001>

<llo_original>
// kernel: tpu_custom_call.1
$region0: #{tpu_custom_call.1}
  #allocation0 [shape = 'u32[]', space=smem, size = 0x4, offset = 0x4, fixed_abs, tag = 'smem constant byte address 0x4 - core index']
  #allocation1 [shape = 'u32[144,128]{1,0:T(1,128)}', space=vmem, size = 0x12000, scoped, tag = 'internal scratch']
  #allocation2 [shape = 'f32[160,384]{1,0:T(8,128)}', space=vmem, size = 0x3c000, scoped, tag = 'scratch operand']
  %s0 = inlined_call_operand.vmem [shape: f32[2,32,384], index: 0, kind: input, shape index: {}]
  %s1 = inlined_call_operand.vmem [shape: f32[1,384], index: 1, kind: input, shape index: {}]
  %s2 = inlined_call_operand.vmem [shape: bf16[288,32], index: 2, kind: input, shape index: {}]
  %s3 = inlined_call_operand.vmem [shape: f32[32,1], index: 3, kind: input, shape index: {}]
  %s4 = inlined_call_operand.vmem [shape: bf16[288,64], index: 4, kind: input, shape index: {}]
  %s5 = inlined_call_operand.vmem [shape: f32[32,1], index: 5, kind: input, shape index: {}]
  %s6 = inlined_call_operand.vmem [shape: bf16[288,96], index: 6, kind: input, shape index: {}]
  %s7 = inlined_call_operand.vmem [shape: f32[32,1], index: 7, kind: input, shape index: {}]
  %s8 = inlined_call_operand.vmem [shape: bf16[288,128], index: 8, kind: input, shape index: {}]
  %s9 = inlined_call_operand.vmem [shape: f32[32,1], index: 9, kind: input, shape index: {}]
  %s10 = inlined_call_operand.vmem [shape: bf16[288,160], index: 10, kind: input, shape index: {}]
  %s11 = inlined_call_operand.vmem [shape: f32[32,1], index: 11, kind: input, shape index: {}]
  %s12 = inlined_call_operand.hbm [shape: f32[2,32,384], index: 12, kind: output, shape index: {}]
  %s13 = sld [smem:[#allocation0]]
  $region81: #{tpu_custom_call.1} parent=0
    _
  %s15 = ssub.s32 1, %s13
  %s16 = scalar_select 0, %s15, %s13
  $region1: #{tpu_custom_call.1} parent=0
    #allocation3 [shape = 'u8[98304]{0}', space=vmem, size = 0x18000, scoped, tag = 'output window, operand 0']
    #allocation4 [shape = 's32[2]{0}', space=sflag, size = 0x8, scoped, tag = 'scoped memory for tpu_custom_call.1']
    %17 = vsyncpa [#allocation4], 0
    %s18 = scalar_lea.sflag [#allocation4], 1
    %19 = vsyncpa %s18, 0
    loop: start=0, step=1, limit=4
    $region2: #{tpu_custom_call.1} parent=1 // loop_pre_header
      _
    $region3: #{tpu_custom_call.1} parent=1 // loop_header
      %s21 = sphi 0, %s25
      %p22 = scmp.ge.s32.totalorder %s21, 4
      %s31 = sphi 0, %s33
      %s34 = sphi 0, %s31
      %s35 = sphi 0, %s34
      %s51 = sphi 0, %s35
      %s55 = sphi 0, %s55
      %s57 = sphi 0, %s55
      %s58 = sphi 0, %s57
      %s72 = sphi 0, %s58
      %s76 = sphi 0, %s76
      %s78 = sphi 0, %s76
      %s79 = sphi 0, %s78
      %s93 = sphi 0, %s79
      %s97 = sphi 0, %s97
      %s99 = sphi 0, %s97
      %s100 = sphi 0, %s99
      %s114 = sphi 0, %s100
      %s118 = sphi 0, %s118
      %s120 = sphi 0, %s118
      %s121 = sphi 0, %s120
      %s135 = sphi 0, %s121
      %s139 = sphi 0, %s139
      %s141 = sphi 0, %s139
      %s142 = sphi 0, %s141
      %s156 = sphi 0, %s142
      %s160 = sphi 0, %s160
      %s162 = sphi 0, %s160
      %s163 = sphi 0, %s162
      %s177 = sphi 0, %s163
      %s181 = sphi 0, %s181
      %s183 = sphi 0, %s181
      %s184 = sphi 0, %s183
      %s198 = sphi 0, %s184
      %s202 = sphi 0, %s202
      %s204 = sphi 0, %s202
      %s205 = sphi 0, %s204
      %s219 = sphi 0, %s205
      %s223 = sphi 0, %s223
      %s225 = sphi 0, %s223
      %s226 = sphi 0, %s225
      %s240 = sphi 0, %s226
      %s244 = sphi 0, %s244
      %s246 = sphi 0, %s244
      %s247 = sphi 0, %s246
      %s261 = sphi 0, %s247
      %s265 = sphi 0, %s265
      %s267 = sphi 0, %s265
      %s268 = sphi 0, %s267
      %s282 = sphi 0, %s268
      %s288 = sphi 0, %s290
      %s291 = sphi 0, %s288
      %s292 = sphi 0, %s291
      %s308 = sphi 0, %s292
    $region4: #{tpu_custom_call.1} parent=1 // loop_header_branch
      %24 = sbr.rel (%p22) target = $region8
    $region5: #{tpu_custom_call.1} parent=1 // loop_body
      %s26 = ssub.s32 %s21, 1
      %s27 = ssub.s32 %s21, 2
      %s28 = sadd.s32 %s21, 1
      %s29 = ssub.s32 %s21, %s28
      %p30 = scmp.eq.s32.totalorder %s29, 0
      %s32 = sadd.s32 %s31, 1
      %s33 = scalar_select %p30, %s31, %s32
      %p36 = pneg %p30
      %p37 = scmp.eq.s32.totalorder %s21, 1
      %p38 = por %p36, %p37
      %p39 = scmp.ne.s32.totalorder %s31, %s34
      %p40 = scmp.eq.s32.totalorder %s21, 0
      %p41 = por %p39, %p40
      %p42 = scmp.ne.s32.totalorder %s31, %s34
      %p43 = scmp.eq.s32.totalorder %s26, 1
      %p44 = por %p42, %p43
      %p45 = scmp.ne.s32.totalorder %s34, %s35
      %p46 = scmp.eq.s32.totalorder %s26, 0
      %p47 = por %p45, %p46
      %p48 = scmp.ne.s32.totalorder %s34, %s35
      %p49 = scmp.eq.s32.totalorder %s27, 1
      %p50 = por %p48, %p49
      %p52 = scmp.ne.s32.totalorder %s35, %s51
      %p53 = scmp.eq.s32.totalorder %s27, 0
      %p54 = por %p52, %p53
      %s56 = sadd.s32 %s55, 1
      %p59 = scmp.eq.s32.totalorder %s21, 1
      %p60 = scmp.ne.s32.totalorder %s55, %s57
      %p61 = scmp.eq.s32.totalorder %s21, 0
      %p62 = por %p60, %p61
      %p63 = scmp.ne.s32.totalorder %s55, %s57
      %p64 = scmp.eq.s32.totalorder %s26, 1
      %p65 = por %p63, %p64
      %p66 = scmp.ne.s32.totalorder %s57, %s58
      %p67 = scmp.eq.s32.totalorder %s26, 0
      %p68 = por %p66, %p67
      %p69 = scmp.ne.s32.totalorder %s57, %s58
      %p70 = scmp.eq.s32.totalorder %s27, 1
      %p71 = por %p69, %p70
      %p73 = scmp.ne.s32.totalorder %s58, %s72
      %p74 = scmp.eq.s32.totalorder %s27, 0
      %p75 = por %p73, %p74
      %s77 = sadd.s32 %s76, 1
      %p80 = scmp.eq.s32.totalorder %s21, 1
      %p81 = scmp.ne.s32.totalorder %s76, %s78
      %p82 = scmp.eq.s32.totalorder %s21, 0
      %p83 = por %p81, %p82
      %p84 = scmp.ne.s32.totalorder %s76, %s78
      %p85 = scmp.eq.s32.totalorder %s26, 1
      %p86 = por %p84, %p85
      %p87 = scmp.ne.s32.totalorder %s78, %s79
      %p88 = scmp.eq.s32.totalorder %s26, 0
      %p89 = por %p87, %p88
      %p90 = scmp.ne.s32.totalorder %s78, %s79
      %p91 = scmp.eq.s32.totalorder %s27, 1
      %p92 = por %p90, %p91
      %p94 = scmp.ne.s32.totalorder %s79, %s93
      %p95 = scmp.eq.s32.totalorder %s27, 0
      %p96 = por %p94, %p95
      %s98 = sadd.s32 %s97, 1
      %p101 = scmp.eq.s32.totalorder %s21, 1
      %p102 = scmp.ne.s32.totalorder %s97, %s99
      %p103 = scmp.eq.s32.totalorder %s21, 0
      %p104 = por %p102, %p103
      %p105 = scmp.ne.s32.totalorder %s97, %s99
      %p106 = scmp.eq.s32.totalorder %s26, 1
      %p107 = por %p105, %p106
      %p108 = scmp.ne.s32.totalorder %s99, %s100
      %p109 = scmp.eq.s32.totalorder %s26, 0
      %p110 = por %p108, %p109
      %p111 = scmp.ne.s32.totalorder %s99, %s100
      %p112 = scmp.eq.s32.totalorder %s27, 1
      %p113 = por %p111, %p112
      %p115 = scmp.ne.s32.totalorder %s100, %s114
      %p116 = scmp.eq.s32.totalorder %s27, 0
      %p117 = por %p115, %p116
      %s119 = sadd.s32 %s118, 1
      %p122 = scmp.eq.s32.totalorder %s21, 1
      %p123 = scmp.ne.s32.totalorder %s118, %s120
      %p124 = scmp.eq.s32.totalorder %s21, 0
      %p125 = por %p123, %p124
      %p126 = scmp.ne.s32.totalorder %s118, %s120
      %p127 = scmp.eq.s32.totalorder %s26, 1
      %p128 = por %p126, %p127
      %p129 = scmp.ne.s32.totalorder %s120, %s121
      %p130 = scmp.eq.s32.totalorder %s26, 0
      %p131 = por %p129, %p130
      %p132 = scmp.ne.s32.totalorder %s120, %s121
      %p133 = scmp.eq.s32.totalorder %s27, 1
      %p134 = por %p132, %p133
      %p136 = scmp.ne.s32.totalorder %s121, %s135
      %p137 = scmp.eq.s32.totalorder %s27, 0
      %p138 = por %p136, %p137
      %s140 = sadd.s32 %s139, 1
      %p143 = scmp.eq.s32.totalorder %s21, 1
      %p144 = scmp.ne.s32.totalorder %s139, %s141
      %p145 = scmp.eq.s32.totalorder %s21, 0
      %p146 = por %p144, %p145
      %p147 = scmp.ne.s32.totalorder %s139, %s141
      %p148 = scmp.eq.s32.totalorder %s26, 1
      %p149 = por %p147, %p148
      %p150 = scmp.ne.s32.totalorder %s141, %s142
      %p151 = scmp.eq.s32.totalorder %s26, 0
      %p152 = por %p150, %p151
      %p153 = scmp.ne.s32.totalorder %s141, %s142
      %p154 = scmp.eq.s32.totalorder %s27, 1
      %p155 = por %p153, %p154
      %p157 = scmp.ne.s32.totalorder %s142, %s156
      %p158 = scmp.eq.s32.totalorder %s27, 0
      %p159 = por %p157, %p158
      %s161 = sadd.s32 %s160, 1
      %p164 = scmp.eq.s32.totalorder %s21, 1
      %p165 = scmp.ne.s32.totalorder %s160, %s162
      %p166 = scmp.eq.s32.totalorder %s21, 0
      %p167 = por %p165, %p166
      %p168 = scmp.ne.s32.totalorder %s160, %s162
      %p169 = scmp.eq.s32.totalorder %s26, 1
      %p170 = por %p168, %p169
      %p171 = scmp.ne.s32.totalorder %s162, %s163
      %p172 = scmp.eq.s32.totalorder %s26, 0
      %p173 = por %p171, %p172
      %p174 = scmp.ne.s32.totalorder %s162, %s163
      %p175 = scmp.eq.s32.totalorder %s27, 1
      %p176 = por %p174, %p175
      %p178 = scmp.ne.s32.totalorder %s163, %s177
      %p179 = scmp.eq.s32.totalorder %s27, 0
      %p180 = por %p178, %p179
      %s182 = sadd.s32 %s181, 1
      %p185 = scmp.eq.s32.totalorder %s21, 1
      %p186 = scmp.ne.s32.totalorder %s181, %s183
      %p187 = scmp.eq.s32.totalorder %s21, 0
      %p188 = por %p186, %p187
      %p189 = scmp.ne.s32.totalorder %s181, %s183
      %p190 = scmp.eq.s32.totalorder %s26, 1
      %p191 = por %p189, %p190
      %p192 = scmp.ne.s32.totalorder %s183, %s184
      %p193 = scmp.eq.s32.totalorder %s26, 0
      %p194 = por %p192, %p193
      %p195 = scmp.ne.s32.totalorder %s183, %s184
      %p196 = scmp.eq.s32.totalorder %s27, 1
      %p197 = por %p195, %p196
      %p199 = scmp.ne.s32.totalorder %s184, %s198
      %p200 = scmp.eq.s32.totalorder %s27, 0
      %p201 = por %p199, %p200
      %s203 = sadd.s32 %s202, 1
      %p206 = scmp.eq.s32.totalorder %s21, 1
      %p207 = scmp.ne.s32.totalorder %s202, %s204
      %p208 = scmp.eq.s32.totalorder %s21, 0
      %p209 = por %p207, %p208
      %p210 = scmp.ne.s32.totalorder %s202, %s204
      %p211 = scmp.eq.s32.totalorder %s26, 1
      %p212 = por %p210, %p211
      %p213 = scmp.ne.s32.totalorder %s204, %s205
      %p214 = scmp.eq.s32.totalorder %s26, 0
      %p215 = por %p213, %p214
      %p216 = scmp.ne.s32.totalorder %s204, %s205
      %p217 = scmp.eq.s32.totalorder %s27, 1
      %p218 = por %p216, %p217
      %p220 = scmp.ne.s32.totalorder %s205, %s219
      %p221 = scmp.eq.s32.totalorder %s27, 0
      %p222 = por %p220, %p221
      %s224 = sadd.s32 %s223, 1
      %p227 = scmp.eq.s32.totalorder %s21, 1
      %p228 = scmp.ne.s32.totalorder %s223, %s225
      %p229 = scmp.eq.s32.totalorder %s21, 0
      %p230 = por %p228, %p229
      %p231 = scmp.ne.s32.totalorder %s223, %s225
      %p232 = scmp.eq.s32.totalorder %s26, 1
      %p233 = por %p231, %p232
      %p234 = scmp.ne.s32.totalorder %s225, %s226
      %p235 = scmp.eq.s32.totalorder %s26, 0
      %p236 = por %p234, %p235
      %p237 = scmp.ne.s32.totalorder %s225, %s226
      %p238 = scmp.eq.s32.totalorder %s27, 1
      %p239 = por %p237, %p238
      %p241 = scmp.ne.s32.totalorder %s226, %s240
      %p242 = scmp.eq.s32.totalorder %s27, 0
      %p243 = por %p241, %p242
      %s245 = sadd.s32 %s244, 1
      %p248 = scmp.eq.s32.totalorder %s21, 1
      %p249 = scmp.ne.s32.totalorder %s244, %s246
      %p250 = scmp.eq.s32.totalorder %s21, 0
      %p251 = por %p249, %p250
      %p252 = scmp.ne.s32.totalorder %s244, %s246
      %p253 = scmp.eq.s32.totalorder %s26, 1
      %p254 = por %p252, %p253
      %p255 = scmp.ne.s32.totalorder %s246, %s247
      %p256 = scmp.eq.s32.totalorder %s26, 0
      %p257 = por %p255, %p256
      %p258 = scmp.ne.s32.totalorder %s246, %s247
      %p259 = scmp.eq.s32.totalorder %s27, 1
      %p260 = por %p258, %p259
      %p262 = scmp.ne.s32.totalorder %s247, %s261
      %p263 = scmp.eq.s32.totalorder %s27, 0
      %p264 = por %p262, %p263
      %s266 = sadd.s32 %s265, 1
      %p269 = scmp.eq.s32.totalorder %s21, 1
      %p270 = scmp.ne.s32.totalorder %s265, %s267
      %p271 = scmp.eq.s32.totalorder %s21, 0
      %p272 = por %p270, %p271
      %p273 = scmp.ne.s32.totalorder %s265, %s267
      %p274 = scmp.eq.s32.totalorder %s26, 1
      %p275 = por %p273, %p274
      %p276 = scmp.ne.s32.totalorder %s267, %s268
      %p277 = scmp.eq.s32.totalorder %s26, 0
      %p278 = por %p276, %p277
      %p279 = scmp.ne.s32.totalorder %s267, %s268
      %p280 = scmp.eq.s32.totalorder %s27, 1
      %p281 = por %p279, %p280
      %p283 = scmp.ne.s32.totalorder %s268, %s282
      %p284 = scmp.eq.s32.totalorder %s27, 0
      %p285 = por %p283, %p284
      %s286 = ssub.s32 %s21, %s28
      %p287 = scmp.eq.s32.totalorder %s286, 0
      %s289 = sadd.s32 %s288, 1
      %s290 = scalar_select %p287, %s288, %s289
      %p293 = pneg %p287
      %p294 = scmp.eq.s32.totalorder %s21, 1
      %p295 = por %p293, %p294
      %p296 = scmp.ne.s32.totalorder %s288, %s291
      %p297 = scmp.eq.s32.totalorder %s21, 0
      %p298 = por %p296, %p297
      %p299 = scmp.ne.s32.totalorder %s288, %s291
      %p300 = scmp.eq.s32.totalorder %s26, 1
      %p301 = por %p299, %p300
      %p302 = scmp.ne.s32.totalorder %s291, %s292
      %p303 = scmp.eq.s32.totalorder %s26, 0
      %p304 = por %p302, %p303
      %p305 = scmp.ne.s32.totalorder %s291, %s292
      %p306 = scmp.eq.s32.totalorder %s27, 1
      %p307 = por %p305, %p306
      %p309 = scmp.ne.s32.totalorder %s292, %s308
      %p310 = scmp.eq.s32.totalorder %s27, 0
      %p311 = por %p309, %p310
      %p312 = scmp.le.s32.totalorder 1, %s21
      %p313 = scmp.lt.s32.totalorder %s21, 3
      %p314 = pnand %p312, %p313
      %p315 = pneg %p314
      // Predicated region
      $region9: #{tpu_custom_call.1} parent=5 // pred_check
        _
      $region10: #{tpu_custom_call.1} parent=5 // pred_check_branch
        %317 = sbr.rel (%p314) target = $region12
      $region11: #{tpu_custom_call.1} parent=5 // pred_region
        %s318 = ssub.s32 %s21, 1
        // Predicated region
        $region13: #{tpu_custom_call.1} parent=11 // pred_check
          %p319 = pneg %p68
        $region14: #{tpu_custom_call.1} parent=11 // pred_check_branch
          %321 = sbr.rel (%p319) target = $region16
        $region15: #{tpu_custom_call.1} parent=11 // pred_region
          _
        $region16: #{tpu_custom_call.1} parent=11 // pred_fallthru
          _
        // Predicated region
        $region17: #{tpu_custom_call.1} parent=11 // pred_check
          %p322 = pneg %p89
        $region18: #{tpu_custom_call.1} parent=11 // pred_check_branch
          %324 = sbr.rel (%p322) target = $region20
        $region19: #{tpu_custom_call.1} parent=11 // pred_region
          _
        $region20: #{tpu_custom_call.1} parent=11 // pred_fallthru
          _
        // Predicated region
        $region21: #{tpu_custom_call.1} parent=11 // pred_check
          %p325 = pneg %p110
        $region22: #{tpu_custom_call.1} parent=11 // pred_check_branch
          %327 = sbr.rel (%p325) target = $region24
        $region23: #{tpu_custom_call.1} parent=11 // pred_region
          _
        $region24: #{tpu_custom_call.1} parent=11 // pred_fallthru
          _
        // Predicated region
        $region25: #{tpu_custom_call.1} parent=11 // pred_check
          %p328 = pneg %p131
        $region26: #{tpu_custom_call.1} parent=11 // pred_check_branch
          %330 = sbr.rel (%p328) target = $region28
        $region27: #{tpu_custom_call.1} parent=11 // pred_region
          _
        $region28: #{tpu_custom_call.1} parent=11 // pred_fallthru
          _
        // Predicated region
        $region29: #{tpu_custom_call.1} parent=11 // pred_check
          %p331 = pneg %p152
        $region30: #{tpu_custom_call.1} parent=11 // pred_check_branch
          %333 = sbr.rel (%p331) target = $region32
        $region31: #{tpu_custom_call.1} parent=11 // pred_region
          _
        $region32: #{tpu_custom_call.1} parent=11 // pred_fallthru
          _
        // Predicated region
        $region33: #{tpu_custom_call.1} parent=11 // pred_check
          %p334 = pneg %p173
        $region34: #{tpu_custom_call.1} parent=11 // pred_check_branch
          %336 = sbr.rel (%p334) target = $region36
        $region35: #{tpu_custom_call.1} parent=11 // pred_region
          _
        $region36: #{tpu_custom_call.1} parent=11 // pred_fallthru
          _
        // Predicated region
        $region37: #{tpu_custom_call.1} parent=11 // pred_check
          %p337 = pneg %p194
        $region38: #{tpu_custom_call.1} parent=11 // pred_check_branch
          %339 = sbr.rel (%p337) target = $region40
        $region39: #{tpu_custom_call.1} parent=11 // pred_region
          _
        $region40: #{tpu_custom_call.1} parent=11 // pred_fallthru
          _
        // Predicated region
        $region41: #{tpu_custom_call.1} parent=11 // pred_check
          %p340 = pneg %p215
        $region42: #{tpu_custom_call.1} parent=11 // pred_check_branch
          %342 = sbr.rel (%p340) target = $region44
        $region43: #{tpu_custom_call.1} parent=11 // pred_region
          _
        $region44: #{tpu_custom_call.1} parent=11 // pred_fallthru
          _
        // Predicated region
        $region45: #{tpu_custom_call.1} parent=11 // pred_check
          %p343 = pneg %p236
        $region46: #{tpu_custom_call.1} parent=11 // pred_check_branch
          %345 = sbr.rel (%p343) target = $region48
        $region47: #{tpu_custom_call.1} parent=11 // pred_region
          _
        $region48: #{tpu_custom_call.1} parent=11 // pred_fallthru
          _
        // Predicated region
        $region49: #{tpu_custom_call.1} parent=11 // pred_check
          %p346 = pneg %p257
        $region50: #{tpu_custom_call.1} parent=11 // pred_check_branch
          %348 = sbr.rel (%p346) target = $region52
        $region51: #{tpu_custom_call.1} parent=11 // pred_region
          _
        $region52: #{tpu_custom_call.1} parent=11 // pred_fallthru
          _
        // Predicated region
        $region53: #{tpu_custom_call.1} parent=11 // pred_check
          %p349 = pneg %p278
        $region54: #{tpu_custom_call.1} parent=11 // pred_check_branch
          %351 = sbr.rel (%p349) target = $region56
        $region55: #{tpu_custom_call.1} parent=11 // pred_region
          _
        $region56: #{tpu_custom_call.1} parent=11 // pred_fallthru
          _
      $region12: #{tpu_custom_call.1} parent=5 // pred_fallthru
        _
      %p352 = scmp.lt.s32.totalorder %s21, 2
      // Predicated region
      $region57: #{tpu_custom_call.1} parent=5 // pred_check
        %p353 = pneg %p352
      $region58: #{tpu_custom_call.1} parent=5 // pred_check_branch
        %355 = sbr.rel (%p353) target = $region60
      $region59: #{tpu_custom_call.1} parent=5 // pred_region
        // Predicated region
        $region61: #{tpu_custom_call.1} parent=59 // pred_check
          %p356 = pneg %p41
        $region62: #{tpu_custom_call.1} parent=59 // pred_check_branch
          %358 = sbr.rel (%p356) target = $region64
        $region63: #{tpu_custom_call.1} parent=59 // pred_region
          %p359 = scmp.lt.s32.totalorder %s21, 1
          %s360 = scalar_select %p359, %s21, 1
          %s361 = smul.addr %s360, 12
          %s362 = smul.addr %s361, 8
          %s363 = scalar_lea.vmem %s0, %s362
        $region64: #{tpu_custom_call.1} parent=59 // pred_fallthru
          _
      $region60: #{tpu_custom_call.1} parent=5 // pred_fallthru
        _
      %p364 = scmp.le.s32.totalorder 1, %s21
      %p365 = scmp.lt.s32.totalorder %s21, 3
      %p366 = pnand %p364, %p365
      %p367 = pneg %p366
      // Predicated region
      $region65: #{tpu_custom_call.1} parent=5 // pred_check
        _
      $region66: #{tpu_custom_call.1} parent=5 // pred_check_branch
        %369 = sbr.rel (%p366) target = $region68
      $region67: #{tpu_custom_call.1} parent=5 // pred_region
        %s370 = ssub.s32 %s21, 1
        %p371 = scmp.lt.s32.totalorder %s26, 1
        %s372 = scalar_select %p371, %s26, 1
        %s373 = smul.addr %s372, 12
        %s374 = smul.addr %s373, 8
        %s375 = scalar_lea.vmem %s0, %s374
        %p376 = pneg %p47
        %p377 = pneg %p44
        %p378 = pneg %p68
        %p379 = pneg %p65
        %p380 = pneg %p89
        %p381 = pneg %p86
        %p382 = pneg %p110
        %p383 = pneg %p107
        %p384 = pneg %p131
        %p385 = pneg %p128
        %p386 = pneg %p152
        %p387 = pneg %p149
        %p388 = pneg %p173
        %p389 = pneg %p170
        %p390 = pneg %p194
        %p391 = pneg %p191
        %p392 = pneg %p215
        %p393 = pneg %p212
        %p394 = pneg %p236
        %p395 = pneg %p233
        %p396 = pneg %p257
        %p397 = pneg %p254
        %p398 = pneg %p278
        %p399 = pneg %p275
        %p400 = pneg %p304
        %p401 = pneg %p301
        %s402 = sand.u32 %s291, 1
        %s403 = scalar_lea.sflag [#allocation4], %s402
        %s404 = sand.u32 %s291, 1
        %s405 = smul.addr %s404, 96
        %s406 = scalar_lea.vmem [#allocation3], %s405
        %p407 = scmp.lt.s32.totalorder %s26, 1
        %s408 = scalar_select %p407, %s26, 1
        %s409 = smul.addr %s408, 12
        %s410 = smul.addr %s409, 8
        %s411 = scalar_lea.vmem %s0, %s410
        %v413 = vld [vmem:[%s411] sm:$0xff]
        %v414 = vld [vmem:[%s411 + $0x8] sm:$0xff]
        %v415 = vld [vmem:[%s411 + $0x10] sm:$0xff]
        %v416 = vld [vmem:[%s411 + $0x18] sm:$0xff]
        %v417 = vld [vmem:[%s411 + $0x20] sm:$0xff]
        %v418 = vld [vmem:[%s411 + $0x28] sm:$0xff]
        %v419 = vld [vmem:[%s411 + $0x30] sm:$0xff]
        %v420 = vld [vmem:[%s411 + $0x38] sm:$0xff]
        %v421 = vld [vmem:[%s411 + $0x40] sm:$0xff]
        %v422 = vld [vmem:[%s411 + $0x48] sm:$0xff]
        %v423 = vld [vmem:[%s411 + $0x50] sm:$0xff]
        %v424 = vld [vmem:[%s411 + $0x58] sm:$0xff]
        %425 = vst [vmem:[#allocation2] sm:$0xff] %v413
        %426 = vst [vmem:[#allocation2 + $0x8] sm:$0xff] %v414
        %427 = vst [vmem:[#allocation2 + $0x10] sm:$0xff] %v415
        %428 = vst [vmem:[#allocation2 + $0x18] sm:$0xff] %v416
        %429 = vst [vmem:[#allocation2 + $0x20] sm:$0xff] %v417
        %430 = vst [vmem:[#allocation2 + $0x28] sm:$0xff] %v418
        %431 = vst [vmem:[#allocation2 + $0x30] sm:$0xff] %v419
        %432 = vst [vmem:[#allocation2 + $0x38] sm:$0xff] %v420
        %433 = vst [vmem:[#allocation2 + $0x40] sm:$0xff] %v421
        %434 = vst [vmem:[#allocation2 + $0x48] sm:$0xff] %v422
        %435 = vst [vmem:[#allocation2 + $0x50] sm:$0xff] %v423
        %436 = vst [vmem:[#allocation2 + $0x58] sm:$0xff] %v424
        %v437 = vld [vmem:[%s1] sm:$0x7]
        %v438 = vld [vmem:[#allocation2] sm:$0xff]
        %v439 = vld [vmem:[#allocation2 + $0x8] sm:$0xff]
        %v440 = vld [vmem:[#allocation2 + $0x10] sm:$0xff]
        %v441 = vld [vmem:[#allocation2 + $0x18] sm:$0xff]
        %v442 = vld [vmem:[#allocation2 + $0x20] sm:$0xff]
        %v443 = vld [vmem:[#allocation2 + $0x28] sm:$0xff]
        %v444 = vld [vmem:[#allocation2 + $0x30] sm:$0xff]
        %v445 = vld [vmem:[#allocation2 + $0x38] sm:$0xff]
        %v446 = vld [vmem:[#allocation2 + $0x40] sm:$0xff]
        %v447 = vld [vmem:[#allocation2 + $0x48] sm:$0xff]
        %v448 = vld [vmem:[#allocation2 + $0x50] sm:$0xff]
        %v449 = vld [vmem:[#allocation2 + $0x58] sm:$0xff]
        %v450 = vpack.c.bf16 %v441, %v438
        %v451 = vpack.c.bf16 %v442, %v439
        %v452 = vpack.c.bf16 %v443, %v440
        %v453 = vpack.c.bf16 %v447, %v444
        %v454 = vpack.c.bf16 %v448, %v445
        %v455 = vpack.c.bf16 %v449, %v446
        %v456 = vld [vmem:[%s2] sm:$0xf]
        %v457 = vld [vmem:[%s2 + $0x4] sm:$0xf]
        %v458 = vld [vmem:[%s2 + $0x8] sm:$0xf]
        %v459 = vld [vmem:[%s2 + $0xc] sm:$0xf]
        %v464 = vunpack.c.l.b16 %v456
        %v465 = vunpack.c.l.b16 %v457
        %v466 = vunpack.c.l.b16 %v458
        %v467 = vunpack.c.l.b16 %v459
        %v468 = vpack.c.b16 %v465, %v464
        %v469 = vpack.c.b16 %v467, %v466
        %vm470 = vcmask 261120
        %v472 = vsel %vm470, %v468, 0
        %v475 = vsel %vm470, %v469, 0
        %477 = vmatprep.subr.bf16.mxu0 %v451
        %478 = vmatpush1.bf16.msra.mxu0 %v450
        %479 = vmatprep.subr.bf16.mxu0 %v454
        %480 = vmatpush1.bf16.msra.mxu0 %v453
        %481 = vmatprep.subr.bf16.mxu0 0
        %482 = vmatpush1.bf16.msra.mxu0 0
        %483 = vmatprep.subr.bf16.mxu0 0
        %484 = vmatpush1.bf16.msra.mxu0 0
        %485 = vmatprep.subr.bf16.mxu0 0
        %486 = vmatpush1.bf16.msra.mxu0 0
        %487 = vmatprep.subr.bf16.mxu0 0
        %488 = vmatpush1.bf16.msra.mxu0 0
        %489 = vmatprep.subr.bf16.mxu0 0
        %490 = vmatpush1.bf16.msra.mxu0 0
        %491 = vmatprep.subr.bf16.mxu0 0
        %492 = vmatpush1.bf16.msra.mxu0 0
        %493 = vmatprep.subr.bf16.mxu0 0
        %494 = vmatpush1.bf16.msra.mxu0 0
        %495 = vmatprep.subr.bf16.mxu0 0
        %496 = vmatpush1.bf16.msra.mxu0 0
        %497 = vmatprep.subr.bf16.mxu0 0
        %498 = vmatpush1.bf16.msra.mxu0 0
        %499 = vmatprep.subr.bf16.mxu0 0
        %500 = vmatpush1.bf16.msra.mxu0 0
        %501 = vmatprep.subr.bf16.mxu0 0
        %502 = vmatpush1.bf16.msra.mxu0 0
        %503 = vmatprep.subr.bf16.mxu0 0
        %504 = vmatpush1.bf16.msra.mxu0 0
        %505 = vmatprep.subr.bf16.mxu0 0
        %506 = vmatpush1.bf16.msra.mxu0 0
        %507 = vmatprep.subr.bf16.mxu0 0
        %508 = vmatpush1.bf16.msra.mxu0 0
        %509 = vmatprep.mubr.bf16.mxu0 0
        %510 = vmatmul.mubr.bf16.gmra.mrb[0].mxu0 %v472
        %v511 = vpop.f32.mrb[0].mxu0
        %v512 = vadd.f32 0.0, %v511
        %v513 = vpop.f32.mrb[0].mxu0
        %v514 = vadd.f32 0.0, %v513
        %v515 = vpop.f32.mrb[0].mxu0
        %v516 = vadd.f32 0.0, %v515
        %v517 = vpop.f32.mrb[0].mxu0
        %v518 = vadd.f32 0.0, %v517
        %519 = vmatprep.mubr.bf16.mxu0 0
        %520 = vmatmul.mubr.bf16.gmra.mrb[0].mxu0 %v475
        %v521 = vpop.f32.mrb[0].mxu0
        %v522 = vadd.f32 0.0, %v521
        %v523 = vpop.f32.mrb[0].mxu0
        %v524 = vadd.f32 0.0, %v523
        %v525 = vpop.f32.mrb[0].mxu0
        %v526 = vadd.f32 0.0, %v525
        %v527 = vpop.f32.mrb[0].mxu0
        %v528 = vadd.f32 0.0, %v527
        %529 = vdwg.mxu0
        %530 = vmatprep.subr.bf16.mxu0 0
        %531 = vmatpush1.bf16.msra.mxu0 %v452
        %532 = vmatprep.subr.bf16.mxu0 0
        %533 = vmatpush1.bf16.msra.mxu0 %v455
        %534 = vmatprep.subr.bf16.mxu0 0
        %535 = vmatpush1.bf16.msra.mxu0 0
        %536 = vmatprep.subr.bf16.mxu0 0
        %537 = vmatpush1.bf16.msra.mxu0 0
        %538 = vmatprep.subr.bf16.mxu0 0
        %539 = vmatpush1.bf16.msra.mxu0 0
        %540 = vmatprep.subr.bf16.mxu0 0
        %541 = vmatpush1.bf16.msra.mxu0 0
        %542 = vmatprep.subr.bf16.mxu0 0
        %543 = vmatpush1.bf16.msra.mxu0 0
        %544 = vmatprep.subr.bf16.mxu0 0
        %545 = vmatpush1.bf16.msra.mxu0 0
        %546 = vmatprep.subr.bf16.mxu0 0
        %547 = vmatpush1.bf16.msra.mxu0 0
        %548 = vmatprep.subr.bf16.mxu0 0
        %549 = vmatpush1.bf16.msra.mxu0 0
        %550 = vmatprep.subr.bf16.mxu0 0
        %551 = vmatpush1.bf16.msra.mxu0 0
        %552 = vmatprep.subr.bf16.mxu0 0
        %553 = vmatpush1.bf16.msra.mxu0 0
        %554 = vmatprep.subr.bf16.mxu0 0
        %555 = vmatpush1.bf16.msra.mxu0 0
        %556 = vmatprep.subr.bf16.mxu0 0
        %557 = vmatpush1.bf16.msra.mxu0 0
        %558 = vmatprep.subr.bf16.mxu0 0
        %559 = vmatpush1.bf16.msra.mxu0 0
        %560 = vmatprep.subr.bf16.mxu0 0
        %561 = vmatpush1.bf16.msra.mxu0 0
        %562 = vmatprep.mubr.bf16.mxu0 0
        %563 = vmatmul.mubr.bf16.gmra.mrb[0].mxu0 %v472
        %v564 = vpop.f32.mrb[0].mxu0
        %v565 = vadd.f32 0.0, %v564
        %v566 = vpop.f32.mrb[0].mxu0
        %v567 = vpop.f32.mrb[0].mxu0
        %v568 = vadd.f32 0.0, %v567
        %v569 = vpop.f32.mrb[0].mxu0
        %570 = vmatprep.mubr.bf16.mxu0 0
        %571 = vmatmul.mubr.bf16.gmra.mrb[0].mxu0 %v475
        %v572 = vpop.f32.mrb[0].mxu0
        %v573 = vadd.f32 0.0, %v572
        %v574 = vpop.f32.mrb[0].mxu0
        %v575 = vpop.f32.mrb[0].mxu0
        %v576 = vadd.f32 0.0, %v575
        %v577 = vpop.f32.mrb[0].mxu0
        %578 = vdwg.mxu0
        %579 = vrot.lane.b32.xlu0 %v512, 19
        %v580 = vpop.permute.xlu0 %579
        %581 = vrot.lane.b32.xlu0 %v516, 19
        %v582 = vpop.permute.xlu0 %581
        %583 = vrot.lane.b32.xlu0 %v522, 19
        %v584 = vpop.permute.xlu0 %583
        %585 = vrot.lane.b32.xlu0 %v526, 19
        %v586 = vpop.permute.xlu0 %585
        %587 = vrot.lane.b32.xlu0 %v514, 19
        %v588 = vpop.permute.xlu0 %587
        %589 = vrot.lane.b32.xlu0 %v518, 19
        %v590 = vpop.permute.xlu0 %589
        %591 = vrot.lane.b32.xlu0 %v524, 19
        %v592 = vpop.permute.xlu0 %591
        %593 = vrot.lane.b32.xlu0 %v528, 19
        %v594 = vpop.permute.xlu0 %593
        %595 = vrot.lane.b32.xlu0 %v565, 19
        %v596 = vpop.permute.xlu0 %595
        %597 = vrot.lane.b32.xlu0 %v568, 19
        %v598 = vpop.permute.xlu0 %597
        %599 = vrot.lane.b32.xlu0 %v573, 19
        %v600 = vpop.permute.xlu0 %599
        %601 = vrot.lane.b32.xlu0 %v576, 19
        %v602 = vpop.permute.xlu0 %601
        %v603 = vlaneseq
        %v604 = vand.u32 %v603, 127
        %vm605 = vcmp.lt.s32.totalorder %v604, 19
        %v606 = vsel %vm605, %v588, %v596
        %v607 = vsel %vm605, %v590, %v598
        %v608 = vsel %vm605, %v592, %v600
        %v609 = vsel %vm605, %v594, %v602
        %v610 = vsel %vm605, %v580, %v588
        %v611 = vsel %vm605, %v582, %v590
        %v612 = vsel %vm605, %v584, %v592
        %v613 = vsel %vm605, %v586, %v594
        %v614 = vsel %vm605, %v596, %v580
        %v615 = vsel %vm605, %v598, %v582
        %v616 = vsel %vm605, %v600, %v584
        %v617 = vsel %vm605, %v602, %v586
        %v618 = vadd.f32 %v614, 0.0
        %v619 = vadd.f32 %v610, 0.0
        %v620 = vadd.f32 %v606, 0.0
        %v621 = vadd.f32 %v615, 0.0
        %v622 = vadd.f32 %v611, 0.0
        %v623 = vadd.f32 %v607, 0.0
        %v624 = vadd.f32 %v616, 0.0
        %v625 = vadd.f32 %v612, 0.0
        %v626 = vadd.f32 %v608, 0.0
        %v627 = vadd.f32 %v617, 0.0
        %v628 = vadd.f32 %v613, 0.0
        %v629 = vadd.f32 %v609, 0.0
        %v630 = vld [vmem:[%s2 + $0x10] sm:$0xf]
        %v631 = vld [vmem:[%s2 + $0x14] sm:$0xf]
        %v632 = vld [vmem:[%s2 + $0x18] sm:$0xf]
        %v633 = vld [vmem:[%s2 + $0x1c] sm:$0xf]
        %v638 = vunpack.c.l.b16 %v630
        %v639 = vunpack.c.l.b16 %v631
        %v640 = vunpack.c.l.b16 %v632
        %v641 = vunpack.c.l.b16 %v633
        %v642 = vpack.c.b16 %v639, %v638
        %v643 = vpack.c.b16 %v641, %v640
        %v645 = vsel %vm470, %v642, 0
        %v648 = vsel %vm470, %v643, 0
        %650 = vmatprep.subr.bf16.mxu0 %v451
        %651 = vmatpush1.bf16.msra.mxu0 %v450
        %652 = vmatprep.subr.bf16.mxu0 %v454
        %653 = vmatpush1.bf16.msra.mxu0 %v453
        %654 = vmatprep.subr.bf16.mxu0 0
        %655 = vmatpush1.bf16.msra.mxu0 0
        %656 = vmatprep.subr.bf16.mxu0 0
        %657 = vmatpush1.bf16.msra.mxu0 0
        %658 = vmatprep.subr.bf16.mxu0 0
        %659 = vmatpush1.bf16.msra.mxu0 0
        %660 = vmatprep.subr.bf16.mxu0 0
        %661 = vmatpush1.bf16.msra.mxu0 0
        %662 = vmatprep.subr.bf16.mxu0 0
        %663 = vmatpush1.bf16.msra.mxu0 0
        %664 = vmatprep.subr.bf16.mxu0 0
        %665 = vmatpush1.bf16.msra.mxu0 0
        %666 = vmatprep.subr.bf16.mxu0 0
        %667 = vmatpush1.bf16.msra.mxu0 0
        %668 = vmatprep.subr.bf16.mxu0 0
        %669 = vmatpush1.bf16.msra.mxu0 0
        %670 = vmatprep.subr.bf16.mxu0 0
        %671 = vmatpush1.bf16.msra.mxu0 0
        %672 = vmatprep.subr.bf16.mxu0 0
        %673 = vmatpush1.bf16.msra.mxu0 0
        %674 = vmatprep.subr.bf16.mxu0 0
        %675 = vmatpush1.bf16.msra.mxu0 0
        %676 = vmatprep.subr.bf16.mxu0 0
        %677 = vmatpush1.bf16.msra.mxu0 0
        %678 = vmatprep.subr.bf16.mxu0 0
        %679 = vmatpush1.bf16.msra.mxu0 0
        %680 = vmatprep.subr.bf16.mxu0 0
        %681 = vmatpush1.bf16.msra.mxu0 0
        %682 = vmatprep.mubr.bf16.mxu0 0
        %683 = vmatmul.mubr.bf16.gmra.mrb[0].mxu0 %v645
        %v684 = vpop.f32.mrb[0].mxu0
        %v685 = vadd.f32 0.0, %v684
        %v686 = vpop.f32.mrb[0].mxu0
        %v687 = vadd.f32 0.0, %v686
        %v688 = vpop.f32.mrb[0].mxu0
        %v689 = vadd.f32 0.0, %v688
        %v690 = vpop.f32.mrb[0].mxu0
        %v691 = vadd.f32 0.0, %v690
        %692 = vmatprep.mubr.bf16.mxu0 0
        %693 = vmatmul.mubr.bf16.gmra.mrb[0].mxu0 %v648
        %v694 = vpop.f32.mrb[0].mxu0
        %v695 = vadd.f32 0.0, %v694
        %v696 = vpop.f32.mrb[0].mxu0
        %v697 = vadd.f32 0.0, %v696
        %v698 = vpop.f32.mrb[0].mxu0
        %v699 = vadd.f32 0.0, %v698
        %v700 = vpop.f32.mrb[0].mxu0
        %v701 = vadd.f32 0.0, %v700
        %702 = vdwg.mxu0
        %703 = vmatprep.subr.bf16.mxu0 0
        %704 = vmatpush1.bf16.msra.mxu0 %v452
        %705 = vmatprep.subr.bf16.mxu0 0
        %706 = vmatpush1.bf16.msra.mxu0 %v455
        %707 = vmatprep.subr.bf16.mxu0 0
        %708 = vmatpush1.bf16.msra.mxu0 0
        %709 = vmatprep.subr.bf16.mxu0 0
        %710 = vmatpush1.bf16.msra.mxu0 0
        %711 = vmatprep.subr.bf16.mxu0 0
        %712 = vmatpush1.bf16.msra.mxu0 0
        %713 = vmatprep.subr.bf16.mxu0 0
        %714 = vmatpush1.bf16.msra.mxu0 0
        %715 = vmatprep.subr.bf16.mxu0 0
        %716 = vmatpush1.bf16.msra.mxu0 0
        %717 = vmatprep.subr.bf16.mxu0 0
        %718 = vmatpush1.bf16.msra.mxu0 0
        %719 = vmatprep.subr.bf16.mxu0 0
        %720 = vmatpush1.bf16.msra.mxu0 0
        %721 = vmatprep.subr.bf16.mxu0 0
        %722 = vmatpush1.bf16.msra.mxu0 0
        %723 = vmatprep.subr.bf16.mxu0 0
        %724 = vmatpush1.bf16.msra.mxu0 0
        %725 = vmatprep.subr.bf16.mxu0 0
        %726 = vmatpush1.bf16.msra.mxu0 0
        %727 = vmatprep.subr.bf16.mxu0 0
        %728 = vmatpush1.bf16.msra.mxu0 0
        %729 = vmatprep.subr.bf16.mxu0 0
        %730 = vmatpush1.bf16.msra.mxu0 0
        %731 = vmatprep.subr.bf16.mxu0 0
        %732 = vmatpush1.bf16.msra.mxu0 0
        %733 = vmatprep.subr.bf16.mxu0 0
        %734 = vmatpush1.bf16.msra.mxu0 0
        %735 = vmatprep.mubr.bf16.mxu0 0
        %736 = vmatmul.mubr.bf16.gmra.mrb[0].mxu0 %v645
        %v737 = vpop.f32.mrb[0].mxu0
        %v738 = vadd.f32 0.0, %v737
        %v739 = vpop.f32.mrb[0].mxu0
        %v740 = vpop.f32.mrb[0].mxu0
        %v741 = vadd.f32 0.0, %v740
        %v742 = vpop.f32.mrb[0].mxu0
        %743 = vmatprep.mubr.bf16.mxu0 0
        %744 = vmatmul.mubr.bf16.gmra.mrb[0].mxu0 %v648
        %v745 = vpop.f32.mrb[0].mxu0
        %v746 = vadd.f32 0.0, %v745
        %v747 = vpop.f32.mrb[0].mxu0
        %v748 = vpop.f32.mrb[0].mxu0
        %v749 = vadd.f32 0.0, %v748
        %v750 = vpop.f32.mrb[0].mxu0
        %751 = vdwg.mxu0
        %752 = vrot.lane.b32.xlu0 %v685, 18
        %v753 = vpop.permute.xlu0 %752
        %754 = vrot.lane.b32.xlu0 %v689, 18
        %v755 = vpop.permute.xlu0 %754
        %756 = vrot.lane.b32.xlu0 %v695, 18
        %v757 = vpop.permute.xlu0 %756
        %758 = vrot.lane.b32.xlu0 %v699, 18
        %v759 = vpop.permute.xlu0 %758
        %760 = vrot.lane.b32.xlu0 %v687, 18
        %v761 = vpop.permute.xlu0 %760
        %762 = vrot.lane.b32.xlu0 %v691, 18
        %v763 = vpop.permute.xlu0 %762
        %764 = vrot.lane.b32.xlu0 %v697, 18
        %v765 = vpop.permute.xlu0 %764
        %766 = vrot.lane.b32.xlu0 %v701, 18
        %v767 = vpop.permute.xlu0 %766
        %768 = vrot.lane.b32.xlu0 %v738, 18
        %v769 = vpop.permute.xlu0 %768
        %770 = vrot.lane.b32.xlu0 %v741, 18
        %v771 = vpop.permute.xlu0 %770
        %772 = vrot.lane.b32.xlu0 %v746, 18
        %v773 = vpop.permute.xlu0 %772
        %774 = vrot.lane.b32.xlu0 %v749, 18
        %v775 = vpop.permute.xlu0 %774
        %vm776 = vcmp.lt.s32.totalorder %v604, 18
        %v777 = vsel %vm776, %v761, %v769
        %v778 = vsel %vm776, %v763, %v771
        %v779 = vsel %vm776, %v765, %v773
        %v780 = vsel %vm776, %v767, %v775
        %v781 = vsel %vm776, %v753, %v761
        %v782 = vsel %vm776, %v755, %v763
        %v783 = vsel %vm776, %v757, %v765
        %v784 = vsel %vm776, %v759, %v767
        %v785 = vsel %vm776, %v769, %v753
        %v786 = vsel %vm776, %v771, %v755
        %v787 = vsel %vm776, %v773, %v757
        %v788 = vsel %vm776, %v775, %v759
        %v789 = vadd.f32 %v618, %v785
        %v790 = vadd.f32 %v619, %v781
        %v791 = vadd.f32 %v620, %v777
        %v792 = vadd.f32 %v621, %v786
        %v793 = vadd.f32 %v622, %v782
        %v794 = vadd.f32 %v623, %v778
        %v795 = vadd.f32 %v624, %v787
        %v796 = vadd.f32 %v625, %v783
        %v797 = vadd.f32 %v626, %v779
        %v798 = vadd.f32 %v627, %v788
        %v799 = vadd.f32 %v628, %v784
        %v800 = vadd.f32 %v629, %v780
        %v801 = vld [vmem:[%s2 + $0x20] sm:$0xf]
        %v802 = vld [vmem:[%s2 + $0x24] sm:$0xf]
        %v803 = vld [vmem:[%s2 + $0x28] sm:$0xf]
        %v804 = vld [vmem:[%s2 + $0x2c] sm:$0xf]
        %v809 = vunpack.c.l.b16 %v801
        %v810 = vunpack.c.l.b16 %v802
        %v811 = vunpack.c.l.b16 %v803
        %v812 = vunpack.c.l.b16 %v804
        %v813 = vpack.c.b16 %v810, %v809
        %v814 = vpack.c.b16 %v812, %v811
        %v816 = vsel %vm470, %v813, 0
        %v819 = vsel %vm470, %v814, 0
        %821 = vmatprep.subr.bf16.mxu0 %v451
        %822 = vmatpush1.bf16.msra.mxu0 %v450
        %823 = vmatprep.subr.bf16.mxu0 %v454
        %824 = vmatpush1.bf16.msra.mxu0 %v453
        %825 = vmatprep.subr.bf16.mxu0 0
        %826 = vmatpush1.bf16.msra.mxu0 0
        %827 = vmatprep.subr.bf16.mxu0 0
        %828 = vmatpush1.bf16.msra.mxu0 0
        %829 = vmatprep.subr.bf16.mxu0 0
        %830 = vmatpush1.bf16.msra.mxu0 0
        %831 = vmatprep.subr.bf16.mxu0 0
        %832 = vmatpush1.bf16.msra.mxu0 0
        %833 = vmatprep.subr.bf16.mxu0 0
        %834 = vmatpush1.bf16.msra.mxu0 0
        %835 = vmatprep.subr.bf16.mxu0 0
        %836 = vmatpush1.bf16.msra.mxu0 0
        %837 = vmatprep.subr.bf16.mxu0 0
        %838 = vmatpush1.bf16.msra.mxu0 0
        %839 = vmatprep.subr.bf16.mxu0 0
        %840 = vmatpush1.bf16.msra.mxu0 0
        %841 = vmatprep.subr.bf16.mxu0 0
        %842 = vmatpush1.bf16.msra.mxu0 0
        %843 = vmatprep.subr.bf16.mxu0 0
        %844 = vmatpush1.bf16.msra.mxu0 0
        %845 = vmatprep.subr.bf16.mxu0 0
        %846 = vmatpush1.bf16.msra.mxu0 0
        %847 = vmatprep.subr.bf16.mxu0 0
        %848 = vmatpush1.bf16.msra.mxu0 0
        %849 = vmatprep.subr.bf16.mxu0 0
        %850 = vmatpush1.bf16.msra.mxu0 0
        %851 = vmatprep.subr.bf16.mxu0 0
        %852 = vmatpush1.bf16.msra.mxu0 0
        %853 = vmatprep.mubr.bf16.mxu0 0
        %854 = vmatmul.mubr.bf16.gmra.mrb[0].mxu0 %v816
        %v855 = vpop.f32.mrb[0].mxu0
        %v856 = vadd.f32 0.0, %v855
        %v857 = vpop.f32.mrb[0].mxu0
        %v858 = vadd.f32 0.0, %v857
        %v859 = vpop.f32.mrb[0].mxu0
        %v860 = vadd.f32 0.0, %v859
        %v861 = vpop.f32.mrb[0].mxu0
        %v862 = vadd.f32 0.0, %v861
        %863 = vmatprep.mubr.bf16.mxu0 0
        %864 = vmatmul.mubr.bf16.gmra.mrb[0].mxu0 %v819
        %v865 = vpop.f32.mrb[0].mxu0
        %v866 = vadd.f32 0.0, %v865
        %v867 = vpop.f32.mrb[0].mxu0
        %v868 = vadd.f32 0.0, %v867
        %v869 = vpop.f32.mrb[0].mxu0
        %v870 = vadd.f32 0.0, %v869
        %v871 = vpop.f32.mrb[0].mxu0
        %v872 = vadd.f32 0.0, %v871
        %873 = vdwg.mxu0
        %874 = vmatprep.subr.bf16.mxu0 0
        %875 = vmatpush1.bf16.msra.mxu0 %v452
        %876 = vmatprep.subr.bf16.mxu0 0
        %877 = vmatpush1.bf16.msra.mxu0 %v455
        %878 = vmatprep.subr.bf16.mxu0 0
        %879 = vmatpush1.bf16.msra.mxu0 0
        %880 = vmatprep.subr.bf16.mxu0 0
        %881 = vmatpush1.bf16.msra.mxu0 0
        %882 = vmatprep.subr.bf16.mxu0 0
        %883 = vmatpush1.bf16.msra.mxu0 0
        %884 = vmatprep.subr.bf16.mxu0 0
        %885 = vmatpush1.bf16.msra.mxu0 0
        %886 = vmatprep.subr.bf16.mxu0 0
        %887 = vmatpush1.bf16.msra.mxu0 0
        %888 = vmatprep.subr.bf16.mxu0 0
        %889 = vmatpush1.bf16.msra.mxu0 0
        %890 = vmatprep.subr.bf16.mxu0 0
        %891 = vmatpush1.bf16.msra.mxu0 0
        %892 = vmatprep.subr.bf16.mxu0 0
        %893 = vmatpush1.bf16.msra.mxu0 0
        %894 = vmatprep.subr.bf16.mxu0 0
        %895 = vmatpush1.bf16.msra.mxu0 0
        %896 = vmatprep.subr.bf16.mxu0 0
        %897 = vmatpush1.bf16.msra.mxu0 0
        %898 = vmatprep.subr.bf16.mxu0 0
        %899 = vmatpush1.bf16.msra.mxu0 0
        %900 = vmatprep.subr.bf16.mxu0 0
        %901 = vmatpush1.bf16.msra.mxu0 0
        %902 = vmatprep.subr.bf16.mxu0 0
        %903 = vmatpush1.bf16.msra.mxu0 0
        %904 = vmatprep.subr.bf16.mxu0 0
        %905 = vmatpush1.bf16.msra.mxu0 0
        %906 = vmatprep.mubr.bf16.mxu0 0
        %907 = vmatmul.mubr.bf16.gmra.mrb[0].mxu0 %v816
        %v908 = vpop.f32.mrb[0].mxu0
        %v909 = vadd.f32 0.0, %v908
        %v910 = vpop.f32.mrb[0].mxu0
        %v911 = vpop.f32.mrb[0].mxu0
        %v912 = vadd.f32 0.0, %v911
        %v913 = vpop.f32.mrb[0].mxu0
        %914 = vmatprep.mubr.bf16.mxu0 0
        %915 = vmatmul.mubr.bf16.gmra.mrb[0].mxu0 %v819
        %v916 = vpop.f32.mrb[0].mxu0
        %v917 = vadd.f32 0.0, %v916
        %v918 = vpop.f32.mrb[0].mxu0
        %v919 = vpop.f32.mrb[0].mxu0
        %v920 = vadd.f32 0.0, %v919
        %v921 = vpop.f32.mrb[0].mxu0
        %922 = vdwg.mxu0
        %923 = vrot.lane.b32.xlu0 %v856, 17
        %v924 = vpop.permute.xlu0 %923
        %925 = vrot.lane.b32.xlu0 %v860, 17
        %v926 = vpop.permute.xlu0 %925
        %927 = vrot.lane.b32.xlu0 %v866, 17
        %v928 = vpop.permute.xlu0 %927
        %929 = vrot.lane.b32.xlu0 %v870, 17
        %v930 = vpop.permute.xlu0 %929
        %931 = vrot.lane.b32.xlu0 %v858, 17
        %v932 = vpop.permute.xlu0 %931
        %933 = vrot.lane.b32.xlu0 %v862, 17
        %v934 = vpop.permute.xlu0 %933
        %935 = vrot.lane.b32.xlu0 %v868, 17
        %v936 = vpop.permute.xlu0 %935
        %937 = vrot.lane.b32.xlu0 %v872, 17
        %v938 = vpop.permute.xlu0 %937
        %939 = vrot.lane.b32.xlu0 %v909, 17
        %v940 = vpop.permute.xlu0 %939
        %941 = vrot.lane.b32.xlu0 %v912, 17
        %v942 = vpop.permute.xlu0 %941
        %943 = vrot.lane.b32.xlu0 %v917, 17
        %v944 = vpop.permute.xlu0 %943
        %945 = vrot.lane.b32.xlu0 %v920, 17
        %v946 = vpop.permute.xlu0 %945
        %vm947 = vcmp.lt.s32.totalorder %v604, 17
        %v948 = vsel %vm947, %v932, %v940
        %v949 = vsel %vm947, %v934, %v942
        %v950 = vsel %vm947, %v936, %v944
        %v951 = vsel %vm947, %v938, %v946
        %v952 = vsel %vm947, %v924, %v932
        %v953 = vsel %vm947, %v926, %v934
        %v954 = vsel %vm947, %v928, %v936
        %v955 = vsel %vm947, %v930, %v938
        %v956 = vsel %vm947, %v940, %v924
        %v957 = vsel %vm947, %v942, %v926
        %v958 = vsel %vm947, %v944, %v928
        %v959 = vsel %vm947, %v946, %v930
        %v960 = vadd.f32 %v789, %v956
        %v961 = vadd.f32 %v790, %v952
        %v962 = vadd.f32 %v791, %v948
        %v963 = vadd.f32 %v792, %v957
        %v964 = vadd.f32 %v793, %v953
        %v965 = vadd.f32 %v794, %v949
        %v966 = vadd.f32 %v795, %v958
        %v967 = vadd.f32 %v796, %v954
        %v968 = vadd.f32 %v797, %v950
        %v969 = vadd.f32 %v798, %v959
        %v970 = vadd.f32 %v799, %v955
        %v971 = vadd.f32 %v800, %v951
        %v972 = vld [vmem:[%s2 + $0x30] sm:$0xf]
        %v973 = vld [vmem:[%s2 + $0x34] sm:$0xf]
        %v974 = vld [vmem:[%s2 + $0x38] sm:$0xf]
        %v975 = vld [vmem:[%s2 + $0x3c] sm:$0xf]
        %v980 = vunpack.c.l.b16 %v972
        %v981 = vunpack.c.l.b16 %v973
        %v982 = vunpack.c.l.b16 %v974
        %v983 = vunpack.c.l.b16 %v975
        %v984 = vpack.c.b16 %v981, %v980
        %v985 = vpack.c.b16 %v983, %v982
        %v987 = vsel %vm470, %v984, 0
        %v990 = vsel %vm470, %v985, 0
        %992 = vmatprep.subr.bf16.mxu0 %v451
        %993 = vmatpush1.bf16.msra.mxu0 %v450
        %994 = vmatprep.subr.bf16.mxu0 %v454
        %995 = vmatpush1.bf16.msra.mxu0 %v453
        %996 = vmatprep.subr.bf16.mxu0 0
        %997 = vmatpush1.bf16.msra.mxu0 0
        %998 = vmatprep.subr.bf16.mxu0 0
        %999 = vmatpush1.bf16.msra.mxu0 0
        %1000 = vmatprep.subr.bf16.mxu0 0
        %1001 = vmatpush1.bf16.msra.mxu0 0
        %1002 = vmatprep.subr.bf16.mxu0 0
        %1003 = vmatpush1.bf16.msra.mxu0 0
        %1004 = vmatprep.subr.bf16.mxu0 0
        %1005 = vmatpush1.bf16.msra.mxu0 0
        %1006 = vmatprep.subr.bf16.mxu0 0
        %1007 = vmatpush1.bf16.msra.mxu0 0
        %1008 = vmatprep.subr.bf16.mxu0 0
        %1009 = vmatpush1.bf16.msra.mxu0 0
        %1010 = vmatprep.subr.bf16.mxu0 0
        %1011 = vmatpush1.bf16.msra.mxu0 0
        %1012 = vmatprep.subr.bf16.mxu0 0
        %1013 = vmatpush1.bf16.msra.mxu0 0
        %1014 = vmatprep.subr.bf16.mxu0 0
        %1015 = vmatpush1.bf16.msra.mxu0 0
        %1016 = vmatprep.subr.bf16.mxu0 0
        %1017 = vmatpush1.bf16.msra.mxu0 0
        %1018 = vmatprep.subr.bf16.mxu0 0
        %1019 = vmatpush1.bf16.msra.mxu0 0
        %1020 = vmatprep.subr.bf16.mxu0 0
        %1021 = vmatpush1.bf16.msra.mxu0 0
        %1022 = vmatprep.subr.bf16.mxu0 0
        %1023 = vmatpush1.bf16.msra.mxu0 0
        %1024 = vmatprep.mubr.bf16.mxu0 0
        %1025 = vmatmul.mubr.bf16.gmra.mrb[0].mxu0 %v987
        %v1026 = vpop.f32.mrb[0].mxu0
        %v1027 = vadd.f32 0.0, %v1026
        %v1028 = vpop.f32.mrb[0].mxu0
        %v1029 = vadd.f32 0.0, %v1028
        %v1030 = vpop.f32.mrb[0].mxu0
        %v1031 = vadd.f32 0.0, %v1030
        %v1032 = vpop.f32.mrb[0].mxu0
        %v1033 = vadd.f32 0.0, %v1032
        %1034 = vmatprep.mubr.bf16.mxu0 0
        %1035 = vmatmul.mubr.bf16.gmra.mrb[0].mxu0 %v990
        %v1036 = vpop.f32.mrb[0].mxu0
        %v1037 = vadd.f32 0.0, %v1036
        %v1038 = vpop.f32.mrb[0].mxu0
        %v1039 = vadd.f32 0.0, %v1038
        %v1040 = vpop.f32.mrb[0].mxu0
        %v1041 = vadd.f32 0.0, %v1040
        %v1042 = vpop.f32.mrb[0].mxu0
        %v1043 = vadd.f32 0.0, %v1042
        %1044 = vdwg.mxu0
        %1045 = vmatprep.subr.bf16.mxu0 0
        %1046 = vmatpush1.bf16.msra.mxu0 %v452
        %1047 = vmatprep.subr.bf16.mxu0 0
        %1048 = vmatpush1.bf16.msra.mxu0 %v455
        %1049 = vmatprep.subr.bf16.mxu0 0
        %1050 = vmatpush1.bf16.msra.mxu0 0
        %1051 = vmatprep.subr.bf16.mxu0 0
        %1052 = vmatpush1.bf16.msra.mxu0 0
        %1053 = vmatprep.subr.bf16.mxu0 0
        %1054 = vmatpush1.bf16.msra.mxu0 0
        %1055 = vmatprep.subr.bf16.mxu0 0
        %1056 = vmatpush1.bf16.msra.mxu0 0
        %1057 = vmatprep.subr.bf16.mxu0 0
        %1058 = vmatpush1.bf16.msra.mxu0 0
        %1059 = vmatprep.subr.bf16.mxu0 0
        %1060 = vmatpush1.bf16.msra.mxu0 0
        %1061 = vmatprep.subr.bf16.mxu0 0
        %1062 = vmatpush1.bf16.msra.mxu0 0
        %1063 = vmatprep.subr.bf16.mxu0 0
        %1064 = vmatpush1.bf16.msra.mxu0 0
        %1065 = vmatprep.subr.bf16.mxu0 0
        %1066 = vmatpush1.bf16.msra.mxu0 0
        %1067 = vmatprep.subr.bf16.mxu0 0
        %1068 = vmatpush1.bf16.msra.mxu0 0
        %1069 = vmatprep.subr.bf16.mxu0 0
        %1070 = vmatpush1.bf16.msra.mxu0 0
        %1071 = vmatprep.subr.bf16.mxu0 0
        %1072 = vmatpush1.bf16.msra.mxu0 0
        %1073 = vmatprep.subr.bf16.mxu0 0
        %1074 = vmatpush1.bf16.msra.mxu0 0
        %1075 = vmatprep.subr.bf16.mxu0 0
        %1076 = vmatpush1.bf16.msra.mxu0 0
        %1077 = vmatprep.mubr.bf16.mxu0 0
        %1078 = vmatmul.mubr.bf16.gmra.mrb[0].mxu0 %v987
        %v1079 = vpop.f32.mrb[0].mxu0
        %v1080 = vadd.f32 0.0, %v1079
        %v1081 = vpop.f32.mrb[0].mxu0
        %v1082 = vpop.f32.mrb[0].mxu0
        %v1083 = vadd.f32 0.0, %v1082
        %v1084 = vpop.f32.mrb[0].mxu0
        %1085 = vmatprep.mubr.bf16.mxu0 0
        %1086 = vmatmul.mubr.bf16.gmra.mrb[0].mxu0 %v990
        %v1087 = vpop.f32.mrb[0].mxu0
        %v1088 = vadd.f32 0.0, %v1087
        %v1089 = vpop.f32.mrb[0].mxu0
        %v1090 = vpop.f32.mrb[0].mxu0
        %v1091 = vadd.f32 0.0, %v1090
        %v1092 = vpop.f32.mrb[0].mxu0
        %1093 = vdwg.mxu0
        %1094 = vrot.lane.b32.xlu0 %v1027, 1
        %v1095 = vpop.permute.xlu0 %1094
        %1096 = vrot.lane.b32.xlu0 %v1031, 1
        %v1097 = vpop.permute.xlu0 %1096
        %1098 = vrot.lane.b32.xlu0 %v1037, 1
        %v1099 = vpop.permute.xlu0 %1098
        %1100 = vrot.lane.b32.xlu0 %v1041, 1
        %v1101 = vpop.permute.xlu0 %1100
        %1102 = vrot.lane.b32.xlu0 %v1029, 1
        %v1103 = vpop.permute.xlu0 %1102
        %1104 = vrot.lane.b32.xlu0 %v1033, 1
        %v1105 = vpop.permute.xlu0 %1104
        %1106 = vrot.lane.b32.xlu0 %v1039, 1
        %v1107 = vpop.permute.xlu0 %1106
        %1108 = vrot.lane.b32.xlu0 %v1043, 1
        %v1109 = vpop.permute.xlu0 %1108
        %1110 = vrot.lane.b32.xlu0 %v1080, 1
        %v1111 = vpop.permute.xlu0 %1110
        %1112 = vrot.lane.b32.xlu0 %v1083, 1
        %v1113 = vpop.permute.xlu0 %1112
        %1114 = vrot.lane.b32.xlu0 %v1088, 1
        %v1115 = vpop.permute.xlu0 %1114
        %1116 = vrot.lane.b32.xlu0 %v1091, 1
        %v1117 = vpop.permute.xlu0 %1116
        %vm1118 = vcmp.lt.s32.totalorder %v604, 1
        %v1119 = vsel %vm1118, %v1103, %v1111
        %v1120 = vsel %vm1118, %v1105, %v1113
        %v1121 = vsel %vm1118, %v1107, %v1115
        %v1122 = vsel %vm1118, %v1109, %v1117
        %v1123 = vsel %vm1118, %v1095, %v1103
        %v1124 = vsel %vm1118, %v1097, %v1105
        %v1125 = vsel %vm1118, %v1099, %v1107
        %v1126 = vsel %vm1118, %v1101, %v1109
        %v1127 = vsel %vm1118, %v1111, %v1095
        %v1128 = vsel %vm1118, %v1113, %v1097
        %v1129 = vsel %vm1118, %v1115, %v1099
        %v1130 = vsel %vm1118, %v1117, %v1101
        %v1131 = vadd.f32 %v960, %v1127
        %v1132 = vadd.f32 %v961, %v1123
        %v1133 = vadd.f32 %v962, %v1119
        %v1134 = vadd.f32 %v963, %v1128
        %v1135 = vadd.f32 %v964, %v1124
        %v1136 = vadd.f32 %v965, %v1120
        %v1137 = vadd.f32 %v966, %v1129
        %v1138 = vadd.f32 %v967, %v1125
        %v1139 = vadd.f32 %v968, %v1121
        %v1140 = vadd.f32 %v969, %v1130
        %v1141 = vadd.f32 %v970, %v1126
        %v1142 = vadd.f32 %v971, %v1122
        %v1143 = vld [vmem:[%s2 + $0x40] sm:$0xf]
        %v1144 = vld [vmem:[%s2 + $0x44] sm:$0xf]
        %v1145 = vld [vmem:[%s2 + $0x48] sm:$0xf]
        %v1146 = vld [vmem:[%s2 + $0x4c] sm:$0xf]
        %v1151 = vunpack.c.l.b16 %v1143
        %v1152 = vunpack.c.l.b16 %v1144
        %v1153 = vunpack.c.l.b16 %v1145
        %v1154 = vunpack.c.l.b16 %v1146
        %v1155 = vpack.c.b16 %v1152, %v1151
        %v1156 = vpack.c.b16 %v1154, %v1153
        %v1158 = vsel %vm470, %v1155, 0
        %v1161 = vsel %vm470, %v1156, 0
        %1163 = vmatprep.subr.bf16.mxu0 %v451
        %1164 = vmatpush1.bf16.msra.mxu0 %v450
        %1165 = vmatprep.subr.bf16.mxu0 %v454
        %1166 = vmatpush1.bf16.msra.mxu0 %v453
        %1167 = vmatprep.subr.bf16.mxu0 0
        %1168 = vmatpush1.bf16.msra.mxu0 0
        %1169 = vmatprep.subr.bf16.mxu0 0
        %1170 = vmatpush1.bf16.msra.mxu0 0
        %1171 = vmatprep.subr.bf16.mxu0 0
        %1172 = vmatpush1.bf16.msra.mxu0 0
        %1173 = vmatprep.subr.bf16.mxu0 0
        %1174 = vmatpush1.bf16.msra.mxu0 0
        %1175 = vmatprep.subr.bf16.mxu0 0
        %1176 = vmatpush1.bf16.msra.mxu0 0
        %1177 = vmatprep.subr.bf16.mxu0 0
        %1178 = vmatpush1.bf16.msra.mxu0 0
        %1179 = vmatprep.subr.bf16.mxu0 0
        %1180 = vmatpush1.bf16.msra.mxu0 0
        %1181 = vmatprep.subr.bf16.mxu0 0
        %1182 = vmatpush1.bf16.msra.mxu0 0
        %1183 = vmatprep.subr.bf16.mxu0 0
        %1184 = vmatpush1.bf16.msra.mxu0 0
        %1185 = vmatprep.subr.bf16.mxu0 0
        %1186 = vmatpush1.bf16.msra.mxu0 0
        %1187 = vmatprep.subr.bf16.mxu0 0
        %1188 = vmatpush1.bf16.msra.mxu0 0
        %1189 = vmatprep.subr.bf16.mxu0 0
        %1190 = vmatpush1.bf16.msra.mxu0 0
        %1191 = vmatprep.subr.bf16.mxu0 0
        %1192 = vmatpush1.bf16.msra.mxu0 0
        %1193 = vmatprep.subr.bf16.mxu0 0
        %1194 = vmatpush1.bf16.msra.mxu0 0
        %1195 = vmatprep.mubr.bf16.mxu0 0
        %1196 = vmatmul.mubr.bf16.gmra.mrb[0].mxu0 %v1158
        %v1197 = vpop.f32.mrb[0].mxu0
        %v1198 = vadd.f32 0.0, %v1197
        %v1199 = vpop.f32.mrb[0].mxu0
        %v1200 = vadd.f32 0.0, %v1199
        %v1201 = vpop.f32.mrb[0].mxu0
        %v1202 = vadd.f32 0.0, %v1201
        %v1203 = vpop.f32.mrb[0].mxu0
        %v1204 = vadd.f32 0.0, %v1203
        %1205 = vmatprep.mubr.bf16.mxu0 0
        %1206 = vmatmul.mubr.bf16.gmra.mrb[0].mxu0 %v1161
        %v1207 = vpop.f32.mrb[0].mxu0
        %v1208 = vadd.f32 0.0, %v1207
        %v1209 = vpop.f32.mrb[0].mxu0
        %v1210 = vadd.f32 0.0, %v1209
        %v1211 = vpop.f32.mrb[0].mxu0
        %v1212 = vadd.f32 0.0, %v1211
        %v1213 = vpop.f32.mrb[0].mxu0
        %v1214 = vadd.f32 0.0, %v1213
        %1215 = vdwg.mxu0
        %1216 = vmatprep.subr.bf16.mxu0 0
        %1217 = vmatpush1.bf16.msra.mxu0 %v452
        %1218 = vmatprep.subr.bf16.mxu0 0
        %1219 = vmatpush1.bf16.msra.mxu0 %v455
        %1220 = vmatprep.subr.bf16.mxu0 0
        %1221 = vmatpush1.bf16.msra.mxu0 0
        %1222 = vmatprep.subr.bf16.mxu0 0
        %1223 = vmatpush1.bf16.msra.mxu0 0
        %1224 = vmatprep.subr.bf16.mxu0 0
        %1225 = vmatpush1.bf16.msra.mxu0 0
        %1226 = vmatprep.subr.bf16.mxu0 0
        %1227 = vmatpush1.bf16.msra.mxu0 0
        %1228 = vmatprep.subr.bf16.mxu0 0
        %1229 = vmatpush1.bf16.msra.mxu0 0
        %1230 = vmatprep.subr.bf16.mxu0 0
        %1231 = vmatpush1.bf16.msra.mxu0 0
        %1232 = vmatprep.subr.bf16.mxu0 0
        %1233 = vmatpush1.bf16.msra.mxu0 0
        %1234 = vmatprep.subr.bf16.mxu0 0
        %1235 = vmatpush1.bf16.msra.mxu0 0
        %1236 = vmatprep.subr.bf16.mxu0 0
        %1237 = vmatpush1.bf16.msra.mxu0 0
        %1238 = vmatprep.subr.bf16.mxu0 0
        %1239 = vmatpush1.bf16.msra.mxu0 0
        %1240 = vmatprep.subr.bf16.mxu0 0
        %1241 = vmatpush1.bf16.msra.mxu0 0
        %1242 = vmatprep.subr.bf16.mxu0 0
        %1243 = vmatpush1.bf16.msra.mxu0 0
        %1244 = vmatprep.subr.bf16.mxu0 0
        %1245 = vmatpush1.bf16.msra.mxu0 0
        %1246 = vmatprep.subr.bf16.mxu0 0
        %1247 = vmatpush1.bf16.msra.mxu0 0
        %1248 = vmatprep.mubr.bf16.mxu0 0
        %1249 = vmatmul.mubr.bf16.gmra.mrb[0].mxu0 %v1158
        %v1250 = vpop.f32.mrb[0].mxu0
        %v1251 = vadd.f32 0.0, %v1250
        %v1252 = vpop.f32.mrb[0].mxu0
        %v1253 = vpop.f32.mrb[0].mxu0
        %v1254 = vadd.f32 0.0, %v1253
        %v1255 = vpop.f32.mrb[0].mxu0
        %1256 = vmatprep.mubr.bf16.mxu0 0
        %1257 = vmatmul.mubr.bf16.gmra.mrb[0].mxu0 %v1161
        %v1258 = vpop.f32.mrb[0].mxu0
        %v1259 = vadd.f32 0.0, %v1258
        %v1260 = vpop.f32.mrb[0].mxu0
        %v1261 = vpop.f32.mrb[0].mxu0
        %v1262 = vadd.f32 0.0, %v1261
        %v1263 = vpop.f32.mrb[0].mxu0
        %1264 = vdwg.mxu0
        %v1265 = vadd.f32 %v1131, %v1198
        %v1266 = vadd.f32 %v1132, %v1200
        %v1267 = vadd.f32 %v1133, %v1251
        %v1268 = vadd.f32 %v1134, %v1202
        %v1269 = vadd.f32 %v1135, %v1204
        %v1270 = vadd.f32 %v1136, %v1254
        %v1271 = vadd.f32 %v1137, %v1208
        %v1272 = vadd.f32 %v1138, %v1210
        %v1273 = vadd.f32 %v1139, %v1259
        %v1274 = vadd.f32 %v1140, %v1212
        %v1275 = vadd.f32 %v1141, %v1214
        %v1276 = vadd.f32 %v1142, %v1262
        %v1277 = vld [vmem:[%s2 + $0x50] sm:$0xf]
        %v1278 = vld [vmem:[%s2 + $0x54] sm:$0xf]
        %v1279 = vld [vmem:[%s2 + $0x58] sm:$0xf]
        %v1280 = vld [vmem:[%s2 + $0x5c] sm:$0xf]
        %v1285 = vunpack.c.l.b16 %v1277
        %v1286 = vunpack.c.l.b16 %v1278
        %v1287 = vunpack.c.l.b16 %v1279
        %v1288 = vunpack.c.l.b16 %v1280
        %v1289 = vpack.c.b16 %v1286, %v1285
        %v1290 = vpack.c.b16 %v1288, %v1287
        %v1292 = vsel %vm470, %v1289, 0
        %v1295 = vsel %vm470, %v1290, 0
        %1297 = vmatprep.subr.bf16.mxu0 %v451
        %1298 = vmatpush1.bf16.msra.mxu0 %v450
        %1299 = vmatprep.subr.bf16.mxu0 %v454
        %1300 = vmatpush1.bf16.msra.mxu0 %v453
        %1301 = vmatprep.subr.bf16.mxu0 0
        %1302 = vmatpush1.bf16.msra.mxu0 0
        %1303 = vmatprep.subr.bf16.mxu0 0
        %1304 = vmatpush1.bf16.msra.mxu0 0
        %1305 = vmatprep.subr.bf16.mxu0 0
        %1306 = vmatpush1.bf16.msra.mxu0 0
        %1307 = vmatprep.subr.bf16.mxu0 0
        %1308 = vmatpush1.bf16.msra.mxu0 0
        %1309 = vmatprep.subr.bf16.mxu0 0
        %1310 = vmatpush1.bf16.msra.mxu0 0
        %1311 = vmatprep.subr.bf16.mxu0 0
        %1312 = vmatpush1.bf16.msra.mxu0 0
        %1313 = vmatprep.subr.bf16.mxu0 0
        %1314 = vmatpush1.bf16.msra.mxu0 0
        %1315 = vmatprep.subr.bf16.mxu0 0
        %1316 = vmatpush1.bf16.msra.mxu0 0
        %1317 = vmatprep.subr.bf16.mxu0 0
        %1318 = vmatpush1.bf16.msra.mxu0 0
        %1319 = vmatprep.subr.bf16.mxu0 0
        %1320 = vmatpush1.bf16.msra.mxu0 0
        %1321 = vmatprep.subr.bf16.mxu0 0
        %1322 = vmatpush1.bf16.msra.mxu0 0
        %1323 = vmatprep.subr.bf16.mxu0 0
        %1324 = vmatpush1.bf16.msra.mxu0 0
        %1325 = vmatprep.subr.bf16.mxu0 0
        %1326 = vmatpush1.bf16.msra.mxu0 0
        %1327 = vmatprep.subr.bf16.mxu0 0
        %1328 = vmatpush1.bf16.msra.mxu0 0
        %1329 = vmatprep.mubr.bf16.mxu0 0
        %1330 = vmatmul.mubr.bf16.gmra.mrb[0].mxu0 %v1292
        %v1331 = vpop.f32.mrb[0].mxu0
        %v1332 = vadd.f32 0.0, %v1331
        %v1333 = vpop.f32.mrb[0].mxu0
        %v1334 = vadd.f32 0.0, %v1333
        %v1335 = vpop.f32.mrb[0].mxu0
        %v1336 = vadd.f32 0.0, %v1335
        %v1337 = vpop.f32.mrb[0].mxu0
        %v1338 = vadd.f32 0.0, %v1337
        %1339 = vmatprep.mubr.bf16.mxu0 0
        %1340 = vmatmul.mubr.bf16.gmra.mrb[0].mxu0 %v1295
        %v1341 = vpop.f32.mrb[0].mxu0
        %v1342 = vadd.f32 0.0, %v1341
        %v1343 = vpop.f32.mrb[0].mxu0
        %v1344 = vadd.f32 0.0, %v1343
        %v1345 = vpop.f32.mrb[0].mxu0
        %v1346 = vadd.f32 0.0, %v1345
        %v1347 = vpop.f32.mrb[0].mxu0
        %v1348 = vadd.f32 0.0, %v1347
        %1349 = vdwg.mxu0
        %1350 = vmatprep.subr.bf16.mxu0 0
        %1351 = vmatpush1.bf16.msra.mxu0 %v452
        %1352 = vmatprep.subr.bf16.mxu0 0
        %1353 = vmatpush1.bf16.msra.mxu0 %v455
        %1354 = vmatprep.subr.bf16.mxu0 0
        %1355 = vmatpush1.bf16.msra.mxu0 0
        %1356 = vmatprep.subr.bf16.mxu0 0
        %1357 = vmatpush1.bf16.msra.mxu0 0
        %1358 = vmatprep.subr.bf16.mxu0 0
        %1359 = vmatpush1.bf16.msra.mxu0 0
        %1360 = vmatprep.subr.bf16.mxu0 0
        %1361 = vmatpush1.bf16.msra.mxu0 0
        %1362 = vmatprep.subr.bf16.mxu0 0
        %1363 = vmatpush1.bf16.msra.mxu0 0
        %1364 = vmatprep.subr.bf16.mxu0 0
        %1365 = vmatpush1.bf16.msra.mxu0 0
        %1366 = vmatprep.subr.bf16.mxu0 0
        %1367 = vmatpush1.bf16.msra.mxu0 0
        %1368 = vmatprep.subr.bf16.mxu0 0
        %1369 = vmatpush1.bf16.msra.mxu0 0
        %1370 = vmatprep.subr.bf16.mxu0 0
        %1371 = vmatpush1.bf16.msra.mxu0 0
        %1372 = vmatprep.subr.bf16.mxu0 0
        %1373 = vmatpush1.bf16.msra.mxu0 0
        %1374 = vmatprep.subr.bf16.mxu0 0
        %1375 = vmatpush1.bf16.msra.mxu0 0
        %1376 = vmatprep.subr.bf16.mxu0 0
        %1377 = vmatpush1.bf16.msra.mxu0 0
        %1378 = vmatprep.subr.bf16.mxu0 0
        %1379 = vmatpush1.bf16.msra.mxu0 0
        %1380 = vmatprep.subr.bf16.mxu0 0
        %1381 = vmatpush1.bf16.msra.mxu0 0
        %1382 = vmatprep.mubr.bf16.mxu0 0
        %1383 = vmatmul.mubr.bf16.gmra.mrb[0].mxu0 %v1292
        %v1384 = vpop.f32.mrb[0].mxu0
        %v1385 = vadd.f32 0.0, %v1384
        %v1386 = vpop.f32.mrb[0].mxu0
        %v1387 = vpop.f32.mrb[0].mxu0
        %v1388 = vadd.f32 0.0, %v1387
        %v1389 = vpop.f32.mrb[0].mxu0
        %1390 = vmatprep.mubr.bf16.mxu0 0
        %1391 = vmatmul.mubr.bf16.gmra.mrb[0].mxu0 %v1295
        %v1392 = vpop.f32.mrb[0].mxu0
        %v1393 = vadd.f32 0.0, %v1392
        %v1394 = vpop.f32.mrb[0].mxu0
        %v1395 = vpop.f32.mrb[0].mxu0
        %v1396 = vadd.f32 0.0, %v1395
        %v1397 = vpop.f32.mrb[0].mxu0
        %1398 = vdwg.mxu0
        %1399 = vrot.lane.b32.xlu0 %v1332, 127
        %v1400 = vpop.permute.xlu0 %1399
        %1401 = vrot.lane.b32.xlu0 %v1336, 127
        %v1402 = vpop.permute.xlu0 %1401
        %1403 = vrot.lane.b32.xlu0 %v1342, 127
        %v1404 = vpop.permute.xlu0 %1403
        %1405 = vrot.lane.b32.xlu0 %v1346, 127
        %v1406 = vpop.permute.xlu0 %1405
        %1407 = vrot.lane.b32.xlu0 %v1334, 127
        %v1408 = vpop.permute.xlu0 %1407
        %1409 = vrot.lane.b32.xlu0 %v1338, 127
        %v1410 = vpop.permute.xlu0 %1409
        %1411 = vrot.lane.b32.xlu0 %v1344, 127
        %v1412 = vpop.permute.xlu0 %1411
        %1413 = vrot.lane.b32.xlu0 %v1348, 127
        %v1414 = vpop.permute.xlu0 %1413
        %1415 = vrot.lane.b32.xlu0 %v1385, 127
        %v1416 = vpop.permute.xlu0 %1415
        %1417 = vrot.lane.b32.xlu0 %v1388, 127
        %v1418 = vpop.permute.xlu0 %1417
        %1419 = vrot.lane.b32.xlu0 %v1393, 127
        %v1420 = vpop.permute.xlu0 %1419
        %1421 = vrot.lane.b32.xlu0 %v1396, 127
        %v1422 = vpop.permute.xlu0 %1421
        %vm1423 = vcmp.lt.s32.totalorder %v604, 127
        %v1424 = vsel %vm1423, %v1408, %v1416
        %v1425 = vsel %vm1423, %v1410, %v1418
        %v1426 = vsel %vm1423, %v1412, %v1420
        %v1427 = vsel %vm1423, %v1414, %v1422
        %v1428 = vsel %vm1423, %v1400, %v1408
        %v1429 = vsel %vm1423, %v1402, %v1410
        %v1430 = vsel %vm1423, %v1404, %v1412
        %v1431 = vsel %vm1423, %v1406, %v1414
        %v1432 = vsel %vm1423, %v1416, %v1400
        %v1433 = vsel %vm1423, %v1418, %v1402
        %v1434 = vsel %vm1423, %v1420, %v1404
        %v1435 = vsel %vm1423, %v1422, %v1406
        %v1436 = vadd.f32 %v1265, %v1428
        %v1437 = vadd.f32 %v1266, %v1424
        %v1438 = vadd.f32 %v1267, %v1432
        %v1439 = vadd.f32 %v1268, %v1429
        %v1440 = vadd.f32 %v1269, %v1425
        %v1441 = vadd.f32 %v1270, %v1433
        %v1442 = vadd.f32 %v1271, %v1430
        %v1443 = vadd.f32 %v1272, %v1426
        %v1444 = vadd.f32 %v1273, %v1434
        %v1445 = vadd.f32 %v1274, %v1431
        %v1446 = vadd.f32 %v1275, %v1427
        %v1447 = vadd.f32 %v1276, %v1435
        %v1448 = vld [vmem:[%s2 + $0x60] sm:$0xf]
        %v1449 = vld [vmem:[%s2 + $0x64] sm:$0xf]
        %v1450 = vld [vmem:[%s2 + $0x68] sm:$0xf]
        %v1451 = vld [vmem:[%s2 + $0x6c] sm:$0xf]
        %v1456 = vunpack.c.l.b16 %v1448
        %v1457 = vunpack.c.l.b16 %v1449
        %v1458 = vunpack.c.l.b16 %v1450
        %v1459 = vunpack.c.l.b16 %v1451
        %v1460 = vpack.c.b16 %v1457, %v1456
        %v1461 = vpack.c.b16 %v1459, %v1458
        %v1463 = vsel %vm470, %v1460, 0
        %v1466 = vsel %vm470, %v1461, 0
        %1468 = vmatprep.subr.bf16.mxu0 %v451
        %1469 = vmatpush1.bf16.msra.mxu0 %v450
        %1470 = vmatprep.subr.bf16.mxu0 %v454
        %1471 = vmatpush1.bf16.msra.mxu0 %v453
        %1472 = vmatprep.subr.bf16.mxu0 0
        %1473 = vmatpush1.bf16.msra.mxu0 0
        %1474 = vmatprep.subr.bf16.mxu0 0
        %1475 = vmatpush1.bf16.msra.mxu0 0
        %1476 = vmatprep.subr.bf16.mxu0 0
        %1477 = vmatpush1.bf16.msra.mxu0 0
        %1478 = vmatprep.subr.bf16.mxu0 0
        %1479 = vmatpush1.bf16.msra.mxu0 0
        %1480 = vmatprep.subr.bf16.mxu0 0
        %1481 = vmatpush1.bf16.msra.mxu0 0
        %1482 = vmatprep.subr.bf16.mxu0 0
        %1483 = vmatpush1.bf16.msra.mxu0 0
        %1484 = vmatprep.subr.bf16.mxu0 0
        %1485 = vmatpush1.bf16.msra.mxu0 0
        %1486 = vmatprep.subr.bf16.mxu0 0
        %1487 = vmatpush1.bf16.msra.mxu0 0
        %1488 = vmatprep.subr.bf16.mxu0 0
        %1489 = vmatpush1.bf16.msra.mxu0 0
        %1490 = vmatprep.subr.bf16.mxu0 0
        %1491 = vmatpush1.bf16.msra.mxu0 0
        %1492 = vmatprep.subr.bf16.mxu0 0
        %1493 = vmatpush1.bf16.msra.mxu0 0
        %1494 = vmatprep.subr.bf16.mxu0 0
        %1495 = vmatpush1.bf16.msra.mxu0 0
        %1496 = vmatprep.subr.bf16.mxu0 0
        %1497 = vmatpush1.bf16.msra.mxu0 0
        %1498 = vmatprep.subr.bf16.mxu0 0
        %1499 = vmatpush1.bf16.msra.mxu0 0
        %1500 = vmatprep.mubr.bf16.mxu0 0
        %1501 = vmatmul.mubr.bf16.gmra.mrb[0].mxu0 %v1463
        %v1502 = vpop.f32.mrb[0].mxu0
        %v1503 = vadd.f32 0.0, %v1502
        %v1504 = vpop.f32.mrb[0].mxu0
        %v1505 = vadd.f32 0.0, %v1504
        %v1506 = vpop.f32.mrb[0].mxu0
        %v1507 = vadd.f32 0.0, %v1506
        %v1508 = vpop.f32.mrb[0].mxu0
        %v1509 = vadd.f32 0.0, %v1508
        %1510 = vmatprep.mubr.bf16.mxu0 0
        %1511 = vmatmul.mubr.bf16.gmra.mrb[0].mxu0 %v1466
        %v1512 = vpop.f32.mrb[0].mxu0
        %v1513 = vadd.f32 0.0, %v1512
        %v1514 = vpop.f32.mrb[0].mxu0
        %v1515 = vadd.f32 0.0, %v1514
        %v1516 = vpop.f32.mrb[0].mxu0
        %v1517 = vadd.f32 0.0, %v1516
        %v1518 = vpop.f32.mrb[0].mxu0
        %v1519 = vadd.f32 0.0, %v1518
        %1520 = vdwg.mxu0
        %1521 = vmatprep.subr.bf16.mxu0 0
        %1522 = vmatpush1.bf16.msra.mxu0 %v452
        %1523 = vmatprep.subr.bf16.mxu0 0
        %1524 = vmatpush1.bf16.msra.mxu0 %v455
        %1525 = vmatprep.subr.bf16.mxu0 0
        %1526 = vmatpush1.bf16.msra.mxu0 0
        %1527 = vmatprep.subr.bf16.mxu0 0
        %1528 = vmatpush1.bf16.msra.mxu0 0
        %1529 = vmatprep.subr.bf16.mxu0 0
        %1530 = vmatpush1.bf16.msra.mxu0 0
        %1531 = vmatprep.subr.bf16.mxu0 0
        %1532 = vmatpush1.bf16.msra.mxu0 0
        %1533 = vmatprep.subr.bf16.mxu0 0
        %1534 = vmatpush1.bf16.msra.mxu0 0
        %1535 = vmatprep.subr.bf16.mxu0 0
        %1536 = vmatpush1.bf16.msra.mxu0 0
        %1537 = vmatprep.subr.bf16.mxu0 0
        %1538 = vmatpush1.bf16.msra.mxu0 0
        %1539 = vmatprep.subr.bf16.mxu0 0
        %1540 = vmatpush1.bf16.msra.mxu0 0
        %1541 = vmatprep.subr.bf16.mxu0 0
        %1542 = vmatpush1.bf16.msra.mxu0 0
        %1543 = vmatprep.subr.bf16.mxu0 0
        %1544 = vmatpush1.bf16.msra.mxu0 0
        %1545 = vmatprep.subr.bf16.mxu0 0
        %1546 = vmatpush1.bf16.msra.mxu0 0
        %1547 = vmatprep.subr.bf16.mxu0 0
        %1548 = vmatpush1.bf16.msra.mxu0 0
        %1549 = vmatprep.subr.bf16.mxu0 0
        %1550 = vmatpush1.bf16.msra.mxu0 0
        %1551 = vmatprep.subr.bf16.mxu0 0
        %1552 = vmatpush1.bf16.msra.mxu0 0
        %1553 = vmatprep.mubr.bf16.mxu0 0
        %1554 = vmatmul.mubr.bf16.gmra.mrb[0].mxu0 %v1463
        %v1555 = vpop.f32.mrb[0].mxu0
        %v1556 = vadd.f32 0.0, %v1555
        %v1557 = vpop.f32.mrb[0].mxu0
        %v1558 = vpop.f32.mrb[0].mxu0
        %v1559 = vadd.f32 0.0, %v1558
        %v1560 = vpop.f32.mrb[0].mxu0
        %1561 = vmatprep.mubr.bf16.mxu0 0
        %1562 = vmatmul.mubr.bf16.gmra.mrb[0].mxu0 %v1466
        %v1563 = vpop.f32.mrb[0].mxu0
        %v1564 = vadd.f32 0.0, %v1563
        %v1565 = vpop.f32.mrb[0].mxu0
        %v1566 = vpop.f32.mrb[0].mxu0
        %v1567 = vadd.f32 0.0, %v1566
        %v1568 = vpop.f32.mrb[0].mxu0
        %1569 = vdwg.mxu0
        %1570 = vrot.lane.b32.xlu0 %v1503, 111
        %v1571 = vpop.permute.xlu0 %1570
        %1572 = vrot.lane.b32.xlu0 %v1507, 111
        %v1573 = vpop.permute.xlu0 %1572
        %1574 = vrot.lane.b32.xlu0 %v1513, 111
        %v1575 = vpop.permute.xlu0 %1574
        %1576 = vrot.lane.b32.xlu0 %v1517, 111
        %v1577 = vpop.permute.xlu0 %1576
        %1578 = vrot.lane.b32.xlu0 %v1505, 111
        %v1579 = vpop.permute.xlu0 %1578
        %1580 = vrot.lane.b32.xlu0 %v1509, 111
        %v1581 = vpop.permute.xlu0 %1580
        %1582 = vrot.lane.b32.xlu0 %v1515, 111
        %v1583 = vpop.permute.xlu0 %1582
        %1584 = vrot.lane.b32.xlu0 %v1519, 111
        %v1585 = vpop.permute.xlu0 %1584
        %1586 = vrot.lane.b32.xlu0 %v1556, 111
        %v1587 = vpop.permute.xlu0 %1586
        %1588 = vrot.lane.b32.xlu0 %v1559, 111
        %v1589 = vpop.permute.xlu0 %1588
        %1590 = vrot.lane.b32.xlu0 %v1564, 111
        %v1591 = vpop.permute.xlu0 %1590
        %1592 = vrot.lane.b32.xlu0 %v1567, 111
        %v1593 = vpop.permute.xlu0 %1592
        %vm1594 = vcmp.lt.s32.totalorder %v604, 111
        %v1595 = vsel %vm1594, %v1579, %v1587
        %v1596 = vsel %vm1594, %v1581, %v1589
        %v1597 = vsel %vm1594, %v1583, %v1591
        %v1598 = vsel %vm1594, %v1585, %v1593
        %v1599 = vsel %vm1594, %v1571, %v1579
        %v1600 = vsel %vm1594, %v1573, %v1581
        %v1601 = vsel %vm1594, %v1575, %v1583
        %v1602 = vsel %vm1594, %v1577, %v1585
        %v1603 = vsel %vm1594, %v1587, %v1571
        %v1604 = vsel %vm1594, %v1589, %v1573
        %v1605 = vsel %vm1594, %v1591, %v1575
        %v1606 = vsel %vm1594, %v1593, %v1577
        %v1607 = vadd.f32 %v1436, %v1599
        %v1608 = vadd.f32 %v1437, %v1595
        %v1609 = vadd.f32 %v1438, %v1603
        %v1610 = vadd.f32 %v1439, %v1600
        %v1611 = vadd.f32 %v1440, %v1596
        %v1612 = vadd.f32 %v1441, %v1604
        %v1613 = vadd.f32 %v1442, %v1601
        %v1614 = vadd.f32 %v1443, %v1597
        %v1615 = vadd.f32 %v1444, %v1605
        %v1616 = vadd.f32 %v1445, %v1602
        %v1617 = vadd.f32 %v1446, %v1598
        %v1618 = vadd.f32 %v1447, %v1606
        %v1619 = vld [vmem:[%s2 + $0x70] sm:$0xf]
        %v1620 = vld [vmem:[%s2 + $0x74] sm:$0xf]
        %v1621 = vld [vmem:[%s2 + $0x78] sm:$0xf]
        %v1622 = vld [vmem:[%s2 + $0x7c] sm:$0xf]
        %v1627 = vunpack.c.l.b16 %v1619
        %v1628 = vunpack.c.l.b16 %v1620
        %v1629 = vunpack.c.l.b16 %v1621
        %v1630 = vunpack.c.l.b16 %v1622
        %v1631 = vpack.c.b16 %v1628, %v1627
        %v1632 = vpack.c.b16 %v1630, %v1629
        %v1634 = vsel %vm470, %v1631, 0
        %v1637 = vsel %vm470, %v1632, 0
        %1639 = vmatprep.subr.bf16.mxu0 %v451
        %1640 = vmatpush1.bf16.msra.mxu0 %v450
        %1641 = vmatprep.subr.bf16.mxu0 %v454
        %1642 = vmatpush1.bf16.msra.mxu0 %v453
        %1643 = vmatprep.subr.bf16.mxu0 0
        %1644 = vmatpush1.bf16.msra.mxu0 0
        %1645 = vmatprep.subr.bf16.mxu0 0
        %1646 = vmatpush1.bf16.msra.mxu0 0
        %1647 = vmatprep.subr.bf16.mxu0 0
        %1648 = vmatpush1.bf16.msra.mxu0 0
        %1649 = vmatprep.subr.bf16.mxu0 0
        %1650 = vmatpush1.bf16.msra.mxu0 0
        %1651 = vmatprep.subr.bf16.mxu0 0
        %1652 = vmatpush1.bf16.msra.mxu0 0
        %1653 = vmatprep.subr.bf16.mxu0 0
        %1654 = vmatpush1.bf16.msra.mxu0 0
        %1655 = vmatprep.subr.bf16.mxu0 0
        %1656 = vmatpush1.bf16.msra.mxu0 0
        %1657 = vmatprep.subr.bf16.mxu0 0
        %1658 = vmatpush1.bf16.msra.mxu0 0
        %1659 = vmatprep.subr.bf16.mxu0 0
        %1660 = vmatpush1.bf16.msra.mxu0 0
        %1661 = vmatprep.subr.bf16.mxu0 0
        %1662 = vmatpush1.bf16.msra.mxu0 0
        %1663 = vmatprep.subr.bf16.mxu0 0
        %1664 = vmatpush1.bf16.msra.mxu0 0
        %1665 = vmatprep.subr.bf16.mxu0 0
        %1666 = vmatpush1.bf16.msra.mxu0 0
        %1667 = vmatprep.subr.bf16.mxu0 0
        %1668 = vmatpush1.bf16.msra.mxu0 0
        %1669 = vmatprep.subr.bf16.mxu0 0
        %1670 = vmatpush1.bf16.msra.mxu0 0
        %1671 = vmatprep.mubr.bf16.mxu0 0
        %1672 = vmatmul.mubr.bf16.gmra.mrb[0].mxu0 %v1634
        %v1673 = vpop.f32.mrb[0].mxu0
        %v1674 = vadd.f32 0.0, %v1673
        %v1675 = vpop.f32.mrb[0].mxu0
        %v1676 = vadd.f32 0.0, %v1675
        %v1677 = vpop.f32.mrb[0].mxu0
        %v1678 = vadd.f32 0.0, %v1677
        %v1679 = vpop.f32.mrb[0].mxu0
        %v1680 = vadd.f32 0.0, %v1679
        %1681 = vmatprep.mubr.bf16.mxu0 0
        %1682 = vmatmul.mubr.bf16.gmra.mrb[0].mxu0 %v1637
        %v1683 = vpop.f32.mrb[0].mxu0
        %v1684 = vadd.f32 0.0, %v1683
        %v1685 = vpop.f32.mrb[0].mxu0
        %v1686 = vadd.f32 0.0, %v1685
        %v1687 = vpop.f32.mrb[0].mxu0
        %v1688 = vadd.f32 0.0, %v1687
        %v1689 = vpop.f32.mrb[0].mxu0
        %v1690 = vadd.f32 0.0, %v1689
        %1691 = vdwg.mxu0
        %1692 = vmatprep.subr.bf16.mxu0 0
        %1693 = vmatpush1.bf16.msra.mxu0 %v452
        %1694 = vmatprep.subr.bf16.mxu0 0
        %1695 = vmatpush1.bf16.msra.mxu0 %v455
        %1696 = vmatprep.subr.bf16.mxu0 0
        %1697 = vmatpush1.bf16.msra.mxu0 0
        %1698 = vmatprep.subr.bf16.mxu0 0
        %1699 = vmatpush1.bf16.msra.mxu0 0
        %1700 = vmatprep.subr.bf16.mxu0 0
        %1701 = vmatpush1.bf16.msra.mxu0 0
        %1702 = vmatprep.subr.bf16.mxu0 0
        %1703 = vmatpush1.bf16.msra.mxu0 0
        %1704 = vmatprep.subr.bf16.mxu0 0
        %1705 = vmatpush1.bf16.msra.mxu0 0
        %1706 = vmatprep.subr.bf16.mxu0 0
        %1707 = vmatpush1.bf16.msra.mxu0 0
        %1708 = vmatprep.subr.bf16.mxu0 0
        %1709 = vmatpush1.bf16.msra.mxu0 0
        %1710 = vmatprep.subr.bf16.mxu0 0
        %1711 = vmatpush1.bf16.msra.mxu0 0
        %1712 = vmatprep.subr.bf16.mxu0 0
        %1713 = vmatpush1.bf16.msra.mxu0 0
        %1714 = vmatprep.subr.bf16.mxu0 0
        %1715 = vmatpush1.bf16.msra.mxu0 0
        %1716 = vmatprep.subr.bf16.mxu0 0
        %1717 = vmatpush1.bf16.msra.mxu0 0
        %1718 = vmatprep.subr.bf16.mxu0 0
        %1719 = vmatpush1.bf16.msra.mxu0 0
        %1720 = vmatprep.subr.bf16.mxu0 0
        %1721 = vmatpush1.bf16.msra.mxu0 0
        %1722 = vmatprep.subr.bf16.mxu0 0
        %1723 = vmatpush1.bf16.msra.mxu0 0
        %1724 = vmatprep.mubr.bf16.mxu0 0
        %1725 = vmatmul.mubr.bf16.gmra.mrb[0].mxu0 %v1634
        %v1726 = vpop.f32.mrb[0].mxu0
        %v1727 = vadd.f32 0.0, %v1726
        %v1728 = vpop.f32.mrb[0].mxu0
        %v1729 = vpop.f32.mrb[0].mxu0
        %v1730 = vadd.f32 0.0, %v1729
        %v1731 = vpop.f32.mrb[0].mxu0
        %1732 = vmatprep.mubr.bf16.mxu0 0
        %1733 = vmatmul.mubr.bf16.gmra.mrb[0].mxu0 %v1637
        %v1734 = vpop.f32.mrb[0].mxu0
        %v1735 = vadd.f32 0.0, %v1734
        %v1736 = vpop.f32.mrb[0].mxu0
        %v1737 = vpop.f32.mrb[0].mxu0
        %v1738 = vadd.f32 0.0, %v1737
        %v1739 = vpop.f32.mrb[0].mxu0
        %1740 = vdwg.mxu0
        %1741 = vrot.lane.b32.xlu0 %v1674, 110
        %v1742 = vpop.permute.xlu0 %1741
        %1743 = vrot.lane.b32.xlu0 %v1678, 110
        %v1744 = vpop.permute.xlu0 %1743
        %1745 = vrot.lane.b32.xlu0 %v1684, 110
        %v1746 = vpop.permute.xlu0 %1745
        %1747 = vrot.lane.b32.xlu0 %v1688, 110
        %v1748 = vpop.permute.xlu0 %1747
        %1749 = vrot.lane.b32.xlu0 %v1676, 110
        %v1750 = vpop.permute.xlu0 %1749
        %1751 = vrot.lane.b32.xlu0 %v1680, 110
        %v1752 = vpop.permute.xlu0 %1751
        %1753 = vrot.lane.b32.xlu0 %v1686, 110
        %v1754 = vpop.permute.xlu0 %1753
        %1755 = vrot.lane.b32.xlu0 %v1690, 110
        %v1756 = vpop.permute.xlu0 %1755
        %1757 = vrot.lane.b32.xlu0 %v1727, 110
        %v1758 = vpop.permute.xlu0 %1757
        %1759 = vrot.lane.b32.xlu0 %v1730, 110
        %v1760 = vpop.permute.xlu0 %1759
        %1761 = vrot.lane.b32.xlu0 %v1735, 110
        %v1762 = vpop.permute.xlu0 %1761
        %1763 = vrot.lane.b32.xlu0 %v1738, 110
        %v1764 = vpop.permute.xlu0 %1763
        %vm1765 = vcmp.lt.s32.totalorder %v604, 110
        %v1766 = vsel %vm1765, %v1750, %v1758
        %v1767 = vsel %vm1765, %v1752, %v1760
        %v1768 = vsel %vm1765, %v1754, %v1762
        %v1769 = vsel %vm1765, %v1756, %v1764
        %v1770 = vsel %vm1765, %v1742, %v1750
        %v1771 = vsel %vm1765, %v1744, %v1752
        %v1772 = vsel %vm1765, %v1746, %v1754
        %v1773 = vsel %vm1765, %v1748, %v1756
        %v1774 = vsel %vm1765, %v1758, %v1742
        %v1775 = vsel %vm1765, %v1760, %v1744
        %v1776 = vsel %vm1765, %v1762, %v1746
        %v1777 = vsel %vm1765, %v1764, %v1748
        %v1778 = vadd.f32 %v1607, %v1770
        %v1779 = vadd.f32 %v1608, %v1766
        %v1780 = vadd.f32 %v1609, %v1774
        %v1781 = vadd.f32 %v1610, %v1771
        %v1782 = vadd.f32 %v1611, %v1767
        %v1783 = vadd.f32 %v1612, %v1775
        %v1784 = vadd.f32 %v1613, %v1772
        %v1785 = vadd.f32 %v1614, %v1768
        %v1786 = vadd.f32 %v1615, %v1776
        %v1787 = vadd.f32 %v1616, %v1773
        %v1788 = vadd.f32 %v1617, %v1769
        %v1789 = vadd.f32 %v1618, %v1777
        %v1790 = vld [vmem:[%s2 + $0x80] sm:$0xf]
        %v1791 = vld [vmem:[%s2 + $0x84] sm:$0xf]
        %v1792 = vld [vmem:[%s2 + $0x88] sm:$0xf]
        %v1793 = vld [vmem:[%s2 + $0x8c] sm:$0xf]
        %v1798 = vunpack.c.l.b16 %v1790
        %v1799 = vunpack.c.l.b16 %v1791
        %v1800 = vunpack.c.l.b16 %v1792
        %v1801 = vunpack.c.l.b16 %v1793
        %v1802 = vpack.c.b16 %v1799, %v1798
        %v1803 = vpack.c.b16 %v1801, %v1800
        %v1805 = vsel %vm470, %v1802, 0
        %v1808 = vsel %vm470, %v1803, 0
        %1810 = vmatprep.subr.bf16.mxu0 %v451
        %1811 = vmatpush1.bf16.msra.mxu0 %v450
        %1812 = vmatprep.subr.bf16.mxu0 %v454
        %1813 = vmatpush1.bf16.msra.mxu0 %v453
        %1814 = vmatprep.subr.bf16.mxu0 0
        %1815 = vmatpush1.bf16.msra.mxu0 0
        %1816 = vmatprep.subr.bf16.mxu0 0
        %1817 = vmatpush1.bf16.msra.mxu0 0
        %1818 = vmatprep.subr.bf16.mxu0 0
        %1819 = vmatpush1.bf16.msra.mxu0 0
        %1820 = vmatprep.subr.bf16.mxu0 0
        %1821 = vmatpush1.bf16.msra.mxu0 0
        %1822 = vmatprep.subr.bf16.mxu0 0
        %1823 = vmatpush1.bf16.msra.mxu0 0
        %1824 = vmatprep.subr.bf16.mxu0 0
        %1825 = vmatpush1.bf16.msra.mxu0 0
        %1826 = vmatprep.subr.bf16.mxu0 0
        %1827 = vmatpush1.bf16.msra.mxu0 0
        %1828 = vmatprep.subr.bf16.mxu0 0
        %1829 = vmatpush1.bf16.msra.mxu0 0
        %1830 = vmatprep.subr.bf16.mxu0 0
        %1831 = vmatpush1.bf16.msra.mxu0 0
        %1832 = vmatprep.subr.bf16.mxu0 0
        %1833 = vmatpush1.bf16.msra.mxu0 0
        %1834 = vmatprep.subr.bf16.mxu0 0
        %1835 = vmatpush1.bf16.msra.mxu0 0
        %1836 = vmatprep.subr.bf16.mxu0 0
        %1837 = vmatpush1.bf16.msra.mxu0 0
        %1838 = vmatprep.subr.bf16.mxu0 0
        %1839 = vmatpush1.bf16.msra.mxu0 0
        %1840 = vmatprep.subr.bf16.mxu0 0
        %1841 = vmatpush1.bf16.msra.mxu0 0
        %1842 = vmatprep.mubr.bf16.mxu0 0
        %1843 = vmatmul.mubr.bf16.gmra.mrb[0].mxu0 %v1805
        %v1844 = vpop.f32.mrb[0].mxu0
        %v1845 = vadd.f32 0.0, %v1844
        %v1846 = vpop.f32.mrb[0].mxu0
        %v1847 = vadd.f32 0.0, %v1846
        %v1848 = vpop.f32.mrb[0].mxu0
        %v1849 = vadd.f32 0.0, %v1848
        %v1850 = vpop.f32.mrb[0].mxu0
        %v1851 = vadd.f32 0.0, %v1850
        %1852 = vmatprep.mubr.bf16.mxu0 0
        %1853 = vmatmul.mubr.bf16.gmra.mrb[0].mxu0 %v1808
        %v1854 = vpop.f32.mrb[0].mxu0
        %v1855 = vadd.f32 0.0, %v1854
        %v1856 = vpop.f32.mrb[0].mxu0
        %v1857 = vadd.f32 0.0, %v1856
        %v1858 = vpop.f32.mrb[0].mxu0
        %v1859 = vadd.f32 0.0, %v1858
        %v1860 = vpop.f32.mrb[0].mxu0
        %v1861 = vadd.f32 0.0, %v1860
        %1862 = vdwg.mxu0
        %1863 = vmatprep.subr.bf16.mxu0 0
        %1864 = vmatpush1.bf16.msra.mxu0 %v452
        %1865 = vmatprep.subr.bf16.mxu0 0
        %1866 = vmatpush1.bf16.msra.mxu0 %v455
        %1867 = vmatprep.subr.bf16.mxu0 0
        %1868 = vmatpush1.bf16.msra.mxu0 0
        %1869 = vmatprep.subr.bf16.mxu0 0
        %1870 = vmatpush1.bf16.msra.mxu0 0
        %1871 = vmatprep.subr.bf16.mxu0 0
        %1872 = vmatpush1.bf16.msra.mxu0 0
        %1873 = vmatprep.subr.bf16.mxu0 0
        %1874 = vmatpush1.bf16.msra.mxu0 0
        %1875 = vmatprep.subr.bf16.mxu0 0
        %1876 = vmatpush1.bf16.msra.mxu0 0
        %1877 = vmatprep.subr.bf16.mxu0 0
        %1878 = vmatpush1.bf16.msra.mxu0 0
        %1879 = vmatprep.subr.bf16.mxu0 0
        %1880 = vmatpush1.bf16.msra.mxu0 0
        %1881 = vmatprep.subr.bf16.mxu0 0
        %1882 = vmatpush1.bf16.msra.mxu0 0
        %1883 = vmatprep.subr.bf16.mxu0 0
        %1884 = vmatpush1.bf16.msra.mxu0 0
        %1885 = vmatprep.subr.bf16.mxu0 0
        %1886 = vmatpush1.bf16.msra.mxu0 0
        %1887 = vmatprep.subr.bf16.mxu0 0
        %1888 = vmatpush1.bf16.msra.mxu0 0
        %1889 = vmatprep.subr.bf16.mxu0 0
        %1890 = vmatpush1.bf16.msra.mxu0 0
        %1891 = vmatprep.subr.bf16.mxu0 0
        %1892 = vmatpush1.bf16.msra.mxu0 0
        %1893 = vmatprep.subr.bf16.mxu0 0
        %1894 = vmatpush1.bf16.msra.mxu0 0
        %1895 = vmatprep.mubr.bf16.mxu0 0
        %1896 = vmatmul.mubr.bf16.gmra.mrb[0].mxu0 %v1805
        %v1897 = vpop.f32.mrb[0].mxu0
        %v1898 = vadd.f32 0.0, %v1897
        %v1899 = vpop.f32.mrb[0].mxu0
        %v1900 = vpop.f32.mrb[0].mxu0
        %v1901 = vadd.f32 0.0, %v1900
        %v1902 = vpop.f32.mrb[0].mxu0
        %1903 = vmatprep.mubr.bf16.mxu0 0
        %1904 = vmatmul.mubr.bf16.gmra.mrb[0].mxu0 %v1808
        %v1905 = vpop.f32.mrb[0].mxu0
        %v1906 = vadd.f32 0.0, %v1905
        %v1907 = vpop.f32.mrb[0].mxu0
        %v1908 = vpop.f32.mrb[0].mxu0
        %v1909 = vadd.f32 0.0, %v1908
        %v1910 = vpop.f32.mrb[0].mxu0
        %1911 = vdwg.mxu0
        %1912 = vrot.lane.b32.xlu0 %v1845, 109
        %v1913 = vpop.permute.xlu0 %1912
        %1914 = vrot.lane.b32.xlu0 %v1849, 109
        %v1915 = vpop.permute.xlu0 %1914
        %1916 = vrot.lane.b32.xlu0 %v1855, 109
        %v1917 = vpop.permute.xlu0 %1916
        %1918 = vrot.lane.b32.xlu0 %v1859, 109
        %v1919 = vpop.permute.xlu0 %1918
        %1920 = vrot.lane.b32.xlu0 %v1847, 109
        %v1921 = vpop.permute.xlu0 %1920
        %1922 = vrot.lane.b32.xlu0 %v1851, 109
        %v1923 = vpop.permute.xlu0 %1922
        %1924 = vrot.lane.b32.xlu0 %v1857, 109
        %v1925 = vpop.permute.xlu0 %1924
        %1926 = vrot.lane.b32.xlu0 %v1861, 109
        %v1927 = vpop.permute.xlu0 %1926
        %1928 = vrot.lane.b32.xlu0 %v1898, 109
        %v1929 = vpop.permute.xlu0 %1928
        %1930 = vrot.lane.b32.xlu0 %v1901, 109
        %v1931 = vpop.permute.xlu0 %1930
        %1932 = vrot.lane.b32.xlu0 %v1906, 109
        %v1933 = vpop.permute.xlu0 %1932
        %1934 = vrot.lane.b32.xlu0 %v1909, 109
        %v1935 = vpop.permute.xlu0 %1934
        %vm1936 = vcmp.lt.s32.totalorder %v604, 109
        %v1937 = vsel %vm1936, %v1921, %v1929
        %v1938 = vsel %vm1936, %v1923, %v1931
        %v1939 = vsel %vm1936, %v1925, %v1933
        %v1940 = vsel %vm1936, %v1927, %v1935
        %v1941 = vsel %vm1936, %v1913, %v1921
        %v1942 = vsel %vm1936, %v1915, %v1923
        %v1943 = vsel %vm1936, %v1917, %v1925
        %v1944 = vsel %vm1936, %v1919, %v1927
        %v1945 = vsel %vm1936, %v1929, %v1913
        %v1946 = vsel %vm1936, %v1931, %v1915
        %v1947 = vsel %vm1936, %v1933, %v1917
        %v1948 = vsel %vm1936, %v1935, %v1919
        %v1949 = vadd.f32 %v1778, %v1941
        %v1950 = vadd.f32 %v1779, %v1937
        %v1951 = vadd.f32 %v1780, %v1945
        %v1952 = vadd.f32 %v1781, %v1942
        %v1953 = vadd.f32 %v1782, %v1938
        %v1954 = vadd.f32 %v1783, %v1946
        %v1955 = vadd.f32 %v1784, %v1943
        %v1956 = vadd.f32 %v1785, %v1939
        %v1957 = vadd.f32 %v1786, %v1947
        %v1958 = vadd.f32 %v1787, %v1944
        %v1959 = vadd.f32 %v1788, %v1940
        %v1960 = vadd.f32 %v1789, %v1948
        %v1961 = vld [vmem:[%s3] sm:$0xff]
        %v1962 = vld [vmem:[%s3 + $0x8] sm:$0xff]
        %v1963 = vld [vmem:[%s3 + $0x10] sm:$0xff]
        %v1964 = vld [vmem:[%s3 + $0x18] sm:$0xff]
        %1966 = vset.pattern.permute.xlu0 0
        %1967 = vperm.xlu0 %1966, %v1961
        %v1968 = vpop.permute.xlu0 %1967
        %1971 = vset.pattern.permute.xlu0 0
        %1972 = vperm.xlu0 %1971, %v1962
        %v1973 = vpop.permute.xlu0 %1972
        %1976 = vset.pattern.permute.xlu0 0
        %1977 = vperm.xlu0 %1976, %v1963
        %v1978 = vpop.permute.xlu0 %1977
        %1981 = vset.pattern.permute.xlu0 0
        %1982 = vperm.xlu0 %1981, %v1964
        %v1983 = vpop.permute.xlu0 %1982
        %v1985 = vadd.f32 %v1949, %v1968
        %v1986 = vadd.f32 %v1950, %v1968
        %v1987 = vadd.f32 %v1951, %v1968
        %v1988 = vadd.f32 %v1952, %v1973
        %v1989 = vadd.f32 %v1953, %v1973
        %v1990 = vadd.f32 %v1954, %v1973
        %v1991 = vadd.f32 %v1955, %v1978
        %v1992 = vadd.f32 %v1956, %v1978
        %v1993 = vadd.f32 %v1957, %v1978
        %v1994 = vadd.f32 %v1958, %v1983
        %v1995 = vadd.f32 %v1959, %v1983
        %v1996 = vadd.f32 %v1960, %v1983
        %vm1997 = vcmp.ge.f32.partialorder %v1985, 0.0
        %vm1998 = vcmp.ge.f32.partialorder %v1986, 0.0
        %vm1999 = vcmp.ge.f32.partialorder %v1987, 0.0
        %vm2000 = vcmp.ge.f32.partialorder %v1988, 0.0
        %vm2001 = vcmp.ge.f32.partialorder %v1989, 0.0
        %vm2002 = vcmp.ge.f32.partialorder %v1990, 0.0
        %vm2003 = vcmp.ge.f32.partialorder %v1991, 0.0
        %vm2004 = vcmp.ge.f32.partialorder %v1992, 0.0
        %vm2005 = vcmp.ge.f32.partialorder %v1993, 0.0
        %vm2006 = vcmp.ge.f32.partialorder %v1994, 0.0
        %vm2007 = vcmp.ge.f32.partialorder %v1995, 0.0
        %vm2008 = vcmp.ge.f32.partialorder %v1996, 0.0
        %v2009 = vmul.f32 %v1985, 0.01
        %v2010 = vmul.f32 %v1986, 0.01
        %v2011 = vmul.f32 %v1987, 0.01
        %v2012 = vmul.f32 %v1988, 0.01
        %v2013 = vmul.f32 %v1989, 0.01
        %v2014 = vmul.f32 %v1990, 0.01
        %v2015 = vmul.f32 %v1991, 0.01
        %v2016 = vmul.f32 %v1992, 0.01
        %v2017 = vmul.f32 %v1993, 0.01
        %v2018 = vmul.f32 %v1994, 0.01
        %v2019 = vmul.f32 %v1995, 0.01
        %v2020 = vmul.f32 %v1996, 0.01
        %v2021 = vsel %vm1997, %v1985, %v2009
        %v2022 = vsel %vm1998, %v1986, %v2010
        %v2023 = vsel %vm1999, %v1987, %v2011
        %v2024 = vsel %vm2000, %v1988, %v2012
        %v2025 = vsel %vm2001, %v1989, %v2013
        %v2026 = vsel %vm2002, %v1990, %v2014
        %v2027 = vsel %vm2003, %v1991, %v2015
        %v2028 = vsel %vm2004, %v1992, %v2016
        %v2029 = vsel %vm2005, %v1993, %v2017
        %v2030 = vsel %vm2006, %v1994, %v2018
        %v2031 = vsel %vm2007, %v1995, %v2019
        %v2032 = vsel %vm2008, %v1996, %v2020
        %v2034 = vlaneseq
        %v2035 = vshrl.u32 %v2034, 7
        %v2036 = vsub.s32 0, %v2035
        %v2037 = vrot.slane %v437, %v2036
        %v2038 = vlaneseq
        %v2039 = vshrl.u32 %v2038, 7
        %v2040 = vsub.s32 1, %v2039
        %v2041 = vrot.slane %v437, %v2040
        %v2042 = vlaneseq
        %v2043 = vshrl.u32 %v2042, 7
        %v2044 = vsub.s32 2, %v2043
        %v2045 = vrot.slane %v437, %v2044
        %v2049 = vmul.f32 %v2021, %v2037
        %v2050 = vmul.f32 %v2022, %v2041
        %v2051 = vmul.f32 %v2023, %v2045
        %v2052 = vmul.f32 %v2024, %v2037
        %v2053 = vmul.f32 %v2025, %v2041
        %v2054 = vmul.f32 %v2026, %v2045
        %v2055 = vmul.f32 %v2027, %v2037
        %v2056 = vmul.f32 %v2028, %v2041
        %v2057 = vmul.f32 %v2029, %v2045
        %v2058 = vmul.f32 %v2030, %v2037
        %v2059 = vmul.f32 %v2031, %v2041
        %v2060 = vmul.f32 %v2032, %v2045
        %2061 = vst [vmem:[#allocation2 + $0x60] sm:$0xff] %v2049
        %2062 = vst [vmem:[#allocation2 + $0x68] sm:$0xff] %v2050
        %2063 = vst [vmem:[#allocation2 + $0x70] sm:$0xff] %v2051
        %2064 = vst [vmem:[#allocation2 + $0x78] sm:$0xff] %v2052
        %2065 = vst [vmem:[#allocation2 + $0x80] sm:$0xff] %v2053
        %2066 = vst [vmem:[#allocation2 + $0x88] sm:$0xff] %v2054
        %2067 = vst [vmem:[#allocation2 + $0x90] sm:$0xff] %v2055
        %2068 = vst [vmem:[#allocation2 + $0x98] sm:$0xff] %v2056
        %2069 = vst [vmem:[#allocation2 + $0xa0] sm:$0xff] %v2057
        %2070 = vst [vmem:[#allocation2 + $0xa8] sm:$0xff] %v2058
        %2071 = vst [vmem:[#allocation2 + $0xb0] sm:$0xff] %v2059
        %2072 = vst [vmem:[#allocation2 + $0xb8] sm:$0xff] %v2060
        %v2073 = vld [vmem:[#allocation2] sm:$0xff]
        %v2074 = vld [vmem:[#allocation2 + $0x8] sm:$0xff]
        %v2075 = vld [vmem:[#allocation2 + $0x10] sm:$0xff]
        %v2076 = vld [vmem:[#allocation2 + $0x18] sm:$0xff]
        %v2077 = vld [vmem:[#allocation2 + $0x20] sm:$0xff]
        %v2078 = vld [vmem:[#allocation2 + $0x28] sm:$0xff]
        %v2079 = vld [vmem:[#allocation2 + $0x30] sm:$0xff]
        %v2080 = vld [vmem:[#allocation2 + $0x38] sm:$0xff]
        %v2081 = vld [vmem:[#allocation2 + $0x40] sm:$0xff]
        %v2082 = vld [vmem:[#allocation2 + $0x48] sm:$0xff]
        %v2083 = vld [vmem:[#allocation2 + $0x50] sm:$0xff]
        %v2084 = vld [vmem:[#allocation2 + $0x58] sm:$0xff]
        %v2085 = vld [vmem:[#allocation2 + $0x60] sm:$0xff]
        %v2086 = vld [vmem:[#allocation2 + $0x68] sm:$0xff]
        %v2087 = vld [vmem:[#allocation2 + $0x70] sm:$0xff]
        %v2088 = vld [vmem:[#allocation2 + $0x78] sm:$0xff]
        %v2089 = vld [vmem:[#allocation2 + $0x80] sm:$0xff]
        %v2090 = vld [vmem:[#allocation2 + $0x88] sm:$0xff]
        %v2091 = vld [vmem:[#allocation2 + $0x90] sm:$0xff]
        %v2092 = vld [vmem:[#allocation2 + $0x98] sm:$0xff]
        %v2093 = vld [vmem:[#allocation2 + $0xa0] sm:$0xff]
        %v2094 = vld [vmem:[#allocation2 + $0xa8] sm:$0xff]
        %v2095 = vld [vmem:[#allocation2 + $0xb0] sm:$0xff]
        %v2096 = vld [vmem:[#allocation2 + $0xb8] sm:$0xff]
        %v2097 = vpack.c.bf16 %v2076, %v2073
        %v2098 = vpack.c.bf16 %v2077, %v2074
        %v2099 = vpack.c.bf16 %v2078, %v2075
        %v2100 = vpack.c.bf16 %v2082, %v2079
        %v2101 = vpack.c.bf16 %v2083, %v2080
        %v2102 = vpack.c.bf16 %v2084, %v2081
        %v2103 = vpack.c.bf16 %v2088, %v2085
        %v2104 = vpack.c.bf16 %v2089, %v2086
        %v2105 = vpack.c.bf16 %v2090, %v2087
        %v2106 = vpack.c.bf16 %v2094, %v2091
        %v2107 = vpack.c.bf16 %v2095, %v2092
        %v2108 = vpack.c.bf16 %v2096, %v2093
        %v2109 = vld [vmem:[%s4] sm:$0xf]
        %v2110 = vld [vmem:[%s4 + $0x4] sm:$0xf]
        %v2111 = vld [vmem:[%s4 + $0x8] sm:$0xf]
        %v2112 = vld [vmem:[%s4 + $0xc] sm:$0xf]
        %v2117 = vunpack.c.l.b16 %v2109
        %v2118 = vunpack.c.l.b16 %v2110
        %v2119 = vunpack.c.l.b16 %v2111
        %v2120 = vunpack.c.l.b16 %v2112
        %v2121 = vpack.c.b16 %v2118, %v2117
        %v2122 = vpack.c.b16 %v2120, %v2119
        %vm2123 = vcmask 523264
        %v2125 = vsel %vm2123, %v2121, 0
        %v2128 = vsel %vm2123, %v2122, 0
        %2130 = vmatprep.subr.bf16.mxu0 %v2098
        %2131 = vmatpush1.bf16.msra.mxu0 %v2097
        %2132 = vmatprep.subr.bf16.mxu0 %v2101
        %2133 = vmatpush1.bf16.msra.mxu0 %v2100
        %2134 = vmatprep.subr.bf16.mxu0 %v2104
        %2135 = vmatpush1.bf16.msra.mxu0 %v2103
        %2136 = vmatprep.subr.bf16.mxu0 %v2107
        %2137 = vmatpush1.bf16.msra.mxu0 %v2106
        %2138 = vmatprep.subr.bf16.mxu0 0
        %2139 = vmatpush1.bf16.msra.mxu0 0
        %2140 = vmatprep.subr.bf16.mxu0 0
        %2141 = vmatpush1.bf16.msra.mxu0 0
        %2142 = vmatprep.subr.bf16.mxu0 0
        %2143 = vmatpush1.bf16.msra.mxu0 0
        %2144 = vmatprep.subr.bf16.mxu0 0
        %2145 = vmatpush1.bf16.msra.mxu0 0
        %2146 = vmatprep.subr.bf16.mxu0 0
        %2147 = vmatpush1.bf16.msra.mxu0 0
        %2148 = vmatprep.subr.bf16.mxu0 0
        %2149 = vmatpush1.bf16.msra.mxu0 0
        %2150 = vmatprep.subr.bf16.mxu0 0
        %2151 = vmatpush1.bf16.msra.mxu0 0
        %2152 = vmatprep.subr.bf16.mxu0 0
        %2153 = vmatpush1.bf16.msra.mxu0 0
        %2154 = vmatprep.subr.bf16.mxu0 0
        %2155 = vmatpush1.bf16.msra.mxu0 0
        %2156 = vmatprep.subr.bf16.mxu0 0
        %2157 = vmatpush1.bf16.msra.mxu0 0
        %2158 = vmatprep.subr.bf16.mxu0 0
        %2159 = vmatpush1.bf16.msra.mxu0 0
        %2160 = vmatprep.subr.bf16.mxu0 0
        %2161 = vmatpush1.bf16.msra.mxu0 0
        %2162 = vmatprep.mubr.bf16.mxu0 0
        %2163 = vmatmul.mubr.bf16.gmra.mrb[0].mxu0 %v2125
        %v2164 = vpop.f32.mrb[0].mxu0
        %v2165 = vadd.f32 0.0, %v2164
        %v2166 = vpop.f32.mrb[0].mxu0
        %v2167 = vadd.f32 0.0, %v2166
        %v2168 = vpop.f32.mrb[0].mxu0
        %v2169 = vadd.f32 0.0, %v2168
        %v2170 = vpop.f32.mrb[0].mxu0
        %v2171 = vadd.f32 0.0, %v2170
        %2172 = vmatprep.mubr.bf16.mxu0 0
        %2173 = vmatmul.mubr.bf16.gmra.mrb[0].mxu0 %v2128
        %v2174 = vpop.f32.mrb[0].mxu0
        %v2175 = vadd.f32 0.0, %v2174
        %v2176 = vpop.f32.mrb[0].mxu0
        %v2177 = vadd.f32 0.0, %v2176
        %v2178 = vpop.f32.mrb[0].mxu0
        %v2179 = vadd.f32 0.0, %v2178
        %v2180 = vpop.f32.mrb[0].mxu0
        %v2181 = vadd.f32 0.0, %v2180
        %2182 = vdwg.mxu0
        %2183 = vmatprep.subr.bf16.mxu0 0
        %2184 = vmatpush1.bf16.msra.mxu0 %v2099
        %2185 = vmatprep.subr.bf16.mxu0 0
        %2186 = vmatpush1.bf16.msra.mxu0 %v2102
        %2187 = vmatprep.subr.bf16.mxu0 0
        %2188 = vmatpush1.bf16.msra.mxu0 %v2105
        %2189 = vmatprep.subr.bf16.mxu0 0
        %2190 = vmatpush1.bf16.msra.mxu0 %v2108
        %2191 = vmatprep.subr.bf16.mxu0 0
        %2192 = vmatpush1.bf16.msra.mxu0 0
        %2193 = vmatprep.subr.bf16.mxu0 0
        %2194 = vmatpush1.bf16.msra.mxu0 0
        %2195 = vmatprep.subr.bf16.mxu0 0
        %2196 = vmatpush1.bf16.msra.mxu0 0
        %2197 = vmatprep.subr.bf16.mxu0 0
        %2198 = vmatpush1.bf16.msra.mxu0 0
        %2199 = vmatprep.subr.bf16.mxu0 0
        %2200 = vmatpush1.bf16.msra.mxu0 0
        %2201 = vmatprep.subr.bf16.mxu0 0
        %2202 = vmatpush1.bf16.msra.mxu0 0
        %2203 = vmatprep.subr.bf16.mxu0 0
        %2204 = vmatpush1.bf16.msra.mxu0 0
        %2205 = vmatprep.subr.bf16.mxu0 0
        %2206 = vmatpush1.bf16.msra.mxu0 0
        %2207 = vmatprep.subr.bf16.mxu0 0
        %2208 = vmatpush1.bf16.msra.mxu0 0
        %2209 = vmatprep.subr.bf16.mxu0 0
        %2210 = vmatpush1.bf16.msra.mxu0 0
        %2211 = vmatprep.subr.bf16.mxu0 0
        %2212 = vmatpush1.bf16.msra.mxu0 0
        %2213 = vmatprep.subr.bf16.mxu0 0
        %2214 = vmatpush1.bf16.msra.mxu0 0
        %2215 = vmatprep.mubr.bf16.mxu0 0
        %2216 = vmatmul.mubr.bf16.gmra.mrb[0].mxu0 %v2125
        %v2217 = vpop.f32.mrb[0].mxu0
        %v2218 = vadd.f32 0.0, %v2217
        %v2219 = vpop.f32.mrb[0].mxu0
        %v2220 = vpop.f32.mrb[0].mxu0
        %v2221 = vadd.f32 0.0, %v2220
        %v2222 = vpop.f32.mrb[0].mxu0
        %2223 = vmatprep.mubr.bf16.mxu0 0
        %2224 = vmatmul.mubr.bf16.gmra.mrb[0].mxu0 %v2128
        %v2225 = vpop.f32.mrb[0].mxu0
        %v2226 = vadd.f32 0.0, %v2225
        %v2227 = vpop.f32.mrb[0].mxu0
        %v2228 = vpop.f32.mrb[0].mxu0
        %v2229 = vadd.f32 0.0, %v2228
        %v2230 = vpop.f32.mrb[0].mxu0
        %2231 = vdwg.mxu0
        %2232 = vrot.lane.b32.xlu0 %v2165, 19
        %v2233 = vpop.permute.xlu0 %2232
        %2234 = vrot.lane.b32.xlu0 %v2169, 19
        %v2235 = vpop.permute.xlu0 %2234
        %2236 = vrot.lane.b32.xlu0 %v2175, 19
        %v2237 = vpop.permute.xlu0 %2236
        %2238 = vrot.lane.b32.xlu0 %v2179, 19
        %v2239 = vpop.permute.xlu0 %2238
        %2240 = vrot.lane.b32.xlu0 %v2167, 19
        %v2241 = vpop.permute.xlu0 %2240
        %2242 = vrot.lane.b32.xlu0 %v2171, 19
        %v2243 = vpop.permute.xlu0 %2242
        %2244 = vrot.lane.b32.xlu0 %v2177, 19
        %v2245 = vpop.permute.xlu0 %2244
        %2246 = vrot.lane.b32.xlu0 %v2181, 19
        %v2247 = vpop.permute.xlu0 %2246
        %2248 = vrot.lane.b32.xlu0 %v2218, 19
        %v2249 = vpop.permute.xlu0 %2248
        %2250 = vrot.lane.b32.xlu0 %v2221, 19
        %v2251 = vpop.permute.xlu0 %2250
        %2252 = vrot.lane.b32.xlu0 %v2226, 19
        %v2253 = vpop.permute.xlu0 %2252
        %2254 = vrot.lane.b32.xlu0 %v2229, 19
        %v2255 = vpop.permute.xlu0 %2254
        %v2256 = vsel %vm605, %v2241, %v2249
        %v2257 = vsel %vm605, %v2243, %v2251
        %v2258 = vsel %vm605, %v2245, %v2253
        %v2259 = vsel %vm605, %v2247, %v2255
        %v2260 = vsel %vm605, %v2233, %v2241
        %v2261 = vsel %vm605, %v2235, %v2243
        %v2262 = vsel %vm605, %v2237, %v2245
        %v2263 = vsel %vm605, %v2239, %v2247
        %v2264 = vsel %vm605, %v2249, %v2233
        %v2265 = vsel %vm605, %v2251, %v2235
        %v2266 = vsel %vm605, %v2253, %v2237
        %v2267 = vsel %vm605, %v2255, %v2239
        %v2268 = vadd.f32 %v2264, 0.0
        %v2269 = vadd.f32 %v2260, 0.0
        %v2270 = vadd.f32 %v2256, 0.0
        %v2271 = vadd.f32 %v2265, 0.0
        %v2272 = vadd.f32 %v2261, 0.0
        %v2273 = vadd.f32 %v2257, 0.0
        %v2274 = vadd.f32 %v2266, 0.0
        %v2275 = vadd.f32 %v2262, 0.0
        %v2276 = vadd.f32 %v2258, 0.0
        %v2277 = vadd.f32 %v2267, 0.0
        %v2278 = vadd.f32 %v2263, 0.0
        %v2279 = vadd.f32 %v2259, 0.0
        %v2280 = vld [vmem:[%s4 + $0x10] sm:$0xf]
        %v2281 = vld [vmem:[%s4 + $0x14] sm:$0xf]
        %v2282 = vld [vmem:[%s4 + $0x18] sm:$0xf]
        %v2283 = vld [vmem:[%s4 + $0x1c] sm:$0xf]
        %v2288 = vunpack.c.l.b16 %v2280
        %v2289 = vunpack.c.l.b16 %v2281
        %v2290 = vunpack.c.l.b16 %v2282
        %v2291 = vunpack.c.l.b16 %v2283
        %v2292 = vpack.c.b16 %v2289, %v2288
        %v2293 = vpack.c.b16 %v2291, %v2290
        %v2295 = vsel %vm2123, %v2292, 0
        %v2298 = vsel %vm2123, %v2293, 0
        %2300 = vmatprep.subr.bf16.mxu0 %v2098
        %2301 = vmatpush1.bf16.msra.mxu0 %v2097
        %2302 = vmatprep.subr.bf16.mxu0 %v2101
        %2303 = vmatpush1.bf16.msra.mxu0 %v2100
        %2304 = vmatprep.subr.bf16.mxu0 %v2104
        %2305 = vmatpush1.bf16.msra.mxu0 %v2103
        %2306 = vmatprep.subr.bf16.mxu0 %v2107
        %2307 = vmatpush1.bf16.msra.mxu0 %v2106
        %2308 = vmatprep.subr.bf16.mxu0 0
        %2309 = vmatpush1.bf16.msra.mxu0 0
        %2310 = vmatprep.subr.bf16.mxu0 0
        %2311 = vmatpush1.bf16.msra.mxu0 0
        %2312 = vmatprep.subr.bf16.mxu0 0
        %2313 = vmatpush1.bf16.msra.mxu0 0
        %2314 = vmatprep.subr.bf16.mxu0 0
        %2315 = vmatpush1.bf16.msra.mxu0 0
        %2316 = vmatprep.subr.bf16.mxu0 0
        %2317 = vmatpush1.bf16.msra.mxu0 0
        %2318 = vmatprep.subr.bf16.mxu0 0
        %2319 = vmatpush1.bf16.msra.mxu0 0
        %2320 = vmatprep.subr.bf16.mxu0 0
        %2321 = vmatpush1.bf16.msra.mxu0 0
        %2322 = vmatprep.subr.bf16.mxu0 0
        %2323 = vmatpush1.bf16.msra.mxu0 0
        %2324 = vmatprep.subr.bf16.mxu0 0
        %2325 = vmatpush1.bf16.msra.mxu0 0
        %2326 = vmatprep.subr.bf16.mxu0 0
        %2327 = vmatpush1.bf16.msra.mxu0 0
        %2328 = vmatprep.subr.bf16.mxu0 0
        %2329 = vmatpush1.bf16.msra.mxu0 0
        %2330 = vmatprep.subr.bf16.mxu0 0
        %2331 = vmatpush1.bf16.msra.mxu0 0
        %2332 = vmatprep.mubr.bf16.mxu0 0
        %2333 = vmatmul.mubr.bf16.gmra.mrb[0].mxu0 %v2295
        %v2334 = vpop.f32.mrb[0].mxu0
        %v2335 = vadd.f32 0.0, %v2334
        %v2336 = vpop.f32.mrb[0].mxu0
        %v2337 = vadd.f32 0.0, %v2336
        %v2338 = vpop.f32.mrb[0].mxu0
        %v2339 = vadd.f32 0.0, %v2338
        %v2340 = vpop.f32.mrb[0].mxu0
        %v2341 = vadd.f32 0.0, %v2340
        %2342 = vmatprep.mubr.bf16.mxu0 0
        %2343 = vmatmul.mubr.bf16.gmra.mrb[0].mxu0 %v2298
        %v2344 = vpop.f32.mrb[0].mxu0
        %v2345 = vadd.f32 0.0, %v2344
        %v2346 = vpop.f32.mrb[0].mxu0
        %v2347 = vadd.f32 0.0, %v2346
        %v2348 = vpop.f32.mrb[0].mxu0
        %v2349 = vadd.f32 0.0, %v2348
        %v2350 = vpop.f32.mrb[0].mxu0
        %v2351 = vadd.f32 0.0, %v2350
        %2352 = vdwg.mxu0
        %2353 = vmatprep.subr.bf16.mxu0 0
        %2354 = vmatpush1.bf16.msra.mxu0 %v2099
        %2355 = vmatprep.subr.bf16.mxu0 0
        %2356 = vmatpush1.bf16.msra.mxu0 %v2102
        %2357 = vmatprep.subr.bf16.mxu0 0
        %2358 = vmatpush1.bf16.msra.mxu0 %v2105
        %2359 = vmatprep.subr.bf16.mxu0 0
        %2360 = vmatpush1.bf16.msra.mxu0 %v2108
        %2361 = vmatprep.subr.bf16.mxu0 0
        %2362 = vmatpush1.bf16.msra.mxu0 0
        %2363 = vmatprep.subr.bf16.mxu0 0
        %2364 = vmatpush1.bf16.msra.mxu0 0
        %2365 = vmatprep.subr.bf16.mxu0 0
        %2366 = vmatpush1.bf16.msra.mxu0 0
        %2367 = vmatprep.subr.bf16.mxu0 0
        %2368 = vmatpush1.bf16.msra.mxu0 0
        %2369 = vmatprep.subr.bf16.mxu0 0
        %2370 = vmatpush1.bf16.msra.mxu0 0
        %2371 = vmatprep.subr.bf16.mxu0 0
        %2372 = vmatpush1.bf16.msra.mxu0 0
        %2373 = vmatprep.subr.bf16.mxu0 0
        %2374 = vmatpush1.bf16.msra.mxu0 0
        %2375 = vmatprep.subr.bf16.mxu0 0
        %2376 = vmatpush1.bf16.msra.mxu0 0
        %2377 = vmatprep.subr.bf16.mxu0 0
        %2378 = vmatpush1.bf16.msra.mxu0 0
        %2379 = vmatprep.subr.bf16.mxu0 0
        %2380 = vmatpush1.bf16.msra.mxu0 0
        %2381 = vmatprep.subr.bf16.mxu0 0
        %2382 = vmatpush1.bf16.msra.mxu0 0
        %2383 = vmatprep.subr.bf16.mxu0 0
        %2384 = vmatpush1.bf16.msra.mxu0 0
        %2385 = vmatprep.mubr.bf16.mxu0 0
        %2386 = vmatmul.mubr.bf16.gmra.mrb[0].mxu0 %v2295
        %v2387 = vpop.f32.mrb[0].mxu0
        %v2388 = vadd.f32 0.0, %v2387
        %v2389 = vpop.f32.mrb[0].mxu0
        %v2390 = vpop.f32.mrb[0].mxu0
        %v2391 = vadd.f32 0.0, %v2390
        %v2392 = vpop.f32.mrb[0].mxu0
        %2393 = vmatprep.mubr.bf16.mxu0 0
        %2394 = vmatmul.mubr.bf16.gmra.mrb[0].mxu0 %v2298
        %v2395 = vpop.f32.mrb[0].mxu0
        %v2396 = vadd.f32 0.0, %v2395
        %v2397 = vpop.f32.mrb[0].mxu0
        %v2398 = vpop.f32.mrb[0].mxu0
        %v2399 = vadd.f32 0.0, %v2398
        %v2400 = vpop.f32.mrb[0].mxu0
        %2401 = vdwg.mxu0
        %2402 = vrot.lane.b32.xlu0 %v2335, 18
        %v2403 = vpop.permute.xlu0 %2402
        %2404 = vrot.lane.b32.xlu0 %v2339, 18
        %v2405 = vpop.permute.xlu0 %2404
        %2406 = vrot.lane.b32.xlu0 %v2345, 18
        %v2407 = vpop.permute.xlu0 %2406
        %2408 = vrot.lane.b32.xlu0 %v2349, 18
        %v2409 = vpop.permute.xlu0 %2408
        %2410 = vrot.lane.b32.xlu0 %v2337, 18
        %v2411 = vpop.permute.xlu0 %2410
        %2412 = vrot.lane.b32.xlu0 %v2341, 18
        %v2413 = vpop.permute.xlu0 %2412
        %2414 = vrot.lane.b32.xlu0 %v2347, 18
        %v2415 = vpop.permute.xlu0 %2414
        %2416 = vrot.lane.b32.xlu0 %v2351, 18
        %v2417 = vpop.permute.xlu0 %2416
        %2418 = vrot.lane.b32.xlu0 %v2388, 18
        %v2419 = vpop.permute.xlu0 %2418
        %2420 = vrot.lane.b32.xlu0 %v2391, 18
        %v2421 = vpop.permute.xlu0 %2420
        %2422 = vrot.lane.b32.xlu0 %v2396, 18
        %v2423 = vpop.permute.xlu0 %2422
        %2424 = vrot.lane.b32.xlu0 %v2399, 18
        %v2425 = vpop.permute.xlu0 %2424
        %v2426 = vsel %vm776, %v2411, %v2419
        %v2427 = vsel %vm776, %v2413, %v2421
        %v2428 = vsel %vm776, %v2415, %v2423
        %v2429 = vsel %vm776, %v2417, %v2425
        %v2430 = vsel %vm776, %v2403, %v2411
        %v2431 = vsel %vm776, %v2405, %v2413
        %v2432 = vsel %vm776, %v2407, %v2415
        %v2433 = vsel %vm776, %v2409, %v2417
        %v2434 = vsel %vm776, %v2419, %v2403
        %v2435 = vsel %vm776, %v2421, %v2405
        %v2436 = vsel %vm776, %v2423, %v2407
        %v2437 = vsel %vm776, %v2425, %v2409
        %v2438 = vadd.f32 %v2268, %v2434
        %v2439 = vadd.f32 %v2269, %v2430
        %v2440 = vadd.f32 %v2270, %v2426
        %v2441 = vadd.f32 %v2271, %v2435
        %v2442 = vadd.f32 %v2272, %v2431
        %v2443 = vadd.f32 %v2273, %v2427
        %v2444 = vadd.f32 %v2274, %v2436
        %v2445 = vadd.f32 %v2275, %v2432
        %v2446 = vadd.f32 %v2276, %v2428
        %v2447 = vadd.f32 %v2277, %v2437
        %v2448 = vadd.f32 %v2278, %v2433
        %v2449 = vadd.f32 %v2279, %v2429
        %v2450 = vld [vmem:[%s4 + $0x20] sm:$0xf]
        %v2451 = vld [vmem:[%s4 + $0x24] sm:$0xf]
        %v2452 = vld [vmem:[%s4 + $0x28] sm:$0xf]
        %v2453 = vld [vmem:[%s4 + $0x2c] sm:$0xf]
        %v2458 = vunpack.c.l.b16 %v2450
        %v2459 = vunpack.c.l.b16 %v2451
        %v2460 = vunpack.c.l.b16 %v2452
        %v2461 = vunpack.c.l.b16 %v2453
        %v2462 = vpack.c.b16 %v2459, %v2458
        %v2463 = vpack.c.b16 %v2461, %v2460
        %v2465 = vsel %vm2123, %v2462, 0
        %v2468 = vsel %vm2123, %v2463, 0
        %2470 = vmatprep.subr.bf16.mxu0 %v2098
        %2471 = vmatpush1.bf16.msra.mxu0 %v2097
        %2472 = vmatprep.subr.bf16.mxu0 %v2101
        %2473 = vmatpush1.bf16.msra.mxu0 %v2100
        %2474 = vmatprep.subr.bf16.mxu0 %v2104
        %2475 = vmatpush1.bf16.msra.mxu0 %v2103
        %2476 = vmatprep.subr.bf16.mxu0 %v2107
        %2477 = vmatpush1.bf16.msra.mxu0 %v2106
        %2478 = vmatprep.subr.bf16.mxu0 0
        %2479 = vmatpush1.bf16.msra.mxu0 0
        %2480 = vmatprep.subr.bf16.mxu0 0
        %2481 = vmatpush1.bf16.msra.mxu0 0
        %2482 = vmatprep.subr.bf16.mxu0 0
        %2483 = vmatpush1.bf16.msra.mxu0 0
        %2484 = vmatprep.subr.bf16.mxu0 0
        %2485 = vmatpush1.bf16.msra.mxu0 0
        %2486 = vmatprep.subr.bf16.mxu0 0
        %2487 = vmatpush1.bf16.msra.mxu0 0
        %2488 = vmatprep.subr.bf16.mxu0 0
        %2489 = vmatpush1.bf16.msra.mxu0 0
        %2490 = vmatprep.subr.bf16.mxu0 0
        %2491 = vmatpush1.bf16.msra.mxu0 0
        %2492 = vmatprep.subr.bf16.mxu0 0
        %2493 = vmatpush1.bf16.msra.mxu0 0
        %2494 = vmatprep.subr.bf16.mxu0 0
        %2495 = vmatpush1.bf16.msra.mxu0 0
        %2496 = vmatprep.subr.bf16.mxu0 0
        %2497 = vmatpush1.bf16.msra.mxu0 0
        %2498 = vmatprep.subr.bf16.mxu0 0
        %2499 = vmatpush1.bf16.msra.mxu0 0
        %2500 = vmatprep.subr.bf16.mxu0 0
        %2501 = vmatpush1.bf16.msra.mxu0 0
        %2502 = vmatprep.mubr.bf16.mxu0 0
        %2503 = vmatmul.mubr.bf16.gmra.mrb[0].mxu0 %v2465
        %v2504 = vpop.f32.mrb[0].mxu0
        %v2505 = vadd.f32 0.0, %v2504
        %v2506 = vpop.f32.mrb[0].mxu0
        %v2507 = vadd.f32 0.0, %v2506
        %v2508 = vpop.f32.mrb[0].mxu0
        %v2509 = vadd.f32 0.0, %v2508
        %v2510 = vpop.f32.mrb[0].mxu0
        %v2511 = vadd.f32 0.0, %v2510
        %2512 = vmatprep.mubr.bf16.mxu0 0
        %2513 = vmatmul.mubr.bf16.gmra.mrb[0].mxu0 %v2468
        %v2514 = vpop.f32.mrb[0].mxu0
        %v2515 = vadd.f32 0.0, %v2514
        %v2516 = vpop.f32.mrb[0].mxu0
        %v2517 = vadd.f32 0.0, %v2516
        %v2518 = vpop.f32.mrb[0].mxu0
        %v2519 = vadd.f32 0.0, %v2518
        %v2520 = vpop.f32.mrb[0].mxu0
        %v2521 = vadd.f32 0.0, %v2520
        %2522 = vdwg.mxu0
        %2523 = vmatprep.subr.bf16.mxu0 0
        %2524 = vmatpush1.bf16.msra.mxu0 %v2099
        %2525 = vmatprep.subr.bf16.mxu0 0
        %2526 = vmatpush1.bf16.msra.mxu0 %v2102
        %2527 = vmatprep.subr.bf16.mxu0 0
        %2528 = vmatpush1.bf16.msra.mxu0 %v2105
        %2529 = vmatprep.subr.bf16.mxu0 0
        %2530 = vmatpush1.bf16.msra.mxu0 %v2108
        %2531 = vmatprep.subr.bf16.mxu0 0
        %2532 = vmatpush1.bf16.msra.mxu0 0
        %2533 = vmatprep.subr.bf16.mxu0 0
        %2534 = vmatpush1.bf16.msra.mxu0 0
        %2535 = vmatprep.subr.bf16.mxu0 0
        %2536 = vmatpush1.bf16.msra.mxu0 0
        %2537 = vmatprep.subr.bf16.mxu0 0
        %2538 = vmatpush1.bf16.msra.mxu0 0
        %2539 = vmatprep.subr.bf16.mxu0 0
        %2540 = vmatpush1.bf16.msra.mxu0 0
        %2541 = vmatprep.subr.bf16.mxu0 0
        %2542 = vmatpush1.bf16.msra.mxu0 0
        %2543 = vmatprep.subr.bf16.mxu0 0
        %2544 = vmatpush1.bf16.msra.mxu0 0
        %2545 = vmatprep.subr.bf16.mxu0 0
        %2546 = vmatpush1.bf16.msra.mxu0 0
        %2547 = vmatprep.subr.bf16.mxu0 0
        %2548 = vmatpush1.bf16.msra.mxu0 0
        %2549 = vmatprep.subr.bf16.mxu0 0
        %2550 = vmatpush1.bf16.msra.mxu0 0
        %2551 = vmatprep.subr.bf16.mxu0 0
        %2552 = vmatpush1.bf16.msra.mxu0 0
        %2553 = vmatprep.subr.bf16.mxu0 0
        %2554 = vmatpush1.bf16.msra.mxu0 0
        %2555 = vmatprep.mubr.bf16.mxu0 0
        %2556 = vmatmul.mubr.bf16.gmra.mrb[0].mxu0 %v2465
        %v2557 = vpop.f32.mrb[0].mxu0
        %v2558 = vadd.f32 0.0, %v2557
        %v2559 = vpop.f32.mrb[0].mxu0
        %v2560 = vpop.f32.mrb[0].mxu0
        %v2561 = vadd.f32 0.0, %v2560
        %v2562 = vpop.f32.mrb[0].mxu0
        %2563 = vmatprep.mubr.bf16.mxu0 0
        %2564 = vmatmul.mubr.bf16.gmra.mrb[0].mxu0 %v2468
        %v2565 = vpop.f32.mrb[0].mxu0
        %v2566 = vadd.f32 0.0, %v2565
        %v2567 = vpop.f32.mrb[0].mxu0
        %v2568 = vpop.f32.mrb[0].mxu0
        %v2569 = vadd.f32 0.0, %v2568
        %v2570 = vpop.f32.mrb[0].mxu0
        %2571 = vdwg.mxu0
        %2572 = vrot.lane.b32.xlu0 %v2505, 17
        %v2573 = vpop.permute.xlu0 %2572
        %2574 = vrot.lane.b32.xlu0 %v2509, 17
        %v2575 = vpop.permute.xlu0 %2574
        %2576 = vrot.lane.b32.xlu0 %v2515, 17
        %v2577 = vpop.permute.xlu0 %2576
        %2578 = vrot.lane.b32.xlu0 %v2519, 17
        %v2579 = vpop.permute.xlu0 %2578
        %2580 = vrot.lane.b32.xlu0 %v2507, 17
        %v2581 = vpop.permute.xlu0 %2580
        %2582 = vrot.lane.b32.xlu0 %v2511, 17
        %v2583 = vpop.permute.xlu0 %2582
        %2584 = vrot.lane.b32.xlu0 %v2517, 17
        %v2585 = vpop.permute.xlu0 %2584
        %2586 = vrot.lane.b32.xlu0 %v2521, 17
        %v2587 = vpop.permute.xlu0 %2586
        %2588 = vrot.lane.b32.xlu0 %v2558, 17
        %v2589 = vpop.permute.xlu0 %2588
        %2590 = vrot.lane.b32.xlu0 %v2561, 17
        %v2591 = vpop.permute.xlu0 %2590
        %2592 = vrot.lane.b32.xlu0 %v2566, 17
        %v2593 = vpop.permute.xlu0 %2592
        %2594 = vrot.lane.b32.xlu0 %v2569, 17
        %v2595 = vpop.permute.xlu0 %2594
        %v2596 = vsel %vm947, %v2581, %v2589
        %v2597 = vsel %vm947, %v2583, %v2591
        %v2598 = vsel %vm947, %v2585, %v2593
        %v2599 = vsel %vm947, %v2587, %v2595
        %v2600 = vsel %vm947, %v2573, %v2581
        %v2601 = vsel %vm947, %v2575, %v2583
        %v2602 = vsel %vm947, %v2577, %v2585
        %v2603 = vsel %vm947, %v2579, %v2587
        %v2604 = vsel %vm947, %v2589, %v2573
        %v2605 = vsel %vm947, %v2591, %v2575
        %v2606 = vsel %vm947, %v2593, %v2577
        %v2607 = vsel %vm947, %v2595, %v2579
        %v2608 = vadd.f32 %v2438, %v2604
        %v2609 = vadd.f32 %v2439, %v2600
        %v2610 = vadd.f32 %v2440, %v2596
        %v2611 = vadd.f32 %v2441, %v2605
        %v2612 = vadd.f32 %v2442, %v2601
        %v2613 = vadd.f32 %v2443, %v2597
        %v2614 = vadd.f32 %v2444, %v2606
        %v2615 = vadd.f32 %v2445, %v2602
        %v2616 = vadd.f32 %v2446, %v2598
        %v2617 = vadd.f32 %v2447, %v2607
        %v2618 = vadd.f32 %v2448, %v2603
        %v2619 = vadd.f32 %v2449, %v2599
        %v2620 = vld [vmem:[%s4 + $0x30] sm:$0xf]
        %v2621 = vld [vmem:[%s4 + $0x34] sm:$0xf]
        %v2622 = vld [vmem:[%s4 + $0x38] sm:$0xf]
        %v2623 = vld [vmem:[%s4 + $0x3c] sm:$0xf]
        %v2628 = vunpack.c.l.b16 %v2620
        %v2629 = vunpack.c.l.b16 %v2621
        %v2630 = vunpack.c.l.b16 %v2622
        %v2631 = vunpack.c.l.b16 %v2623
        %v2632 = vpack.c.b16 %v2629, %v2628
        %v2633 = vpack.c.b16 %v2631, %v2630
        %v2635 = vsel %vm2123, %v2632, 0
        %v2638 = vsel %vm2123, %v2633, 0
        %2640 = vmatprep.subr.bf16.mxu0 %v2098
        %2641 = vmatpush1.bf16.msra.mxu0 %v2097
        %2642 = vmatprep.subr.bf16.mxu0 %v2101
        %2643 = vmatpush1.bf16.msra.mxu0 %v2100
        %2644 = vmatprep.subr.bf16.mxu0 %v2104
        %2645 = vmatpush1.bf16.msra.mxu0 %v2103
        %2646 = vmatprep.subr.bf16.mxu0 %v2107
        %2647 = vmatpush1.bf16.msra.mxu0 %v2106
        %2648 = vmatprep.subr.bf16.mxu0 0
        %2649 = vmatpush1.bf16.msra.mxu0 0
        %2650 = vmatprep.subr.bf16.mxu0 0
        %2651 = vmatpush1.bf16.msra.mxu0 0
        %2652 = vmatprep.subr.bf16.mxu0 0
        %2653 = vmatpush1.bf16.msra.mxu0 0
        %2654 = vmatprep.subr.bf16.mxu0 0
        %2655 = vmatpush1.bf16.msra.mxu0 0
        %2656 = vmatprep.subr.bf16.mxu0 0
        %2657 = vmatpush1.bf16.msra.mxu0 0
        %2658 = vmatprep.subr.bf16.mxu0 0
        %2659 = vmatpush1.bf16.msra.mxu0 0
        %2660 = vmatprep.subr.bf16.mxu0 0
        %2661 = vmatpush1.bf16.msra.mxu0 0
        %2662 = vmatprep.subr.bf16.mxu0 0
        %2663 = vmatpush1.bf16.msra.mxu0 0
        %2664 = vmatprep.subr.bf16.mxu0 0
        %2665 = vmatpush1.bf16.msra.mxu0 0
        %2666 = vmatprep.subr.bf16.mxu0 0
        %2667 = vmatpush1.bf16.msra.mxu0 0
        %2668 = vmatprep.subr.bf16.mxu0 0
        %2669 = vmatpush1.bf16.msra.mxu0 0
        %2670 = vmatprep.subr.bf16.mxu0 0
        %2671 = vmatpush1.bf16.msra.mxu0 0
        %2672 = vmatprep.mubr.bf16.mxu0 0
        %2673 = vmatmul.mubr.bf16.gmra.mrb[0].mxu0 %v2635
        %v2674 = vpop.f32.mrb[0].mxu0
        %v2675 = vadd.f32 0.0, %v2674
        %v2676 = vpop.f32.mrb[0].mxu0
        %v2677 = vadd.f32 0.0, %v2676
        %v2678 = vpop.f32.mrb[0].mxu0
        %v2679 = vadd.f32 0.0, %v2678
        %v2680 = vpop.f32.mrb[0].mxu0
        %v2681 = vadd.f32 0.0, %v2680
        %2682 = vmatprep.mubr.bf16.mxu0 0
        %2683 = vmatmul.mubr.bf16.gmra.mrb[0].mxu0 %v2638
        %v2684 = vpop.f32.mrb[0].mxu0
        %v2685 = vadd.f32 0.0, %v2684
        %v2686 = vpop.f32.mrb[0].mxu0
        %v2687 = vadd.f32 0.0, %v2686
        %v2688 = vpop.f32.mrb[0].mxu0
        %v2689 = vadd.f32 0.0, %v2688
        %v2690 = vpop.f32.mrb[0].mxu0
        %v2691 = vadd.f32 0.0, %v2690
        %2692 = vdwg.mxu0
        %2693 = vmatprep.subr.bf16.mxu0 0
        %2694 = vmatpush1.bf16.msra.mxu0 %v2099
        %2695 = vmatprep.subr.bf16.mxu0 0
        %2696 = vmatpush1.bf16.msra.mxu0 %v2102
        %2697 = vmatprep.subr.bf16.mxu0 0
        %2698 = vmatpush1.bf16.msra.mxu0 %v2105
        %2699 = vmatprep.subr.bf16.mxu0 0
        %2700 = vmatpush1.bf16.msra.mxu0 %v2108
        %2701 = vmatprep.subr.bf16.mxu0 0
        %2702 = vmatpush1.bf16.msra.mxu0 0
        %2703 = vmatprep.subr.bf16.mxu0 0
        %2704 = vmatpush1.bf16.msra.mxu0 0
        %2705 = vmatprep.subr.bf16.mxu0 0
        %2706 = vmatpush1.bf16.msra.mxu0 0
        %2707 = vmatprep.subr.bf16.mxu0 0
        %2708 = vmatpush1.bf16.msra.mxu0 0
        %2709 = vmatprep.subr.bf16.mxu0 0
        %2710 = vmatpush1.bf16.msra.mxu0 0
        %2711 = vmatprep.subr.bf16.mxu0 0
        %2712 = vmatpush1.bf16.msra.mxu0 0
        %2713 = vmatprep.subr.bf16.mxu0 0
        %2714 = vmatpush1.bf16.msra.mxu0 0
        %2715 = vmatprep.subr.bf16.mxu0 0
        %2716 = vmatpush1.bf16.msra.mxu0 0
        %2717 = vmatprep.subr.bf16.mxu0 0
        %2718 = vmatpush1.bf16.msra.mxu0 0
        %2719 = vmatprep.subr.bf16.mxu0 0
        %2720 = vmatpush1.bf16.msra.mxu0 0
        %2721 = vmatprep.subr.bf16.mxu0 0
        %2722 = vmatpush1.bf16.msra.mxu0 0
        %2723 = vmatprep.subr.bf16.mxu0 0
        %2724 = vmatpush1.bf16.msra.mxu0 0
        %2725 = vmatprep.mubr.bf16.mxu0 0
        %2726 = vmatmul.mubr.bf16.gmra.mrb[0].mxu0 %v2635
        %v2727 = vpop.f32.mrb[0].mxu0
        %v2728 = vadd.f32 0.0, %v2727
        %v2729 = vpop.f32.mrb[0].mxu0
        %v2730 = vpop.f32.mrb[0].mxu0
        %v2731 = vadd.f32 0.0, %v2730
        %v2732 = vpop.f32.mrb[0].mxu0
        %2733 = vmatprep.mubr.bf16.mxu0 0
        %2734 = vmatmul.mubr.bf16.gmra.mrb[0].mxu0 %v2638
        %v2735 = vpop.f32.mrb[0].mxu0
        %v2736 = vadd.f32 0.0, %v2735
        %v2737 = vpop.f32.mrb[0].mxu0
        %v2738 = vpop.f32.mrb[0].mxu0
        %v2739 = vadd.f32 0.0, %v2738
        %v2740 = vpop.f32.mrb[0].mxu0
        %2741 = vdwg.mxu0
        %2742 = vrot.lane.b32.xlu0 %v2675, 1
        %v2743 = vpop.permute.xlu0 %2742
        %2744 = vrot.lane.b32.xlu0 %v2679, 1
        %v2745 = vpop.permute.xlu0 %2744
        %2746 = vrot.lane.b32.xlu0 %v2685, 1
        %v2747 = vpop.permute.xlu0 %2746
        %2748 = vrot.lane.b32.xlu0 %v2689, 1
        %v2749 = vpop.permute.xlu0 %2748
        %2750 = vrot.lane.b32.xlu0 %v2677, 1
        %v2751 = vpop.permute.xlu0 %2750
        %2752 = vrot.lane.b32.xlu0 %v2681, 1
        %v2753 = vpop.permute.xlu0 %2752
        %2754 = vrot.lane.b32.xlu0 %v2687, 1
        %v2755 = vpop.permute.xlu0 %2754
        %2756 = vrot.lane.b32.xlu0 %v2691, 1
        %v2757 = vpop.permute.xlu0 %2756
        %2758 = vrot.lane.b32.xlu0 %v2728, 1
        %v2759 = vpop.permute.xlu0 %2758
        %2760 = vrot.lane.b32.xlu0 %v2731, 1
        %v2761 = vpop.permute.xlu0 %2760
        %2762 = vrot.lane.b32.xlu0 %v2736, 1
        %v2763 = vpop.permute.xlu0 %2762
        %2764 = vrot.lane.b32.xlu0 %v2739, 1
        %v2765 = vpop.permute.xlu0 %2764
        %v2766 = vsel %vm1118, %v2751, %v2759
        %v2767 = vsel %vm1118, %v2753, %v2761
        %v2768 = vsel %vm1118, %v2755, %v2763
        %v2769 = vsel %vm1118, %v2757, %v2765
        %v2770 = vsel %vm1118, %v2743, %v2751
        %v2771 = vsel %vm1118, %v2745, %v2753
        %v2772 = vsel %vm1118, %v2747, %v2755
        %v2773 = vsel %vm1118, %v2749, %v2757
        %v2774 = vsel %vm1118, %v2759, %v2743
        %v2775 = vsel %vm1118, %v2761, %v2745
        %v2776 = vsel %vm1118, %v2763, %v2747
        %v2777 = vsel %vm1118, %v2765, %v2749
        %v2778 = vadd.f32 %v2608, %v2774
        %v2779 = vadd.f32 %v2609, %v2770
        %v2780 = vadd.f32 %v2610, %v2766
        %v2781 = vadd.f32 %v2611, %v2775
        %v2782 = vadd.f32 %v2612, %v2771
        %v2783 = vadd.f32 %v2613, %v2767
        %v2784 = vadd.f32 %v2614, %v2776
        %v2785 = vadd.f32 %v2615, %v2772
        %v2786 = vadd.f32 %v2616, %v2768
        %v2787 = vadd.f32 %v2617, %v2777
        %v2788 = vadd.f32 %v2618, %v2773
        %v2789 = vadd.f32 %v2619, %v2769
        %v2790 = vld [vmem:[%s4 + $0x40] sm:$0xf]
        %v2791 = vld [vmem:[%s4 + $0x44] sm:$0xf]
        %v2792 = vld [vmem:[%s4 + $0x48] sm:$0xf]
        %v2793 = vld [vmem:[%s4 + $0x4c] sm:$0xf]
        %v2798 = vunpack.c.l.b16 %v2790
        %v2799 = vunpack.c.l.b16 %v2791
        %v2800 = vunpack.c.l.b16 %v2792
        %v2801 = vunpack.c.l.b16 %v2793
        %v2802 = vpack.c.b16 %v2799, %v2798
        %v2803 = vpack.c.b16 %v2801, %v2800
        %v2805 = vsel %vm2123, %v2802, 0
        %v2808 = vsel %vm2123, %v2803, 0
        %2810 = vmatprep.subr.bf16.mxu0 %v2098
        %2811 = vmatpush1.bf16.msra.mxu0 %v2097
        %2812 = vmatprep.subr.bf16.mxu0 %v2101
        %2813 = vmatpush1.bf16.msra.mxu0 %v2100
        %2814 = vmatprep.subr.bf16.mxu0 %v2104
        %2815 = vmatpush1.bf16.msra.mxu0 %v2103
        %2816 = vmatprep.subr.bf16.mxu0 %v2107
        %2817 = vmatpush1.bf16.msra.mxu0 %v2106
        %2818 = vmatprep.subr.bf16.mxu0 0
        %2819 = vmatpush1.bf16.msra.mxu0 0
        %2820 = vmatprep.subr.bf16.mxu0 0
        %2821 = vmatpush1.bf16.msra.mxu0 0
        %2822 = vmatprep.subr.bf16.mxu0 0
        %2823 = vmatpush1.bf16.msra.mxu0 0
        %2824 = vmatprep.subr.bf16.mxu0 0
        %2825 = vmatpush1.bf16.msra.mxu0 0
        %2826 = vmatprep.subr.bf16.mxu0 0
        %2827 = vmatpush1.bf16.msra.mxu0 0
        %2828 = vmatprep.subr.bf16.mxu0 0
        %2829 = vmatpush1.bf16.msra.mxu0 0
        %2830 = vmatprep.subr.bf16.mxu0 0
        %2831 = vmatpush1.bf16.msra.mxu0 0
        %2832 = vmatprep.subr.bf16.mxu0 0
        %2833 = vmatpush1.bf16.msra.mxu0 0
        %2834 = vmatprep.subr.bf16.mxu0 0
        %2835 = vmatpush1.bf16.msra.mxu0 0
        %2836 = vmatprep.subr.bf16.mxu0 0
        %2837 = vmatpush1.bf16.msra.mxu0 0
        %2838 = vmatprep.subr.bf16.mxu0 0
        %2839 = vmatpush1.bf16.msra.mxu0 0
        %2840 = vmatprep.subr.bf16.mxu0 0
        %2841 = vmatpush1.bf16.msra.mxu0 0
        %2842 = vmatprep.mubr.bf16.mxu0 0
        %2843 = vmatmul.mubr.bf16.gmra.mrb[0].mxu0 %v2805
        %v2844 = vpop.f32.mrb[0].mxu0
        %v2845 = vadd.f32 0.0, %v2844
        %v2846 = vpop.f32.mrb[0].mxu0
        %v2847 = vadd.f32 0.0, %v2846
        %v2848 = vpop.f32.mrb[0].mxu0
        %v2849 = vadd.f32 0.0, %v2848
        %v2850 = vpop.f32.mrb[0].mxu0
        %v2851 = vadd.f32 0.0, %v2850
        %2852 = vmatprep.mubr.bf16.mxu0 0
        %2853 = vmatmul.mubr.bf16.gmra.mrb[0].mxu0 %v2808
        %v2854 = vpop.f32.mrb[0].mxu0
        %v2855 = vadd.f32 0.0, %v2854
        %v2856 = vpop.f32.mrb[0].mxu0
        %v2857 = vadd.f32 0.0, %v2856
        %v2858 = vpop.f32.mrb[0].mxu0
        %v2859 = vadd.f32 0.0, %v2858
        %v2860 = vpop.f32.mrb[0].mxu0
        %v2861 = vadd.f32 0.0, %v2860
        %2862 = vdwg.mxu0
        %2863 = vmatprep.subr.bf16.mxu0 0
        %2864 = vmatpush1.bf16.msra.mxu0 %v2099
        %2865 = vmatprep.subr.bf16.mxu0 0
        %2866 = vmatpush1.bf16.msra.mxu0 %v2102
        %2867 = vmatprep.subr.bf16.mxu0 0
        %2868 = vmatpush1.bf16.msra.mxu0 %v2105
        %2869 = vmatprep.subr.bf16.mxu0 0
        %2870 = vmatpush1.bf16.msra.mxu0 %v2108
        %2871 = vmatprep.subr.bf16.mxu0 0
        %2872 = vmatpush1.bf16.msra.mxu0 0
        %2873 = vmatprep.subr.bf16.mxu0 0
        %2874 = vmatpush1.bf16.msra.mxu0 0
        %2875 = vmatprep.subr.bf16.mxu0 0
        %2876 = vmatpush1.bf16.msra.mxu0 0
        %2877 = vmatprep.subr.bf16.mxu0 0
        %2878 = vmatpush1.bf16.msra.mxu0 0
        %2879 = vmatprep.subr.bf16.mxu0 0
        %2880 = vmatpush1.bf16.msra.mxu0 0
        %2881 = vmatprep.subr.bf16.mxu0 0
        %2882 = vmatpush1.bf16.msra.mxu0 0
        %2883 = vmatprep.subr.bf16.mxu0 0
        %2884 = vmatpush1.bf16.msra.mxu0 0
        %2885 = vmatprep.subr.bf16.mxu0 0
        %2886 = vmatpush1.bf16.msra.mxu0 0
        %2887 = vmatprep.subr.bf16.mxu0 0
        %2888 = vmatpush1.bf16.msra.mxu0 0
        %2889 = vmatprep.subr.bf16.mxu0 0
        %2890 = vmatpush1.bf16.msra.mxu0 0
        %2891 = vmatprep.subr.bf16.mxu0 0
        %2892 = vmatpush1.bf16.msra.mxu0 0
        %2893 = vmatprep.subr.bf16.mxu0 0
        %2894 = vmatpush1.bf16.msra.mxu0 0
        %2895 = vmatprep.mubr.bf16.mxu0 0
        %2896 = vmatmul.mubr.bf16.gmra.mrb[0].mxu0 %v2805
        %v2897 = vpop.f32.mrb[0].mxu0
        %v2898 = vadd.f32 0.0, %v2897
        %v2899 = vpop.f32.mrb[0].mxu0
        %v2900 = vpop.f32.mrb[0].mxu0
        %v2901 = vadd.f32 0.0, %v2900
        %v2902 = vpop.f32.mrb[0].mxu0
        %2903 = vmatprep.mubr.bf16.mxu0 0
        %2904 = vmatmul.mubr.bf16.gmra.mrb[0].mxu0 %v2808
        %v2905 = vpop.f32.mrb[0].mxu0
        %v2906 = vadd.f32 0.0, %v2905
        %v2907 = vpop.f32.mrb[0].mxu0
        %v2908 = vpop.f32.mrb[0].mxu0
        %v2909 = vadd.f32 0.0, %v2908
        %v2910 = vpop.f32.mrb[0].mxu0
        %2911 = vdwg.mxu0
        %v2912 = vadd.f32 %v2778, %v2845
        %v2913 = vadd.f32 %v2779, %v2847
        %v2914 = vadd.f32 %v2780, %v2898
        %v2915 = vadd.f32 %v2781, %v2849
        %v2916 = vadd.f32 %v2782, %v2851
        %v2917 = vadd.f32 %v2783, %v2901
        %v2918 = vadd.f32 %v2784, %v2855
        %v2919 = vadd.f32 %v2785, %v2857
        %v2920 = vadd.f32 %v2786, %v2906
        %v2921 = vadd.f32 %v2787, %v2859
        %v2922 = vadd.f32 %v2788, %v2861
        %v2923 = vadd.f32 %v2789, %v2909
        %v2924 = vld [vmem:[%s4 + $0x50] sm:$0xf]
        %v2925 = vld [vmem:[%s4 + $0x54] sm:$0xf]
        %v2926 = vld [vmem:[%s4 + $0x58] sm:$0xf]
        %v2927 = vld [vmem:[%s4 + $0x5c] sm:$0xf]
        %v2932 = vunpack.c.l.b16 %v2924
        %v2933 = vunpack.c.l.b16 %v2925
        %v2934 = vunpack.c.l.b16 %v2926
        %v2935 = vunpack.c.l.b16 %v2927
        %v2936 = vpack.c.b16 %v2933, %v2932
        %v2937 = vpack.c.b16 %v2935, %v2934
        %v2939 = vsel %vm2123, %v2936, 0
        %v2942 = vsel %vm2123, %v2937, 0
        %2944 = vmatprep.subr.bf16.mxu0 %v2098
        %2945 = vmatpush1.bf16.msra.mxu0 %v2097
        %2946 = vmatprep.subr.bf16.mxu0 %v2101
        %2947 = vmatpush1.bf16.msra.mxu0 %v2100
        %2948 = vmatprep.subr.bf16.mxu0 %v2104
        %2949 = vmatpush1.bf16.msra.mxu0 %v2103
        %2950 = vmatprep.subr.bf16.mxu0 %v2107
        %2951 = vmatpush1.bf16.msra.mxu0 %v2106
        %2952 = vmatprep.subr.bf16.mxu0 0
        %2953 = vmatpush1.bf16.msra.mxu0 0
        %2954 = vmatprep.subr.bf16.mxu0 0
        %2955 = vmatpush1.bf16.msra.mxu0 0
        %2956 = vmatprep.subr.bf16.mxu0 0
        %2957 = vmatpush1.bf16.msra.mxu0 0
        %2958 = vmatprep.subr.bf16.mxu0 0
        %2959 = vmatpush1.bf16.msra.mxu0 0
        %2960 = vmatprep.subr.bf16.mxu0 0
        %2961 = vmatpush1.bf16.msra.mxu0 0
        %2962 = vmatprep.subr.bf16.mxu0 0
        %2963 = vmatpush1.bf16.msra.mxu0 0
        %2964 = vmatprep.subr.bf16.mxu0 0
        %2965 = vmatpush1.bf16.msra.mxu0 0
        %2966 = vmatprep.subr.bf16.mxu0 0
        %2967 = vmatpush1.bf16.msra.mxu0 0
        %2968 = vmatprep.subr.bf16.mxu0 0
        %2969 = vmatpush1.bf16.msra.mxu0 0
        %2970 = vmatprep.subr.bf16.mxu0 0
        %2971 = vmatpush1.bf16.msra.mxu0 0
        %2972 = vmatprep.subr.bf16.mxu0 0
        %2973 = vmatpush1.bf16.msra.mxu0 0
        %2974 = vmatprep.subr.bf16.mxu0 0
        %2975 = vmatpush1.bf16.msra.mxu0 0
        %2976 = vmatprep.mubr.bf16.mxu0 0
        %2977 = vmatmul.mubr.bf16.gmra.mrb[0].mxu0 %v2939
        %v2978 = vpop.f32.mrb[0].mxu0
        %v2979 = vadd.f32 0.0, %v2978
        %v2980 = vpop.f32.mrb[0].mxu0
        %v2981 = vadd.f32 0.0, %v2980
        %v2982 = vpop.f32.mrb[0].mxu0
        %v2983 = vadd.f32 0.0, %v2982
        %v2984 = vpop.f32.mrb[0].mxu0
        %v2985 = vadd.f32 0.0, %v2984
        %2986 = vmatprep.mubr.bf16.mxu0 0
        %2987 = vmatmul.mubr.bf16.gmra.mrb[0].mxu0 %v2942
        %v2988 = vpop.f32.mrb[0].mxu0
        %v2989 = vadd.f32 0.0, %v2988
        %v2990 = vpop.f32.mrb[0].mxu0
        %v2991 = vadd.f32 0.0, %v2990
        %v2992 = vpop.f32.mrb[0].mxu0
        %v2993 = vadd.f32 0.0, %v2992
        %v2994 = vpop.f32.mrb[0].mxu0
        %v2995 = vadd.f32 0.0, %v2994
        %2996 = vdwg.mxu0
        %2997 = vmatprep.subr.bf16.mxu0 0
        %2998 = vmatpush1.bf16.msra.mxu0 %v2099
        %2999 = vmatprep.subr.bf16.mxu0 0
        %3000 = vmatpush1.bf16.msra.mxu0 %v2102
        %3001 = vmatprep.subr.bf16.mxu0 0
        %3002 = vmatpush1.bf16.msra.mxu0 %v2105
        %3003 = vmatprep.subr.bf16.mxu0 0
        %3004 = vmatpush1.bf16.msra.mxu0 %v2108
        %3005 = vmatprep.subr.bf16.mxu0 0
        %3006 = vmatpush1.bf16.msra.mxu0 0
        %3007 = vmatprep.subr.bf16.mxu0 0
        %3008 = vmatpush1.bf16.msra.mxu0 0
        %3009 = vmatprep.subr.bf16.mxu0 0
        %3010 = vmatpush1.bf16.msra.mxu0 0
        %3011 = vmatprep.subr.bf16.mxu0 0
        %3012 = vmatpush1.bf16.msra.mxu0 0
        %3013 = vmatprep.subr.bf16.mxu0 0
        %3014 = vmatpush1.bf16.msra.mxu0 0
        %3015 = vmatprep.subr.bf16.mxu0 0
        %3016 = vmatpush1.bf16.msra.mxu0 0
        %3017 = vmatprep.subr.bf16.mxu0 0
        %3018 = vmatpush1.bf16.msra.mxu0 0
        %3019 = vmatprep.subr.bf16.mxu0 0
        %3020 = vmatpush1.bf16.msra.mxu0 0
        %3021 = vmatprep.subr.bf16.mxu0 0
        %3022 = vmatpush1.bf16.msra.mxu0 0
        %3023 = vmatprep.subr.bf16.mxu0 0
        %3024 = vmatpush1.bf16.msra.mxu0 0
        %3025 = vmatprep.subr.bf16.mxu0 0
        %3026 = vmatpush1.bf16.msra.mxu0 0
        %3027 = vmatprep.subr.bf16.mxu0 0
        %3028 = vmatpush1.bf16.msra.mxu0 0
        %3029 = vmatprep.mubr.bf16.mxu0 0
        %3030 = vmatmul.mubr.bf16.gmra.mrb[0].mxu0 %v2939
        %v3031 = vpop.f32.mrb[0].mxu0
        %v3032 = vadd.f32 0.0, %v3031
        %v3033 = vpop.f32.mrb[0].mxu0
        %v3034 = vpop.f32.mrb[0].mxu0
        %v3035 = vadd.f32 0.0, %v3034
        %v3036 = vpop.f32.mrb[0].mxu0
        %3037 = vmatprep.mubr.bf16.mxu0 0
        %3038 = vmatmul.mubr.bf16.gmra.mrb[0].mxu0 %v2942
        %v3039 = vpop.f32.mrb[0].mxu0
        %v3040 = vadd.f32 0.0, %v3039
        %v3041 = vpop.f32.mrb[0].mxu0
        %v3042 = vpop.f32.mrb[0].mxu0
        %v3043 = vadd.f32 0.0, %v3042
        %v3044 = vpop.f32.mrb[0].mxu0
        %3045 = vdwg.mxu0
        %3046 = vrot.lane.b32.xlu0 %v2979, 127
        %v3047 = vpop.permute.xlu0 %3046
        %3048 = vrot.lane.b32.xlu0 %v2983, 127
        %v3049 = vpop.permute.xlu0 %3048
        %3050 = vrot.lane.b32.xlu0 %v2989, 127
        %v3051 = vpop.permute.xlu0 %3050
        %3052 = vrot.lane.b32.xlu0 %v2993, 127
        %v3053 = vpop.permute.xlu0 %3052
        %3054 = vrot.lane.b32.xlu0 %v2981, 127
        %v3055 = vpop.permute.xlu0 %3054
        %3056 = vrot.lane.b32.xlu0 %v2985, 127
        %v3057 = vpop.permute.xlu0 %3056
        %3058 = vrot.lane.b32.xlu0 %v2991, 127
        %v3059 = vpop.permute.xlu0 %3058
        %3060 = vrot.lane.b32.xlu0 %v2995, 127
        %v3061 = vpop.permute.xlu0 %3060
        %3062 = vrot.lane.b32.xlu0 %v3032, 127
        %v3063 = vpop.permute.xlu0 %3062
        %3064 = vrot.lane.b32.xlu0 %v3035, 127
        %v3065 = vpop.permute.xlu0 %3064
        %3066 = vrot.lane.b32.xlu0 %v3040, 127
        %v3067 = vpop.permute.xlu0 %3066
        %3068 = vrot.lane.b32.xlu0 %v3043, 127
        %v3069 = vpop.permute.xlu0 %3068
        %v3070 = vsel %vm1423, %v3055, %v3063
        %v3071 = vsel %vm1423, %v3057, %v3065
        %v3072 = vsel %vm1423, %v3059, %v3067
        %v3073 = vsel %vm1423, %v3061, %v3069
        %v3074 = vsel %vm1423, %v3047, %v3055
        %v3075 = vsel %vm1423, %v3049, %v3057
        %v3076 = vsel %vm1423, %v3051, %v3059
        %v3077 = vsel %vm1423, %v3053, %v3061
        %v3078 = vsel %vm1423, %v3063, %v3047
        %v3079 = vsel %vm1423, %v3065, %v3049
        %v3080 = vsel %vm1423, %v3067, %v3051
        %v3081 = vsel %vm1423, %v3069, %v3053
        %v3082 = vadd.f32 %v2912, %v3074
        %v3083 = vadd.f32 %v2913, %v3070
        %v3084 = vadd.f32 %v2914, %v3078
        %v3085 = vadd.f32 %v2915, %v3075
        %v3086 = vadd.f32 %v2916, %v3071
        %v3087 = vadd.f32 %v2917, %v3079
        %v3088 = vadd.f32 %v2918, %v3076
        %v3089 = vadd.f32 %v2919, %v3072
        %v3090 = vadd.f32 %v2920, %v3080
        %v3091 = vadd.f32 %v2921, %v3077
        %v3092 = vadd.f32 %v2922, %v3073
        %v3093 = vadd.f32 %v2923, %v3081
        %v3094 = vld [vmem:[%s4 + $0x60] sm:$0xf]
        %v3095 = vld [vmem:[%s4 + $0x64] sm:$0xf]
        %v3096 = vld [vmem:[%s4 + $0x68] sm:$0xf]
        %v3097 = vld [vmem:[%s4 + $0x6c] sm:$0xf]
        %v3102 = vunpack.c.l.b16 %v3094
        %v3103 = vunpack.c.l.b16 %v3095
        %v3104 = vunpack.c.l.b16 %v3096
        %v3105 = vunpack.c.l.b16 %v3097
        %v3106 = vpack.c.b16 %v3103, %v3102
        %v3107 = vpack.c.b16 %v3105, %v3104
        %v3109 = vsel %vm2123, %v3106, 0
        %v3112 = vsel %vm2123, %v3107, 0
        %3114 = vmatprep.subr.bf16.mxu0 %v2098
        %3115 = vmatpush1.bf16.msra.mxu0 %v2097
        %3116 = vmatprep.subr.bf16.mxu0 %v2101
        %3117 = vmatpush1.bf16.msra.mxu0 %v2100
        %3118 = vmatprep.subr.bf16.mxu0 %v2104
        %3119 = vmatpush1.bf16.msra.mxu0 %v2103
        %3120 = vmatprep.subr.bf16.mxu0 %v2107
        %3121 = vmatpush1.bf16.msra.mxu0 %v2106
        %3122 = vmatprep.subr.bf16.mxu0 0
        %3123 = vmatpush1.bf16.msra.mxu0 0
        %3124 = vmatprep.subr.bf16.mxu0 0
        %3125 = vmatpush1.bf16.msra.mxu0 0
        %3126 = vmatprep.subr.bf16.mxu0 0
        %3127 = vmatpush1.bf16.msra.mxu0 0
        %3128 = vmatprep.subr.bf16.mxu0 0
        %3129 = vmatpush1.bf16.msra.mxu0 0
        %3130 = vmatprep.subr.bf16.mxu0 0
        %3131 = vmatpush1.bf16.msra.mxu0 0
        %3132 = vmatprep.subr.bf16.mxu0 0
        %3133 = vmatpush1.bf16.msra.mxu0 0
        %3134 = vmatprep.subr.bf16.mxu0 0
        %3135 = vmatpush1.bf16.msra.mxu0 0
        %3136 = vmatprep.subr.bf16.mxu0 0
        %3137 = vmatpush1.bf16.msra.mxu0 0
        %3138 = vmatprep.subr.bf16.mxu0 0
        %3139 = vmatpush1.bf16.msra.mxu0 0
        %3140 = vmatprep.subr.bf16.mxu0 0
        %3141 = vmatpush1.bf16.msra.mxu0 0
        %3142 = vmatprep.subr.bf16.mxu0 0
        %3143 = vmatpush1.bf16.msra.mxu0 0
        %3144 = vmatprep.subr.bf16.mxu0 0
        %3145 = vmatpush1.bf16.msra.mxu0 0
        %3146 = vmatprep.mubr.bf16.mxu0 0
        %3147 = vmatmul.mubr.bf16.gmra.mrb[0].mxu0 %v3109
        %v3148 = vpop.f32.mrb[0].mxu0
        %v3149 = vadd.f32 0.0, %v3148
        %v3150 = vpop.f32.mrb[0].mxu0
        %v3151 = vadd.f32 0.0, %v3150
        %v3152 = vpop.f32.mrb[0].mxu0
        %v3153 = vadd.f32 0.0, %v3152
        %v3154 = vpop.f32.mrb[0].mxu0
        %v3155 = vadd.f32 0.0, %v3154
        %3156 = vmatprep.mubr.bf16.mxu0 0
        %3157 = vmatmul.mubr.bf16.gmra.mrb[0].mxu0 %v3112
        %v3158 = vpop.f32.mrb[0].mxu0
        %v3159 = vadd.f32 0.0, %v3158
        %v3160 = vpop.f32.mrb[0].mxu0
        %v3161 = vadd.f32 0.0, %v3160
        %v3162 = vpop.f32.mrb[0].mxu0
        %v3163 = vadd.f32 0.0, %v3162
        %v3164 = vpop.f32.mrb[0].mxu0
        %v3165 = vadd.f32 0.0, %v3164
        %3166 = vdwg.mxu0
        %3167 = vmatprep.subr.bf16.mxu0 0
        %3168 = vmatpush1.bf16.msra.mxu0 %v2099
        %3169 = vmatprep.subr.bf16.mxu0 0
        %3170 = vmatpush1.bf16.msra.mxu0 %v2102
        %3171 = vmatprep.subr.bf16.mxu0 0
        %3172 = vmatpush1.bf16.msra.mxu0 %v2105
        %3173 = vmatprep.subr.bf16.mxu0 0
        %3174 = vmatpush1.bf16.msra.mxu0 %v2108
        %3175 = vmatprep.subr.bf16.mxu0 0
        %3176 = vmatpush1.bf16.msra.mxu0 0
        %3177 = vmatprep.subr.bf16.mxu0 0
        %3178 = vmatpush1.bf16.msra.mxu0 0
        %3179 = vmatprep.subr.bf16.mxu0 0
        %3180 = vmatpush1.bf16.msra.mxu0 0
        %3181 = vmatprep.subr.bf16.mxu0 0
        %3182 = vmatpush1.bf16.msra.mxu0 0
        %3183 = vmatprep.subr.bf16.mxu0 0
        %3184 = vmatpush1.bf16.msra.mxu0 0
        %3185 = vmatprep.subr.bf16.mxu0 0
        %3186 = vmatpush1.bf16.msra.mxu0 0
        %3187 = vmatprep.subr.bf16.mxu0 0
        %3188 = vmatpush1.bf16.msra.mxu0 0
        %3189 = vmatprep.subr.bf16.mxu0 0
        %3190 = vmatpush1.bf16.msra.mxu0 0
        %3191 = vmatprep.subr.bf16.mxu0 0
        %3192 = vmatpush1.bf16.msra.mxu0 0
        %3193 = vmatprep.subr.bf16.mxu0 0
        %3194 = vmatpush1.bf16.msra.mxu0 0
        %3195 = vmatprep.subr.bf16.mxu0 0
        %3196 = vmatpush1.bf16.msra.mxu0 0
        %3197 = vmatprep.subr.bf16.mxu0 0
        %3198 = vmatpush1.bf16.msra.mxu0 0
        %3199 = vmatprep.mubr.bf16.mxu0 0
        %3200 = vmatmul.mubr.bf16.gmra.mrb[0].mxu0 %v3109
        %v3201 = vpop.f32.mrb[0].mxu0
        %v3202 = vadd.f32 0.0, %v3201
        %v3203 = vpop.f32.mrb[0].mxu0
        %v3204 = vpop.f32.mrb[0].mxu0
        %v3205 = vadd.f32 0.0, %v3204
        %v3206 = vpop.f32.mrb[0].mxu0
        %3207 = vmatprep.mubr.bf16.mxu0 0
        %3208 = vmatmul.mubr.bf16.gmra.mrb[0].mxu0 %v3112
        %v3209 = vpop.f32.mrb[0].mxu0
        %v3210 = vadd.f32 0.0, %v3209
        %v3211 = vpop.f32.mrb[0].mxu0
        %v3212 = vpop.f32.mrb[0].mxu0
        %v3213 = vadd.f32 0.0, %v3212
        %v3214 = vpop.f32.mrb[0].mxu0
        %3215 = vdwg.mxu0
        %3216 = vrot.lane.b32.xlu0 %v3149, 111
        %v3217 = vpop.permute.xlu0 %3216
        %3218 = vrot.lane.b32.xlu0 %v3153, 111
        %v3219 = vpop.permute.xlu0 %3218
        %3220 = vrot.lane.b32.xlu0 %v3159, 111
        %v3221 = vpop.permute.xlu0 %3220
        %3222 = vrot.lane.b32.xlu0 %v3163, 111
        %v3223 = vpop.permute.xlu0 %3222
        %3224 = vrot.lane.b32.xlu0 %v3151, 111
        %v3225 = vpop.permute.xlu0 %3224
        %3226 = vrot.lane.b32.xlu0 %v3155, 111
        %v3227 = vpop.permute.xlu0 %3226
        %3228 = vrot.lane.b32.xlu0 %v3161, 111
        %v3229 = vpop.permute.xlu0 %3228
        %3230 = vrot.lane.b32.xlu0 %v3165, 111
        %v3231 = vpop.permute.xlu0 %3230
        %3232 = vrot.lane.b32.xlu0 %v3202, 111
        %v3233 = vpop.permute.xlu0 %3232
        %3234 = vrot.lane.b32.xlu0 %v3205, 111
        %v3235 = vpop.permute.xlu0 %3234
        %3236 = vrot.lane.b32.xlu0 %v3210, 111
        %v3237 = vpop.permute.xlu0 %3236
        %3238 = vrot.lane.b32.xlu0 %v3213, 111
        %v3239 = vpop.permute.xlu0 %3238
        %v3240 = vsel %vm1594, %v3225, %v3233
        %v3241 = vsel %vm1594, %v3227, %v3235
        %v3242 = vsel %vm1594, %v3229, %v3237
        %v3243 = vsel %vm1594, %v3231, %v3239
        %v3244 = vsel %vm1594, %v3217, %v3225
        %v3245 = vsel %vm1594, %v3219, %v3227
        %v3246 = vsel %vm1594, %v3221, %v3229
        %v3247 = vsel %vm1594, %v3223, %v3231
        %v3248 = vsel %vm1594, %v3233, %v3217
        %v3249 = vsel %vm1594, %v3235, %v3219
        %v3250 = vsel %vm1594, %v3237, %v3221
        %v3251 = vsel %vm1594, %v3239, %v3223
        %v3252 = vadd.f32 %v3082, %v3244
        %v3253 = vadd.f32 %v3083, %v3240
        %v3254 = vadd.f32 %v3084, %v3248
        %v3255 = vadd.f32 %v3085, %v3245
        %v3256 = vadd.f32 %v3086, %v3241
        %v3257 = vadd.f32 %v3087, %v3249
        %v3258 = vadd.f32 %v3088, %v3246
        %v3259 = vadd.f32 %v3089, %v3242
        %v3260 = vadd.f32 %v3090, %v3250
        %v3261 = vadd.f32 %v3091, %v3247
        %v3262 = vadd.f32 %v3092, %v3243
        %v3263 = vadd.f32 %v3093, %v3251
        %v3264 = vld [vmem:[%s4 + $0x70] sm:$0xf]
        %v3265 = vld [vmem:[%s4 + $0x74] sm:$0xf]
        %v3266 = vld [vmem:[%s4 + $0x78] sm:$0xf]
        %v3267 = vld [vmem:[%s4 + $0x7c] sm:$0xf]
        %v3272 = vunpack.c.l.b16 %v3264
        %v3273 = vunpack.c.l.b16 %v3265
        %v3274 = vunpack.c.l.b16 %v3266
        %v3275 = vunpack.c.l.b16 %v3267
        %v3276 = vpack.c.b16 %v3273, %v3272
        %v3277 = vpack.c.b16 %v3275, %v3274
        %v3279 = vsel %vm2123, %v3276, 0
        %v3282 = vsel %vm2123, %v3277, 0
        %3284 = vmatprep.subr.bf16.mxu0 %v2098
        %3285 = vmatpush1.bf16.msra.mxu0 %v2097
        %3286 = vmatprep.subr.bf16.mxu0 %v2101
        %3287 = vmatpush1.bf16.msra.mxu0 %v2100
        %3288 = vmatprep.subr.bf16.mxu0 %v2104
        %3289 = vmatpush1.bf16.msra.mxu0 %v2103
        %3290 = vmatprep.subr.bf16.mxu0 %v2107
        %3291 = vmatpush1.bf16.msra.mxu0 %v2106
        %3292 = vmatprep.subr.bf16.mxu0 0
        %3293 = vmatpush1.bf16.msra.mxu0 0
        %3294 = vmatprep.subr.bf16.mxu0 0
        %3295 = vmatpush1.bf16.msra.mxu0 0
        %3296 = vmatprep.subr.bf16.mxu0 0
        %3297 = vmatpush1.bf16.msra.mxu0 0
        %3298 = vmatprep.subr.bf16.mxu0 0
        %3299 = vmatpush1.bf16.msra.mxu0 0
        %3300 = vmatprep.subr.bf16.mxu0 0
        %3301 = vmatpush1.bf16.msra.mxu0 0
        %3302 = vmatprep.subr.bf16.mxu0 0
        %3303 = vmatpush1.bf16.msra.mxu0 0
        %3304 = vmatprep.subr.bf16.mxu0 0
        %3305 = vmatpush1.bf16.msra.mxu0 0
        %3306 = vmatprep.subr.bf16.mxu0 0
        %3307 = vmatpush1.bf16.msra.mxu0 0
        %3308 = vmatprep.subr.bf16.mxu0 0
        %3309 = vmatpush1.bf16.msra.mxu0 0
        %3310 = vmatprep.subr.bf16.mxu0 0
        %3311 = vmatpush1.bf16.msra.mxu0 0
        %3312 = vmatprep.subr.bf16.mxu0 0
        %3313 = vmatpush1.bf16.msra.mxu0 0
        %3314 = vmatprep.subr.bf16.mxu0 0
        %3315 = vmatpush1.bf16.msra.mxu0 0
        %3316 = vmatprep.mubr.bf16.mxu0 0
        %3317 = vmatmul.mubr.bf16.gmra.mrb[0].mxu0 %v3279
        %v3318 = vpop.f32.mrb[0].mxu0
        %v3319 = vadd.f32 0.0, %v3318
        %v3320 = vpop.f32.mrb[0].mxu0
        %v3321 = vadd.f32 0.0, %v3320
        %v3322 = vpop.f32.mrb[0].mxu0
        %v3323 = vadd.f32 0.0, %v3322
        %v3324 = vpop.f32.mrb[0].mxu0
        %v3325 = vadd.f32 0.0, %v3324
        %3326 = vmatprep.mubr.bf16.mxu0 0
        %3327 = vmatmul.mubr.bf16.gmra.mrb[0].mxu0 %v3282
        %v3328 = vpop.f32.mrb[0].mxu0
        %v3329 = vadd.f32 0.0, %v3328
        %v3330 = vpop.f32.mrb[0].mxu0
        %v3331 = vadd.f32 0.0, %v3330
        %v3332 = vpop.f32.mrb[0].mxu0
        %v3333 = vadd.f32 0.0, %v3332
        %v3334 = vpop.f32.mrb[0].mxu0
        %v3335 = vadd.f32 0.0, %v3334
        %3336 = vdwg.mxu0
        %3337 = vmatprep.subr.bf16.mxu0 0
        %3338 = vmatpush1.bf16.msra.mxu0 %v2099
        %3339 = vmatprep.subr.bf16.mxu0 0
        %3340 = vmatpush1.bf16.msra.mxu0 %v2102
        %3341 = vmatprep.subr.bf16.mxu0 0
        %3342 = vmatpush1.bf16.msra.mxu0 %v2105
        %3343 = vmatprep.subr.bf16.mxu0 0
        %3344 = vmatpush1.bf16.msra.mxu0 %v2108
        %3345 = vmatprep.subr.bf16.mxu0 0
        %3346 = vmatpush1.bf16.msra.mxu0 0
        %3347 = vmatprep.subr.bf16.mxu0 0
        %3348 = vmatpush1.bf16.msra.mxu0 0
        %3349 = vmatprep.subr.bf16.mxu0 0
        %3350 = vmatpush1.bf16.msra.mxu0 0
        %3351 = vmatprep.subr.bf16.mxu0 0
        %3352 = vmatpush1.bf16.msra.mxu0 0
        %3353 = vmatprep.subr.bf16.mxu0 0
        %3354 = vmatpush1.bf16.msra.mxu0 0
        %3355 = vmatprep.subr.bf16.mxu0 0
        %3356 = vmatpush1.bf16.msra.mxu0 0
        %3357 = vmatprep.subr.bf16.mxu0 0
        %3358 = vmatpush1.bf16.msra.mxu0 0
        %3359 = vmatprep.subr.bf16.mxu0 0
        %3360 = vmatpush1.bf16.msra.mxu0 0
        %3361 = vmatprep.subr.bf16.mxu0 0
        %3362 = vmatpush1.bf16.msra.mxu0 0
        %3363 = vmatprep.subr.bf16.mxu0 0
        %3364 = vmatpush1.bf16.msra.mxu0 0
        %3365 = vmatprep.subr.bf16.mxu0 0
        %3366 = vmatpush1.bf16.msra.mxu0 0
        %3367 = vmatprep.subr.bf16.mxu0 0
        %3368 = vmatpush1.bf16.msra.mxu0 0
        %3369 = vmatprep.mubr.bf16.mxu0 0
        %3370 = vmatmul.mubr.bf16.gmra.mrb[0].mxu0 %v3279
        %v3371 = vpop.f32.mrb[0].mxu0
        %v3372 = vadd.f32 0.0, %v3371
        %v3373 = vpop.f32.mrb[0].mxu0
        %v3374 = vpop.f32.mrb[0].mxu0
        %v3375 = vadd.f32 0.0, %v3374
        %v3376 = vpop.f32.mrb[0].mxu0
        %3377 = vmatprep.mubr.bf16.mxu0 0
        %3378 = vmatmul.mubr.bf16.gmra.mrb[0].mxu0 %v3282
        %v3379 = vpop.f32.mrb[0].mxu0
        %v3380 = vadd.f32 0.0, %v3379
        %v3381 = vpop.f32.mrb[0].mxu0
        %v3382 = vpop.f32.mrb[0].mxu0
        %v3383 = vadd.f32 0.0, %v3382
        %v3384 = vpop.f32.mrb[0].mxu0
        %3385 = vdwg.mxu0
        %3386 = vrot.lane.b32.xlu0 %v3319, 110
        %v3387 = vpop.permute.xlu0 %3386
        %3388 = vrot.lane.b32.xlu0 %v3323, 110
        %v3389 = vpop.permute.xlu0 %3388
        %3390 = vrot.lane.b32.xlu0 %v3329, 110
        %v3391 = vpop.permute.xlu0 %3390
        %3392 = vrot.lane.b32.xlu0 %v3333, 110
        %v3393 = vpop.permute.xlu0 %3392
        %3394 = vrot.lane.b32.xlu0 %v3321, 110
        %v3395 = vpop.permute.xlu0 %3394
        %3396 = vrot.lane.b32.xlu0 %v3325, 110
        %v3397 = vpop.permute.xlu0 %3396
        %3398 = vrot.lane.b32.xlu0 %v3331, 110
        %v3399 = vpop.permute.xlu0 %3398
        %3400 = vrot.lane.b32.xlu0 %v3335, 110
        %v3401 = vpop.permute.xlu0 %3400
        %3402 = vrot.lane.b32.xlu0 %v3372, 110
        %v3403 = vpop.permute.xlu0 %3402
        %3404 = vrot.lane.b32.xlu0 %v3375, 110
        %v3405 = vpop.permute.xlu0 %3404
        %3406 = vrot.lane.b32.xlu0 %v3380, 110
        %v3407 = vpop.permute.xlu0 %3406
        %3408 = vrot.lane.b32.xlu0 %v3383, 110
        %v3409 = vpop.permute.xlu0 %3408
        %v3410 = vsel %vm1765, %v3395, %v3403
        %v3411 = vsel %vm1765, %v3397, %v3405
        %v3412 = vsel %vm1765, %v3399, %v3407
        %v3413 = vsel %vm1765, %v3401, %v3409
        %v3414 = vsel %vm1765, %v3387, %v3395
        %v3415 = vsel %vm1765, %v3389, %v3397
        %v3416 = vsel %vm1765, %v3391, %v3399
        %v3417 = vsel %vm1765, %v3393, %v3401
        %v3418 = vsel %vm1765, %v3403, %v3387
        %v3419 = vsel %vm1765, %v3405, %v3389
        %v3420 = vsel %vm1765, %v3407, %v3391
        %v3421 = vsel %vm1765, %v3409, %v3393
        %v3422 = vadd.f32 %v3252, %v3414
        %v3423 = vadd.f32 %v3253, %v3410
        %v3424 = vadd.f32 %v3254, %v3418
        %v3425 = vadd.f32 %v3255, %v3415
        %v3426 = vadd.f32 %v3256, %v3411
        %v3427 = vadd.f32 %v3257, %v3419
        %v3428 = vadd.f32 %v3258, %v3416
        %v3429 = vadd.f32 %v3259, %v3412
        %v3430 = vadd.f32 %v3260, %v3420
        %v3431 = vadd.f32 %v3261, %v3417
        %v3432 = vadd.f32 %v3262, %v3413
        %v3433 = vadd.f32 %v3263, %v3421
        %v3434 = vld [vmem:[%s4 + $0x80] sm:$0xf]
        %v3435 = vld [vmem:[%s4 + $0x84] sm:$0xf]
        %v3436 = vld [vmem:[%s4 + $0x88] sm:$0xf]
        %v3437 = vld [vmem:[%s4 + $0x8c] sm:$0xf]
        %v3442 = vunpack.c.l.b16 %v3434
        %v3443 = vunpack.c.l.b16 %v3435
        %v3444 = vunpack.c.l.b16 %v3436
        %v3445 = vunpack.c.l.b16 %v3437
        %v3446 = vpack.c.b16 %v3443, %v3442
        %v3447 = vpack.c.b16 %v3445, %v3444
        %v3449 = vsel %vm2123, %v3446, 0
        %v3452 = vsel %vm2123, %v3447, 0
        %3454 = vmatprep.subr.bf16.mxu0 %v2098
        %3455 = vmatpush1.bf16.msra.mxu0 %v2097
        %3456 = vmatprep.subr.bf16.mxu0 %v2101
        %3457 = vmatpush1.bf16.msra.mxu0 %v2100
        %3458 = vmatprep.subr.bf16.mxu0 %v2104
        %3459 = vmatpush1.bf16.msra.mxu0 %v2103
        %3460 = vmatprep.subr.bf16.mxu0 %v2107
        %3461 = vmatpush1.bf16.msra.mxu0 %v2106
        %3462 = vmatprep.subr.bf16.mxu0 0
        %3463 = vmatpush1.bf16.msra.mxu0 0
        %3464 = vmatprep.subr.bf16.mxu0 0
        %3465 = vmatpush1.bf16.msra.mxu0 0
        %3466 = vmatprep.subr.bf16.mxu0 0
        %3467 = vmatpush1.bf16.msra.mxu0 0
        %3468 = vmatprep.subr.bf16.mxu0 0
        %3469 = vmatpush1.bf16.msra.mxu0 0
        %3470 = vmatprep.subr.bf16.mxu0 0
        %3471 = vmatpush1.bf16.msra.mxu0 0
        %3472 = vmatprep.subr.bf16.mxu0 0
        %3473 = vmatpush1.bf16.msra.mxu0 0
        %3474 = vmatprep.subr.bf16.mxu0 0
        %3475 = vmatpush1.bf16.msra.mxu0 0
        %3476 = vmatprep.subr.bf16.mxu0 0
        %3477 = vmatpush1.bf16.msra.mxu0 0
        %3478 = vmatprep.subr.bf16.mxu0 0
        %3479 = vmatpush1.bf16.msra.mxu0 0
        %3480 = vmatprep.subr.bf16.mxu0 0
        %3481 = vmatpush1.bf16.msra.mxu0 0
        %3482 = vmatprep.subr.bf16.mxu0 0
        %3483 = vmatpush1.bf16.msra.mxu0 0
        %3484 = vmatprep.subr.bf16.mxu0 0
        %3485 = vmatpush1.bf16.msra.mxu0 0
        %3486 = vmatprep.mubr.bf16.mxu0 0
        %3487 = vmatmul.mubr.bf16.gmra.mrb[0].mxu0 %v3449
        %v3488 = vpop.f32.mrb[0].mxu0
        %v3489 = vadd.f32 0.0, %v3488
        %v3490 = vpop.f32.mrb[0].mxu0
        %v3491 = vadd.f32 0.0, %v3490
        %v3492 = vpop.f32.mrb[0].mxu0
        %v3493 = vadd.f32 0.0, %v3492
        %v3494 = vpop.f32.mrb[0].mxu0
        %v3495 = vadd.f32 0.0, %v3494
        %3496 = vmatprep.mubr.bf16.mxu0 0
        %3497 = vmatmul.mubr.bf16.gmra.mrb[0].mxu0 %v3452
        %v3498 = vpop.f32.mrb[0].mxu0
        %v3499 = vadd.f32 0.0, %v3498
        %v3500 = vpop.f32.mrb[0].mxu0
        %v3501 = vadd.f32 0.0, %v3500
        %v3502 = vpop.f32.mrb[0].mxu0
        %v3503 = vadd.f32 0.0, %v3502
        %v3504 = vpop.f32.mrb[0].mxu0
        %v3505 = vadd.f32 0.0, %v3504
        %3506 = vdwg.mxu0
        %3507 = vmatprep.subr.bf16.mxu0 0
        %3508 = vmatpush1.bf16.msra.mxu0 %v2099
        %3509 = vmatprep.subr.bf16.mxu0 0
        %3510 = vmatpush1.bf16.msra.mxu0 %v2102
        %3511 = vmatprep.subr.bf16.mxu0 0
        %3512 = vmatpush1.bf16.msra.mxu0 %v2105
        %3513 = vmatprep.subr.bf16.mxu0 0
        %3514 = vmatpush1.bf16.msra.mxu0 %v2108
        %3515 = vmatprep.subr.bf16.mxu0 0
        %3516 = vmatpush1.bf16.msra.mxu0 0
        %3517 = vmatprep.subr.bf16.mxu0 0
        %3518 = vmatpush1.bf16.msra.mxu0 0
        %3519 = vmatprep.subr.bf16.mxu0 0
        %3520 = vmatpush1.bf16.msra.mxu0 0
        %3521 = vmatprep.subr.bf16.mxu0 0
        %3522 = vmatpush1.bf16.msra.mxu0 0
        %3523 = vmatprep.subr.bf16.mxu0 0
        %3524 = vmatpush1.bf16.msra.mxu0 0
        %3525 = vmatprep.subr.bf16.mxu0 0
        %3526 = vmatpush1.bf16.msra.mxu0 0
        %3527 = vmatprep.subr.bf16.mxu0 0
        %3528 = vmatpush1.bf16.msra.mxu0 0
        %3529 = vmatprep.subr.bf16.mxu0 0
        %3530 = vmatpush1.bf16.msra.mxu0 0
        %3531 = vmatprep.subr.bf16.mxu0 0
        %3532 = vmatpush1.bf16.msra.mxu0 0
        %3533 = vmatprep.subr.bf16.mxu0 0
        %3534 = vmatpush1.bf16.msra.mxu0 0
        %3535 = vmatprep.subr.bf16.mxu0 0
        %3536 = vmatpush1.bf16.msra.mxu0 0
        %3537 = vmatprep.subr.bf16.mxu0 0
        %3538 = vmatpush1.bf16.msra.mxu0 0
        %3539 = vmatprep.mubr.bf16.mxu0 0
        %3540 = vmatmul.mubr.bf16.gmra.mrb[0].mxu0 %v3449
        %v3541 = vpop.f32.mrb[0].mxu0
        %v3542 = vadd.f32 0.0, %v3541
        %v3543 = vpop.f32.mrb[0].mxu0
        %v3544 = vpop.f32.mrb[0].mxu0
        %v3545 = vadd.f32 0.0, %v3544
        %v3546 = vpop.f32.mrb[0].mxu0
        %3547 = vmatprep.mubr.bf16.mxu0 0
        %3548 = vmatmul.mubr.bf16.gmra.mrb[0].mxu0 %v3452
        %v3549 = vpop.f32.mrb[0].mxu0
        %v3550 = vadd.f32 0.0, %v3549
        %v3551 = vpop.f32.mrb[0].mxu0
        %v3552 = vpop.f32.mrb[0].mxu0
        %v3553 = vadd.f32 0.0, %v3552
        %v3554 = vpop.f32.mrb[0].mxu0
        %3555 = vdwg.mxu0
        %3556 = vrot.lane.b32.xlu0 %v3489, 109
        %v3557 = vpop.permute.xlu0 %3556
        %3558 = vrot.lane.b32.xlu0 %v3493, 109
        %v3559 = vpop.permute.xlu0 %3558
        %3560 = vrot.lane.b32.xlu0 %v3499, 109
        %v3561 = vpop.permute.xlu0 %3560
        %3562 = vrot.lane.b32.xlu0 %v3503, 109
        %v3563 = vpop.permute.xlu0 %3562
        %3564 = vrot.lane.b32.xlu0 %v3491, 109
        %v3565 = vpop.permute.xlu0 %3564
        %3566 = vrot.lane.b32.xlu0 %v3495, 109
        %v3567 = vpop.permute.xlu0 %3566
        %3568 = vrot.lane.b32.xlu0 %v3501, 109
        %v3569 = vpop.permute.xlu0 %3568
        %3570 = vrot.lane.b32.xlu0 %v3505, 109
        %v3571 = vpop.permute.xlu0 %3570
        %3572 = vrot.lane.b32.xlu0 %v3542, 109
        %v3573 = vpop.permute.xlu0 %3572
        %3574 = vrot.lane.b32.xlu0 %v3545, 109
        %v3575 = vpop.permute.xlu0 %3574
        %3576 = vrot.lane.b32.xlu0 %v3550, 109
        %v3577 = vpop.permute.xlu0 %3576
        %3578 = vrot.lane.b32.xlu0 %v3553, 109
        %v3579 = vpop.permute.xlu0 %3578
        %v3580 = vsel %vm1936, %v3565, %v3573
        %v3581 = vsel %vm1936, %v3567, %v3575
        %v3582 = vsel %vm1936, %v3569, %v3577
        %v3583 = vsel %vm1936, %v3571, %v3579
        %v3584 = vsel %vm1936, %v3557, %v3565
        %v3585 = vsel %vm1936, %v3559, %v3567
        %v3586 = vsel %vm1936, %v3561, %v3569
        %v3587 = vsel %vm1936, %v3563, %v3571
        %v3588 = vsel %vm1936, %v3573, %v3557
        %v3589 = vsel %vm1936, %v3575, %v3559
        %v3590 = vsel %vm1936, %v3577, %v3561
        %v3591 = vsel %vm1936, %v3579, %v3563
        %v3592 = vadd.f32 %v3422, %v3584
        %v3593 = vadd.f32 %v3423, %v3580
        %v3594 = vadd.f32 %v3424, %v3588
        %v3595 = vadd.f32 %v3425, %v3585
        %v3596 = vadd.f32 %v3426, %v3581
        %v3597 = vadd.f32 %v3427, %v3589
        %v3598 = vadd.f32 %v3428, %v3586
        %v3599 = vadd.f32 %v3429, %v3582
        %v3600 = vadd.f32 %v3430, %v3590
        %v3601 = vadd.f32 %v3431, %v3587
        %v3602 = vadd.f32 %v3432, %v3583
        %v3603 = vadd.f32 %v3433, %v3591
        %v3604 = vld [vmem:[%s5] sm:$0xff]
        %v3605 = vld [vmem:[%s5 + $0x8] sm:$0xff]
        %v3606 = vld [vmem:[%s5 + $0x10] sm:$0xff]
        %v3607 = vld [vmem:[%s5 + $0x18] sm:$0xff]
        %3609 = vset.pattern.permute.xlu0 0
        %3610 = vperm.xlu0 %3609, %v3604
        %v3611 = vpop.permute.xlu0 %3610
        %3614 = vset.pattern.permute.xlu0 0
        %3615 = vperm.xlu0 %3614, %v3605
        %v3616 = vpop.permute.xlu0 %3615
        %3619 = vset.pattern.permute.xlu0 0
        %3620 = vperm.xlu0 %3619, %v3606
        %v3621 = vpop.permute.xlu0 %3620
        %3624 = vset.pattern.permute.xlu0 0
        %3625 = vperm.xlu0 %3624, %v3607
        %v3626 = vpop.permute.xlu0 %3625
        %v3628 = vadd.f32 %v3592, %v3611
        %v3629 = vadd.f32 %v3593, %v3611
        %v3630 = vadd.f32 %v3594, %v3611
        %v3631 = vadd.f32 %v3595, %v3616
        %v3632 = vadd.f32 %v3596, %v3616
        %v3633 = vadd.f32 %v3597, %v3616
        %v3634 = vadd.f32 %v3598, %v3621
        %v3635 = vadd.f32 %v3599, %v3621
        %v3636 = vadd.f32 %v3600, %v3621
        %v3637 = vadd.f32 %v3601, %v3626
        %v3638 = vadd.f32 %v3602, %v3626
        %v3639 = vadd.f32 %v3603, %v3626
        %vm3640 = vcmp.ge.f32.partialorder %v3628, 0.0
        %vm3641 = vcmp.ge.f32.partialorder %v3629, 0.0
        %vm3642 = vcmp.ge.f32.partialorder %v3630, 0.0
        %vm3643 = vcmp.ge.f32.partialorder %v3631, 0.0
        %vm3644 = vcmp.ge.f32.partialorder %v3632, 0.0
        %vm3645 = vcmp.ge.f32.partialorder %v3633, 0.0
        %vm3646 = vcmp.ge.f32.partialorder %v3634, 0.0
        %vm3647 = vcmp.ge.f32.partialorder %v3635, 0.0
        %vm3648 = vcmp.ge.f32.partialorder %v3636, 0.0
        %vm3649 = vcmp.ge.f32.partialorder %v3637, 0.0
        %vm3650 = vcmp.ge.f32.partialorder %v3638, 0.0
        %vm3651 = vcmp.ge.f32.partialorder %v3639, 0.0
        %v3652 = vmul.f32 %v3628, 0.01
        %v3653 = vmul.f32 %v3629, 0.01
        %v3654 = vmul.f32 %v3630, 0.01
        %v3655 = vmul.f32 %v3631, 0.01
        %v3656 = vmul.f32 %v3632, 0.01
        %v3657 = vmul.f32 %v3633, 0.01
        %v3658 = vmul.f32 %v3634, 0.01
        %v3659 = vmul.f32 %v3635, 0.01
        %v3660 = vmul.f32 %v3636, 0.01
        %v3661 = vmul.f32 %v3637, 0.01
        %v3662 = vmul.f32 %v3638, 0.01
        %v3663 = vmul.f32 %v3639, 0.01
        %v3664 = vsel %vm3640, %v3628, %v3652
        %v3665 = vsel %vm3641, %v3629, %v3653
        %v3666 = vsel %vm3642, %v3630, %v3654
        %v3667 = vsel %vm3643, %v3631, %v3655
        %v3668 = vsel %vm3644, %v3632, %v3656
        %v3669 = vsel %vm3645, %v3633, %v3657
        %v3670 = vsel %vm3646, %v3634, %v3658
        %v3671 = vsel %vm3647, %v3635, %v3659
        %v3672 = vsel %vm3648, %v3636, %v3660
        %v3673 = vsel %vm3649, %v3637, %v3661
        %v3674 = vsel %vm3650, %v3638, %v3662
        %v3675 = vsel %vm3651, %v3639, %v3663
        %v3676 = vmul.f32 %v3664, %v2037
        %v3677 = vmul.f32 %v3665, %v2041
        %v3678 = vmul.f32 %v3666, %v2045
        %v3679 = vmul.f32 %v3667, %v2037
        %v3680 = vmul.f32 %v3668, %v2041
        %v3681 = vmul.f32 %v3669, %v2045
        %v3682 = vmul.f32 %v3670, %v2037
        %v3683 = vmul.f32 %v3671, %v2041
        %v3684 = vmul.f32 %v3672, %v2045
        %v3685 = vmul.f32 %v3673, %v2037
        %v3686 = vmul.f32 %v3674, %v2041
        %v3687 = vmul.f32 %v3675, %v2045
        %3688 = vst [vmem:[#allocation2 + $0xc0] sm:$0xff] %v3676
        %3689 = vst [vmem:[#allocation2 + $0xc8] sm:$0xff] %v3677
        %3690 = vst [vmem:[#allocation2 + $0xd0] sm:$0xff] %v3678
        %3691 = vst [vmem:[#allocation2 + $0xd8] sm:$0xff] %v3679
        %3692 = vst [vmem:[#allocation2 + $0xe0] sm:$0xff] %v3680
        %3693 = vst [vmem:[#allocation2 + $0xe8] sm:$0xff] %v3681
        %3694 = vst [vmem:[#allocation2 + $0xf0] sm:$0xff] %v3682
        %3695 = vst [vmem:[#allocation2 + $0xf8] sm:$0xff] %v3683
        %3696 = vst [vmem:[#allocation2 + $0x100] sm:$0xff] %v3684
        %3697 = vst [vmem:[#allocation2 + $0x108] sm:$0xff] %v3685
        %3698 = vst [vmem:[#allocation2 + $0x110] sm:$0xff] %v3686
        %3699 = vst [vmem:[#allocation2 + $0x118] sm:$0xff] %v3687
        %v3700 = vld [vmem:[#allocation2] sm:$0xff]
        %v3701 = vld [vmem:[#allocation2 + $0x8] sm:$0xff]
        %v3702 = vld [vmem:[#allocation2 + $0x10] sm:$0xff]
        %v3703 = vld [vmem:[#allocation2 + $0x18] sm:$0xff]
        %v3704 = vld [vmem:[#allocation2 + $0x20] sm:$0xff]
        %v3705 = vld [vmem:[#allocation2 + $0x28] sm:$0xff]
        %v3706 = vld [vmem:[#allocation2 + $0x30] sm:$0xff]
        %v3707 = vld [vmem:[#allocation2 + $0x38] sm:$0xff]
        %v3708 = vld [vmem:[#allocation2 + $0x40] sm:$0xff]
        %v3709 = vld [vmem:[#allocation2 + $0x48] sm:$0xff]
        %v3710 = vld [vmem:[#allocation2 + $0x50] sm:$0xff]
        %v3711 = vld [vmem:[#allocation2 + $0x58] sm:$0xff]
        %v3712 = vld [vmem:[#allocation2 + $0x60] sm:$0xff]
        %v3713 = vld [vmem:[#allocation2 + $0x68] sm:$0xff]
        %v3714 = vld [vmem:[#allocation2 + $0x70] sm:$0xff]
        %v3715 = vld [vmem:[#allocation2 + $0x78] sm:$0xff]
        %v3716 = vld [vmem:[#allocation2 + $0x80] sm:$0xff]
        %v3717 = vld [vmem:[#allocation2 + $0x88] sm:$0xff]
        %v3718 = vld [vmem:[#allocation2 + $0x90] sm:$0xff]
        %v3719 = vld [vmem:[#allocation2 + $0x98] sm:$0xff]
        %v3720 = vld [vmem:[#allocation2 + $0xa0] sm:$0xff]
        %v3721 = vld [vmem:[#allocation2 + $0xa8] sm:$0xff]
        %v3722 = vld [vmem:[#allocation2 + $0xb0] sm:$0xff]
        %v3723 = vld [vmem:[#allocation2 + $0xb8] sm:$0xff]
        %v3724 = vld [vmem:[#allocation2 + $0xc0] sm:$0xff]
        %v3725 = vld [vmem:[#allocation2 + $0xc8] sm:$0xff]
        %v3726 = vld [vmem:[#allocation2 + $0xd0] sm:$0xff]
        %v3727 = vld [vmem:[#allocation2 + $0xd8] sm:$0xff]
        %v3728 = vld [vmem:[#allocation2 + $0xe0] sm:$0xff]
        %v3729 = vld [vmem:[#allocation2 + $0xe8] sm:$0xff]
        %v3730 = vld [vmem:[#allocation2 + $0xf0] sm:$0xff]
        %v3731 = vld [vmem:[#allocation2 + $0xf8] sm:$0xff]
        %v3732 = vld [vmem:[#allocation2 + $0x100] sm:$0xff]
        %v3733 = vld [vmem:[#allocation2 + $0x108] sm:$0xff]
        %v3734 = vld [vmem:[#allocation2 + $0x110] sm:$0xff]
        %v3735 = vld [vmem:[#allocation2 + $0x118] sm:$0xff]
        %v3736 = vpack.c.bf16 %v3703, %v3700
        %v3737 = vpack.c.bf16 %v3704, %v3701
        %v3738 = vpack.c.bf16 %v3705, %v3702
        %v3739 = vpack.c.bf16 %v3709, %v3706
        %v3740 = vpack.c.bf16 %v3710, %v3707
        %v3741 = vpack.c.bf16 %v3711, %v3708
        %v3742 = vpack.c.bf16 %v3715, %v3712
        %v3743 = vpack.c.bf16 %v3716, %v3713
        %v3744 = vpack.c.bf16 %v3717, %v3714
        %v3745 = vpack.c.bf16 %v3721, %v3718
        %v3746 = vpack.c.bf16 %v3722, %v3719
        %v3747 = vpack.c.bf16 %v3723, %v3720
        %v3748 = vpack.c.bf16 %v3727, %v3724
        %v3749 = vpack.c.bf16 %v3728, %v3725
        %v3750 = vpack.c.bf16 %v3729, %v3726
        %v3751 = vpack.c.bf16 %v3733, %v3730
        %v3752 = vpack.c.bf16 %v3734, %v3731
        %v3753 = vpack.c.bf16 %v3735, %v3732
        %v3754 = vld [vmem:[%s6] sm:$0xf]
        %v3755 = vld [vmem:[%s6 + $0x4] sm:$0xf]
        %v3756 = vld [vmem:[%s6 + $0x8] sm:$0xf]
        %v3757 = vld [vmem:[%s6 + $0xc] sm:$0xf]
        %v3762 = vunpack.c.l.b16 %v3754
        %v3763 = vunpack.c.l.b16 %v3755
        %v3764 = vunpack.c.l.b16 %v3756
        %v3765 = vunpack.c.l.b16 %v3757
        %v3766 = vpack.c.b16 %v3763, %v3762
        %v3767 = vpack.c.b16 %v3765, %v3764
        %vm3768 = vcmask 785408
        %v3770 = vsel %vm3768, %v3766, 0
        %v3773 = vsel %vm3768, %v3767, 0
        %3775 = vmatprep.subr.bf16.mxu0 %v3737
        %3776 = vmatpush1.bf16.msra.mxu0 %v3736
        %3777 = vmatprep.subr.bf16.mxu0 %v3740
        %3778 = vmatpush1.bf16.msra.mxu0 %v3739
        %3779 = vmatprep.subr.bf16.mxu0 %v3743
        %3780 = vmatpush1.bf16.msra.mxu0 %v3742
        %3781 = vmatprep.subr.bf16.mxu0 %v3746
        %3782 = vmatpush1.bf16.msra.mxu0 %v3745
        %3783 = vmatprep.subr.bf16.mxu0 %v3749
        %3784 = vmatpush1.bf16.msra.mxu0 %v3748
        %3785 = vmatprep.subr.bf16.mxu0 %v3752
        %3786 = vmatpush1.bf16.msra.mxu0 %v3751
        %3787 = vmatprep.subr.bf16.mxu0 0
        %3788 = vmatpush1.bf16.msra.mxu0 0
        %3789 = vmatprep.subr.bf16.mxu0 0
        %3790 = vmatpush1.bf16.msra.mxu0 0
        %3791 = vmatprep.subr.bf16.mxu0 0
        %3792 = vmatpush1.bf16.msra.mxu0 0
        %3793 = vmatprep.subr.bf16.mxu0 0
        %3794 = vmatpush1.bf16.msra.mxu0 0
        %3795 = vmatprep.subr.bf16.mxu0 0
        %3796 = vmatpush1.bf16.msra.mxu0 0
        %3797 = vmatprep.subr.bf16.mxu0 0
        %3798 = vmatpush1.bf16.msra.mxu0 0
        %3799 = vmatprep.subr.bf16.mxu0 0
        %3800 = vmatpush1.bf16.msra.mxu0 0
        %3801 = vmatprep.subr.bf16.mxu0 0
        %3802 = vmatpush1.bf16.msra.mxu0 0
        %3803 = vmatprep.subr.bf16.mxu0 0
        %3804 = vmatpush1.bf16.msra.mxu0 0
        %3805 = vmatprep.subr.bf16.mxu0 0
        %3806 = vmatpush1.bf16.msra.mxu0 0
        %3807 = vmatprep.mubr.bf16.mxu0 0
        %3808 = vmatmul.mubr.bf16.gmra.mrb[0].mxu0 %v3770
        %v3809 = vpop.f32.mrb[0].mxu0
        %v3810 = vadd.f32 0.0, %v3809
        %v3811 = vpop.f32.mrb[0].mxu0
        %v3812 = vadd.f32 0.0, %v3811
        %v3813 = vpop.f32.mrb[0].mxu0
        %v3814 = vadd.f32 0.0, %v3813
        %v3815 = vpop.f32.mrb[0].mxu0
        %v3816 = vadd.f32 0.0, %v3815
        %3817 = vmatprep.mubr.bf16.mxu0 0
        %3818 = vmatmul.mubr.bf16.gmra.mrb[0].mxu0 %v3773
        %v3819 = vpop.f32.mrb[0].mxu0
        %v3820 = vadd.f32 0.0, %v3819
        %v3821 = vpop.f32.mrb[0].mxu0
        %v3822 = vadd.f32 0.0, %v3821
        %v3823 = vpop.f32.mrb[0].mxu0
        %v3824 = vadd.f32 0.0, %v3823
        %v3825 = vpop.f32.mrb[0].mxu0
        %v3826 = vadd.f32 0.0, %v3825
        %3827 = vdwg.mxu0
        %3828 = vmatprep.subr.bf16.mxu0 0
        %3829 = vmatpush1.bf16.msra.mxu0 %v3738
        %3830 = vmatprep.subr.bf16.mxu0 0
        %3831 = vmatpush1.bf16.msra.mxu0 %v3741
        %3832 = vmatprep.subr.bf16.mxu0 0
        %3833 = vmatpush1.bf16.msra.mxu0 %v3744
        %3834 = vmatprep.subr.bf16.mxu0 0
        %3835 = vmatpush1.bf16.msra.mxu0 %v3747
        %3836 = vmatprep.subr.bf16.mxu0 0
        %3837 = vmatpush1.bf16.msra.mxu0 %v3750
        %3838 = vmatprep.subr.bf16.mxu0 0
        %3839 = vmatpush1.bf16.msra.mxu0 %v3753
        %3840 = vmatprep.subr.bf16.mxu0 0
        %3841 = vmatpush1.bf16.msra.mxu0 0
        %3842 = vmatprep.subr.bf16.mxu0 0
        %3843 = vmatpush1.bf16.msra.mxu0 0
        %3844 = vmatprep.subr.bf16.mxu0 0
        %3845 = vmatpush1.bf16.msra.mxu0 0
        %3846 = vmatprep.subr.bf16.mxu0 0
        %3847 = vmatpush1.bf16.msra.mxu0 0
        %3848 = vmatprep.subr.bf16.mxu0 0
        %3849 = vmatpush1.bf16.msra.mxu0 0
        %3850 = vmatprep.subr.bf16.mxu0 0
        %3851 = vmatpush1.bf16.msra.mxu0 0
        %3852 = vmatprep.subr.bf16.mxu0 0
        %3853 = vmatpush1.bf16.msra.mxu0 0
        %3854 = vmatprep.subr.bf16.mxu0 0
        %3855 = vmatpush1.bf16.msra.mxu0 0
        %3856 = vmatprep.subr.bf16.mxu0 0
        %3857 = vmatpush1.bf16.msra.mxu0 0
        %3858 = vmatprep.subr.bf16.mxu0 0
        %3859 = vmatpush1.bf16.msra.mxu0 0
        %3860 = vmatprep.mubr.bf16.mxu0 0
        %3861 = vmatmul.mubr.bf16.gmra.mrb[0].mxu0 %v3770
        %v3862 = vpop.f32.mrb[0].mxu0
        %v3863 = vadd.f32 0.0, %v3862
        %v3864 = vpop.f32.mrb[0].mxu0
        %v3865 = vpop.f32.mrb[0].mxu0
        %v3866 = vadd.f32 0.0, %v3865
        %v3867 = vpop.f32.mrb[0].mxu0
        %3868 = vmatprep.mubr.bf16.mxu0 0
        %3869 = vmatmul.mubr.bf16.gmra.mrb[0].mxu0 %v3773
        %v3870 = vpop.f32.mrb[0].mxu0
        %v3871 = vadd.f32 0.0, %v3870
        %v3872 = vpop.f32.mrb[0].mxu0
        %v3873 = vpop.f32.mrb[0].mxu0
        %v3874 = vadd.f32 0.0, %v3873
        %v3875 = vpop.f32.mrb[0].mxu0
        %3876 = vdwg.mxu0
        %3877 = vrot.lane.b32.xlu0 %v3810, 19
        %v3878 = vpop.permute.xlu0 %3877
        %3879 = vrot.lane.b32.xlu0 %v3814, 19
        %v3880 = vpop.permute.xlu0 %3879
        %3881 = vrot.lane.b32.xlu0 %v3820, 19
        %v3882 = vpop.permute.xlu0 %3881
        %3883 = vrot.lane.b32.xlu0 %v3824, 19
        %v3884 = vpop.permute.xlu0 %3883
        %3885 = vrot.lane.b32.xlu0 %v3812, 19
        %v3886 = vpop.permute.xlu0 %3885
        %3887 = vrot.lane.b32.xlu0 %v3816, 19
        %v3888 = vpop.permute.xlu0 %3887
        %3889 = vrot.lane.b32.xlu0 %v3822, 19
        %v3890 = vpop.permute.xlu0 %3889
        %3891 = vrot.lane.b32.xlu0 %v3826, 19
        %v3892 = vpop.permute.xlu0 %3891
        %3893 = vrot.lane.b32.xlu0 %v3863, 19
        %v3894 = vpop.permute.xlu0 %3893
        %3895 = vrot.lane.b32.xlu0 %v3866, 19
        %v3896 = vpop.permute.xlu0 %3895
        %3897 = vrot.lane.b32.xlu0 %v3871, 19
        %v3898 = vpop.permute.xlu0 %3897
        %3899 = vrot.lane.b32.xlu0 %v3874, 19
        %v3900 = vpop.permute.xlu0 %3899
        %v3901 = vsel %vm605, %v3886, %v3894
        %v3902 = vsel %vm605, %v3888, %v3896
        %v3903 = vsel %vm605, %v3890, %v3898
        %v3904 = vsel %vm605, %v3892, %v3900
        %v3905 = vsel %vm605, %v3878, %v3886
        %v3906 = vsel %vm605, %v3880, %v3888
        %v3907 = vsel %vm605, %v3882, %v3890
        %v3908 = vsel %vm605, %v3884, %v3892
        %v3909 = vsel %vm605, %v3894, %v3878
        %v3910 = vsel %vm605, %v3896, %v3880
        %v3911 = vsel %vm605, %v3898, %v3882
        %v3912 = vsel %vm605, %v3900, %v3884
        %v3913 = vadd.f32 %v3909, 0.0
        %v3914 = vadd.f32 %v3905, 0.0
        %v3915 = vadd.f32 %v3901, 0.0
        %v3916 = vadd.f32 %v3910, 0.0
        %v3917 = vadd.f32 %v3906, 0.0
        %v3918 = vadd.f32 %v3902, 0.0
        %v3919 = vadd.f32 %v3911, 0.0
        %v3920 = vadd.f32 %v3907, 0.0
        %v3921 = vadd.f32 %v3903, 0.0
        %v3922 = vadd.f32 %v3912, 0.0
        %v3923 = vadd.f32 %v3908, 0.0
        %v3924 = vadd.f32 %v3904, 0.0
        %v3925 = vld [vmem:[%s6 + $0x10] sm:$0xf]
        %v3926 = vld [vmem:[%s6 + $0x14] sm:$0xf]
        %v3927 = vld [vmem:[%s6 + $0x18] sm:$0xf]
        %v3928 = vld [vmem:[%s6 + $0x1c] sm:$0xf]
        %v3933 = vunpack.c.l.b16 %v3925
        %v3934 = vunpack.c.l.b16 %v3926
        %v3935 = vunpack.c.l.b16 %v3927
        %v3936 = vunpack.c.l.b16 %v3928
        %v3937 = vpack.c.b16 %v3934, %v3933
        %v3938 = vpack.c.b16 %v3936, %v3935
        %v3940 = vsel %vm3768, %v3937, 0
        %v3943 = vsel %vm3768, %v3938, 0
        %3945 = vmatprep.subr.bf16.mxu0 %v3737
        %3946 = vmatpush1.bf16.msra.mxu0 %v3736
        %3947 = vmatprep.subr.bf16.mxu0 %v3740
        %3948 = vmatpush1.bf16.msra.mxu0 %v3739
        %3949 = vmatprep.subr.bf16.mxu0 %v3743
        %3950 = vmatpush1.bf16.msra.mxu0 %v3742
        %3951 = vmatprep.subr.bf16.mxu0 %v3746
        %3952 = vmatpush1.bf16.msra.mxu0 %v3745
        %3953 = vmatprep.subr.bf16.mxu0 %v3749
        %3954 = vmatpush1.bf16.msra.mxu0 %v3748
        %3955 = vmatprep.subr.bf16.mxu0 %v3752
        %3956 = vmatpush1.bf16.msra.mxu0 %v3751
        %3957 = vmatprep.subr.bf16.mxu0 0
        %3958 = vmatpush1.bf16.msra.mxu0 0
        %3959 = vmatprep.subr.bf16.mxu0 0
        %3960 = vmatpush1.bf16.msra.mxu0 0
        %3961 = vmatprep.subr.bf16.mxu0 0
        %3962 = vmatpush1.bf16.msra.mxu0 0
        %3963 = vmatprep.subr.bf16.mxu0 0
        %3964 = vmatpush1.bf16.msra.mxu0 0
        %3965 = vmatprep.subr.bf16.mxu0 0
        %3966 = vmatpush1.bf16.msra.mxu0 0
        %3967 = vmatprep.subr.bf16.mxu0 0
        %3968 = vmatpush1.bf16.msra.mxu0 0
        %3969 = vmatprep.subr.bf16.mxu0 0
        %3970 = vmatpush1.bf16.msra.mxu0 0
        %3971 = vmatprep.subr.bf16.mxu0 0
        %3972 = vmatpush1.bf16.msra.mxu0 0
        %3973 = vmatprep.subr.bf16.mxu0 0
        %3974 = vmatpush1.bf16.msra.mxu0 0
        %3975 = vmatprep.subr.bf16.mxu0 0
        %3976 = vmatpush1.bf16.msra.mxu0 0
        %3977 = vmatprep.mubr.bf16.mxu0 0
        %3978 = vmatmul.mubr.bf16.gmra.mrb[0].mxu0 %v3940
        %v3979 = vpop.f32.mrb[0].mxu0
        %v3980 = vadd.f32 0.0, %v3979
        %v3981 = vpop.f32.mrb[0].mxu0
        %v3982 = vadd.f32 0.0, %v3981
        %v3983 = vpop.f32.mrb[0].mxu0
        %v3984 = vadd.f32 0.0, %v3983
        %v3985 = vpop.f32.mrb[0].mxu0
        %v3986 = vadd.f32 0.0, %v3985
        %3987 = vmatprep.mubr.bf16.mxu0 0
        %3988 = vmatmul.mubr.bf16.gmra.mrb[0].mxu0 %v3943
        %v3989 = vpop.f32.mrb[0].mxu0
        %v3990 = vadd.f32 0.0, %v3989
        %v3991 = vpop.f32.mrb[0].mxu0
        %v3992 = vadd.f32 0.0, %v3991
        %v3993 = vpop.f32.mrb[0].mxu0
        %v3994 = vadd.f32 0.0, %v3993
        %v3995 = vpop.f32.mrb[0].mxu0
        %v3996 = vadd.f32 0.0, %v3995
        %3997 = vdwg.mxu0
        %3998 = vmatprep.subr.bf16.mxu0 0
        %3999 = vmatpush1.bf16.msra.mxu0 %v3738
        %4000 = vmatprep.subr.bf16.mxu0 0
        %4001 = vmatpush1.bf16.msra.mxu0 %v3741
        %4002 = vmatprep.subr.bf16.mxu0 0
        %4003 = vmatpush1.bf16.msra.mxu0 %v3744
        %4004 = vmatprep.subr.bf16.mxu0 0
        %4005 = vmatpush1.bf16.msra.mxu0 %v3747
        %4006 = vmatprep.subr.bf16.mxu0 0
        %4007 = vmatpush1.bf16.msra.mxu0 %v3750
        %4008 = vmatprep.subr.bf16.mxu0 0
        %4009 = vmatpush1.bf16.msra.mxu0 %v3753
        %4010 = vmatprep.subr.bf16.mxu0 0
        %4011 = vmatpush1.bf16.msra.mxu0 0
        %4012 = vmatprep.subr.bf16.mxu0 0
        %4013 = vmatpush1.bf16.msra.mxu0 0
        %4014 = vmatprep.subr.bf16.mxu0 0
        %4015 = vmatpush1.bf16.msra.mxu0 0
        %4016 = vmatprep.subr.bf16.mxu0 0
        %4017 = vmatpush1.bf16.msra.mxu0 0
        %4018 = vmatprep.subr.bf16.mxu0 0
        %4019 = vmatpush1.bf16.msra.mxu0 0
        %4020 = vmatprep.subr.bf16.mxu0 0
        %4021 = vmatpush1.bf16.msra.mxu0 0
        %4022 = vmatprep.subr.bf16.mxu0 0
        %4023 = vmatpush1.bf16.msra.mxu0 0
        %4024 = vmatprep.subr.bf16.mxu0 0
        %4025 = vmatpush1.bf16.msra.mxu0 0
        %4026 = vmatprep.subr.bf16.mxu0 0
        %4027 = vmatpush1.bf16.msra.mxu0 0
        %4028 = vmatprep.subr.bf16.mxu0 0
        %4029 = vmatpush1.bf16.msra.mxu0 0
        %4030 = vmatprep.mubr.bf16.mxu0 0
        %4031 = vmatmul.mubr.bf16.gmra.mrb[0].mxu0 %v3940
        %v4032 = vpop.f32.mrb[0].mxu0
        %v4033 = vadd.f32 0.0, %v4032
        %v4034 = vpop.f32.mrb[0].mxu0
        %v4035 = vpop.f32.mrb[0].mxu0
        %v4036 = vadd.f32 0.0, %v4035
        %v4037 = vpop.f32.mrb[0].mxu0
        %4038 = vmatprep.mubr.bf16.mxu0 0
        %4039 = vmatmul.mubr.bf16.gmra.mrb[0].mxu0 %v3943
        %v4040 = vpop.f32.mrb[0].mxu0
        %v4041 = vadd.f32 0.0, %v4040
        %v4042 = vpop.f32.mrb[0].mxu0
        %v4043 = vpop.f32.mrb[0].mxu0
        %v4044 = vadd.f32 0.0, %v4043
        %v4045 = vpop.f32.mrb[0].mxu0
        %4046 = vdwg.mxu0
        %4047 = vrot.lane.b32.xlu0 %v3980, 18
        %v4048 = vpop.permute.xlu0 %4047
        %4049 = vrot.lane.b32.xlu0 %v3984, 18
        %v4050 = vpop.permute.xlu0 %4049
        %4051 = vrot.lane.b32.xlu0 %v3990, 18
        %v4052 = vpop.permute.xlu0 %4051
        %4053 = vrot.lane.b32.xlu0 %v3994, 18
        %v4054 = vpop.permute.xlu0 %4053
        %4055 = vrot.lane.b32.xlu0 %v3982, 18
        %v4056 = vpop.permute.xlu0 %4055
        %4057 = vrot.lane.b32.xlu0 %v3986, 18
        %v4058 = vpop.permute.xlu0 %4057
        %4059 = vrot.lane.b32.xlu0 %v3992, 18
        %v4060 = vpop.permute.xlu0 %4059
        %4061 = vrot.lane.b32.xlu0 %v3996, 18
        %v4062 = vpop.permute.xlu0 %4061
        %4063 = vrot.lane.b32.xlu0 %v4033, 18
        %v4064 = vpop.permute.xlu0 %4063
        %4065 = vrot.lane.b32.xlu0 %v4036, 18
        %v4066 = vpop.permute.xlu0 %4065
        %4067 = vrot.lane.b32.xlu0 %v4041, 18
        %v4068 = vpop.permute.xlu0 %4067
        %4069 = vrot.lane.b32.xlu0 %v4044, 18
        %v4070 = vpop.permute.xlu0 %4069
        %v4071 = vsel %vm776, %v4056, %v4064
        %v4072 = vsel %vm776, %v4058, %v4066
        %v4073 = vsel %vm776, %v4060, %v4068
        %v4074 = vsel %vm776, %v4062, %v4070
        %v4075 = vsel %vm776, %v4048, %v4056
        %v4076 = vsel %vm776, %v4050, %v4058
        %v4077 = vsel %vm776, %v4052, %v4060
        %v4078 = vsel %vm776, %v4054, %v4062
        %v4079 = vsel %vm776, %v4064, %v4048
        %v4080 = vsel %vm776, %v4066, %v4050
        %v4081 = vsel %vm776, %v4068, %v4052
        %v4082 = vsel %vm776, %v4070, %v4054
        %v4083 = vadd.f32 %v3913, %v4079
        %v4084 = vadd.f32 %v3914, %v4075
        %v4085 = vadd.f32 %v3915, %v4071
        %v4086 = vadd.f32 %v3916, %v4080
        %v4087 = vadd.f32 %v3917, %v4076
        %v4088 = vadd.f32 %v3918, %v4072
        %v4089 = vadd.f32 %v3919, %v4081
        %v4090 = vadd.f32 %v3920, %v4077
        %v4091 = vadd.f32 %v3921, %v4073
        %v4092 = vadd.f32 %v3922, %v4082
        %v4093 = vadd.f32 %v3923, %v4078
        %v4094 = vadd.f32 %v3924, %v4074
        %v4095 = vld [vmem:[%s6 + $0x20] sm:$0xf]
        %v4096 = vld [vmem:[%s6 + $0x24] sm:$0xf]
        %v4097 = vld [vmem:[%s6 + $0x28] sm:$0xf]
        %v4098 = vld [vmem:[%s6 + $0x2c] sm:$0xf]
        %v4103 = vunpack.c.l.b16 %v4095
        %v4104 = vunpack.c.l.b16 %v4096
        %v4105 = vunpack.c.l.b16 %v4097
        %v4106 = vunpack.c.l.b16 %v4098
        %v4107 = vpack.c.b16 %v4104, %v4103
        %v4108 = vpack.c.b16 %v4106, %v4105
        %v4110 = vsel %vm3768, %v4107, 0
        %v4113 = vsel %vm3768, %v4108, 0
        %4115 = vmatprep.subr.bf16.mxu0 %v3737
        %4116 = vmatpush1.bf16.msra.mxu0 %v3736
        %4117 = vmatprep.subr.bf16.mxu0 %v3740
        %4118 = vmatpush1.bf16.msra.mxu0 %v3739
        %4119 = vmatprep.subr.bf16.mxu0 %v3743
        %4120 = vmatpush1.bf16.msra.mxu0 %v3742
        %4121 = vmatprep.subr.bf16.mxu0 %v3746
        %4122 = vmatpush1.bf16.msra.mxu0 %v3745
        %4123 = vmatprep.subr.bf16.mxu0 %v3749
        %4124 = vmatpush1.bf16.msra.mxu0 %v3748
        %4125 = vmatprep.subr.bf16.mxu0 %v3752
        %4126 = vmatpush1.bf16.msra.mxu0 %v3751
        %4127 = vmatprep.subr.bf16.mxu0 0
        %4128 = vmatpush1.bf16.msra.mxu0 0
        %4129 = vmatprep.subr.bf16.mxu0 0
        %4130 = vmatpush1.bf16.msra.mxu0 0
        %4131 = vmatprep.subr.bf16.mxu0 0
        %4132 = vmatpush1.bf16.msra.mxu0 0
        %4133 = vmatprep.subr.bf16.mxu0 0
        %4134 = vmatpush1.bf16.msra.mxu0 0
        %4135 = vmatprep.subr.bf16.mxu0 0
        %4136 = vmatpush1.bf16.msra.mxu0 0
        %4137 = vmatprep.subr.bf16.mxu0 0
        %4138 = vmatpush1.bf16.msra.mxu0 0
        %4139 = vmatprep.subr.bf16.mxu0 0
        %4140 = vmatpush1.bf16.msra.mxu0 0
        %4141 = vmatprep.subr.bf16.mxu0 0
        %4142 = vmatpush1.bf16.msra.mxu0 0
        %4143 = vmatprep.subr.bf16.mxu0 0
        %4144 = vmatpush1.bf16.msra.mxu0 0
        %4145 = vmatprep.subr.bf16.mxu0 0
        %4146 = vmatpush1.bf16.msra.mxu0 0
        %4147 = vmatprep.mubr.bf16.mxu0 0
        %4148 = vmatmul.mubr.bf16.gmra.mrb[0].mxu0 %v4110
        %v4149 = vpop.f32.mrb[0].mxu0
        %v4150 = vadd.f32 0.0, %v4149
        %v4151 = vpop.f32.mrb[0].mxu0
        %v4152 = vadd.f32 0.0, %v4151
        %v4153 = vpop.f32.mrb[0].mxu0
        %v4154 = vadd.f32 0.0, %v4153
        %v4155 = vpop.f32.mrb[0].mxu0
        %v4156 = vadd.f32 0.0, %v4155
        %4157 = vmatprep.mubr.bf16.mxu0 0
        %4158 = vmatmul.mubr.bf16.gmra.mrb[0].mxu0 %v4113
        %v4159 = vpop.f32.mrb[0].mxu0
        %v4160 = vadd.f32 0.0, %v4159
        %v4161 = vpop.f32.mrb[0].mxu0
        %v4162 = vadd.f32 0.0, %v4161
        %v4163 = vpop.f32.mrb[0].mxu0
        %v4164 = vadd.f32 0.0, %v4163
        %v4165 = vpop.f32.mrb[0].mxu0
        %v4166 = vadd.f32 0.0, %v4165
        %4167 = vdwg.mxu0
        %4168 = vmatprep.subr.bf16.mxu0 0
        %4169 = vmatpush1.bf16.msra.mxu0 %v3738
        %4170 = vmatprep.subr.bf16.mxu0 0
        %4171 = vmatpush1.bf16.msra.mxu0 %v3741
        %4172 = vmatprep.subr.bf16.mxu0 0
        %4173 = vmatpush1.bf16.msra.mxu0 %v3744
        %4174 = vmatprep.subr.bf16.mxu0 0
        %4175 = vmatpush1.bf16.msra.mxu0 %v3747
        %4176 = vmatprep.subr.bf16.mxu0 0
        %4177 = vmatpush1.bf16.msra.mxu0 %v3750
        %4178 = vmatprep.subr.bf16.mxu0 0
        %4179 = vmatpush1.bf16.msra.mxu0 %v3753
        %4180 = vmatprep.subr.bf16.mxu0 0
        %4181 = vmatpush1.bf16.msra.mxu0 0
        %4182 = vmatprep.subr.bf16.mxu0 0
        %4183 = vmatpush1.bf16.msra.mxu0 0
        %4184 = vmatprep.subr.bf16.mxu0 0
        %4185 = vmatpush1.bf16.msra.mxu0 0
        %4186 = vmatprep.subr.bf16.mxu0 0
        %4187 = vmatpush1.bf16.msra.mxu0 0
        %4188 = vmatprep.subr.bf16.mxu0 0
        %4189 = vmatpush1.bf16.msra.mxu0 0
        %4190 = vmatprep.subr.bf16.mxu0 0
        %4191 = vmatpush1.bf16.msra.mxu0 0
        %4192 = vmatprep.subr.bf16.mxu0 0
        %4193 = vmatpush1.bf16.msra.mxu0 0
        %4194 = vmatprep.subr.bf16.mxu0 0
        %4195 = vmatpush1.bf16.msra.mxu0 0
        %4196 = vmatprep.subr.bf16.mxu0 0
        %4197 = vmatpush1.bf16.msra.mxu0 0
        %4198 = vmatprep.subr.bf16.mxu0 0
        %4199 = vmatpush1.bf16.msra.mxu0 0
        %4200 = vmatprep.mubr.bf16.mxu0 0
        %4201 = vmatmul.mubr.bf16.gmra.mrb[0].mxu0 %v4110
        %v4202 = vpop.f32.mrb[0].mxu0
        %v4203 = vadd.f32 0.0, %v4202
        %v4204 = vpop.f32.mrb[0].mxu0
        %v4205 = vpop.f32.mrb[0].mxu0
        %v4206 = vadd.f32 0.0, %v4205
        %v4207 = vpop.f32.mrb[0].mxu0
        %4208 = vmatprep.mubr.bf16.mxu0 0
        %4209 = vmatmul.mubr.bf16.gmra.mrb[0].mxu0 %v4113
        %v4210 = vpop.f32.mrb[0].mxu0
        %v4211 = vadd.f32 0.0, %v4210
        %v4212 = vpop.f32.mrb[0].mxu0
        %v4213 = vpop.f32.mrb[0].mxu0
        %v4214 = vadd.f32 0.0, %v4213
        %v4215 = vpop.f32.mrb[0].mxu0
        %4216 = vdwg.mxu0
        %4217 = vrot.lane.b32.xlu0 %v4150, 17
        %v4218 = vpop.permute.xlu0 %4217
        %4219 = vrot.lane.b32.xlu0 %v4154, 17
        %v4220 = vpop.permute.xlu0 %4219
        %4221 = vrot.lane.b32.xlu0 %v4160, 17
        %v4222 = vpop.permute.xlu0 %4221
        %4223 = vrot.lane.b32.xlu0 %v4164, 17
        %v4224 = vpop.permute.xlu0 %4223
        %4225 = vrot.lane.b32.xlu0 %v4152, 17
        %v4226 = vpop.permute.xlu0 %4225
        %4227 = vrot.lane.b32.xlu0 %v4156, 17
        %v4228 = vpop.permute.xlu0 %4227
        %4229 = vrot.lane.b32.xlu0 %v4162, 17
        %v4230 = vpop.permute.xlu0 %4229
        %4231 = vrot.lane.b32.xlu0 %v4166, 17
        %v4232 = vpop.permute.xlu0 %4231
        %4233 = vrot.lane.b32.xlu0 %v4203, 17
        %v4234 = vpop.permute.xlu0 %4233
        %4235 = vrot.lane.b32.xlu0 %v4206, 17
        %v4236 = vpop.permute.xlu0 %4235
        %4237 = vrot.lane.b32.xlu0 %v4211, 17
        %v4238 = vpop.permute.xlu0 %4237
        %4239 = vrot.lane.b32.xlu0 %v4214, 17
        %v4240 = vpop.permute.xlu0 %4239
        %v4241 = vsel %vm947, %v4226, %v4234
        %v4242 = vsel %vm947, %v4228, %v4236
        %v4243 = vsel %vm947, %v4230, %v4238
        %v4244 = vsel %vm947, %v4232, %v4240
        %v4245 = vsel %vm947, %v4218, %v4226
        %v4246 = vsel %vm947, %v4220, %v4228
        %v4247 = vsel %vm947, %v4222, %v4230
        %v4248 = vsel %vm947, %v4224, %v4232
        %v4249 = vsel %vm947, %v4234, %v4218
        %v4250 = vsel %vm947, %v4236, %v4220
        %v4251 = vsel %vm947, %v4238, %v4222
        %v4252 = vsel %vm947, %v4240, %v4224
        %v4253 = vadd.f32 %v4083, %v4249
        %v4254 = vadd.f32 %v4084, %v4245
        %v4255 = vadd.f32 %v4085, %v4241
        %v4256 = vadd.f32 %v4086, %v4250
        %v4257 = vadd.f32 %v4087, %v4246
        %v4258 = vadd.f32 %v4088, %v4242
        %v4259 = vadd.f32 %v4089, %v4251
        %v4260 = vadd.f32 %v4090, %v4247
        %v4261 = vadd.f32 %v4091, %v4243
        %v4262 = vadd.f32 %v4092, %v4252
        %v4263 = vadd.f32 %v4093, %v4248
        %v4264 = vadd.f32 %v4094, %v4244
        %v4265 = vld [vmem:[%s6 + $0x30] sm:$0xf]
        %v4266 = vld [vmem:[%s6 + $0x34] sm:$0xf]
        %v4267 = vld [vmem:[%s6 + $0x38] sm:$0xf]
        %v4268 = vld [vmem:[%s6 + $0x3c] sm:$0xf]
        %v4273 = vunpack.c.l.b16 %v4265
        %v4274 = vunpack.c.l.b16 %v4266
        %v4275 = vunpack.c.l.b16 %v4267
        %v4276 = vunpack.c.l.b16 %v4268
        %v4277 = vpack.c.b16 %v4274, %v4273
        %v4278 = vpack.c.b16 %v4276, %v4275
        %v4280 = vsel %vm3768, %v4277, 0
        %v4283 = vsel %vm3768, %v4278, 0
        %4285 = vmatprep.subr.bf16.mxu0 %v3737
        %4286 = vmatpush1.bf16.msra.mxu0 %v3736
        %4287 = vmatprep.subr.bf16.mxu0 %v3740
        %4288 = vmatpush1.bf16.msra.mxu0 %v3739
        %4289 = vmatprep.subr.bf16.mxu0 %v3743
        %4290 = vmatpush1.bf16.msra.mxu0 %v3742
        %4291 = vmatprep.subr.bf16.mxu0 %v3746
        %4292 = vmatpush1.bf16.msra.mxu0 %v3745
        %4293 = vmatprep.subr.bf16.mxu0 %v3749
        %4294 = vmatpush1.bf16.msra.mxu0 %v3748
        %4295 = vmatprep.subr.bf16.mxu0 %v3752
        %4296 = vmatpush1.bf16.msra.mxu0 %v3751
        %4297 = vmatprep.subr.bf16.mxu0 0
        %4298 = vmatpush1.bf16.msra.mxu0 0
        %4299 = vmatprep.subr.bf16.mxu0 0
        %4300 = vmatpush1.bf16.msra.mxu0 0
        %4301 = vmatprep.subr.bf16.mxu0 0
        %4302 = vmatpush1.bf16.msra.mxu0 0
        %4303 = vmatprep.subr.bf16.mxu0 0
        %4304 = vmatpush1.bf16.msra.mxu0 0
        %4305 = vmatprep.subr.bf16.mxu0 0
        %4306 = vmatpush1.bf16.msra.mxu0 0
        %4307 = vmatprep.subr.bf16.mxu0 0
        %4308 = vmatpush1.bf16.msra.mxu0 0
        %4309 = vmatprep.subr.bf16.mxu0 0
        %4310 = vmatpush1.bf16.msra.mxu0 0
        %4311 = vmatprep.subr.bf16.mxu0 0
        %4312 = vmatpush1.bf16.msra.mxu0 0
        %4313 = vmatprep.subr.bf16.mxu0 0
        %4314 = vmatpush1.bf16.msra.mxu0 0
        %4315 = vmatprep.subr.bf16.mxu0 0
        %4316 = vmatpush1.bf16.msra.mxu0 0
        %4317 = vmatprep.mubr.bf16.mxu0 0
        %4318 = vmatmul.mubr.bf16.gmra.mrb[0].mxu0 %v4280
        %v4319 = vpop.f32.mrb[0].mxu0
        %v4320 = vadd.f32 0.0, %v4319
        %v4321 = vpop.f32.mrb[0].mxu0
        %v4322 = vadd.f32 0.0, %v4321
        %v4323 = vpop.f32.mrb[0].mxu0
        %v4324 = vadd.f32 0.0, %v4323
        %v4325 = vpop.f32.mrb[0].mxu0
        %v4326 = vadd.f32 0.0, %v4325
        %4327 = vmatprep.mubr.bf16.mxu0 0
        %4328 = vmatmul.mubr.bf16.gmra.mrb[0].mxu0 %v4283
        %v4329 = vpop.f32.mrb[0].mxu0
        %v4330 = vadd.f32 0.0, %v4329
        %v4331 = vpop.f32.mrb[0].mxu0
        %v4332 = vadd.f32 0.0, %v4331
        %v4333 = vpop.f32.mrb[0].mxu0
        %v4334 = vadd.f32 0.0, %v4333
        %v4335 = vpop.f32.mrb[0].mxu0
        %v4336 = vadd.f32 0.0, %v4335
        %4337 = vdwg.mxu0
        %4338 = vmatprep.subr.bf16.mxu0 0
        %4339 = vmatpush1.bf16.msra.mxu0 %v3738
        %4340 = vmatprep.subr.bf16.mxu0 0
        %4341 = vmatpush1.bf16.msra.mxu0 %v3741
        %4342 = vmatprep.subr.bf16.mxu0 0
        %4343 = vmatpush1.bf16.msra.mxu0 %v3744
        %4344 = vmatprep.subr.bf16.mxu0 0
        %4345 = vmatpush1.bf16.msra.mxu0 %v3747
        %4346 = vmatprep.subr.bf16.mxu0 0
        %4347 = vmatpush1.bf16.msra.mxu0 %v3750
        %4348 = vmatprep.subr.bf16.mxu0 0
        %4349 = vmatpush1.bf16.msra.mxu0 %v3753
        %4350 = vmatprep.subr.bf16.mxu0 0
        %4351 = vmatpush1.bf16.msra.mxu0 0
        %4352 = vmatprep.subr.bf16.mxu0 0
        %4353 = vmatpush1.bf16.msra.mxu0 0
        %4354 = vmatprep.subr.bf16.mxu0 0
        %4355 = vmatpush1.bf16.msra.mxu0 0
        %4356 = vmatprep.subr.bf16.mxu0 0
        %4357 = vmatpush1.bf16.msra.mxu0 0
        %4358 = vmatprep.subr.bf16.mxu0 0
        %4359 = vmatpush1.bf16.msra.mxu0 0
        %4360 = vmatprep.subr.bf16.mxu0 0
        %4361 = vmatpush1.bf16.msra.mxu0 0
        %4362 = vmatprep.subr.bf16.mxu0 0
        %4363 = vmatpush1.bf16.msra.mxu0 0
        %4364 = vmatprep.subr.bf16.mxu0 0
        %4365 = vmatpush1.bf16.msra.mxu0 0
        %4366 = vmatprep.subr.bf16.mxu0 0
        %4367 = vmatpush1.bf16.msra.mxu0 0
        %4368 = vmatprep.subr.bf16.mxu0 0
        %4369 = vmatpush1.bf16.msra.mxu0 0
        %4370 = vmatprep.mubr.bf16.mxu0 0
        %4371 = vmatmul.mubr.bf16.gmra.mrb[0].mxu0 %v4280
        %v4372 = vpop.f32.mrb[0].mxu0
        %v4373 = vadd.f32 0.0, %v4372
        %v4374 = vpop.f32.mrb[0].mxu0
        %v4375 = vpop.f32.mrb[0].mxu0
        %v4376 = vadd.f32 0.0, %v4375
        %v4377 = vpop.f32.mrb[0].mxu0
        %4378 = vmatprep.mubr.bf16.mxu0 0
        %4379 = vmatmul.mubr.bf16.gmra.mrb[0].mxu0 %v4283
        %v4380 = vpop.f32.mrb[0].mxu0
        %v4381 = vadd.f32 0.0, %v4380
        %v4382 = vpop.f32.mrb[0].mxu0
        %v4383 = vpop.f32.mrb[0].mxu0
        %v4384 = vadd.f32 0.0, %v4383
        %v4385 = vpop.f32.mrb[0].mxu0
        %4386 = vdwg.mxu0
        %4387 = vrot.lane.b32.xlu0 %v4320, 1
        %v4388 = vpop.permute.xlu0 %4387
        %4389 = vrot.lane.b32.xlu0 %v4324, 1
        %v4390 = vpop.permute.xlu0 %4389
        %4391 = vrot.lane.b32.xlu0 %v4330, 1
        %v4392 = vpop.permute.xlu0 %4391
        %4393 = vrot.lane.b32.xlu0 %v4334, 1
        %v4394 = vpop.permute.xlu0 %4393
        %4395 = vrot.lane.b32.xlu0 %v4322, 1
        %v4396 = vpop.permute.xlu0 %4395
        %4397 = vrot.lane.b32.xlu0 %v4326, 1
        %v4398 = vpop.permute.xlu0 %4397
        %4399 = vrot.lane.b32.xlu0 %v4332, 1
        %v4400 = vpop.permute.xlu0 %4399
        %4401 = vrot.lane.b32.xlu0 %v4336, 1
        %v4402 = vpop.permute.xlu0 %4401
        %4403 = vrot.lane.b32.xlu0 %v4373, 1
        %v4404 = vpop.permute.xlu0 %4403
        %4405 = vrot.lane.b32.xlu0 %v4376, 1
        %v4406 = vpop.permute.xlu0 %4405
        %4407 = vrot.lane.b32.xlu0 %v4381, 1
        %v4408 = vpop.permute.xlu0 %4407
        %4409 = vrot.lane.b32.xlu0 %v4384, 1
        %v4410 = vpop.permute.xlu0 %4409
        %v4411 = vsel %vm1118, %v4396, %v4404
        %v4412 = vsel %vm1118, %v4398, %v4406
        %v4413 = vsel %vm1118, %v4400, %v4408
        %v4414 = vsel %vm1118, %v4402, %v4410
        %v4415 = vsel %vm1118, %v4388, %v4396
        %v4416 = vsel %vm1118, %v4390, %v4398
        %v4417 = vsel %vm1118, %v4392, %v4400
        %v4418 = vsel %vm1118, %v4394, %v4402
        %v4419 = vsel %vm1118, %v4404, %v4388
        %v4420 = vsel %vm1118, %v4406, %v4390
        %v4421 = vsel %vm1118, %v4408, %v4392
        %v4422 = vsel %vm1118, %v4410, %v4394
        %v4423 = vadd.f32 %v4253, %v4419
        %v4424 = vadd.f32 %v4254, %v4415
        %v4425 = vadd.f32 %v4255, %v4411
        %v4426 = vadd.f32 %v4256, %v4420
        %v4427 = vadd.f32 %v4257, %v4416
        %v4428 = vadd.f32 %v4258, %v4412
        %v4429 = vadd.f32 %v4259, %v4421
        %v4430 = vadd.f32 %v4260, %v4417
        %v4431 = vadd.f32 %v4261, %v4413
        %v4432 = vadd.f32 %v4262, %v4422
        %v4433 = vadd.f32 %v4263, %v4418
        %v4434 = vadd.f32 %v4264, %v4414
        %v4435 = vld [vmem:[%s6 + $0x40] sm:$0xf]
        %v4436 = vld [vmem:[%s6 + $0x44] sm:$0xf]
        %v4437 = vld [vmem:[%s6 + $0x48] sm:$0xf]
        %v4438 = vld [vmem:[%s6 + $0x4c] sm:$0xf]
        %v4443 = vunpack.c.l.b16 %v4435
        %v4444 = vunpack.c.l.b16 %v4436
        %v4445 = vunpack.c.l.b16 %v4437
        %v4446 = vunpack.c.l.b16 %v4438
        %v4447 = vpack.c.b16 %v4444, %v4443
        %v4448 = vpack.c.b16 %v4446, %v4445
        %v4450 = vsel %vm3768, %v4447, 0
        %v4453 = vsel %vm3768, %v4448, 0
        %4455 = vmatprep.subr.bf16.mxu0 %v3737
        %4456 = vmatpush1.bf16.msra.mxu0 %v3736
        %4457 = vmatprep.subr.bf16.mxu0 %v3740
        %4458 = vmatpush1.bf16.msra.mxu0 %v3739
        %4459 = vmatprep.subr.bf16.mxu0 %v3743
        %4460 = vmatpush1.bf16.msra.mxu0 %v3742
        %4461 = vmatprep.subr.bf16.mxu0 %v3746
        %4462 = vmatpush1.bf16.msra.mxu0 %v3745
        %4463 = vmatprep.subr.bf16.mxu0 %v3749
        %4464 = vmatpush1.bf16.msra.mxu0 %v3748
        %4465 = vmatprep.subr.bf16.mxu0 %v3752
        %4466 = vmatpush1.bf16.msra.mxu0 %v3751
        %4467 = vmatprep.subr.bf16.mxu0 0
        %4468 = vmatpush1.bf16.msra.mxu0 0
        %4469 = vmatprep.subr.bf16.mxu0 0
        %4470 = vmatpush1.bf16.msra.mxu0 0
        %4471 = vmatprep.subr.bf16.mxu0 0
        %4472 = vmatpush1.bf16.msra.mxu0 0
        %4473 = vmatprep.subr.bf16.mxu0 0
        %4474 = vmatpush1.bf16.msra.mxu0 0
        %4475 = vmatprep.subr.bf16.mxu0 0
        %4476 = vmatpush1.bf16.msra.mxu0 0
        %4477 = vmatprep.subr.bf16.mxu0 0
        %4478 = vmatpush1.bf16.msra.mxu0 0
        %4479 = vmatprep.subr.bf16.mxu0 0
        %4480 = vmatpush1.bf16.msra.mxu0 0
        %4481 = vmatprep.subr.bf16.mxu0 0
        %4482 = vmatpush1.bf16.msra.mxu0 0
        %4483 = vmatprep.subr.bf16.mxu0 0
        %4484 = vmatpush1.bf16.msra.mxu0 0
        %4485 = vmatprep.subr.bf16.mxu0 0
        %4486 = vmatpush1.bf16.msra.mxu0 0
        %4487 = vmatprep.mubr.bf16.mxu0 0
        %4488 = vmatmul.mubr.bf16.gmra.mrb[0].mxu0 %v4450
        %v4489 = vpop.f32.mrb[0].mxu0
        %v4490 = vadd.f32 0.0, %v4489
        %v4491 = vpop.f32.mrb[0].mxu0
        %v4492 = vadd.f32 0.0, %v4491
        %v4493 = vpop.f32.mrb[0].mxu0
        %v4494 = vadd.f32 0.0, %v4493
        %v4495 = vpop.f32.mrb[0].mxu0
        %v4496 = vadd.f32 0.0, %v4495
        %4497 = vmatprep.mubr.bf16.mxu0 0
        %4498 = vmatmul.mubr.bf16.gmra.mrb[0].mxu0 %v4453
        %v4499 = vpop.f32.mrb[0].mxu0
        %v4500 = vadd.f32 0.0, %v4499
        %v4501 = vpop.f32.mrb[0].mxu0
        %v4502 = vadd.f32 0.0, %v4501
        %v4503 = vpop.f32.mrb[0].mxu0
        %v4504 = vadd.f32 0.0, %v4503
        %v4505 = vpop.f32.mrb[0].mxu0
        %v4506 = vadd.f32 0.0, %v4505
        %4507 = vdwg.mxu0
        %4508 = vmatprep.subr.bf16.mxu0 0
        %4509 = vmatpush1.bf16.msra.mxu0 %v3738
        %4510 = vmatprep.subr.bf16.mxu0 0
        %4511 = vmatpush1.bf16.msra.mxu0 %v3741
        %4512 = vmatprep.subr.bf16.mxu0 0
        %4513 = vmatpush1.bf16.msra.mxu0 %v3744
        %4514 = vmatprep.subr.bf16.mxu0 0
        %4515 = vmatpush1.bf16.msra.mxu0 %v3747
        %4516 = vmatprep.subr.bf16.mxu0 0
        %4517 = vmatpush1.bf16.msra.mxu0 %v3750
        %4518 = vmatprep.subr.bf16.mxu0 0
        %4519 = vmatpush1.bf16.msra.mxu0 %v3753
        %4520 = vmatprep.subr.bf16.mxu0 0
        %4521 = vmatpush1.bf16.msra.mxu0 0
        %4522 = vmatprep.subr.bf16.mxu0 0
        %4523 = vmatpush1.bf16.msra.mxu0 0
        %4524 = vmatprep.subr.bf16.mxu0 0
        %4525 = vmatpush1.bf16.msra.mxu0 0
        %4526 = vmatprep.subr.bf16.mxu0 0
        %4527 = vmatpush1.bf16.msra.mxu0 0
        %4528 = vmatprep.subr.bf16.mxu0 0
        %4529 = vmatpush1.bf16.msra.mxu0 0
        %4530 = vmatprep.subr.bf16.mxu0 0
        %4531 = vmatpush1.bf16.msra.mxu0 0
        %4532 = vmatprep.subr.bf16.mxu0 0
        %4533 = vmatpush1.bf16.msra.mxu0 0
        %4534 = vmatprep.subr.bf16.mxu0 0
        %4535 = vmatpush1.bf16.msra.mxu0 0
        %4536 = vmatprep.subr.bf16.mxu0 0
        %4537 = vmatpush1.bf16.msra.mxu0 0
        %4538 = vmatprep.subr.bf16.mxu0 0
        %4539 = vmatpush1.bf16.msra.mxu0 0
        %4540 = vmatprep.mubr.bf16.mxu0 0
        %4541 = vmatmul.mubr.bf16.gmra.mrb[0].mxu0 %v4450
        %v4542 = vpop.f32.mrb[0].mxu0
        %v4543 = vadd.f32 0.0, %v4542
        %v4544 = vpop.f32.mrb[0].mxu0
        %v4545 = vpop.f32.mrb[0].mxu0
        %v4546 = vadd.f32 0.0, %v4545
        %v4547 = vpop.f32.mrb[0].mxu0
        %4548 = vmatprep.mubr.bf16.mxu0 0
        %4549 = vmatmul.mubr.bf16.gmra.mrb[0].mxu0 %v4453
        %v4550 = vpop.f32.mrb[0].mxu0
        %v4551 = vadd.f32 0.0, %v4550
        %v4552 = vpop.f32.mrb[0].mxu0
        %v4553 = vpop.f32.mrb[0].mxu0
        %v4554 = vadd.f32 0.0, %v4553
        %v4555 = vpop.f32.mrb[0].mxu0
        %4556 = vdwg.mxu0
        %v4557 = vadd.f32 %v4423, %v4490
        %v4558 = vadd.f32 %v4424, %v4492
        %v4559 = vadd.f32 %v4425, %v4543
        %v4560 = vadd.f32 %v4426, %v4494
        %v4561 = vadd.f32 %v4427, %v4496
        %v4562 = vadd.f32 %v4428, %v4546
        %v4563 = vadd.f32 %v4429, %v4500
        %v4564 = vadd.f32 %v4430, %v4502
        %v4565 = vadd.f32 %v4431, %v4551
        %v4566 = vadd.f32 %v4432, %v4504
        %v4567 = vadd.f32 %v4433, %v4506
        %v4568 = vadd.f32 %v4434, %v4554
        %v4569 = vld [vmem:[%s6 + $0x50] sm:$0xf]
        %v4570 = vld [vmem:[%s6 + $0x54] sm:$0xf]
        %v4571 = vld [vmem:[%s6 + $0x58] sm:$0xf]
        %v4572 = vld [vmem:[%s6 + $0x5c] sm:$0xf]
        %v4577 = vunpack.c.l.b16 %v4569
        %v4578 = vunpack.c.l.b16 %v4570
        %v4579 = vunpack.c.l.b16 %v4571
        %v4580 = vunpack.c.l.b16 %v4572
        %v4581 = vpack.c.b16 %v4578, %v4577
        %v4582 = vpack.c.b16 %v4580, %v4579
        %v4584 = vsel %vm3768, %v4581, 0
        %v4587 = vsel %vm3768, %v4582, 0
        %4589 = vmatprep.subr.bf16.mxu0 %v3737
        %4590 = vmatpush1.bf16.msra.mxu0 %v3736
        %4591 = vmatprep.subr.bf16.mxu0 %v3740
        %4592 = vmatpush1.bf16.msra.mxu0 %v3739
        %4593 = vmatprep.subr.bf16.mxu0 %v3743
        %4594 = vmatpush1.bf16.msra.mxu0 %v3742
        %4595 = vmatprep.subr.bf16.mxu0 %v3746
        %4596 = vmatpush1.bf16.msra.mxu0 %v3745
        %4597 = vmatprep.subr.bf16.mxu0 %v3749
        %4598 = vmatpush1.bf16.msra.mxu0 %v3748
        %4599 = vmatprep.subr.bf16.mxu0 %v3752
        %4600 = vmatpush1.bf16.msra.mxu0 %v3751
        %4601 = vmatprep.subr.bf16.mxu0 0
        %4602 = vmatpush1.bf16.msra.mxu0 0
        %4603 = vmatprep.subr.bf16.mxu0 0
        %4604 = vmatpush1.bf16.msra.mxu0 0
        %4605 = vmatprep.subr.bf16.mxu0 0
        %4606 = vmatpush1.bf16.msra.mxu0 0
        %4607 = vmatprep.subr.bf16.mxu0 0
        %4608 = vmatpush1.bf16.msra.mxu0 0
        %4609 = vmatprep.subr.bf16.mxu0 0
        %4610 = vmatpush1.bf16.msra.mxu0 0
        %4611 = vmatprep.subr.bf16.mxu0 0
        %4612 = vmatpush1.bf16.msra.mxu0 0
        %4613 = vmatprep.subr.bf16.mxu0 0
        %4614 = vmatpush1.bf16.msra.mxu0 0
        %4615 = vmatprep.subr.bf16.mxu0 0
        %4616 = vmatpush1.bf16.msra.mxu0 0
        %4617 = vmatprep.subr.bf16.mxu0 0
        %4618 = vmatpush1.bf16.msra.mxu0 0
        %4619 = vmatprep.subr.bf16.mxu0 0
        %4620 = vmatpush1.bf16.msra.mxu0 0
        %4621 = vmatprep.mubr.bf16.mxu0 0
        %4622 = vmatmul.mubr.bf16.gmra.mrb[0].mxu0 %v4584
        %v4623 = vpop.f32.mrb[0].mxu0
        %v4624 = vadd.f32 0.0, %v4623
        %v4625 = vpop.f32.mrb[0].mxu0
        %v4626 = vadd.f32 0.0, %v4625
        %v4627 = vpop.f32.mrb[0].mxu0
        %v4628 = vadd.f32 0.0, %v4627
        %v4629 = vpop.f32.mrb[0].mxu0
        %v4630 = vadd.f32 0.0, %v4629
        %4631 = vmatprep.mubr.bf16.mxu0 0
        %4632 = vmatmul.mubr.bf16.gmra.mrb[0].mxu0 %v4587
        %v4633 = vpop.f32.mrb[0].mxu0
        %v4634 = vadd.f32 0.0, %v4633
        %v4635 = vpop.f32.mrb[0].mxu0
        %v4636 = vadd.f32 0.0, %v4635
        %v4637 = vpop.f32.mrb[0].mxu0
        %v4638 = vadd.f32 0.0, %v4637
        %v4639 = vpop.f32.mrb[0].mxu0
        %v4640 = vadd.f32 0.0, %v4639
        %4641 = vdwg.mxu0
        %4642 = vmatprep.subr.bf16.mxu0 0
        %4643 = vmatpush1.bf16.msra.mxu0 %v3738
        %4644 = vmatprep.subr.bf16.mxu0 0
        %4645 = vmatpush1.bf16.msra.mxu0 %v3741
        %4646 = vmatprep.subr.bf16.mxu0 0
        %4647 = vmatpush1.bf16.msra.mxu0 %v3744
        %4648 = vmatprep.subr.bf16.mxu0 0
        %4649 = vmatpush1.bf16.msra.mxu0 %v3747
        %4650 = vmatprep.subr.bf16.mxu0 0
        %4651 = vmatpush1.bf16.msra.mxu0 %v3750
        %4652 = vmatprep.subr.bf16.mxu0 0
        %4653 = vmatpush1.bf16.msra.mxu0 %v3753
        %4654 = vmatprep.subr.bf16.mxu0 0
        %4655 = vmatpush1.bf16.msra.mxu0 0
        %4656 = vmatprep.subr.bf16.mxu0 0
        %4657 = vmatpush1.bf16.msra.mxu0 0
        %4658 = vmatprep.subr.bf16.mxu0 0
        %4659 = vmatpush1.bf16.msra.mxu0 0
        %4660 = vmatprep.subr.bf16.mxu0 0
        %4661 = vmatpush1.bf16.msra.mxu0 0
        %4662 = vmatprep.subr.bf16.mxu0 0
        %4663 = vmatpush1.bf16.msra.mxu0 0
        %4664 = vmatprep.subr.bf16.mxu0 0
        %4665 = vmatpush1.bf16.msra.mxu0 0
        %4666 = vmatprep.subr.bf16.mxu0 0
        %4667 = vmatpush1.bf16.msra.mxu0 0
        %4668 = vmatprep.subr.bf16.mxu0 0
        %4669 = vmatpush1.bf16.msra.mxu0 0
        %4670 = vmatprep.subr.bf16.mxu0 0
        %4671 = vmatpush1.bf16.msra.mxu0 0
        %4672 = vmatprep.subr.bf16.mxu0 0
        %4673 = vmatpush1.bf16.msra.mxu0 0
        %4674 = vmatprep.mubr.bf16.mxu0 0
        %4675 = vmatmul.mubr.bf16.gmra.mrb[0].mxu0 %v4584
        %v4676 = vpop.f32.mrb[0].mxu0
        %v4677 = vadd.f32 0.0, %v4676
        %v4678 = vpop.f32.mrb[0].mxu0
        %v4679 = vpop.f32.mrb[0].mxu0
        %v4680 = vadd.f32 0.0, %v4679
        %v4681 = vpop.f32.mrb[0].mxu0
        %4682 = vmatprep.mubr.bf16.mxu0 0
        %4683 = vmatmul.mubr.bf16.gmra.mrb[0].mxu0 %v4587
        %v4684 = vpop.f32.mrb[0].mxu0
        %v4685 = vadd.f32 0.0, %v4684
        %v4686 = vpop.f32.mrb[0].mxu0
        %v4687 = vpop.f32.mrb[0].mxu0
        %v4688 = vadd.f32 0.0, %v4687
        %v4689 = vpop.f32.mrb[0].mxu0
        %4690 = vdwg.mxu0
        %4691 = vrot.lane.b32.xlu0 %v4624, 127
        %v4692 = vpop.permute.xlu0 %4691
        %4693 = vrot.lane.b32.xlu0 %v4628, 127
        %v4694 = vpop.permute.xlu0 %4693
        %4695 = vrot.lane.b32.xlu0 %v4634, 127
        %v4696 = vpop.permute.xlu0 %4695
        %4697 = vrot.lane.b32.xlu0 %v4638, 127
        %v4698 = vpop.permute.xlu0 %4697
        %4699 = vrot.lane.b32.xlu0 %v4626, 127
        %v4700 = vpop.permute.xlu0 %4699
        %4701 = vrot.lane.b32.xlu0 %v4630, 127
        %v4702 = vpop.permute.xlu0 %4701
        %4703 = vrot.lane.b32.xlu0 %v4636, 127
        %v4704 = vpop.permute.xlu0 %4703
        %4705 = vrot.lane.b32.xlu0 %v4640, 127
        %v4706 = vpop.permute.xlu0 %4705
        %4707 = vrot.lane.b32.xlu0 %v4677, 127
        %v4708 = vpop.permute.xlu0 %4707
        %4709 = vrot.lane.b32.xlu0 %v4680, 127
        %v4710 = vpop.permute.xlu0 %4709
        %4711 = vrot.lane.b32.xlu0 %v4685, 127
        %v4712 = vpop.permute.xlu0 %4711
        %4713 = vrot.lane.b32.xlu0 %v4688, 127
        %v4714 = vpop.permute.xlu0 %4713
        %v4715 = vsel %vm1423, %v4700, %v4708
        %v4716 = vsel %vm1423, %v4702, %v4710
        %v4717 = vsel %vm1423, %v4704, %v4712
        %v4718 = vsel %vm1423, %v4706, %v4714
        %v4719 = vsel %vm1423, %v4692, %v4700
        %v4720 = vsel %vm1423, %v4694, %v4702
        %v4721 = vsel %vm1423, %v4696, %v4704
        %v4722 = vsel %vm1423, %v4698, %v4706
        %v4723 = vsel %vm1423, %v4708, %v4692
        %v4724 = vsel %vm1423, %v4710, %v4694
        %v4725 = vsel %vm1423, %v4712, %v4696
        %v4726 = vsel %vm1423, %v4714, %v4698
        %v4727 = vadd.f32 %v4557, %v4719
        %v4728 = vadd.f32 %v4558, %v4715
        %v4729 = vadd.f32 %v4559, %v4723
        %v4730 = vadd.f32 %v4560, %v4720
        %v4731 = vadd.f32 %v4561, %v4716
        %v4732 = vadd.f32 %v4562, %v4724
        %v4733 = vadd.f32 %v4563, %v4721
        %v4734 = vadd.f32 %v4564, %v4717
        %v4735 = vadd.f32 %v4565, %v4725
        %v4736 = vadd.f32 %v4566, %v4722
        %v4737 = vadd.f32 %v4567, %v4718
        %v4738 = vadd.f32 %v4568, %v4726
        %v4739 = vld [vmem:[%s6 + $0x60] sm:$0xf]
        %v4740 = vld [vmem:[%s6 + $0x64] sm:$0xf]
        %v4741 = vld [vmem:[%s6 + $0x68] sm:$0xf]
        %v4742 = vld [vmem:[%s6 + $0x6c] sm:$0xf]
        %v4747 = vunpack.c.l.b16 %v4739
        %v4748 = vunpack.c.l.b16 %v4740
        %v4749 = vunpack.c.l.b16 %v4741
        %v4750 = vunpack.c.l.b16 %v4742
        %v4751 = vpack.c.b16 %v4748, %v4747
        %v4752 = vpack.c.b16 %v4750, %v4749
        %v4754 = vsel %vm3768, %v4751, 0
        %v4757 = vsel %vm3768, %v4752, 0
        %4759 = vmatprep.subr.bf16.mxu0 %v3737
        %4760 = vmatpush1.bf16.msra.mxu0 %v3736
        %4761 = vmatprep.subr.bf16.mxu0 %v3740
        %4762 = vmatpush1.bf16.msra.mxu0 %v3739
        %4763 = vmatprep.subr.bf16.mxu0 %v3743
        %4764 = vmatpush1.bf16.msra.mxu0 %v3742
        %4765 = vmatprep.subr.bf16.mxu0 %v3746
        %4766 = vmatpush1.bf16.msra.mxu0 %v3745
        %4767 = vmatprep.subr.bf16.mxu0 %v3749
        %4768 = vmatpush1.bf16.msra.mxu0 %v3748
        %4769 = vmatprep.subr.bf16.mxu0 %v3752
        %4770 = vmatpush1.bf16.msra.mxu0 %v3751
        %4771 = vmatprep.subr.bf16.mxu0 0
        %4772 = vmatpush1.bf16.msra.mxu0 0
        %4773 = vmatprep.subr.bf16.mxu0 0
        %4774 = vmatpush1.bf16.msra.mxu0 0
        %4775 = vmatprep.subr.bf16.mxu0 0
        %4776 = vmatpush1.bf16.msra.mxu0 0
        %4777 = vmatprep.subr.bf16.mxu0 0
        %4778 = vmatpush1.bf16.msra.mxu0 0
        %4779 = vmatprep.subr.bf16.mxu0 0
        %4780 = vmatpush1.bf16.msra.mxu0 0
        %4781 = vmatprep.subr.bf16.mxu0 0
        %4782 = vmatpush1.bf16.msra.mxu0 0
        %4783 = vmatprep.subr.bf16.mxu0 0
        %4784 = vmatpush1.bf16.msra.mxu0 0
        %4785 = vmatprep.subr.bf16.mxu0 0
        %4786 = vmatpush1.bf16.msra.mxu0 0
        %4787 = vmatprep.subr.bf16.mxu0 0
        %4788 = vmatpush1.bf16.msra.mxu0 0
        %4789 = vmatprep.subr.bf16.mxu0 0
        %4790 = vmatpush1.bf16.msra.mxu0 0
        %4791 = vmatprep.mubr.bf16.mxu0 0
        %4792 = vmatmul.mubr.bf16.gmra.mrb[0].mxu0 %v4754
        %v4793 = vpop.f32.mrb[0].mxu0
        %v4794 = vadd.f32 0.0, %v4793
        %v4795 = vpop.f32.mrb[0].mxu0
        %v4796 = vadd.f32 0.0, %v4795
        %v4797 = vpop.f32.mrb[0].mxu0
        %v4798 = vadd.f32 0.0, %v4797
        %v4799 = vpop.f32.mrb[0].mxu0
        %v4800 = vadd.f32 0.0, %v4799
        %4801 = vmatprep.mubr.bf16.mxu0 0
        %4802 = vmatmul.mubr.bf16.gmra.mrb[0].mxu0 %v4757
        %v4803 = vpop.f32.mrb[0].mxu0
        %v4804 = vadd.f32 0.0, %v4803
        %v4805 = vpop.f32.mrb[0].mxu0
        %v4806 = vadd.f32 0.0, %v4805
        %v4807 = vpop.f32.mrb[0].mxu0
        %v4808 = vadd.f32 0.0, %v4807
        %v4809 = vpop.f32.mrb[0].mxu0
        %v4810 = vadd.f32 0.0, %v4809
        %4811 = vdwg.mxu0
        %4812 = vmatprep.subr.bf16.mxu0 0
        %4813 = vmatpush1.bf16.msra.mxu0 %v3738
        %4814 = vmatprep.subr.bf16.mxu0 0
        %4815 = vmatpush1.bf16.msra.mxu0 %v3741
        %4816 = vmatprep.subr.bf16.mxu0 0
        %4817 = vmatpush1.bf16.msra.mxu0 %v3744
        %4818 = vmatprep.subr.bf16.mxu0 0
        %4819 = vmatpush1.bf16.msra.mxu0 %v3747
        %4820 = vmatprep.subr.bf16.mxu0 0
        %4821 = vmatpush1.bf16.msra.mxu0 %v3750
        %4822 = vmatprep.subr.bf16.mxu0 0
        %4823 = vmatpush1.bf16.msra.mxu0 %v3753
        %4824 = vmatprep.subr.bf16.mxu0 0
        %4825 = vmatpush1.bf16.msra.mxu0 0
        %4826 = vmatprep.subr.bf16.mxu0 0
        %4827 = vmatpush1.bf16.msra.mxu0 0
        %4828 = vmatprep.subr.bf16.mxu0 0
        %4829 = vmatpush1.bf16.msra.mxu0 0
        %4830 = vmatprep.subr.bf16.mxu0 0
        %4831 = vmatpush1.bf16.msra.mxu0 0
        %4832 = vmatprep.subr.bf16.mxu0 0
        %4833 = vmatpush1.bf16.msra.mxu0 0
        %4834 = vmatprep.subr.bf16.mxu0 0
        %4835 = vmatpush1.bf16.msra.mxu0 0
        %4836 = vmatprep.subr.bf16.mxu0 0
        %4837 = vmatpush1.bf16.msra.mxu0 0
        %4838 = vmatprep.subr.bf16.mxu0 0
        %4839 = vmatpush1.bf16.msra.mxu0 0
        %4840 = vmatprep.subr.bf16.mxu0 0
        %4841 = vmatpush1.bf16.msra.mxu0 0
        %4842 = vmatprep.subr.bf16.mxu0 0
        %4843 = vmatpush1.bf16.msra.mxu0 0
        %4844 = vmatprep.mubr.bf16.mxu0 0
        %4845 = vmatmul.mubr.bf16.gmra.mrb[0].mxu0 %v4754
        %v4846 = vpop.f32.mrb[0].mxu0
        %v4847 = vadd.f32 0.0, %v4846
        %v4848 = vpop.f32.mrb[0].mxu0
        %v4849 = vpop.f32.mrb[0].mxu0
        %v4850 = vadd.f32 0.0, %v4849
        %v4851 = vpop.f32.mrb[0].mxu0
        %4852 = vmatprep.mubr.bf16.mxu0 0
        %4853 = vmatmul.mubr.bf16.gmra.mrb[0].mxu0 %v4757
        %v4854 = vpop.f32.mrb[0].mxu0
        %v4855 = vadd.f32 0.0, %v4854
        %v4856 = vpop.f32.mrb[0].mxu0
        %v4857 = vpop.f32.mrb[0].mxu0
        %v4858 = vadd.f32 0.0, %v4857
        %v4859 = vpop.f32.mrb[0].mxu0
        %4860 = vdwg.mxu0
        %4861 = vrot.lane.b32.xlu0 %v4794, 111
        %v4862 = vpop.permute.xlu0 %4861
        %4863 = vrot.lane.b32.xlu0 %v4798, 111
        %v4864 = vpop.permute.xlu0 %4863
        %4865 = vrot.lane.b32.xlu0 %v4804, 111
        %v4866 = vpop.permute.xlu0 %4865
        %4867 = vrot.lane.b32.xlu0 %v4808, 111
        %v4868 = vpop.permute.xlu0 %4867
        %4869 = vrot.lane.b32.xlu0 %v4796, 111
        %v4870 = vpop.permute.xlu0 %4869
        %4871 = vrot.lane.b32.xlu0 %v4800, 111
        %v4872 = vpop.permute.xlu0 %4871
        %4873 = vrot.lane.b32.xlu0 %v4806, 111
        %v4874 = vpop.permute.xlu0 %4873
        %4875 = vrot.lane.b32.xlu0 %v4810, 111
        %v4876 = vpop.permute.xlu0 %4875
        %4877 = vrot.lane.b32.xlu0 %v4847, 111
        %v4878 = vpop.permute.xlu0 %4877
        %4879 = vrot.lane.b32.xlu0 %v4850, 111
        %v4880 = vpop.permute.xlu0 %4879
        %4881 = vrot.lane.b32.xlu0 %v4855, 111
        %v4882 = vpop.permute.xlu0 %4881
        %4883 = vrot.lane.b32.xlu0 %v4858, 111
        %v4884 = vpop.permute.xlu0 %4883
        %v4885 = vsel %vm1594, %v4870, %v4878
        %v4886 = vsel %vm1594, %v4872, %v4880
        %v4887 = vsel %vm1594, %v4874, %v4882
        %v4888 = vsel %vm1594, %v4876, %v4884
        %v4889 = vsel %vm1594, %v4862, %v4870
        %v4890 = vsel %vm1594, %v4864, %v4872
        %v4891 = vsel %vm1594, %v4866, %v4874
        %v4892 = vsel %vm1594, %v4868, %v4876
        %v4893 = vsel %vm1594, %v4878, %v4862
        %v4894 = vsel %vm1594, %v4880, %v4864
        %v4895 = vsel %vm1594, %v4882, %v4866
        %v4896 = vsel %vm1594, %v4884, %v4868
        %v4897 = vadd.f32 %v4727, %v4889
        %v4898 = vadd.f32 %v4728, %v4885
        %v4899 = vadd.f32 %v4729, %v4893
        %v4900 = vadd.f32 %v4730, %v4890
        %v4901 = vadd.f32 %v4731, %v4886
        %v4902 = vadd.f32 %v4732, %v4894
        %v4903 = vadd.f32 %v4733, %v4891
        %v4904 = vadd.f32 %v4734, %v4887
        %v4905 = vadd.f32 %v4735, %v4895
        %v4906 = vadd.f32 %v4736, %v4892
        %v4907 = vadd.f32 %v4737, %v4888
        %v4908 = vadd.f32 %v4738, %v4896
        %v4909 = vld [vmem:[%s6 + $0x70] sm:$0xf]
        %v4910 = vld [vmem:[%s6 + $0x74] sm:$0xf]
        %v4911 = vld [vmem:[%s6 + $0x78] sm:$0xf]
        %v4912 = vld [vmem:[%s6 + $0x7c] sm:$0xf]
        %v4917 = vunpack.c.l.b16 %v4909
        %v4918 = vunpack.c.l.b16 %v4910
        %v4919 = vunpack.c.l.b16 %v4911
        %v4920 = vunpack.c.l.b16 %v4912
        %v4921 = vpack.c.b16 %v4918, %v4917
        %v4922 = vpack.c.b16 %v4920, %v4919
        %v4924 = vsel %vm3768, %v4921, 0
        %v4927 = vsel %vm3768, %v4922, 0
        %4929 = vmatprep.subr.bf16.mxu0 %v3737
        %4930 = vmatpush1.bf16.msra.mxu0 %v3736
        %4931 = vmatprep.subr.bf16.mxu0 %v3740
        %4932 = vmatpush1.bf16.msra.mxu0 %v3739
        %4933 = vmatprep.subr.bf16.mxu0 %v3743
        %4934 = vmatpush1.bf16.msra.mxu0 %v3742
        %4935 = vmatprep.subr.bf16.mxu0 %v3746
        %4936 = vmatpush1.bf16.msra.mxu0 %v3745
        %4937 = vmatprep.subr.bf16.mxu0 %v3749
        %4938 = vmatpush1.bf16.msra.mxu0 %v3748
        %4939 = vmatprep.subr.bf16.mxu0 %v3752
        %4940 = vmatpush1.bf16.msra.mxu0 %v3751
        %4941 = vmatprep.subr.bf16.mxu0 0
        %4942 = vmatpush1.bf16.msra.mxu0 0
        %4943 = vmatprep.subr.bf16.mxu0 0
        %4944 = vmatpush1.bf16.msra.mxu0 0
        %4945 = vmatprep.subr.bf16.mxu0 0
        %4946 = vmatpush1.bf16.msra.mxu0 0
        %4947 = vmatprep.subr.bf16.mxu0 0
        %4948 = vmatpush1.bf16.msra.mxu0 0
        %4949 = vmatprep.subr.bf16.mxu0 0
        %4950 = vmatpush1.bf16.msra.mxu0 0
        %4951 = vmatprep.subr.bf16.mxu0 0
        %4952 = vmatpush1.bf16.msra.mxu0 0
        %4953 = vmatprep.subr.bf16.mxu0 0
        %4954 = vmatpush1.bf16.msra.mxu0 0
        %4955 = vmatprep.subr.bf16.mxu0 0
        %4956 = vmatpush1.bf16.msra.mxu0 0
        %4957 = vmatprep.subr.bf16.mxu0 0
        %4958 = vmatpush1.bf16.msra.mxu0 0
        %4959 = vmatprep.subr.bf16.mxu0 0
        %4960 = vmatpush1.bf16.msra.mxu0 0
        %4961 = vmatprep.mubr.bf16.mxu0 0
        %4962 = vmatmul.mubr.bf16.gmra.mrb[0].mxu0 %v4924
        %v4963 = vpop.f32.mrb[0].mxu0
        %v4964 = vadd.f32 0.0, %v4963
        %v4965 = vpop.f32.mrb[0].mxu0
        %v4966 = vadd.f32 0.0, %v4965
        %v4967 = vpop.f32.mrb[0].mxu0
        %v4968 = vadd.f32 0.0, %v4967
        %v4969 = vpop.f32.mrb[0].mxu0
        %v4970 = vadd.f32 0.0, %v4969
        %4971 = vmatprep.mubr.bf16.mxu0 0
        %4972 = vmatmul.mubr.bf16.gmra.mrb[0].mxu0 %v4927
        %v4973 = vpop.f32.mrb[0].mxu0
        %v4974 = vadd.f32 0.0, %v4973
        %v4975 = vpop.f32.mrb[0].mxu0
        %v4976 = vadd.f32 0.0, %v4975
        %v4977 = vpop.f32.mrb[0].mxu0
        %v4978 = vadd.f32 0.0, %v4977
        %v4979 = vpop.f32.mrb[0].mxu0
        %v4980 = vadd.f32 0.0, %v4979
        %4981 = vdwg.mxu0
        %4982 = vmatprep.subr.bf16.mxu0 0
        %4983 = vmatpush1.bf16.msra.mxu0 %v3738
        %4984 = vmatprep.subr.bf16.mxu0 0
        %4985 = vmatpush1.bf16.msra.mxu0 %v3741
        %4986 = vmatprep.subr.bf16.mxu0 0
        %4987 = vmatpush1.bf16.msra.mxu0 %v3744
        %4988 = vmatprep.subr.bf16.mxu0 0
        %4989 = vmatpush1.bf16.msra.mxu0 %v3747
        %4990 = vmatprep.subr.bf16.mxu0 0
        %4991 = vmatpush1.bf16.msra.mxu0 %v3750
        %4992 = vmatprep.subr.bf16.mxu0 0
        %4993 = vmatpush1.bf16.msra.mxu0 %v3753
        %4994 = vmatprep.subr.bf16.mxu0 0
        %4995 = vmatpush1.bf16.msra.mxu0 0
        %4996 = vmatprep.subr.bf16.mxu0 0
        %4997 = vmatpush1.bf16.msra.mxu0 0
        %4998 = vmatprep.subr.bf16.mxu0 0
        %4999 = vmatpush1.bf16.msra.mxu0 0
        %5000 = vmatprep.subr.bf16.mxu0 0
        %5001 = vmatpush1.bf16.msra.mxu0 0
        %5002 = vmatprep.subr.bf16.mxu0 0
        %5003 = vmatpush1.bf16.msra.mxu0 0
        %5004 = vmatprep.subr.bf16.mxu0 0
        %5005 = vmatpush1.bf16.msra.mxu0 0
        %5006 = vmatprep.subr.bf16.mxu0 0
        %5007 = vmatpush1.bf16.msra.mxu0 0
        %5008 = vmatprep.subr.bf16.mxu0 0
        %5009 = vmatpush1.bf16.msra.mxu0 0
        %5010 = vmatprep.subr.bf16.mxu0 0
        %5011 = vmatpush1.bf16.msra.mxu0 0
        %5012 = vmatprep.subr.bf16.mxu0 0
        %5013 = vmatpush1.bf16.msra.mxu0 0
        %5014 = vmatprep.mubr.bf16.mxu0 0
        %5015 = vmatmul.mubr.bf16.gmra.mrb[0].mxu0 %v4924
        %v5016 = vpop.f32.mrb[0].mxu0
        %v5017 = vadd.f32 0.0, %v5016
        %v5018 = vpop.f32.mrb[0].mxu0
        %v5019 = vpop.f32.mrb[0].mxu0
        %v5020 = vadd.f32 0.0, %v5019
        %v5021 = vpop.f32.mrb[0].mxu0
        %5022 = vmatprep.mubr.bf16.mxu0 0
        %5023 = vmatmul.mubr.bf16.gmra.mrb[0].mxu0 %v4927
        %v5024 = vpop.f32.mrb[0].mxu0
        %v5025 = vadd.f32 0.0, %v5024
        %v5026 = vpop.f32.mrb[0].mxu0
        %v5027 = vpop.f32.mrb[0].mxu0
        %v5028 = vadd.f32 0.0, %v5027
        %v5029 = vpop.f32.mrb[0].mxu0
        %5030 = vdwg.mxu0
        %5031 = vrot.lane.b32.xlu0 %v4964, 110
        %v5032 = vpop.permute.xlu0 %5031
        %5033 = vrot.lane.b32.xlu0 %v4968, 110
        %v5034 = vpop.permute.xlu0 %5033
        %5035 = vrot.lane.b32.xlu0 %v4974, 110
        %v5036 = vpop.permute.xlu0 %5035
        %5037 = vrot.lane.b32.xlu0 %v4978, 110
        %v5038 = vpop.permute.xlu0 %5037
        %5039 = vrot.lane.b32.xlu0 %v4966, 110
        %v5040 = vpop.permute.xlu0 %5039
        %5041 = vrot.lane.b32.xlu0 %v4970, 110
        %v5042 = vpop.permute.xlu0 %5041
        %5043 = vrot.lane.b32.xlu0 %v4976, 110
        %v5044 = vpop.permute.xlu0 %5043
        %5045 = vrot.lane.b32.xlu0 %v4980, 110
        %v5046 = vpop.permute.xlu0 %5045
        %5047 = vrot.lane.b32.xlu0 %v5017, 110
        %v5048 = vpop.permute.xlu0 %5047
        %5049 = vrot.lane.b32.xlu0 %v5020, 110
        %v5050 = vpop.permute.xlu0 %5049
        %5051 = vrot.lane.b32.xlu0 %v5025, 110
        %v5052 = vpop.permute.xlu0 %5051
        %5053 = vrot.lane.b32.xlu0 %v5028, 110
        %v5054 = vpop.permute.xlu0 %5053
        %v5055 = vsel %vm1765, %v5040, %v5048
        %v5056 = vsel %vm1765, %v5042, %v5050
        %v5057 = vsel %vm1765, %v5044, %v5052
        %v5058 = vsel %vm1765, %v5046, %v5054
        %v5059 = vsel %vm1765, %v5032, %v5040
        %v5060 = vsel %vm1765, %v5034, %v5042
        %v5061 = vsel %vm1765, %v5036, %v5044
        %v5062 = vsel %vm1765, %v5038, %v5046
        %v5063 = vsel %vm1765, %v5048, %v5032
        %v5064 = vsel %vm1765, %v5050, %v5034
        %v5065 = vsel %vm1765, %v5052, %v5036
        %v5066 = vsel %vm1765, %v5054, %v5038
        %v5067 = vadd.f32 %v4897, %v5059
        %v5068 = vadd.f32 %v4898, %v5055
        %v5069 = vadd.f32 %v4899, %v5063
        %v5070 = vadd.f32 %v4900, %v5060
        %v5071 = vadd.f32 %v4901, %v5056
        %v5072 = vadd.f32 %v4902, %v5064
        %v5073 = vadd.f32 %v4903, %v5061
        %v5074 = vadd.f32 %v4904, %v5057
        %v5075 = vadd.f32 %v4905, %v5065
        %v5076 = vadd.f32 %v4906, %v5062
        %v5077 = vadd.f32 %v4907, %v5058
        %v5078 = vadd.f32 %v4908, %v5066
        %v5079 = vld [vmem:[%s6 + $0x80] sm:$0xf]
        %v5080 = vld [vmem:[%s6 + $0x84] sm:$0xf]
        %v5081 = vld [vmem:[%s6 + $0x88] sm:$0xf]
        %v5082 = vld [vmem:[%s6 + $0x8c] sm:$0xf]
        %v5087 = vunpack.c.l.b16 %v5079
        %v5088 = vunpack.c.l.b16 %v5080
        %v5089 = vunpack.c.l.b16 %v5081
        %v5090 = vunpack.c.l.b16 %v5082
        %v5091 = vpack.c.b16 %v5088, %v5087
        %v5092 = vpack.c.b16 %v5090, %v5089
        %v5094 = vsel %vm3768, %v5091, 0
        %v5097 = vsel %vm3768, %v5092, 0
        %5099 = vmatprep.subr.bf16.mxu0 %v3737
        %5100 = vmatpush1.bf16.msra.mxu0 %v3736
        %5101 = vmatprep.subr.bf16.mxu0 %v3740
        %5102 = vmatpush1.bf16.msra.mxu0 %v3739
        %5103 = vmatprep.subr.bf16.mxu0 %v3743
        %5104 = vmatpush1.bf16.msra.mxu0 %v3742
        %5105 = vmatprep.subr.bf16.mxu0 %v3746
        %5106 = vmatpush1.bf16.msra.mxu0 %v3745
        %5107 = vmatprep.subr.bf16.mxu0 %v3749
        %5108 = vmatpush1.bf16.msra.mxu0 %v3748
        %5109 = vmatprep.subr.bf16.mxu0 %v3752
        %5110 = vmatpush1.bf16.msra.mxu0 %v3751
        %5111 = vmatprep.subr.bf16.mxu0 0
        %5112 = vmatpush1.bf16.msra.mxu0 0
        %5113 = vmatprep.subr.bf16.mxu0 0
        %5114 = vmatpush1.bf16.msra.mxu0 0
        %5115 = vmatprep.subr.bf16.mxu0 0
        %5116 = vmatpush1.bf16.msra.mxu0 0
        %5117 = vmatprep.subr.bf16.mxu0 0
        %5118 = vmatpush1.bf16.msra.mxu0 0
        %5119 = vmatprep.subr.bf16.mxu0 0
        %5120 = vmatpush1.bf16.msra.mxu0 0
        %5121 = vmatprep.subr.bf16.mxu0 0
        %5122 = vmatpush1.bf16.msra.mxu0 0
        %5123 = vmatprep.subr.bf16.mxu0 0
        %5124 = vmatpush1.bf16.msra.mxu0 0
        %5125 = vmatprep.subr.bf16.mxu0 0
        %5126 = vmatpush1.bf16.msra.mxu0 0
        %5127 = vmatprep.subr.bf16.mxu0 0
        %5128 = vmatpush1.bf16.msra.mxu0 0
        %5129 = vmatprep.subr.bf16.mxu0 0
        %5130 = vmatpush1.bf16.msra.mxu0 0
        %5131 = vmatprep.mubr.bf16.mxu0 0
        %5132 = vmatmul.mubr.bf16.gmra.mrb[0].mxu0 %v5094
        %v5133 = vpop.f32.mrb[0].mxu0
        %v5134 = vadd.f32 0.0, %v5133
        %v5135 = vpop.f32.mrb[0].mxu0
        %v5136 = vadd.f32 0.0, %v5135
        %v5137 = vpop.f32.mrb[0].mxu0
        %v5138 = vadd.f32 0.0, %v5137
        %v5139 = vpop.f32.mrb[0].mxu0
        %v5140 = vadd.f32 0.0, %v5139
        %5141 = vmatprep.mubr.bf16.mxu0 0
        %5142 = vmatmul.mubr.bf16.gmra.mrb[0].mxu0 %v5097
        %v5143 = vpop.f32.mrb[0].mxu0
        %v5144 = vadd.f32 0.0, %v5143
        %v5145 = vpop.f32.mrb[0].mxu0
        %v5146 = vadd.f32 0.0, %v5145
        %v5147 = vpop.f32.mrb[0].mxu0
        %v5148 = vadd.f32 0.0, %v5147
        %v5149 = vpop.f32.mrb[0].mxu0
        %v5150 = vadd.f32 0.0, %v5149
        %5151 = vdwg.mxu0
        %5152 = vmatprep.subr.bf16.mxu0 0
        %5153 = vmatpush1.bf16.msra.mxu0 %v3738
        %5154 = vmatprep.subr.bf16.mxu0 0
        %5155 = vmatpush1.bf16.msra.mxu0 %v3741
        %5156 = vmatprep.subr.bf16.mxu0 0
        %5157 = vmatpush1.bf16.msra.mxu0 %v3744
        %5158 = vmatprep.subr.bf16.mxu0 0
        %5159 = vmatpush1.bf16.msra.mxu0 %v3747
        %5160 = vmatprep.subr.bf16.mxu0 0
        %5161 = vmatpush1.bf16.msra.mxu0 %v3750
        %5162 = vmatprep.subr.bf16.mxu0 0
        %5163 = vmatpush1.bf16.msra.mxu0 %v3753
        %5164 = vmatprep.subr.bf16.mxu0 0
        %5165 = vmatpush1.bf16.msra.mxu0 0
        %5166 = vmatprep.subr.bf16.mxu0 0
        %5167 = vmatpush1.bf16.msra.mxu0 0
        %5168 = vmatprep.subr.bf16.mxu0 0
        %5169 = vmatpush1.bf16.msra.mxu0 0
        %5170 = vmatprep.subr.bf16.mxu0 0
        %5171 = vmatpush1.bf16.msra.mxu0 0
        %5172 = vmatprep.subr.bf16.mxu0 0
        %5173 = vmatpush1.bf16.msra.mxu0 0
        %5174 = vmatprep.subr.bf16.mxu0 0
        %5175 = vmatpush1.bf16.msra.mxu0 0
        %5176 = vmatprep.subr.bf16.mxu0 0
        %5177 = vmatpush1.bf16.msra.mxu0 0
        %5178 = vmatprep.subr.bf16.mxu0 0
        %5179 = vmatpush1.bf16.msra.mxu0 0
        %5180 = vmatprep.subr.bf16.mxu0 0
        %5181 = vmatpush1.bf16.msra.mxu0 0
        %5182 = vmatprep.subr.bf16.mxu0 0
        %5183 = vmatpush1.bf16.msra.mxu0 0
        %5184 = vmatprep.mubr.bf16.mxu0 0
        %5185 = vmatmul.mubr.bf16.gmra.mrb[0].mxu0 %v5094
        %v5186 = vpop.f32.mrb[0].mxu0
        %v5187 = vadd.f32 0.0, %v5186
        %v5188 = vpop.f32.mrb[0].mxu0
        %v5189 = vpop.f32.mrb[0].mxu0
        %v5190 = vadd.f32 0.0, %v5189
        %v5191 = vpop.f32.mrb[0].mxu0
        %5192 = vmatprep.mubr.bf16.mxu0 0
        %5193 = vmatmul.mubr.bf16.gmra.mrb[0].mxu0 %v5097
        %v5194 = vpop.f32.mrb[0].mxu0
        %v5195 = vadd.f32 0.0, %v5194
        %v5196 = vpop.f32.mrb[0].mxu0
        %v5197 = vpop.f32.mrb[0].mxu0
        %v5198 = vadd.f32 0.0, %v5197
        %v5199 = vpop.f32.mrb[0].mxu0
        %5200 = vdwg.mxu0
        %5201 = vrot.lane.b32.xlu0 %v5134, 109
        %v5202 = vpop.permute.xlu0 %5201
        %5203 = vrot.lane.b32.xlu0 %v5138, 109
        %v5204 = vpop.permute.xlu0 %5203
        %5205 = vrot.lane.b32.xlu0 %v5144, 109
        %v5206 = vpop.permute.xlu0 %5205
        %5207 = vrot.lane.b32.xlu0 %v5148, 109
        %v5208 = vpop.permute.xlu0 %5207
        %5209 = vrot.lane.b32.xlu0 %v5136, 109
        %v5210 = vpop.permute.xlu0 %5209
        %5211 = vrot.lane.b32.xlu0 %v5140, 109
        %v5212 = vpop.permute.xlu0 %5211
        %5213 = vrot.lane.b32.xlu0 %v5146, 109
        %v5214 = vpop.permute.xlu0 %5213
        %5215 = vrot.lane.b32.xlu0 %v5150, 109
        %v5216 = vpop.permute.xlu0 %5215
        %5217 = vrot.lane.b32.xlu0 %v5187, 109
        %v5218 = vpop.permute.xlu0 %5217
        %5219 = vrot.lane.b32.xlu0 %v5190, 109
        %v5220 = vpop.permute.xlu0 %5219
        %5221 = vrot.lane.b32.xlu0 %v5195, 109
        %v5222 = vpop.permute.xlu0 %5221
        %5223 = vrot.lane.b32.xlu0 %v5198, 109
        %v5224 = vpop.permute.xlu0 %5223
        %v5225 = vsel %vm1936, %v5210, %v5218
        %v5226 = vsel %vm1936, %v5212, %v5220
        %v5227 = vsel %vm1936, %v5214, %v5222
        %v5228 = vsel %vm1936, %v5216, %v5224
        %v5229 = vsel %vm1936, %v5202, %v5210
        %v5230 = vsel %vm1936, %v5204, %v5212
        %v5231 = vsel %vm1936, %v5206, %v5214
        %v5232 = vsel %vm1936, %v5208, %v5216
        %v5233 = vsel %vm1936, %v5218, %v5202
        %v5234 = vsel %vm1936, %v5220, %v5204
        %v5235 = vsel %vm1936, %v5222, %v5206
        %v5236 = vsel %vm1936, %v5224, %v5208
        %v5237 = vadd.f32 %v5067, %v5229
        %v5238 = vadd.f32 %v5068, %v5225
        %v5239 = vadd.f32 %v5069, %v5233
        %v5240 = vadd.f32 %v5070, %v5230
        %v5241 = vadd.f32 %v5071, %v5226
        %v5242 = vadd.f32 %v5072, %v5234
        %v5243 = vadd.f32 %v5073, %v5231
        %v5244 = vadd.f32 %v5074, %v5227
        %v5245 = vadd.f32 %v5075, %v5235
        %v5246 = vadd.f32 %v5076, %v5232
        %v5247 = vadd.f32 %v5077, %v5228
        %v5248 = vadd.f32 %v5078, %v5236
        %v5249 = vld [vmem:[%s7] sm:$0xff]
        %v5250 = vld [vmem:[%s7 + $0x8] sm:$0xff]
        %v5251 = vld [vmem:[%s7 + $0x10] sm:$0xff]
        %v5252 = vld [vmem:[%s7 + $0x18] sm:$0xff]
        %5254 = vset.pattern.permute.xlu0 0
        %5255 = vperm.xlu0 %5254, %v5249
        %v5256 = vpop.permute.xlu0 %5255
        %5259 = vset.pattern.permute.xlu0 0
        %5260 = vperm.xlu0 %5259, %v5250
        %v5261 = vpop.permute.xlu0 %5260
        %5264 = vset.pattern.permute.xlu0 0
        %5265 = vperm.xlu0 %5264, %v5251
        %v5266 = vpop.permute.xlu0 %5265
        %5269 = vset.pattern.permute.xlu0 0
        %5270 = vperm.xlu0 %5269, %v5252
        %v5271 = vpop.permute.xlu0 %5270
        %v5273 = vadd.f32 %v5237, %v5256
        %v5274 = vadd.f32 %v5238, %v5256
        %v5275 = vadd.f32 %v5239, %v5256
        %v5276 = vadd.f32 %v5240, %v5261
        %v5277 = vadd.f32 %v5241, %v5261
        %v5278 = vadd.f32 %v5242, %v5261
        %v5279 = vadd.f32 %v5243, %v5266
        %v5280 = vadd.f32 %v5244, %v5266
        %v5281 = vadd.f32 %v5245, %v5266
        %v5282 = vadd.f32 %v5246, %v5271
        %v5283 = vadd.f32 %v5247, %v5271
        %v5284 = vadd.f32 %v5248, %v5271
        %vm5285 = vcmp.ge.f32.partialorder %v5273, 0.0
        %vm5286 = vcmp.ge.f32.partialorder %v5274, 0.0
        %vm5287 = vcmp.ge.f32.partialorder %v5275, 0.0
        %vm5288 = vcmp.ge.f32.partialorder %v5276, 0.0
        %vm5289 = vcmp.ge.f32.partialorder %v5277, 0.0
        %vm5290 = vcmp.ge.f32.partialorder %v5278, 0.0
        %vm5291 = vcmp.ge.f32.partialorder %v5279, 0.0
        %vm5292 = vcmp.ge.f32.partialorder %v5280, 0.0
        %vm5293 = vcmp.ge.f32.partialorder %v5281, 0.0
        %vm5294 = vcmp.ge.f32.partialorder %v5282, 0.0
        %vm5295 = vcmp.ge.f32.partialorder %v5283, 0.0
        %vm5296 = vcmp.ge.f32.partialorder %v5284, 0.0
        %v5297 = vmul.f32 %v5273, 0.01
        %v5298 = vmul.f32 %v5274, 0.01
        %v5299 = vmul.f32 %v5275, 0.01
        %v5300 = vmul.f32 %v5276, 0.01
        %v5301 = vmul.f32 %v5277, 0.01
        %v5302 = vmul.f32 %v5278, 0.01
        %v5303 = vmul.f32 %v5279, 0.01
        %v5304 = vmul.f32 %v5280, 0.01
        %v5305 = vmul.f32 %v5281, 0.01
        %v5306 = vmul.f32 %v5282, 0.01
        %v5307 = vmul.f32 %v5283, 0.01
        %v5308 = vmul.f32 %v5284, 0.01
        %v5309 = vsel %vm5285, %v5273, %v5297
        %v5310 = vsel %vm5286, %v5274, %v5298
        %v5311 = vsel %vm5287, %v5275, %v5299
        %v5312 = vsel %vm5288, %v5276, %v5300
        %v5313 = vsel %vm5289, %v5277, %v5301
        %v5314 = vsel %vm5290, %v5278, %v5302
        %v5315 = vsel %vm5291, %v5279, %v5303
        %v5316 = vsel %vm5292, %v5280, %v5304
        %v5317 = vsel %vm5293, %v5281, %v5305
        %v5318 = vsel %vm5294, %v5282, %v5306
        %v5319 = vsel %vm5295, %v5283, %v5307
        %v5320 = vsel %vm5296, %v5284, %v5308
        %v5321 = vmul.f32 %v5309, %v2037
        %v5322 = vmul.f32 %v5310, %v2041
        %v5323 = vmul.f32 %v5311, %v2045
        %v5324 = vmul.f32 %v5312, %v2037
        %v5325 = vmul.f32 %v5313, %v2041
        %v5326 = vmul.f32 %v5314, %v2045
        %v5327 = vmul.f32 %v5315, %v2037
        %v5328 = vmul.f32 %v5316, %v2041
        %v5329 = vmul.f32 %v5317, %v2045
        %v5330 = vmul.f32 %v5318, %v2037
        %v5331 = vmul.f32 %v5319, %v2041
        %v5332 = vmul.f32 %v5320, %v2045
        %5333 = vst [vmem:[#allocation2 + $0x120] sm:$0xff] %v5321
        %5334 = vst [vmem:[#allocation2 + $0x128] sm:$0xff] %v5322
        %5335 = vst [vmem:[#allocation2 + $0x130] sm:$0xff] %v5323
        %5336 = vst [vmem:[#allocation2 + $0x138] sm:$0xff] %v5324
        %5337 = vst [vmem:[#allocation2 + $0x140] sm:$0xff] %v5325
        %5338 = vst [vmem:[#allocation2 + $0x148] sm:$0xff] %v5326
        %5339 = vst [vmem:[#allocation2 + $0x150] sm:$0xff] %v5327
        %5340 = vst [vmem:[#allocation2 + $0x158] sm:$0xff] %v5328
        %5341 = vst [vmem:[#allocation2 + $0x160] sm:$0xff] %v5329
        %5342 = vst [vmem:[#allocation2 + $0x168] sm:$0xff] %v5330
        %5343 = vst [vmem:[#allocation2 + $0x170] sm:$0xff] %v5331
        %5344 = vst [vmem:[#allocation2 + $0x178] sm:$0xff] %v5332
        %v5345 = vld [vmem:[#allocation2] sm:$0xff]
        %v5346 = vld [vmem:[#allocation2 + $0x8] sm:$0xff]
        %v5347 = vld [vmem:[#allocation2 + $0x10] sm:$0xff]
        %v5348 = vld [vmem:[#allocation2 + $0x18] sm:$0xff]
        %v5349 = vld [vmem:[#allocation2 + $0x20] sm:$0xff]
        %v5350 = vld [vmem:[#allocation2 + $0x28] sm:$0xff]
        %v5351 = vld [vmem:[#allocation2 + $0x30] sm:$0xff]
        %v5352 = vld [vmem:[#allocation2 + $0x38] sm:$0xff]
        %v5353 = vld [vmem:[#allocation2 + $0x40] sm:$0xff]
        %v5354 = vld [vmem:[#allocation2 + $0x48] sm:$0xff]
        %v5355 = vld [vmem:[#allocation2 + $0x50] sm:$0xff]
        %v5356 = vld [vmem:[#allocation2 + $0x58] sm:$0xff]
        %v5357 = vld [vmem:[#allocation2 + $0x60] sm:$0xff]
        %v5358 = vld [vmem:[#allocation2 + $0x68] sm:$0xff]
        %v5359 = vld [vmem:[#allocation2 + $0x70] sm:$0xff]
        %v5360 = vld [vmem:[#allocation2 + $0x78] sm:$0xff]
        %v5361 = vld [vmem:[#allocation2 + $0x80] sm:$0xff]
        %v5362 = vld [vmem:[#allocation2 + $0x88] sm:$0xff]
        %v5363 = vld [vmem:[#allocation2 + $0x90] sm:$0xff]
        %v5364 = vld [vmem:[#allocation2 + $0x98] sm:$0xff]
        %v5365 = vld [vmem:[#allocation2 + $0xa0] sm:$0xff]
        %v5366 = vld [vmem:[#allocation2 + $0xa8] sm:$0xff]
        %v5367 = vld [vmem:[#allocation2 + $0xb0] sm:$0xff]
        %v5368 = vld [vmem:[#allocation2 + $0xb8] sm:$0xff]
        %v5369 = vld [vmem:[#allocation2 + $0xc0] sm:$0xff]
        %v5370 = vld [vmem:[#allocation2 + $0xc8] sm:$0xff]
        %v5371 = vld [vmem:[#allocation2 + $0xd0] sm:$0xff]
        %v5372 = vld [vmem:[#allocation2 + $0xd8] sm:$0xff]
        %v5373 = vld [vmem:[#allocation2 + $0xe0] sm:$0xff]
        %v5374 = vld [vmem:[#allocation2 + $0xe8] sm:$0xff]
        %v5375 = vld [vmem:[#allocation2 + $0xf0] sm:$0xff]
        %v5376 = vld [vmem:[#allocation2 + $0xf8] sm:$0xff]
        %v5377 = vld [vmem:[#allocation2 + $0x100] sm:$0xff]
        %v5378 = vld [vmem:[#allocation2 + $0x108] sm:$0xff]
        %v5379 = vld [vmem:[#allocation2 + $0x110] sm:$0xff]
        %v5380 = vld [vmem:[#allocation2 + $0x118] sm:$0xff]
        %v5381 = vld [vmem:[#allocation2 + $0x120] sm:$0xff]
        %v5382 = vld [vmem:[#allocation2 + $0x128] sm:$0xff]
        %v5383 = vld [vmem:[#allocation2 + $0x130] sm:$0xff]
        %v5384 = vld [vmem:[#allocation2 + $0x138] sm:$0xff]
        %v5385 = vld [vmem:[#allocation2 + $0x140] sm:$0xff]
        %v5386 = vld [vmem:[#allocation2 + $0x148] sm:$0xff]
        %v5387 = vld [vmem:[#allocation2 + $0x150] sm:$0xff]
        %v5388 = vld [vmem:[#allocation2 + $0x158] sm:$0xff]
        %v5389 = vld [vmem:[#allocation2 + $0x160] sm:$0xff]
        %v5390 = vld [vmem:[#allocation2 + $0x168] sm:$0xff]
        %v5391 = vld [vmem:[#allocation2 + $0x170] sm:$0xff]
        %v5392 = vld [vmem:[#allocation2 + $0x178] sm:$0xff]
        %v5393 = vpack.c.bf16 %v5348, %v5345
        %v5394 = vpack.c.bf16 %v5349, %v5346
        %v5395 = vpack.c.bf16 %v5350, %v5347
        %v5396 = vpack.c.bf16 %v5354, %v5351
        %v5397 = vpack.c.bf16 %v5355, %v5352
        %v5398 = vpack.c.bf16 %v5356, %v5353
        %v5399 = vpack.c.bf16 %v5360, %v5357
        %v5400 = vpack.c.bf16 %v5361, %v5358
        %v5401 = vpack.c.bf16 %v5362, %v5359
        %v5402 = vpack.c.bf16 %v5366, %v5363
        %v5403 = vpack.c.bf16 %v5367, %v5364
        %v5404 = vpack.c.bf16 %v5368, %v5365
        %v5405 = vpack.c.bf16 %v5372, %v5369
        %v5406 = vpack.c.bf16 %v5373, %v5370
        %v5407 = vpack.c.bf16 %v5374, %v5371
        %v5408 = vpack.c.bf16 %v5378, %v5375
        %v5409 = vpack.c.bf16 %v5379, %v5376
        %v5410 = vpack.c.bf16 %v5380, %v5377
        %v5411 = vpack.c.bf16 %v5384, %v5381
        %v5412 = vpack.c.bf16 %v5385, %v5382
        %v5413 = vpack.c.bf16 %v5386, %v5383
        %v5414 = vpack.c.bf16 %v5390, %v5387
        %v5415 = vpack.c.bf16 %v5391, %v5388
        %v5416 = vpack.c.bf16 %v5392, %v5389
        %v5417 = vld [vmem:[%s8] sm:$0xf]
        %v5418 = vld [vmem:[%s8 + $0x4] sm:$0xf]
        %v5419 = vld [vmem:[%s8 + $0x8] sm:$0xf]
        %v5420 = vld [vmem:[%s8 + $0xc] sm:$0xf]
        %v5425 = vunpack.c.l.b16 %v5417
        %v5426 = vunpack.c.l.b16 %v5418
        %v5427 = vunpack.c.l.b16 %v5419
        %v5428 = vunpack.c.l.b16 %v5420
        %v5429 = vpack.c.b16 %v5426, %v5425
        %v5430 = vpack.c.b16 %v5428, %v5427
        %5433 = vmatprep.subr.bf16.mxu0 %v5394
        %5434 = vmatpush1.bf16.msra.mxu0 %v5393
        %5435 = vmatprep.subr.bf16.mxu0 %v5397
        %5436 = vmatpush1.bf16.msra.mxu0 %v5396
        %5437 = vmatprep.subr.bf16.mxu0 %v5400
        %5438 = vmatpush1.bf16.msra.mxu0 %v5399
        %5439 = vmatprep.subr.bf16.mxu0 %v5403
        %5440 = vmatpush1.bf16.msra.mxu0 %v5402
        %5441 = vmatprep.subr.bf16.mxu0 %v5406
        %5442 = vmatpush1.bf16.msra.mxu0 %v5405
        %5443 = vmatprep.subr.bf16.mxu0 %v5409
        %5444 = vmatpush1.bf16.msra.mxu0 %v5408
        %5445 = vmatprep.subr.bf16.mxu0 %v5412
        %5446 = vmatpush1.bf16.msra.mxu0 %v5411
        %5447 = vmatprep.subr.bf16.mxu0 %v5415
        %5448 = vmatpush1.bf16.msra.mxu0 %v5414
        %5449 = vmatprep.subr.bf16.mxu0 0
        %5450 = vmatpush1.bf16.msra.mxu0 0
        %5451 = vmatprep.subr.bf16.mxu0 0
        %5452 = vmatpush1.bf16.msra.mxu0 0
        %5453 = vmatprep.subr.bf16.mxu0 0
        %5454 = vmatpush1.bf16.msra.mxu0 0
        %5455 = vmatprep.subr.bf16.mxu0 0
        %5456 = vmatpush1.bf16.msra.mxu0 0
        %5457 = vmatprep.subr.bf16.mxu0 0
        %5458 = vmatpush1.bf16.msra.mxu0 0
        %5459 = vmatprep.subr.bf16.mxu0 0
        %5460 = vmatpush1.bf16.msra.mxu0 0
        %5461 = vmatprep.subr.bf16.mxu0 0
        %5462 = vmatpush1.bf16.msra.mxu0 0
        %5463 = vmatprep.subr.bf16.mxu0 0
        %5464 = vmatpush1.bf16.msra.mxu0 0
        %5465 = vmatprep.mubr.bf16.mxu0 0
        %5466 = vmatmul.mubr.bf16.gmra.mrb[0].mxu0 %v5429
        %v5467 = vpop.f32.mrb[0].mxu0
        %v5468 = vadd.f32 0.0, %v5467
        %v5469 = vpop.f32.mrb[0].mxu0
        %v5470 = vadd.f32 0.0, %v5469
        %v5471 = vpop.f32.mrb[0].mxu0
        %v5472 = vadd.f32 0.0, %v5471
        %v5473 = vpop.f32.mrb[0].mxu0
        %v5474 = vadd.f32 0.0, %v5473
        %5475 = vmatprep.mubr.bf16.mxu0 0
        %5476 = vmatmul.mubr.bf16.gmra.mrb[0].mxu0 %v5430
        %v5477 = vpop.f32.mrb[0].mxu0
        %v5478 = vadd.f32 0.0, %v5477
        %v5479 = vpop.f32.mrb[0].mxu0
        %v5480 = vadd.f32 0.0, %v5479
        %v5481 = vpop.f32.mrb[0].mxu0
        %v5482 = vadd.f32 0.0, %v5481
        %v5483 = vpop.f32.mrb[0].mxu0
        %v5484 = vadd.f32 0.0, %v5483
        %5485 = vdwg.mxu0
        %5486 = vmatprep.subr.bf16.mxu0 0
        %5487 = vmatpush1.bf16.msra.mxu0 %v5395
        %5488 = vmatprep.subr.bf16.mxu0 0
        %5489 = vmatpush1.bf16.msra.mxu0 %v5398
        %5490 = vmatprep.subr.bf16.mxu0 0
        %5491 = vmatpush1.bf16.msra.mxu0 %v5401
        %5492 = vmatprep.subr.bf16.mxu0 0
        %5493 = vmatpush1.bf16.msra.mxu0 %v5404
        %5494 = vmatprep.subr.bf16.mxu0 0
        %5495 = vmatpush1.bf16.msra.mxu0 %v5407
        %5496 = vmatprep.subr.bf16.mxu0 0
        %5497 = vmatpush1.bf16.msra.mxu0 %v5410
        %5498 = vmatprep.subr.bf16.mxu0 0
        %5499 = vmatpush1.bf16.msra.mxu0 %v5413
        %5500 = vmatprep.subr.bf16.mxu0 0
        %5501 = vmatpush1.bf16.msra.mxu0 %v5416
        %5502 = vmatprep.subr.bf16.mxu0 0
        %5503 = vmatpush1.bf16.msra.mxu0 0
        %5504 = vmatprep.subr.bf16.mxu0 0
        %5505 = vmatpush1.bf16.msra.mxu0 0
        %5506 = vmatprep.subr.bf16.mxu0 0
        %5507 = vmatpush1.bf16.msra.mxu0 0
        %5508 = vmatprep.subr.bf16.mxu0 0
        %5509 = vmatpush1.bf16.msra.mxu0 0
        %5510 = vmatprep.subr.bf16.mxu0 0
        %5511 = vmatpush1.bf16.msra.mxu0 0
        %5512 = vmatprep.subr.bf16.mxu0 0
        %5513 = vmatpush1.bf16.msra.mxu0 0
        %5514 = vmatprep.subr.bf16.mxu0 0
        %5515 = vmatpush1.bf16.msra.mxu0 0
        %5516 = vmatprep.subr.bf16.mxu0 0
        %5517 = vmatpush1.bf16.msra.mxu0 0
        %5518 = vmatprep.mubr.bf16.mxu0 0
        %5519 = vmatmul.mubr.bf16.gmra.mrb[0].mxu0 %v5429
        %v5520 = vpop.f32.mrb[0].mxu0
        %v5521 = vadd.f32 0.0, %v5520
        %v5522 = vpop.f32.mrb[0].mxu0
        %v5523 = vpop.f32.mrb[0].mxu0
        %v5524 = vadd.f32 0.0, %v5523
        %v5525 = vpop.f32.mrb[0].mxu0
        %5526 = vmatprep.mubr.bf16.mxu0 0
        %5527 = vmatmul.mubr.bf16.gmra.mrb[0].mxu0 %v5430
        %v5528 = vpop.f32.mrb[0].mxu0
        %v5529 = vadd.f32 0.0, %v5528
        %v5530 = vpop.f32.mrb[0].mxu0
        %v5531 = vpop.f32.mrb[0].mxu0
        %v5532 = vadd.f32 0.0, %v5531
        %v5533 = vpop.f32.mrb[0].mxu0
        %5534 = vdwg.mxu0
        %5535 = vrot.lane.b32.xlu0 %v5468, 19
        %v5536 = vpop.permute.xlu0 %5535
        %5537 = vrot.lane.b32.xlu0 %v5472, 19
        %v5538 = vpop.permute.xlu0 %5537
        %5539 = vrot.lane.b32.xlu0 %v5478, 19
        %v5540 = vpop.permute.xlu0 %5539
        %5541 = vrot.lane.b32.xlu0 %v5482, 19
        %v5542 = vpop.permute.xlu0 %5541
        %5543 = vrot.lane.b32.xlu0 %v5470, 19
        %v5544 = vpop.permute.xlu0 %5543
        %5545 = vrot.lane.b32.xlu0 %v5474, 19
        %v5546 = vpop.permute.xlu0 %5545
        %5547 = vrot.lane.b32.xlu0 %v5480, 19
        %v5548 = vpop.permute.xlu0 %5547
        %5549 = vrot.lane.b32.xlu0 %v5484, 19
        %v5550 = vpop.permute.xlu0 %5549
        %5551 = vrot.lane.b32.xlu0 %v5521, 19
        %v5552 = vpop.permute.xlu0 %5551
        %5553 = vrot.lane.b32.xlu0 %v5524, 19
        %v5554 = vpop.permute.xlu0 %5553
        %5555 = vrot.lane.b32.xlu0 %v5529, 19
        %v5556 = vpop.permute.xlu0 %5555
        %5557 = vrot.lane.b32.xlu0 %v5532, 19
        %v5558 = vpop.permute.xlu0 %5557
        %v5559 = vsel %vm605, %v5544, %v5552
        %v5560 = vsel %vm605, %v5546, %v5554
        %v5561 = vsel %vm605, %v5548, %v5556
        %v5562 = vsel %vm605, %v5550, %v5558
        %v5563 = vsel %vm605, %v5536, %v5544
        %v5564 = vsel %vm605, %v5538, %v5546
        %v5565 = vsel %vm605, %v5540, %v5548
        %v5566 = vsel %vm605, %v5542, %v5550
        %v5567 = vsel %vm605, %v5552, %v5536
        %v5568 = vsel %vm605, %v5554, %v5538
        %v5569 = vsel %vm605, %v5556, %v5540
        %v5570 = vsel %vm605, %v5558, %v5542
        %v5571 = vadd.f32 %v5567, 0.0
        %v5572 = vadd.f32 %v5563, 0.0
        %v5573 = vadd.f32 %v5559, 0.0
        %v5574 = vadd.f32 %v5568, 0.0
        %v5575 = vadd.f32 %v5564, 0.0
        %v5576 = vadd.f32 %v5560, 0.0
        %v5577 = vadd.f32 %v5569, 0.0
        %v5578 = vadd.f32 %v5565, 0.0
        %v5579 = vadd.f32 %v5561, 0.0
        %v5580 = vadd.f32 %v5570, 0.0
        %v5581 = vadd.f32 %v5566, 0.0
        %v5582 = vadd.f32 %v5562, 0.0
        %v5583 = vld [vmem:[%s8 + $0x10] sm:$0xf]
        %v5584 = vld [vmem:[%s8 + $0x14] sm:$0xf]
        %v5585 = vld [vmem:[%s8 + $0x18] sm:$0xf]
        %v5586 = vld [vmem:[%s8 + $0x1c] sm:$0xf]
        %v5591 = vunpack.c.l.b16 %v5583
        %v5592 = vunpack.c.l.b16 %v5584
        %v5593 = vunpack.c.l.b16 %v5585
        %v5594 = vunpack.c.l.b16 %v5586
        %v5595 = vpack.c.b16 %v5592, %v5591
        %v5596 = vpack.c.b16 %v5594, %v5593
        %5599 = vmatprep.subr.bf16.mxu0 %v5394
        %5600 = vmatpush1.bf16.msra.mxu0 %v5393
        %5601 = vmatprep.subr.bf16.mxu0 %v5397
        %5602 = vmatpush1.bf16.msra.mxu0 %v5396
        %5603 = vmatprep.subr.bf16.mxu0 %v5400
        %5604 = vmatpush1.bf16.msra.mxu0 %v5399
        %5605 = vmatprep.subr.bf16.mxu0 %v5403
        %5606 = vmatpush1.bf16.msra.mxu0 %v5402
        %5607 = vmatprep.subr.bf16.mxu0 %v5406
        %5608 = vmatpush1.bf16.msra.mxu0 %v5405
        %5609 = vmatprep.subr.bf16.mxu0 %v5409
        %5610 = vmatpush1.bf16.msra.mxu0 %v5408
        %5611 = vmatprep.subr.bf16.mxu0 %v5412
        %5612 = vmatpush1.bf16.msra.mxu0 %v5411
        %5613 = vmatprep.subr.bf16.mxu0 %v5415
        %5614 = vmatpush1.bf16.msra.mxu0 %v5414
        %5615 = vmatprep.subr.bf16.mxu0 0
        %5616 = vmatpush1.bf16.msra.mxu0 0
        %5617 = vmatprep.subr.bf16.mxu0 0
        %5618 = vmatpush1.bf16.msra.mxu0 0
        %5619 = vmatprep.subr.bf16.mxu0 0
        %5620 = vmatpush1.bf16.msra.mxu0 0
        %5621 = vmatprep.subr.bf16.mxu0 0
        %5622 = vmatpush1.bf16.msra.mxu0 0
        %5623 = vmatprep.subr.bf16.mxu0 0
        %5624 = vmatpush1.bf16.msra.mxu0 0
        %5625 = vmatprep.subr.bf16.mxu0 0
        %5626 = vmatpush1.bf16.msra.mxu0 0
        %5627 = vmatprep.subr.bf16.mxu0 0
        %5628 = vmatpush1.bf16.msra.mxu0 0
        %5629 = vmatprep.subr.bf16.mxu0 0
        %5630 = vmatpush1.bf16.msra.mxu0 0
        %5631 = vmatprep.mubr.bf16.mxu0 0
        %5632 = vmatmul.mubr.bf16.gmra.mrb[0].mxu0 %v5595
        %v5633 = vpop.f32.mrb[0].mxu0
        %v5634 = vadd.f32 0.0, %v5633
        %v5635 = vpop.f32.mrb[0].mxu0
        %v5636 = vadd.f32 0.0, %v5635
        %v5637 = vpop.f32.mrb[0].mxu0
        %v5638 = vadd.f32 0.0, %v5637
        %v5639 = vpop.f32.mrb[0].mxu0
        %v5640 = vadd.f32 0.0, %v5639
        %5641 = vmatprep.mubr.bf16.mxu0 0
        %5642 = vmatmul.mubr.bf16.gmra.mrb[0].mxu0 %v5596
        %v5643 = vpop.f32.mrb[0].mxu0
        %v5644 = vadd.f32 0.0, %v5643
        %v5645 = vpop.f32.mrb[0].mxu0
        %v5646 = vadd.f32 0.0, %v5645
        %v5647 = vpop.f32.mrb[0].mxu0
        %v5648 = vadd.f32 0.0, %v5647
        %v5649 = vpop.f32.mrb[0].mxu0
        %v5650 = vadd.f32 0.0, %v5649
        %5651 = vdwg.mxu0
        %5652 = vmatprep.subr.bf16.mxu0 0
        %5653 = vmatpush1.bf16.msra.mxu0 %v5395
        %5654 = vmatprep.subr.bf16.mxu0 0
        %5655 = vmatpush1.bf16.msra.mxu0 %v5398
        %5656 = vmatprep.subr.bf16.mxu0 0
        %5657 = vmatpush1.bf16.msra.mxu0 %v5401
        %5658 = vmatprep.subr.bf16.mxu0 0
        %5659 = vmatpush1.bf16.msra.mxu0 %v5404
        %5660 = vmatprep.subr.bf16.mxu0 0
        %5661 = vmatpush1.bf16.msra.mxu0 %v5407
        %5662 = vmatprep.subr.bf16.mxu0 0
        %5663 = vmatpush1.bf16.msra.mxu0 %v5410
        %5664 = vmatprep.subr.bf16.mxu0 0
        %5665 = vmatpush1.bf16.msra.mxu0 %v5413
        %5666 = vmatprep.subr.bf16.mxu0 0
        %5667 = vmatpush1.bf16.msra.mxu0 %v5416
        %5668 = vmatprep.subr.bf16.mxu0 0
        %5669 = vmatpush1.bf16.msra.mxu0 0
        %5670 = vmatprep.subr.bf16.mxu0 0
        %5671 = vmatpush1.bf16.msra.mxu0 0
        %5672 = vmatprep.subr.bf16.mxu0 0
        %5673 = vmatpush1.bf16.msra.mxu0 0
        %5674 = vmatprep.subr.bf16.mxu0 0
        %5675 = vmatpush1.bf16.msra.mxu0 0
        %5676 = vmatprep.subr.bf16.mxu0 0
        %5677 = vmatpush1.bf16.msra.mxu0 0
        %5678 = vmatprep.subr.bf16.mxu0 0
        %5679 = vmatpush1.bf16.msra.mxu0 0
        %5680 = vmatprep.subr.bf16.mxu0 0
        %5681 = vmatpush1.bf16.msra.mxu0 0
        %5682 = vmatprep.subr.bf16.mxu0 0
        %5683 = vmatpush1.bf16.msra.mxu0 0
        %5684 = vmatprep.mubr.bf16.mxu0 0
        %5685 = vmatmul.mubr.bf16.gmra.mrb[0].mxu0 %v5595
        %v5686 = vpop.f32.mrb[0].mxu0
        %v5687 = vadd.f32 0.0, %v5686
        %v5688 = vpop.f32.mrb[0].mxu0
        %v5689 = vpop.f32.mrb[0].mxu0
        %v5690 = vadd.f32 0.0, %v5689
        %v5691 = vpop.f32.mrb[0].mxu0
        %5692 = vmatprep.mubr.bf16.mxu0 0
        %5693 = vmatmul.mubr.bf16.gmra.mrb[0].mxu0 %v5596
        %v5694 = vpop.f32.mrb[0].mxu0
        %v5695 = vadd.f32 0.0, %v5694
        %v5696 = vpop.f32.mrb[0].mxu0
        %v5697 = vpop.f32.mrb[0].mxu0
        %v5698 = vadd.f32 0.0, %v5697
        %v5699 = vpop.f32.mrb[0].mxu0
        %5700 = vdwg.mxu0
        %5701 = vrot.lane.b32.xlu0 %v5634, 18
        %v5702 = vpop.permute.xlu0 %5701
        %5703 = vrot.lane.b32.xlu0 %v5638, 18
        %v5704 = vpop.permute.xlu0 %5703
        %5705 = vrot.lane.b32.xlu0 %v5644, 18
        %v5706 = vpop.permute.xlu0 %5705
        %5707 = vrot.lane.b32.xlu0 %v5648, 18
        %v5708 = vpop.permute.xlu0 %5707
        %5709 = vrot.lane.b32.xlu0 %v5636, 18
        %v5710 = vpop.permute.xlu0 %5709
        %5711 = vrot.lane.b32.xlu0 %v5640, 18
        %v5712 = vpop.permute.xlu0 %5711
        %5713 = vrot.lane.b32.xlu0 %v5646, 18
        %v5714 = vpop.permute.xlu0 %5713
        %5715 = vrot.lane.b32.xlu0 %v5650, 18
        %v5716 = vpop.permute.xlu0 %5715
        %5717 = vrot.lane.b32.xlu0 %v5687, 18
        %v5718 = vpop.permute.xlu0 %5717
        %5719 = vrot.lane.b32.xlu0 %v5690, 18
        %v5720 = vpop.permute.xlu0 %5719
        %5721 = vrot.lane.b32.xlu0 %v5695, 18
        %v5722 = vpop.permute.xlu0 %5721
        %5723 = vrot.lane.b32.xlu0 %v5698, 18
        %v5724 = vpop.permute.xlu0 %5723
        %v5725 = vsel %vm776, %v5710, %v5718
        %v5726 = vsel %vm776, %v5712, %v5720
        %v5727 = vsel %vm776, %v5714, %v5722
        %v5728 = vsel %vm776, %v5716, %v5724
        %v5729 = vsel %vm776, %v5702, %v5710
        %v5730 = vsel %vm776, %v5704, %v5712
        %v5731 = vsel %vm776, %v5706, %v5714
        %v5732 = vsel %vm776, %v5708, %v5716
        %v5733 = vsel %vm776, %v5718, %v5702
        %v5734 = vsel %vm776, %v5720, %v5704
        %v5735 = vsel %vm776, %v5722, %v5706
        %v5736 = vsel %vm776, %v5724, %v5708
        %v5737 = vadd.f32 %v5571, %v5733
        %v5738 = vadd.f32 %v5572, %v5729
        %v5739 = vadd.f32 %v5573, %v5725
        %v5740 = vadd.f32 %v5574, %v5734
        %v5741 = vadd.f32 %v5575, %v5730
        %v5742 = vadd.f32 %v5576, %v5726
        %v5743 = vadd.f32 %v5577, %v5735
        %v5744 = vadd.f32 %v5578, %v5731
        %v5745 = vadd.f32 %v5579, %v5727
        %v5746 = vadd.f32 %v5580, %v5736
        %v5747 = vadd.f32 %v5581, %v5732
        %v5748 = vadd.f32 %v5582, %v5728
        %v5749 = vld [vmem:[%s8 + $0x20] sm:$0xf]
        %v5750 = vld [vmem:[%s8 + $0x24] sm:$0xf]
        %v5751 = vld [vmem:[%s8 + $0x28] sm:$0xf]
        %v5752 = vld [vmem:[%s8 + $0x2c] sm:$0xf]
        %v5757 = vunpack.c.l.b16 %v5749
        %v5758 = vunpack.c.l.b16 %v5750
        %v5759 = vunpack.c.l.b16 %v5751
        %v5760 = vunpack.c.l.b16 %v5752
        %v5761 = vpack.c.b16 %v5758, %v5757
        %v5762 = vpack.c.b16 %v5760, %v5759
        %5765 = vmatprep.subr.bf16.mxu0 %v5394
        %5766 = vmatpush1.bf16.msra.mxu0 %v5393
        %5767 = vmatprep.subr.bf16.mxu0 %v5397
        %5768 = vmatpush1.bf16.msra.mxu0 %v5396
        %5769 = vmatprep.subr.bf16.mxu0 %v5400
        %5770 = vmatpush1.bf16.msra.mxu0 %v5399
        %5771 = vmatprep.subr.bf16.mxu0 %v5403
        %5772 = vmatpush1.bf16.msra.mxu0 %v5402
        %5773 = vmatprep.subr.bf16.mxu0 %v5406
        %5774 = vmatpush1.bf16.msra.mxu0 %v5405
        %5775 = vmatprep.subr.bf16.mxu0 %v5409
        %5776 = vmatpush1.bf16.msra.mxu0 %v5408
        %5777 = vmatprep.subr.bf16.mxu0 %v5412
        %5778 = vmatpush1.bf16.msra.mxu0 %v5411
        %5779 = vmatprep.subr.bf16.mxu0 %v5415
        %5780 = vmatpush1.bf16.msra.mxu0 %v5414
        %5781 = vmatprep.subr.bf16.mxu0 0
        %5782 = vmatpush1.bf16.msra.mxu0 0
        %5783 = vmatprep.subr.bf16.mxu0 0
        %5784 = vmatpush1.bf16.msra.mxu0 0
        %5785 = vmatprep.subr.bf16.mxu0 0
        %5786 = vmatpush1.bf16.msra.mxu0 0
        %5787 = vmatprep.subr.bf16.mxu0 0
        %5788 = vmatpush1.bf16.msra.mxu0 0
        %5789 = vmatprep.subr.bf16.mxu0 0
        %5790 = vmatpush1.bf16.msra.mxu0 0
        %5791 = vmatprep.subr.bf16.mxu0 0
        %5792 = vmatpush1.bf16.msra.mxu0 0
        %5793 = vmatprep.subr.bf16.mxu0 0
        %5794 = vmatpush1.bf16.msra.mxu0 0
        %5795 = vmatprep.subr.bf16.mxu0 0
        %5796 = vmatpush1.bf16.msra.mxu0 0
        %5797 = vmatprep.mubr.bf16.mxu0 0
        %5798 = vmatmul.mubr.bf16.gmra.mrb[0].mxu0 %v5761
        %v5799 = vpop.f32.mrb[0].mxu0
        %v5800 = vadd.f32 0.0, %v5799
        %v5801 = vpop.f32.mrb[0].mxu0
        %v5802 = vadd.f32 0.0, %v5801
        %v5803 = vpop.f32.mrb[0].mxu0
        %v5804 = vadd.f32 0.0, %v5803
        %v5805 = vpop.f32.mrb[0].mxu0
        %v5806 = vadd.f32 0.0, %v5805
        %5807 = vmatprep.mubr.bf16.mxu0 0
        %5808 = vmatmul.mubr.bf16.gmra.mrb[0].mxu0 %v5762
        %v5809 = vpop.f32.mrb[0].mxu0
        %v5810 = vadd.f32 0.0, %v5809
        %v5811 = vpop.f32.mrb[0].mxu0
        %v5812 = vadd.f32 0.0, %v5811
        %v5813 = vpop.f32.mrb[0].mxu0
        %v5814 = vadd.f32 0.0, %v5813
        %v5815 = vpop.f32.mrb[0].mxu0
        %v5816 = vadd.f32 0.0, %v5815
        %5817 = vdwg.mxu0
        %5818 = vmatprep.subr.bf16.mxu0 0
        %5819 = vmatpush1.bf16.msra.mxu0 %v5395
        %5820 = vmatprep.subr.bf16.mxu0 0
        %5821 = vmatpush1.bf16.msra.mxu0 %v5398
        %5822 = vmatprep.subr.bf16.mxu0 0
        %5823 = vmatpush1.bf16.msra.mxu0 %v5401
        %5824 = vmatprep.subr.bf16.mxu0 0
        %5825 = vmatpush1.bf16.msra.mxu0 %v5404
        %5826 = vmatprep.subr.bf16.mxu0 0
        %5827 = vmatpush1.bf16.msra.mxu0 %v5407
        %5828 = vmatprep.subr.bf16.mxu0 0
        %5829 = vmatpush1.bf16.msra.mxu0 %v5410
        %5830 = vmatprep.subr.bf16.mxu0 0
        %5831 = vmatpush1.bf16.msra.mxu0 %v5413
        %5832 = vmatprep.subr.bf16.mxu0 0
        %5833 = vmatpush1.bf16.msra.mxu0 %v5416
        %5834 = vmatprep.subr.bf16.mxu0 0
        %5835 = vmatpush1.bf16.msra.mxu0 0
        %5836 = vmatprep.subr.bf16.mxu0 0
        %5837 = vmatpush1.bf16.msra.mxu0 0
        %5838 = vmatprep.subr.bf16.mxu0 0
        %5839 = vmatpush1.bf16.msra.mxu0 0
        %5840 = vmatprep.subr.bf16.mxu0 0
        %5841 = vmatpush1.bf16.msra.mxu0 0
        %5842 = vmatprep.subr.bf16.mxu0 0
        %5843 = vmatpush1.bf16.msra.mxu0 0
        %5844 = vmatprep.subr.bf16.mxu0 0
        %5845 = vmatpush1.bf16.msra.mxu0 0
        %5846 = vmatprep.subr.bf16.mxu0 0
        %5847 = vmatpush1.bf16.msra.mxu0 0
        %5848 = vmatprep.subr.bf16.mxu0 0
        %5849 = vmatpush1.bf16.msra.mxu0 0
        %5850 = vmatprep.mubr.bf16.mxu0 0
        %5851 = vmatmul.mubr.bf16.gmra.mrb[0].mxu0 %v5761
        %v5852 = vpop.f32.mrb[0].mxu0
        %v5853 = vadd.f32 0.0, %v5852
        %v5854 = vpop.f32.mrb[0].mxu0
        %v5855 = vpop.f32.mrb[0].mxu0
        %v5856 = vadd.f32 0.0, %v5855
        %v5857 = vpop.f32.mrb[0].mxu0
        %5858 = vmatprep.mubr.bf16.mxu0 0
        %5859 = vmatmul.mubr.bf16.gmra.mrb[0].mxu0 %v5762
        %v5860 = vpop.f32.mrb[0].mxu0
        %v5861 = vadd.f32 0.0, %v5860
        %v5862 = vpop.f32.mrb[0].mxu0
        %v5863 = vpop.f32.mrb[0].mxu0
        %v5864 = vadd.f32 0.0, %v5863
        %v5865 = vpop.f32.mrb[0].mxu0
        %5866 = vdwg.mxu0
        %5867 = vrot.lane.b32.xlu0 %v5800, 17
        %v5868 = vpop.permute.xlu0 %5867
        %5869 = vrot.lane.b32.xlu0 %v5804, 17
        %v5870 = vpop.permute.xlu0 %5869
        %5871 = vrot.lane.b32.xlu0 %v5810, 17
        %v5872 = vpop.permute.xlu0 %5871
        %5873 = vrot.lane.b32.xlu0 %v5814, 17
        %v5874 = vpop.permute.xlu0 %5873
        %5875 = vrot.lane.b32.xlu0 %v5802, 17
        %v5876 = vpop.permute.xlu0 %5875
        %5877 = vrot.lane.b32.xlu0 %v5806, 17
        %v5878 = vpop.permute.xlu0 %5877
        %5879 = vrot.lane.b32.xlu0 %v5812, 17
        %v5880 = vpop.permute.xlu0 %5879
        %5881 = vrot.lane.b32.xlu0 %v5816, 17
        %v5882 = vpop.permute.xlu0 %5881
        %5883 = vrot.lane.b32.xlu0 %v5853, 17
        %v5884 = vpop.permute.xlu0 %5883
        %5885 = vrot.lane.b32.xlu0 %v5856, 17
        %v5886 = vpop.permute.xlu0 %5885
        %5887 = vrot.lane.b32.xlu0 %v5861, 17
        %v5888 = vpop.permute.xlu0 %5887
        %5889 = vrot.lane.b32.xlu0 %v5864, 17
        %v5890 = vpop.permute.xlu0 %5889
        %v5891 = vsel %vm947, %v5876, %v5884
        %v5892 = vsel %vm947, %v5878, %v5886
        %v5893 = vsel %vm947, %v5880, %v5888
        %v5894 = vsel %vm947, %v5882, %v5890
        %v5895 = vsel %vm947, %v5868, %v5876
        %v5896 = vsel %vm947, %v5870, %v5878
        %v5897 = vsel %vm947, %v5872, %v5880
        %v5898 = vsel %vm947, %v5874, %v5882
        %v5899 = vsel %vm947, %v5884, %v5868
        %v5900 = vsel %vm947, %v5886, %v5870
        %v5901 = vsel %vm947, %v5888, %v5872
        %v5902 = vsel %vm947, %v5890, %v5874
        %v5903 = vadd.f32 %v5737, %v5899
        %v5904 = vadd.f32 %v5738, %v5895
        %v5905 = vadd.f32 %v5739, %v5891
        %v5906 = vadd.f32 %v5740, %v5900
        %v5907 = vadd.f32 %v5741, %v5896
        %v5908 = vadd.f32 %v5742, %v5892
        %v5909 = vadd.f32 %v5743, %v5901
        %v5910 = vadd.f32 %v5744, %v5897
        %v5911 = vadd.f32 %v5745, %v5893
        %v5912 = vadd.f32 %v5746, %v5902
        %v5913 = vadd.f32 %v5747, %v5898
        %v5914 = vadd.f32 %v5748, %v5894
        %v5915 = vld [vmem:[%s8 + $0x30] sm:$0xf]
        %v5916 = vld [vmem:[%s8 + $0x34] sm:$0xf]
        %v5917 = vld [vmem:[%s8 + $0x38] sm:$0xf]
        %v5918 = vld [vmem:[%s8 + $0x3c] sm:$0xf]
        %v5923 = vunpack.c.l.b16 %v5915
        %v5924 = vunpack.c.l.b16 %v5916
        %v5925 = vunpack.c.l.b16 %v5917
        %v5926 = vunpack.c.l.b16 %v5918
        %v5927 = vpack.c.b16 %v5924, %v5923
        %v5928 = vpack.c.b16 %v5926, %v5925
        %5931 = vmatprep.subr.bf16.mxu0 %v5394
        %5932 = vmatpush1.bf16.msra.mxu0 %v5393
        %5933 = vmatprep.subr.bf16.mxu0 %v5397
        %5934 = vmatpush1.bf16.msra.mxu0 %v5396
        %5935 = vmatprep.subr.bf16.mxu0 %v5400
        %5936 = vmatpush1.bf16.msra.mxu0 %v5399
        %5937 = vmatprep.subr.bf16.mxu0 %v5403
        %5938 = vmatpush1.bf16.msra.mxu0 %v5402
        %5939 = vmatprep.subr.bf16.mxu0 %v5406
        %5940 = vmatpush1.bf16.msra.mxu0 %v5405
        %5941 = vmatprep.subr.bf16.mxu0 %v5409
        %5942 = vmatpush1.bf16.msra.mxu0 %v5408
        %5943 = vmatprep.subr.bf16.mxu0 %v5412
        %5944 = vmatpush1.bf16.msra.mxu0 %v5411
        %5945 = vmatprep.subr.bf16.mxu0 %v5415
        %5946 = vmatpush1.bf16.msra.mxu0 %v5414
        %5947 = vmatprep.subr.bf16.mxu0 0
        %5948 = vmatpush1.bf16.msra.mxu0 0
        %5949 = vmatprep.subr.bf16.mxu0 0
        %5950 = vmatpush1.bf16.msra.mxu0 0
        %5951 = vmatprep.subr.bf16.mxu0 0
        %5952 = vmatpush1.bf16.msra.mxu0 0
        %5953 = vmatprep.subr.bf16.mxu0 0
        %5954 = vmatpush1.bf16.msra.mxu0 0
        %5955 = vmatprep.subr.bf16.mxu0 0
        %5956 = vmatpush1.bf16.msra.mxu0 0
        %5957 = vmatprep.subr.bf16.mxu0 0
        %5958 = vmatpush1.bf16.msra.mxu0 0
        %5959 = vmatprep.subr.bf16.mxu0 0
        %5960 = vmatpush1.bf16.msra.mxu0 0
        %5961 = vmatprep.subr.bf16.mxu0 0
        %5962 = vmatpush1.bf16.msra.mxu0 0
        %5963 = vmatprep.mubr.bf16.mxu0 0
        %5964 = vmatmul.mubr.bf16.gmra.mrb[0].mxu0 %v5927
        %v5965 = vpop.f32.mrb[0].mxu0
        %v5966 = vadd.f32 0.0, %v5965
        %v5967 = vpop.f32.mrb[0].mxu0
        %v5968 = vadd.f32 0.0, %v5967
        %v5969 = vpop.f32.mrb[0].mxu0
        %v5970 = vadd.f32 0.0, %v5969
        %v5971 = vpop.f32.mrb[0].mxu0
        %v5972 = vadd.f32 0.0, %v5971
        %5973 = vmatprep.mubr.bf16.mxu0 0
        %5974 = vmatmul.mubr.bf16.gmra.mrb[0].mxu0 %v5928
        %v5975 = vpop.f32.mrb[0].mxu0
        %v5976 = vadd.f32 0.0, %v5975
        %v5977 = vpop.f32.mrb[0].mxu0
        %v5978 = vadd.f32 0.0, %v5977
        %v5979 = vpop.f32.mrb[0].mxu0
        %v5980 = vadd.f32 0.0, %v5979
        %v5981 = vpop.f32.mrb[0].mxu0
        %v5982 = vadd.f32 0.0, %v5981
        %5983 = vdwg.mxu0
        %5984 = vmatprep.subr.bf16.mxu0 0
        %5985 = vmatpush1.bf16.msra.mxu0 %v5395
        %5986 = vmatprep.subr.bf16.mxu0 0
        %5987 = vmatpush1.bf16.msra.mxu0 %v5398
        %5988 = vmatprep.subr.bf16.mxu0 0
        %5989 = vmatpush1.bf16.msra.mxu0 %v5401
        %5990 = vmatprep.subr.bf16.mxu0 0
        %5991 = vmatpush1.bf16.msra.mxu0 %v5404
        %5992 = vmatprep.subr.bf16.mxu0 0
        %5993 = vmatpush1.bf16.msra.mxu0 %v5407
        %5994 = vmatprep.subr.bf16.mxu0 0
        %5995 = vmatpush1.bf16.msra.mxu0 %v5410
        %5996 = vmatprep.subr.bf16.mxu0 0
        %5997 = vmatpush1.bf16.msra.mxu0 %v5413
        %5998 = vmatprep.subr.bf16.mxu0 0
        %5999 = vmatpush1.bf16.msra.mxu0 %v5416
        %6000 = vmatprep.subr.bf16.mxu0 0
        %6001 = vmatpush1.bf16.msra.mxu0 0
        %6002 = vmatprep.subr.bf16.mxu0 0
        %6003 = vmatpush1.bf16.msra.mxu0 0
        %6004 = vmatprep.subr.bf16.mxu0 0
        %6005 = vmatpush1.bf16.msra.mxu0 0
        %6006 = vmatprep.subr.bf16.mxu0 0
        %6007 = vmatpush1.bf16.msra.mxu0 0
        %6008 = vmatprep.subr.bf16.mxu0 0
        %6009 = vmatpush1.bf16.msra.mxu0 0
        %6010 = vmatprep.subr.bf16.mxu0 0
        %6011 = vmatpush1.bf16.msra.mxu0 0
        %6012 = vmatprep.subr.bf16.mxu0 0
        %6013 = vmatpush1.bf16.msra.mxu0 0
        %6014 = vmatprep.subr.bf16.mxu0 0
        %6015 = vmatpush1.bf16.msra.mxu0 0
        %6016 = vmatprep.mubr.bf16.mxu0 0
        %6017 = vmatmul.mubr.bf16.gmra.mrb[0].mxu0 %v5927
        %v6018 = vpop.f32.mrb[0].mxu0
        %v6019 = vadd.f32 0.0, %v6018
        %v6020 = vpop.f32.mrb[0].mxu0
        %v6021 = vpop.f32.mrb[0].mxu0
        %v6022 = vadd.f32 0.0, %v6021
        %v6023 = vpop.f32.mrb[0].mxu0
        %6024 = vmatprep.mubr.bf16.mxu0 0
        %6025 = vmatmul.mubr.bf16.gmra.mrb[0].mxu0 %v5928
        %v6026 = vpop.f32.mrb[0].mxu0
        %v6027 = vadd.f32 0.0, %v6026
        %v6028 = vpop.f32.mrb[0].mxu0
        %v6029 = vpop.f32.mrb[0].mxu0
        %v6030 = vadd.f32 0.0, %v6029
        %v6031 = vpop.f32.mrb[0].mxu0
        %6032 = vdwg.mxu0
        %6033 = vrot.lane.b32.xlu0 %v5966, 1
        %v6034 = vpop.permute.xlu0 %6033
        %6035 = vrot.lane.b32.xlu0 %v5970, 1
        %v6036 = vpop.permute.xlu0 %6035
        %6037 = vrot.lane.b32.xlu0 %v5976, 1
        %v6038 = vpop.permute.xlu0 %6037
        %6039 = vrot.lane.b32.xlu0 %v5980, 1
        %v6040 = vpop.permute.xlu0 %6039
        %6041 = vrot.lane.b32.xlu0 %v5968, 1
        %v6042 = vpop.permute.xlu0 %6041
        %6043 = vrot.lane.b32.xlu0 %v5972, 1
        %v6044 = vpop.permute.xlu0 %6043
        %6045 = vrot.lane.b32.xlu0 %v5978, 1
        %v6046 = vpop.permute.xlu0 %6045
        %6047 = vrot.lane.b32.xlu0 %v5982, 1
        %v6048 = vpop.permute.xlu0 %6047
        %6049 = vrot.lane.b32.xlu0 %v6019, 1
        %v6050 = vpop.permute.xlu0 %6049
        %6051 = vrot.lane.b32.xlu0 %v6022, 1
        %v6052 = vpop.permute.xlu0 %6051
        %6053 = vrot.lane.b32.xlu0 %v6027, 1
        %v6054 = vpop.permute.xlu0 %6053
        %6055 = vrot.lane.b32.xlu0 %v6030, 1
        %v6056 = vpop.permute.xlu0 %6055
        %v6057 = vsel %vm1118, %v6042, %v6050
        %v6058 = vsel %vm1118, %v6044, %v6052
        %v6059 = vsel %vm1118, %v6046, %v6054
        %v6060 = vsel %vm1118, %v6048, %v6056
        %v6061 = vsel %vm1118, %v6034, %v6042
        %v6062 = vsel %vm1118, %v6036, %v6044
        %v6063 = vsel %vm1118, %v6038, %v6046
        %v6064 = vsel %vm1118, %v6040, %v6048
        %v6065 = vsel %vm1118, %v6050, %v6034
        %v6066 = vsel %vm1118, %v6052, %v6036
        %v6067 = vsel %vm1118, %v6054, %v6038
        %v6068 = vsel %vm1118, %v6056, %v6040
        %v6069 = vadd.f32 %v5903, %v6065
        %v6070 = vadd.f32 %v5904, %v6061
        %v6071 = vadd.f32 %v5905, %v6057
        %v6072 = vadd.f32 %v5906, %v6066
        %v6073 = vadd.f32 %v5907, %v6062
        %v6074 = vadd.f32 %v5908, %v6058
        %v6075 = vadd.f32 %v5909, %v6067
        %v6076 = vadd.f32 %v5910, %v6063
        %v6077 = vadd.f32 %v5911, %v6059
        %v6078 = vadd.f32 %v5912, %v6068
        %v6079 = vadd.f32 %v5913, %v6064
        %v6080 = vadd.f32 %v5914, %v6060
        %v6081 = vld [vmem:[%s8 + $0x40] sm:$0xf]
        %v6082 = vld [vmem:[%s8 + $0x44] sm:$0xf]
        %v6083 = vld [vmem:[%s8 + $0x48] sm:$0xf]
        %v6084 = vld [vmem:[%s8 + $0x4c] sm:$0xf]
        %v6089 = vunpack.c.l.b16 %v6081
        %v6090 = vunpack.c.l.b16 %v6082
        %v6091 = vunpack.c.l.b16 %v6083
        %v6092 = vunpack.c.l.b16 %v6084
        %v6093 = vpack.c.b16 %v6090, %v6089
        %v6094 = vpack.c.b16 %v6092, %v6091
        %6097 = vmatprep.subr.bf16.mxu0 %v5394
        %6098 = vmatpush1.bf16.msra.mxu0 %v5393
        %6099 = vmatprep.subr.bf16.mxu0 %v5397
        %6100 = vmatpush1.bf16.msra.mxu0 %v5396
        %6101 = vmatprep.subr.bf16.mxu0 %v5400
        %6102 = vmatpush1.bf16.msra.mxu0 %v5399
        %6103 = vmatprep.subr.bf16.mxu0 %v5403
        %6104 = vmatpush1.bf16.msra.mxu0 %v5402
        %6105 = vmatprep.subr.bf16.mxu0 %v5406
        %6106 = vmatpush1.bf16.msra.mxu0 %v5405
        %6107 = vmatprep.subr.bf16.mxu0 %v5409
        %6108 = vmatpush1.bf16.msra.mxu0 %v5408
        %6109 = vmatprep.subr.bf16.mxu0 %v5412
        %6110 = vmatpush1.bf16.msra.mxu0 %v5411
        %6111 = vmatprep.subr.bf16.mxu0 %v5415
        %6112 = vmatpush1.bf16.msra.mxu0 %v5414
        %6113 = vmatprep.subr.bf16.mxu0 0
        %6114 = vmatpush1.bf16.msra.mxu0 0
        %6115 = vmatprep.subr.bf16.mxu0 0
        %6116 = vmatpush1.bf16.msra.mxu0 0
        %6117 = vmatprep.subr.bf16.mxu0 0
        %6118 = vmatpush1.bf16.msra.mxu0 0
        %6119 = vmatprep.subr.bf16.mxu0 0
        %6120 = vmatpush1.bf16.msra.mxu0 0
        %6121 = vmatprep.subr.bf16.mxu0 0
        %6122 = vmatpush1.bf16.msra.mxu0 0
        %6123 = vmatprep.subr.bf16.mxu0 0
        %6124 = vmatpush1.bf16.msra.mxu0 0
        %6125 = vmatprep.subr.bf16.mxu0 0
        %6126 = vmatpush1.bf16.msra.mxu0 0
        %6127 = vmatprep.subr.bf16.mxu0 0
        %6128 = vmatpush1.bf16.msra.mxu0 0
        %6129 = vmatprep.mubr.bf16.mxu0 0
        %6130 = vmatmul.mubr.bf16.gmra.mrb[0].mxu0 %v6093
        %v6131 = vpop.f32.mrb[0].mxu0
        %v6132 = vadd.f32 0.0, %v6131
        %v6133 = vpop.f32.mrb[0].mxu0
        %v6134 = vadd.f32 0.0, %v6133
        %v6135 = vpop.f32.mrb[0].mxu0
        %v6136 = vadd.f32 0.0, %v6135
        %v6137 = vpop.f32.mrb[0].mxu0
        %v6138 = vadd.f32 0.0, %v6137
        %6139 = vmatprep.mubr.bf16.mxu0 0
        %6140 = vmatmul.mubr.bf16.gmra.mrb[0].mxu0 %v6094
        %v6141 = vpop.f32.mrb[0].mxu0
        %v6142 = vadd.f32 0.0, %v6141
        %v6143 = vpop.f32.mrb[0].mxu0
        %v6144 = vadd.f32 0.0, %v6143
        %v6145 = vpop.f32.mrb[0].mxu0
        %v6146 = vadd.f32 0.0, %v6145
        %v6147 = vpop.f32.mrb[0].mxu0
        %v6148 = vadd.f32 0.0, %v6147
        %6149 = vdwg.mxu0
        %6150 = vmatprep.subr.bf16.mxu0 0
        %6151 = vmatpush1.bf16.msra.mxu0 %v5395
        %6152 = vmatprep.subr.bf16.mxu0 0
        %6153 = vmatpush1.bf16.msra.mxu0 %v5398
        %6154 = vmatprep.subr.bf16.mxu0 0
        %6155 = vmatpush1.bf16.msra.mxu0 %v5401
        %6156 = vmatprep.subr.bf16.mxu0 0
        %6157 = vmatpush1.bf16.msra.mxu0 %v5404
        %6158 = vmatprep.subr.bf16.mxu0 0
        %6159 = vmatpush1.bf16.msra.mxu0 %v5407
        %6160 = vmatprep.subr.bf16.mxu0 0
        %6161 = vmatpush1.bf16.msra.mxu0 %v5410
        %6162 = vmatprep.subr.bf16.mxu0 0
        %6163 = vmatpush1.bf16.msra.mxu0 %v5413
        %6164 = vmatprep.subr.bf16.mxu0 0
        %6165 = vmatpush1.bf16.msra.mxu0 %v5416
        %6166 = vmatprep.subr.bf16.mxu0 0
        %6167 = vmatpush1.bf16.msra.mxu0 0
        %6168 = vmatprep.subr.bf16.mxu0 0
        %6169 = vmatpush1.bf16.msra.mxu0 0
        %6170 = vmatprep.subr.bf16.mxu0 0
        %6171 = vmatpush1.bf16.msra.mxu0 0
        %6172 = vmatprep.subr.bf16.mxu0 0
        %6173 = vmatpush1.bf16.msra.mxu0 0
        %6174 = vmatprep.subr.bf16.mxu0 0
        %6175 = vmatpush1.bf16.msra.mxu0 0
        %6176 = vmatprep.subr.bf16.mxu0 0
        %6177 = vmatpush1.bf16.msra.mxu0 0
        %6178 = vmatprep.subr.bf16.mxu0 0
        %6179 = vmatpush1.bf16.msra.mxu0 0
        %6180 = vmatprep.subr.bf16.mxu0 0
        %6181 = vmatpush1.bf16.msra.mxu0 0
        %6182 = vmatprep.mubr.bf16.mxu0 0
        %6183 = vmatmul.mubr.bf16.gmra.mrb[0].mxu0 %v6093
        %v6184 = vpop.f32.mrb[0].mxu0
        %v6185 = vadd.f32 0.0, %v6184
        %v6186 = vpop.f32.mrb[0].mxu0
        %v6187 = vpop.f32.mrb[0].mxu0
        %v6188 = vadd.f32 0.0, %v6187
        %v6189 = vpop.f32.mrb[0].mxu0
        %6190 = vmatprep.mubr.bf16.mxu0 0
        %6191 = vmatmul.mubr.bf16.gmra.mrb[0].mxu0 %v6094
        %v6192 = vpop.f32.mrb[0].mxu0
        %v6193 = vadd.f32 0.0, %v6192
        %v6194 = vpop.f32.mrb[0].mxu0
        %v6195 = vpop.f32.mrb[0].mxu0
        %v6196 = vadd.f32 0.0, %v6195
        %v6197 = vpop.f32.mrb[0].mxu0
        %6198 = vdwg.mxu0
        %v6199 = vadd.f32 %v6069, %v6132
        %v6200 = vadd.f32 %v6070, %v6134
        %v6201 = vadd.f32 %v6071, %v6185
        %v6202 = vadd.f32 %v6072, %v6136
        %v6203 = vadd.f32 %v6073, %v6138
        %v6204 = vadd.f32 %v6074, %v6188
        %v6205 = vadd.f32 %v6075, %v6142
        %v6206 = vadd.f32 %v6076, %v6144
        %v6207 = vadd.f32 %v6077, %v6193
        %v6208 = vadd.f32 %v6078, %v6146
        %v6209 = vadd.f32 %v6079, %v6148
        %v6210 = vadd.f32 %v6080, %v6196
        %v6211 = vld [vmem:[%s8 + $0x50] sm:$0xf]
        %v6212 = vld [vmem:[%s8 + $0x54] sm:$0xf]
        %v6213 = vld [vmem:[%s8 + $0x58] sm:$0xf]
        %v6214 = vld [vmem:[%s8 + $0x5c] sm:$0xf]
        %v6219 = vunpack.c.l.b16 %v6211
        %v6220 = vunpack.c.l.b16 %v6212
        %v6221 = vunpack.c.l.b16 %v6213
        %v6222 = vunpack.c.l.b16 %v6214
        %v6223 = vpack.c.b16 %v6220, %v6219
        %v6224 = vpack.c.b16 %v6222, %v6221
        %6227 = vmatprep.subr.bf16.mxu0 %v5394
        %6228 = vmatpush1.bf16.msra.mxu0 %v5393
        %6229 = vmatprep.subr.bf16.mxu0 %v5397
        %6230 = vmatpush1.bf16.msra.mxu0 %v5396
        %6231 = vmatprep.subr.bf16.mxu0 %v5400
        %6232 = vmatpush1.bf16.msra.mxu0 %v5399
        %6233 = vmatprep.subr.bf16.mxu0 %v5403
        %6234 = vmatpush1.bf16.msra.mxu0 %v5402
        %6235 = vmatprep.subr.bf16.mxu0 %v5406
        %6236 = vmatpush1.bf16.msra.mxu0 %v5405
        %6237 = vmatprep.subr.bf16.mxu0 %v5409
        %6238 = vmatpush1.bf16.msra.mxu0 %v5408
        %6239 = vmatprep.subr.bf16.mxu0 %v5412
        %6240 = vmatpush1.bf16.msra.mxu0 %v5411
        %6241 = vmatprep.subr.bf16.mxu0 %v5415
        %6242 = vmatpush1.bf16.msra.mxu0 %v5414
        %6243 = vmatprep.subr.bf16.mxu0 0
        %6244 = vmatpush1.bf16.msra.mxu0 0
        %6245 = vmatprep.subr.bf16.mxu0 0
        %6246 = vmatpush1.bf16.msra.mxu0 0
        %6247 = vmatprep.subr.bf16.mxu0 0
        %6248 = vmatpush1.bf16.msra.mxu0 0
        %6249 = vmatprep.subr.bf16.mxu0 0
        %6250 = vmatpush1.bf16.msra.mxu0 0
        %6251 = vmatprep.subr.bf16.mxu0 0
        %6252 = vmatpush1.bf16.msra.mxu0 0
        %6253 = vmatprep.subr.bf16.mxu0 0
        %6254 = vmatpush1.bf16.msra.mxu0 0
        %6255 = vmatprep.subr.bf16.mxu0 0
        %6256 = vmatpush1.bf16.msra.mxu0 0
        %6257 = vmatprep.subr.bf16.mxu0 0
        %6258 = vmatpush1.bf16.msra.mxu0 0
        %6259 = vmatprep.mubr.bf16.mxu0 0
        %6260 = vmatmul.mubr.bf16.gmra.mrb[0].mxu0 %v6223
        %v6261 = vpop.f32.mrb[0].mxu0
        %v6262 = vadd.f32 0.0, %v6261
        %v6263 = vpop.f32.mrb[0].mxu0
        %v6264 = vadd.f32 0.0, %v6263
        %v6265 = vpop.f32.mrb[0].mxu0
        %v6266 = vadd.f32 0.0, %v6265
        %v6267 = vpop.f32.mrb[0].mxu0
        %v6268 = vadd.f32 0.0, %v6267
        %6269 = vmatprep.mubr.bf16.mxu0 0
        %6270 = vmatmul.mubr.bf16.gmra.mrb[0].mxu0 %v6224
        %v6271 = vpop.f32.mrb[0].mxu0
        %v6272 = vadd.f32 0.0, %v6271
        %v6273 = vpop.f32.mrb[0].mxu0
        %v6274 = vadd.f32 0.0, %v6273
        %v6275 = vpop.f32.mrb[0].mxu0
        %v6276 = vadd.f32 0.0, %v6275
        %v6277 = vpop.f32.mrb[0].mxu0
        %v6278 = vadd.f32 0.0, %v6277
        %6279 = vdwg.mxu0
        %6280 = vmatprep.subr.bf16.mxu0 0
        %6281 = vmatpush1.bf16.msra.mxu0 %v5395
        %6282 = vmatprep.subr.bf16.mxu0 0
        %6283 = vmatpush1.bf16.msra.mxu0 %v5398
        %6284 = vmatprep.subr.bf16.mxu0 0
        %6285 = vmatpush1.bf16.msra.mxu0 %v5401
        %6286 = vmatprep.subr.bf16.mxu0 0
        %6287 = vmatpush1.bf16.msra.mxu0 %v5404
        %6288 = vmatprep.subr.bf16.mxu0 0
        %6289 = vmatpush1.bf16.msra.mxu0 %v5407
        %6290 = vmatprep.subr.bf16.mxu0 0
        %6291 = vmatpush1.bf16.msra.mxu0 %v5410
        %6292 = vmatprep.subr.bf16.mxu0 0
        %6293 = vmatpush1.bf16.msra.mxu0 %v5413
        %6294 = vmatprep.subr.bf16.mxu0 0
        %6295 = vmatpush1.bf16.msra.mxu0 %v5416
        %6296 = vmatprep.subr.bf16.mxu0 0
        %6297 = vmatpush1.bf16.msra.mxu0 0
        %6298 = vmatprep.subr.bf16.mxu0 0
        %6299 = vmatpush1.bf16.msra.mxu0 0
        %6300 = vmatprep.subr.bf16.mxu0 0
        %6301 = vmatpush1.bf16.msra.mxu0 0
        %6302 = vmatprep.subr.bf16.mxu0 0
        %6303 = vmatpush1.bf16.msra.mxu0 0
        %6304 = vmatprep.subr.bf16.mxu0 0
        %6305 = vmatpush1.bf16.msra.mxu0 0
        %6306 = vmatprep.subr.bf16.mxu0 0
        %6307 = vmatpush1.bf16.msra.mxu0 0
        %6308 = vmatprep.subr.bf16.mxu0 0
        %6309 = vmatpush1.bf16.msra.mxu0 0
        %6310 = vmatprep.subr.bf16.mxu0 0
        %6311 = vmatpush1.bf16.msra.mxu0 0
        %6312 = vmatprep.mubr.bf16.mxu0 0
        %6313 = vmatmul.mubr.bf16.gmra.mrb[0].mxu0 %v6223
        %v6314 = vpop.f32.mrb[0].mxu0
        %v6315 = vadd.f32 0.0, %v6314
        %v6316 = vpop.f32.mrb[0].mxu0
        %v6317 = vpop.f32.mrb[0].mxu0
        %v6318 = vadd.f32 0.0, %v6317
        %v6319 = vpop.f32.mrb[0].mxu0
        %6320 = vmatprep.mubr.bf16.mxu0 0
        %6321 = vmatmul.mubr.bf16.gmra.mrb[0].mxu0 %v6224
        %v6322 = vpop.f32.mrb[0].mxu0
        %v6323 = vadd.f32 0.0, %v6322
        %v6324 = vpop.f32.mrb[0].mxu0
        %v6325 = vpop.f32.mrb[0].mxu0
        %v6326 = vadd.f32 0.0, %v6325
        %v6327 = vpop.f32.mrb[0].mxu0
        %6328 = vdwg.mxu0
        %6329 = vrot.lane.b32.xlu0 %v6262, 127
        %v6330 = vpop.permute.xlu0 %6329
        %6331 = vrot.lane.b32.xlu0 %v6266, 127
        %v6332 = vpop.permute.xlu0 %6331
        %6333 = vrot.lane.b32.xlu0 %v6272, 127
        %v6334 = vpop.permute.xlu0 %6333
        %6335 = vrot.lane.b32.xlu0 %v6276, 127
        %v6336 = vpop.permute.xlu0 %6335
        %6337 = vrot.lane.b32.xlu0 %v6264, 127
        %v6338 = vpop.permute.xlu0 %6337
        %6339 = vrot.lane.b32.xlu0 %v6268, 127
        %v6340 = vpop.permute.xlu0 %6339
        %6341 = vrot.lane.b32.xlu0 %v6274, 127
        %v6342 = vpop.permute.xlu0 %6341
        %6343 = vrot.lane.b32.xlu0 %v6278, 127
        %v6344 = vpop.permute.xlu0 %6343
        %6345 = vrot.lane.b32.xlu0 %v6315, 127
        %v6346 = vpop.permute.xlu0 %6345
        %6347 = vrot.lane.b32.xlu0 %v6318, 127
        %v6348 = vpop.permute.xlu0 %6347
        %6349 = vrot.lane.b32.xlu0 %v6323, 127
        %v6350 = vpop.permute.xlu0 %6349
        %6351 = vrot.lane.b32.xlu0 %v6326, 127
        %v6352 = vpop.permute.xlu0 %6351
        %v6353 = vsel %vm1423, %v6338, %v6346
        %v6354 = vsel %vm1423, %v6340, %v6348
        %v6355 = vsel %vm1423, %v6342, %v6350
        %v6356 = vsel %vm1423, %v6344, %v6352
        %v6357 = vsel %vm1423, %v6330, %v6338
        %v6358 = vsel %vm1423, %v6332, %v6340
        %v6359 = vsel %vm1423, %v6334, %v6342
        %v6360 = vsel %vm1423, %v6336, %v6344
        %v6361 = vsel %vm1423, %v6346, %v6330
        %v6362 = vsel %vm1423, %v6348, %v6332
        %v6363 = vsel %vm1423, %v6350, %v6334
        %v6364 = vsel %vm1423, %v6352, %v6336
        %v6365 = vadd.f32 %v6199, %v6357
        %v6366 = vadd.f32 %v6200, %v6353
        %v6367 = vadd.f32 %v6201, %v6361
        %v6368 = vadd.f32 %v6202, %v6358
        %v6369 = vadd.f32 %v6203, %v6354
        %v6370 = vadd.f32 %v6204, %v6362
        %v6371 = vadd.f32 %v6205, %v6359
        %v6372 = vadd.f32 %v6206, %v6355
        %v6373 = vadd.f32 %v6207, %v6363
        %v6374 = vadd.f32 %v6208, %v6360
        %v6375 = vadd.f32 %v6209, %v6356
        %v6376 = vadd.f32 %v6210, %v6364
        %v6377 = vld [vmem:[%s8 + $0x60] sm:$0xf]
        %v6378 = vld [vmem:[%s8 + $0x64] sm:$0xf]
        %v6379 = vld [vmem:[%s8 + $0x68] sm:$0xf]
        %v6380 = vld [vmem:[%s8 + $0x6c] sm:$0xf]
        %v6385 = vunpack.c.l.b16 %v6377
        %v6386 = vunpack.c.l.b16 %v6378
        %v6387 = vunpack.c.l.b16 %v6379
        %v6388 = vunpack.c.l.b16 %v6380
        %v6389 = vpack.c.b16 %v6386, %v6385
        %v6390 = vpack.c.b16 %v6388, %v6387
        %6393 = vmatprep.subr.bf16.mxu0 %v5394
        %6394 = vmatpush1.bf16.msra.mxu0 %v5393
        %6395 = vmatprep.subr.bf16.mxu0 %v5397
        %6396 = vmatpush1.bf16.msra.mxu0 %v5396
        %6397 = vmatprep.subr.bf16.mxu0 %v5400
        %6398 = vmatpush1.bf16.msra.mxu0 %v5399
        %6399 = vmatprep.subr.bf16.mxu0 %v5403
        %6400 = vmatpush1.bf16.msra.mxu0 %v5402
        %6401 = vmatprep.subr.bf16.mxu0 %v5406
        %6402 = vmatpush1.bf16.msra.mxu0 %v5405
        %6403 = vmatprep.subr.bf16.mxu0 %v5409
        %6404 = vmatpush1.bf16.msra.mxu0 %v5408
        %6405 = vmatprep.subr.bf16.mxu0 %v5412
        %6406 = vmatpush1.bf16.msra.mxu0 %v5411
        %6407 = vmatprep.subr.bf16.mxu0 %v5415
        %6408 = vmatpush1.bf16.msra.mxu0 %v5414
        %6409 = vmatprep.subr.bf16.mxu0 0
        %6410 = vmatpush1.bf16.msra.mxu0 0
        %6411 = vmatprep.subr.bf16.mxu0 0
        %6412 = vmatpush1.bf16.msra.mxu0 0
        %6413 = vmatprep.subr.bf16.mxu0 0
        %6414 = vmatpush1.bf16.msra.mxu0 0
        %6415 = vmatprep.subr.bf16.mxu0 0
        %6416 = vmatpush1.bf16.msra.mxu0 0
        %6417 = vmatprep.subr.bf16.mxu0 0
        %6418 = vmatpush1.bf16.msra.mxu0 0
        %6419 = vmatprep.subr.bf16.mxu0 0
        %6420 = vmatpush1.bf16.msra.mxu0 0
        %6421 = vmatprep.subr.bf16.mxu0 0
        %6422 = vmatpush1.bf16.msra.mxu0 0
        %6423 = vmatprep.subr.bf16.mxu0 0
        %6424 = vmatpush1.bf16.msra.mxu0 0
        %6425 = vmatprep.mubr.bf16.mxu0 0
        %6426 = vmatmul.mubr.bf16.gmra.mrb[0].mxu0 %v6389
        %v6427 = vpop.f32.mrb[0].mxu0
        %v6428 = vadd.f32 0.0, %v6427
        %v6429 = vpop.f32.mrb[0].mxu0
        %v6430 = vadd.f32 0.0, %v6429
        %v6431 = vpop.f32.mrb[0].mxu0
        %v6432 = vadd.f32 0.0, %v6431
        %v6433 = vpop.f32.mrb[0].mxu0
        %v6434 = vadd.f32 0.0, %v6433
        %6435 = vmatprep.mubr.bf16.mxu0 0
        %6436 = vmatmul.mubr.bf16.gmra.mrb[0].mxu0 %v6390
        %v6437 = vpop.f32.mrb[0].mxu0
        %v6438 = vadd.f32 0.0, %v6437
        %v6439 = vpop.f32.mrb[0].mxu0
        %v6440 = vadd.f32 0.0, %v6439
        %v6441 = vpop.f32.mrb[0].mxu0
        %v6442 = vadd.f32 0.0, %v6441
        %v6443 = vpop.f32.mrb[0].mxu0
        %v6444 = vadd.f32 0.0, %v6443
        %6445 = vdwg.mxu0
        %6446 = vmatprep.subr.bf16.mxu0 0
        %6447 = vmatpush1.bf16.msra.mxu0 %v5395
        %6448 = vmatprep.subr.bf16.mxu0 0
        %6449 = vmatpush1.bf16.msra.mxu0 %v5398
        %6450 = vmatprep.subr.bf16.mxu0 0
        %6451 = vmatpush1.bf16.msra.mxu0 %v5401
        %6452 = vmatprep.subr.bf16.mxu0 0
        %6453 = vmatpush1.bf16.msra.mxu0 %v5404
        %6454 = vmatprep.subr.bf16.mxu0 0
        %6455 = vmatpush1.bf16.msra.mxu0 %v5407
        %6456 = vmatprep.subr.bf16.mxu0 0
        %6457 = vmatpush1.bf16.msra.mxu0 %v5410
        %6458 = vmatprep.subr.bf16.mxu0 0
        %6459 = vmatpush1.bf16.msra.mxu0 %v5413
        %6460 = vmatprep.subr.bf16.mxu0 0
        %6461 = vmatpush1.bf16.msra.mxu0 %v5416
        %6462 = vmatprep.subr.bf16.mxu0 0
        %6463 = vmatpush1.bf16.msra.mxu0 0
        %6464 = vmatprep.subr.bf16.mxu0 0
        %6465 = vmatpush1.bf16.msra.mxu0 0
        %6466 = vmatprep.subr.bf16.mxu0 0
        %6467 = vmatpush1.bf16.msra.mxu0 0
        %6468 = vmatprep.subr.bf16.mxu0 0
        %6469 = vmatpush1.bf16.msra.mxu0 0
        %6470 = vmatprep.subr.bf16.mxu0 0
        %6471 = vmatpush1.bf16.msra.mxu0 0
        %6472 = vmatprep.subr.bf16.mxu0 0
        %6473 = vmatpush1.bf16.msra.mxu0 0
        %6474 = vmatprep.subr.bf16.mxu0 0
        %6475 = vmatpush1.bf16.msra.mxu0 0
        %6476 = vmatprep.subr.bf16.mxu0 0
        %6477 = vmatpush1.bf16.msra.mxu0 0
        %6478 = vmatprep.mubr.bf16.mxu0 0
        %6479 = vmatmul.mubr.bf16.gmra.mrb[0].mxu0 %v6389
        %v6480 = vpop.f32.mrb[0].mxu0
        %v6481 = vadd.f32 0.0, %v6480
        %v6482 = vpop.f32.mrb[0].mxu0
        %v6483 = vpop.f32.mrb[0].mxu0
        %v6484 = vadd.f32 0.0, %v6483
        %v6485 = vpop.f32.mrb[0].mxu0
        %6486 = vmatprep.mubr.bf16.mxu0 0
        %6487 = vmatmul.mubr.bf16.gmra.mrb[0].mxu0 %v6390
        %v6488 = vpop.f32.mrb[0].mxu0
        %v6489 = vadd.f32 0.0, %v6488
        %v6490 = vpop.f32.mrb[0].mxu0
        %v6491 = vpop.f32.mrb[0].mxu0
        %v6492 = vadd.f32 0.0, %v6491
        %v6493 = vpop.f32.mrb[0].mxu0
        %6494 = vdwg.mxu0
        %6495 = vrot.lane.b32.xlu0 %v6428, 111
        %v6496 = vpop.permute.xlu0 %6495
        %6497 = vrot.lane.b32.xlu0 %v6432, 111
        %v6498 = vpop.permute.xlu0 %6497
        %6499 = vrot.lane.b32.xlu0 %v6438, 111
        %v6500 = vpop.permute.xlu0 %6499
        %6501 = vrot.lane.b32.xlu0 %v6442, 111
        %v6502 = vpop.permute.xlu0 %6501
        %6503 = vrot.lane.b32.xlu0 %v6430, 111
        %v6504 = vpop.permute.xlu0 %6503
        %6505 = vrot.lane.b32.xlu0 %v6434, 111
        %v6506 = vpop.permute.xlu0 %6505
        %6507 = vrot.lane.b32.xlu0 %v6440, 111
        %v6508 = vpop.permute.xlu0 %6507
        %6509 = vrot.lane.b32.xlu0 %v6444, 111
        %v6510 = vpop.permute.xlu0 %6509
        %6511 = vrot.lane.b32.xlu0 %v6481, 111
        %v6512 = vpop.permute.xlu0 %6511
        %6513 = vrot.lane.b32.xlu0 %v6484, 111
        %v6514 = vpop.permute.xlu0 %6513
        %6515 = vrot.lane.b32.xlu0 %v6489, 111
        %v6516 = vpop.permute.xlu0 %6515
        %6517 = vrot.lane.b32.xlu0 %v6492, 111
        %v6518 = vpop.permute.xlu0 %6517
        %v6519 = vsel %vm1594, %v6504, %v6512
        %v6520 = vsel %vm1594, %v6506, %v6514
        %v6521 = vsel %vm1594, %v6508, %v6516
        %v6522 = vsel %vm1594, %v6510, %v6518
        %v6523 = vsel %vm1594, %v6496, %v6504
        %v6524 = vsel %vm1594, %v6498, %v6506
        %v6525 = vsel %vm1594, %v6500, %v6508
        %v6526 = vsel %vm1594, %v6502, %v6510
        %v6527 = vsel %vm1594, %v6512, %v6496
        %v6528 = vsel %vm1594, %v6514, %v6498
        %v6529 = vsel %vm1594, %v6516, %v6500
        %v6530 = vsel %vm1594, %v6518, %v6502
        %v6531 = vadd.f32 %v6365, %v6523
        %v6532 = vadd.f32 %v6366, %v6519
        %v6533 = vadd.f32 %v6367, %v6527
        %v6534 = vadd.f32 %v6368, %v6524
        %v6535 = vadd.f32 %v6369, %v6520
        %v6536 = vadd.f32 %v6370, %v6528
        %v6537 = vadd.f32 %v6371, %v6525
        %v6538 = vadd.f32 %v6372, %v6521
        %v6539 = vadd.f32 %v6373, %v6529
        %v6540 = vadd.f32 %v6374, %v6526
        %v6541 = vadd.f32 %v6375, %v6522
        %v6542 = vadd.f32 %v6376, %v6530
        %v6543 = vld [vmem:[%s8 + $0x70] sm:$0xf]
        %v6544 = vld [vmem:[%s8 + $0x74] sm:$0xf]
        %v6545 = vld [vmem:[%s8 + $0x78] sm:$0xf]
        %v6546 = vld [vmem:[%s8 + $0x7c] sm:$0xf]
        %v6551 = vunpack.c.l.b16 %v6543
        %v6552 = vunpack.c.l.b16 %v6544
        %v6553 = vunpack.c.l.b16 %v6545
        %v6554 = vunpack.c.l.b16 %v6546
        %v6555 = vpack.c.b16 %v6552, %v6551
        %v6556 = vpack.c.b16 %v6554, %v6553
        %6559 = vmatprep.subr.bf16.mxu0 %v5394
        %6560 = vmatpush1.bf16.msra.mxu0 %v5393
        %6561 = vmatprep.subr.bf16.mxu0 %v5397
        %6562 = vmatpush1.bf16.msra.mxu0 %v5396
        %6563 = vmatprep.subr.bf16.mxu0 %v5400
        %6564 = vmatpush1.bf16.msra.mxu0 %v5399
        %6565 = vmatprep.subr.bf16.mxu0 %v5403
        %6566 = vmatpush1.bf16.msra.mxu0 %v5402
        %6567 = vmatprep.subr.bf16.mxu0 %v5406
        %6568 = vmatpush1.bf16.msra.mxu0 %v5405
        %6569 = vmatprep.subr.bf16.mxu0 %v5409
        %6570 = vmatpush1.bf16.msra.mxu0 %v5408
        %6571 = vmatprep.subr.bf16.mxu0 %v5412
        %6572 = vmatpush1.bf16.msra.mxu0 %v5411
        %6573 = vmatprep.subr.bf16.mxu0 %v5415
        %6574 = vmatpush1.bf16.msra.mxu0 %v5414
        %6575 = vmatprep.subr.bf16.mxu0 0
        %6576 = vmatpush1.bf16.msra.mxu0 0
        %6577 = vmatprep.subr.bf16.mxu0 0
        %6578 = vmatpush1.bf16.msra.mxu0 0
        %6579 = vmatprep.subr.bf16.mxu0 0
        %6580 = vmatpush1.bf16.msra.mxu0 0
        %6581 = vmatprep.subr.bf16.mxu0 0
        %6582 = vmatpush1.bf16.msra.mxu0 0
        %6583 = vmatprep.subr.bf16.mxu0 0
        %6584 = vmatpush1.bf16.msra.mxu0 0
        %6585 = vmatprep.subr.bf16.mxu0 0
        %6586 = vmatpush1.bf16.msra.mxu0 0
        %6587 = vmatprep.subr.bf16.mxu0 0
        %6588 = vmatpush1.bf16.msra.mxu0 0
        %6589 = vmatprep.subr.bf16.mxu0 0
        %6590 = vmatpush1.bf16.msra.mxu0 0
        %6591 = vmatprep.mubr.bf16.mxu0 0
        %6592 = vmatmul.mubr.bf16.gmra.mrb[0].mxu0 %v6555
        %v6593 = vpop.f32.mrb[0].mxu0
        %v6594 = vadd.f32 0.0, %v6593
        %v6595 = vpop.f32.mrb[0].mxu0
        %v6596 = vadd.f32 0.0, %v6595
        %v6597 = vpop.f32.mrb[0].mxu0
        %v6598 = vadd.f32 0.0, %v6597
        %v6599 = vpop.f32.mrb[0].mxu0
        %v6600 = vadd.f32 0.0, %v6599
        %6601 = vmatprep.mubr.bf16.mxu0 0
        %6602 = vmatmul.mubr.bf16.gmra.mrb[0].mxu0 %v6556
        %v6603 = vpop.f32.mrb[0].mxu0
        %v6604 = vadd.f32 0.0, %v6603
        %v6605 = vpop.f32.mrb[0].mxu0
        %v6606 = vadd.f32 0.0, %v6605
        %v6607 = vpop.f32.mrb[0].mxu0
        %v6608 = vadd.f32 0.0, %v6607
        %v6609 = vpop.f32.mrb[0].mxu0
        %v6610 = vadd.f32 0.0, %v6609
        %6611 = vdwg.mxu0
        %6612 = vmatprep.subr.bf16.mxu0 0
        %6613 = vmatpush1.bf16.msra.mxu0 %v5395
        %6614 = vmatprep.subr.bf16.mxu0 0
        %6615 = vmatpush1.bf16.msra.mxu0 %v5398
        %6616 = vmatprep.subr.bf16.mxu0 0
        %6617 = vmatpush1.bf16.msra.mxu0 %v5401
        %6618 = vmatprep.subr.bf16.mxu0 0
        %6619 = vmatpush1.bf16.msra.mxu0 %v5404
        %6620 = vmatprep.subr.bf16.mxu0 0
        %6621 = vmatpush1.bf16.msra.mxu0 %v5407
        %6622 = vmatprep.subr.bf16.mxu0 0
        %6623 = vmatpush1.bf16.msra.mxu0 %v5410
        %6624 = vmatprep.subr.bf16.mxu0 0
        %6625 = vmatpush1.bf16.msra.mxu0 %v5413
        %6626 = vmatprep.subr.bf16.mxu0 0
        %6627 = vmatpush1.bf16.msra.mxu0 %v5416
        %6628 = vmatprep.subr.bf16.mxu0 0
        %6629 = vmatpush1.bf16.msra.mxu0 0
        %6630 = vmatprep.subr.bf16.mxu0 0
        %6631 = vmatpush1.bf16.msra.mxu0 0
        %6632 = vmatprep.subr.bf16.mxu0 0
        %6633 = vmatpush1.bf16.msra.mxu0 0
        %6634 = vmatprep.subr.bf16.mxu0 0
        %6635 = vmatpush1.bf16.msra.mxu0 0
        %6636 = vmatprep.subr.bf16.mxu0 0
        %6637 = vmatpush1.bf16.msra.mxu0 0
        %6638 = vmatprep.subr.bf16.mxu0 0
        %6639 = vmatpush1.bf16.msra.mxu0 0
        %6640 = vmatprep.subr.bf16.mxu0 0
        %6641 = vmatpush1.bf16.msra.mxu0 0
        %6642 = vmatprep.subr.bf16.mxu0 0
        %6643 = vmatpush1.bf16.msra.mxu0 0
        %6644 = vmatprep.mubr.bf16.mxu0 0
        %6645 = vmatmul.mubr.bf16.gmra.mrb[0].mxu0 %v6555
        %v6646 = vpop.f32.mrb[0].mxu0
        %v6647 = vadd.f32 0.0, %v6646
        %v6648 = vpop.f32.mrb[0].mxu0
        %v6649 = vpop.f32.mrb[0].mxu0
        %v6650 = vadd.f32 0.0, %v6649
        %v6651 = vpop.f32.mrb[0].mxu0
        %6652 = vmatprep.mubr.bf16.mxu0 0
        %6653 = vmatmul.mubr.bf16.gmra.mrb[0].mxu0 %v6556
        %v6654 = vpop.f32.mrb[0].mxu0
        %v6655 = vadd.f32 0.0, %v6654
        %v6656 = vpop.f32.mrb[0].mxu0
        %v6657 = vpop.f32.mrb[0].mxu0
        %v6658 = vadd.f32 0.0, %v6657
        %v6659 = vpop.f32.mrb[0].mxu0
        %6660 = vdwg.mxu0
        %6661 = vrot.lane.b32.xlu0 %v6594, 110
        %v6662 = vpop.permute.xlu0 %6661
        %6663 = vrot.lane.b32.xlu0 %v6598, 110
        %v6664 = vpop.permute.xlu0 %6663
        %6665 = vrot.lane.b32.xlu0 %v6604, 110
        %v6666 = vpop.permute.xlu0 %6665
        %6667 = vrot.lane.b32.xlu0 %v6608, 110
        %v6668 = vpop.permute.xlu0 %6667
        %6669 = vrot.lane.b32.xlu0 %v6596, 110
        %v6670 = vpop.permute.xlu0 %6669
        %6671 = vrot.lane.b32.xlu0 %v6600, 110
        %v6672 = vpop.permute.xlu0 %6671
        %6673 = vrot.lane.b32.xlu0 %v6606, 110
        %v6674 = vpop.permute.xlu0 %6673
        %6675 = vrot.lane.b32.xlu0 %v6610, 110
        %v6676 = vpop.permute.xlu0 %6675
        %6677 = vrot.lane.b32.xlu0 %v6647, 110
        %v6678 = vpop.permute.xlu0 %6677
        %6679 = vrot.lane.b32.xlu0 %v6650, 110
        %v6680 = vpop.permute.xlu0 %6679
        %6681 = vrot.lane.b32.xlu0 %v6655, 110
        %v6682 = vpop.permute.xlu0 %6681
        %6683 = vrot.lane.b32.xlu0 %v6658, 110
        %v6684 = vpop.permute.xlu0 %6683
        %v6685 = vsel %vm1765, %v6670, %v6678
        %v6686 = vsel %vm1765, %v6672, %v6680
        %v6687 = vsel %vm1765, %v6674, %v6682
        %v6688 = vsel %vm1765, %v6676, %v6684
        %v6689 = vsel %vm1765, %v6662, %v6670
        %v6690 = vsel %vm1765, %v6664, %v6672
        %v6691 = vsel %vm1765, %v6666, %v6674
        %v6692 = vsel %vm1765, %v6668, %v6676
        %v6693 = vsel %vm1765, %v6678, %v6662
        %v6694 = vsel %vm1765, %v6680, %v6664
        %v6695 = vsel %vm1765, %v6682, %v6666
        %v6696 = vsel %vm1765, %v6684, %v6668
        %v6697 = vadd.f32 %v6531, %v6689
        %v6698 = vadd.f32 %v6532, %v6685
        %v6699 = vadd.f32 %v6533, %v6693
        %v6700 = vadd.f32 %v6534, %v6690
        %v6701 = vadd.f32 %v6535, %v6686
        %v6702 = vadd.f32 %v6536, %v6694
        %v6703 = vadd.f32 %v6537, %v6691
        %v6704 = vadd.f32 %v6538, %v6687
        %v6705 = vadd.f32 %v6539, %v6695
        %v6706 = vadd.f32 %v6540, %v6692
        %v6707 = vadd.f32 %v6541, %v6688
        %v6708 = vadd.f32 %v6542, %v6696
        %v6709 = vld [vmem:[%s8 + $0x80] sm:$0xf]
        %v6710 = vld [vmem:[%s8 + $0x84] sm:$0xf]
        %v6711 = vld [vmem:[%s8 + $0x88] sm:$0xf]
        %v6712 = vld [vmem:[%s8 + $0x8c] sm:$0xf]
        %v6717 = vunpack.c.l.b16 %v6709
        %v6718 = vunpack.c.l.b16 %v6710
        %v6719 = vunpack.c.l.b16 %v6711
        %v6720 = vunpack.c.l.b16 %v6712
        %v6721 = vpack.c.b16 %v6718, %v6717
        %v6722 = vpack.c.b16 %v6720, %v6719
        %6725 = vmatprep.subr.bf16.mxu0 %v5394
        %6726 = vmatpush1.bf16.msra.mxu0 %v5393
        %6727 = vmatprep.subr.bf16.mxu0 %v5397
        %6728 = vmatpush1.bf16.msra.mxu0 %v5396
        %6729 = vmatprep.subr.bf16.mxu0 %v5400
        %6730 = vmatpush1.bf16.msra.mxu0 %v5399
        %6731 = vmatprep.subr.bf16.mxu0 %v5403
        %6732 = vmatpush1.bf16.msra.mxu0 %v5402
        %6733 = vmatprep.subr.bf16.mxu0 %v5406
        %6734 = vmatpush1.bf16.msra.mxu0 %v5405
        %6735 = vmatprep.subr.bf16.mxu0 %v5409
        %6736 = vmatpush1.bf16.msra.mxu0 %v5408
        %6737 = vmatprep.subr.bf16.mxu0 %v5412
        %6738 = vmatpush1.bf16.msra.mxu0 %v5411
        %6739 = vmatprep.subr.bf16.mxu0 %v5415
        %6740 = vmatpush1.bf16.msra.mxu0 %v5414
        %6741 = vmatprep.subr.bf16.mxu0 0
        %6742 = vmatpush1.bf16.msra.mxu0 0
        %6743 = vmatprep.subr.bf16.mxu0 0
        %6744 = vmatpush1.bf16.msra.mxu0 0
        %6745 = vmatprep.subr.bf16.mxu0 0
        %6746 = vmatpush1.bf16.msra.mxu0 0
        %6747 = vmatprep.subr.bf16.mxu0 0
        %6748 = vmatpush1.bf16.msra.mxu0 0
        %6749 = vmatprep.subr.bf16.mxu0 0
        %6750 = vmatpush1.bf16.msra.mxu0 0
        %6751 = vmatprep.subr.bf16.mxu0 0
        %6752 = vmatpush1.bf16.msra.mxu0 0
        %6753 = vmatprep.subr.bf16.mxu0 0
        %6754 = vmatpush1.bf16.msra.mxu0 0
        %6755 = vmatprep.subr.bf16.mxu0 0
        %6756 = vmatpush1.bf16.msra.mxu0 0
        %6757 = vmatprep.mubr.bf16.mxu0 0
        %6758 = vmatmul.mubr.bf16.gmra.mrb[0].mxu0 %v6721
        %v6759 = vpop.f32.mrb[0].mxu0
        %v6760 = vadd.f32 0.0, %v6759
        %v6761 = vpop.f32.mrb[0].mxu0
        %v6762 = vadd.f32 0.0, %v6761
        %v6763 = vpop.f32.mrb[0].mxu0
        %v6764 = vadd.f32 0.0, %v6763
        %v6765 = vpop.f32.mrb[0].mxu0
        %v6766 = vadd.f32 0.0, %v6765
        %6767 = vmatprep.mubr.bf16.mxu0 0
        %6768 = vmatmul.mubr.bf16.gmra.mrb[0].mxu0 %v6722
        %v6769 = vpop.f32.mrb[0].mxu0
        %v6770 = vadd.f32 0.0, %v6769
        %v6771 = vpop.f32.mrb[0].mxu0
        %v6772 = vadd.f32 0.0, %v6771
        %v6773 = vpop.f32.mrb[0].mxu0
        %v6774 = vadd.f32 0.0, %v6773
        %v6775 = vpop.f32.mrb[0].mxu0
        %v6776 = vadd.f32 0.0, %v6775
        %6777 = vdwg.mxu0
        %6778 = vmatprep.subr.bf16.mxu0 0
        %6779 = vmatpush1.bf16.msra.mxu0 %v5395
        %6780 = vmatprep.subr.bf16.mxu0 0
        %6781 = vmatpush1.bf16.msra.mxu0 %v5398
        %6782 = vmatprep.subr.bf16.mxu0 0
        %6783 = vmatpush1.bf16.msra.mxu0 %v5401
        %6784 = vmatprep.subr.bf16.mxu0 0
        %6785 = vmatpush1.bf16.msra.mxu0 %v5404
        %6786 = vmatprep.subr.bf16.mxu0 0
        %6787 = vmatpush1.bf16.msra.mxu0 %v5407
        %6788 = vmatprep.subr.bf16.mxu0 0
        %6789 = vmatpush1.bf16.msra.mxu0 %v5410
        %6790 = vmatprep.subr.bf16.mxu0 0
        %6791 = vmatpush1.bf16.msra.mxu0 %v5413
        %6792 = vmatprep.subr.bf16.mxu0 0
        %6793 = vmatpush1.bf16.msra.mxu0 %v5416
        %6794 = vmatprep.subr.bf16.mxu0 0
        %6795 = vmatpush1.bf16.msra.mxu0 0
        %6796 = vmatprep.subr.bf16.mxu0 0
        %6797 = vmatpush1.bf16.msra.mxu0 0
        %6798 = vmatprep.subr.bf16.mxu0 0
        %6799 = vmatpush1.bf16.msra.mxu0 0
        %6800 = vmatprep.subr.bf16.mxu0 0
        %6801 = vmatpush1.bf16.msra.mxu0 0
        %6802 = vmatprep.subr.bf16.mxu0 0
        %6803 = vmatpush1.bf16.msra.mxu0 0
        %6804 = vmatprep.subr.bf16.mxu0 0
        %6805 = vmatpush1.bf16.msra.mxu0 0
        %6806 = vmatprep.subr.bf16.mxu0 0
        %6807 = vmatpush1.bf16.msra.mxu0 0
        %6808 = vmatprep.subr.bf16.mxu0 0
        %6809 = vmatpush1.bf16.msra.mxu0 0
        %6810 = vmatprep.mubr.bf16.mxu0 0
        %6811 = vmatmul.mubr.bf16.gmra.mrb[0].mxu0 %v6721
        %v6812 = vpop.f32.mrb[0].mxu0
        %v6813 = vadd.f32 0.0, %v6812
        %v6814 = vpop.f32.mrb[0].mxu0
        %v6815 = vpop.f32.mrb[0].mxu0
        %v6816 = vadd.f32 0.0, %v6815
        %v6817 = vpop.f32.mrb[0].mxu0
        %6818 = vmatprep.mubr.bf16.mxu0 0
        %6819 = vmatmul.mubr.bf16.gmra.mrb[0].mxu0 %v6722
        %v6820 = vpop.f32.mrb[0].mxu0
        %v6821 = vadd.f32 0.0, %v6820
        %v6822 = vpop.f32.mrb[0].mxu0
        %v6823 = vpop.f32.mrb[0].mxu0
        %v6824 = vadd.f32 0.0, %v6823
        %v6825 = vpop.f32.mrb[0].mxu0
        %6826 = vdwg.mxu0
        %6827 = vrot.lane.b32.xlu0 %v6760, 109
        %v6828 = vpop.permute.xlu0 %6827
        %6829 = vrot.lane.b32.xlu0 %v6764, 109
        %v6830 = vpop.permute.xlu0 %6829
        %6831 = vrot.lane.b32.xlu0 %v6770, 109
        %v6832 = vpop.permute.xlu0 %6831
        %6833 = vrot.lane.b32.xlu0 %v6774, 109
        %v6834 = vpop.permute.xlu0 %6833
        %6835 = vrot.lane.b32.xlu0 %v6762, 109
        %v6836 = vpop.permute.xlu0 %6835
        %6837 = vrot.lane.b32.xlu0 %v6766, 109
        %v6838 = vpop.permute.xlu0 %6837
        %6839 = vrot.lane.b32.xlu0 %v6772, 109
        %v6840 = vpop.permute.xlu0 %6839
        %6841 = vrot.lane.b32.xlu0 %v6776, 109
        %v6842 = vpop.permute.xlu0 %6841
        %6843 = vrot.lane.b32.xlu0 %v6813, 109
        %v6844 = vpop.permute.xlu0 %6843
        %6845 = vrot.lane.b32.xlu0 %v6816, 109
        %v6846 = vpop.permute.xlu0 %6845
        %6847 = vrot.lane.b32.xlu0 %v6821, 109
        %v6848 = vpop.permute.xlu0 %6847
        %6849 = vrot.lane.b32.xlu0 %v6824, 109
        %v6850 = vpop.permute.xlu0 %6849
        %v6851 = vsel %vm1936, %v6836, %v6844
        %v6852 = vsel %vm1936, %v6838, %v6846
        %v6853 = vsel %vm1936, %v6840, %v6848
        %v6854 = vsel %vm1936, %v6842, %v6850
        %v6855 = vsel %vm1936, %v6828, %v6836
        %v6856 = vsel %vm1936, %v6830, %v6838
        %v6857 = vsel %vm1936, %v6832, %v6840
        %v6858 = vsel %vm1936, %v6834, %v6842
        %v6859 = vsel %vm1936, %v6844, %v6828
        %v6860 = vsel %vm1936, %v6846, %v6830
        %v6861 = vsel %vm1936, %v6848, %v6832
        %v6862 = vsel %vm1936, %v6850, %v6834
        %v6863 = vadd.f32 %v6697, %v6855
        %v6864 = vadd.f32 %v6698, %v6851
        %v6865 = vadd.f32 %v6699, %v6859
        %v6866 = vadd.f32 %v6700, %v6856
        %v6867 = vadd.f32 %v6701, %v6852
        %v6868 = vadd.f32 %v6702, %v6860
        %v6869 = vadd.f32 %v6703, %v6857
        %v6870 = vadd.f32 %v6704, %v6853
        %v6871 = vadd.f32 %v6705, %v6861
        %v6872 = vadd.f32 %v6706, %v6858
        %v6873 = vadd.f32 %v6707, %v6854
        %v6874 = vadd.f32 %v6708, %v6862
        %v6875 = vld [vmem:[%s9] sm:$0xff]
        %v6876 = vld [vmem:[%s9 + $0x8] sm:$0xff]
        %v6877 = vld [vmem:[%s9 + $0x10] sm:$0xff]
        %v6878 = vld [vmem:[%s9 + $0x18] sm:$0xff]
        %6880 = vset.pattern.permute.xlu0 0
        %6881 = vperm.xlu0 %6880, %v6875
        %v6882 = vpop.permute.xlu0 %6881
        %6885 = vset.pattern.permute.xlu0 0
        %6886 = vperm.xlu0 %6885, %v6876
        %v6887 = vpop.permute.xlu0 %6886
        %6890 = vset.pattern.permute.xlu0 0
        %6891 = vperm.xlu0 %6890, %v6877
        %v6892 = vpop.permute.xlu0 %6891
        %6895 = vset.pattern.permute.xlu0 0
        %6896 = vperm.xlu0 %6895, %v6878
        %v6897 = vpop.permute.xlu0 %6896
        %v6899 = vadd.f32 %v6863, %v6882
        %v6900 = vadd.f32 %v6864, %v6882
        %v6901 = vadd.f32 %v6865, %v6882
        %v6902 = vadd.f32 %v6866, %v6887
        %v6903 = vadd.f32 %v6867, %v6887
        %v6904 = vadd.f32 %v6868, %v6887
        %v6905 = vadd.f32 %v6869, %v6892
        %v6906 = vadd.f32 %v6870, %v6892
        %v6907 = vadd.f32 %v6871, %v6892
        %v6908 = vadd.f32 %v6872, %v6897
        %v6909 = vadd.f32 %v6873, %v6897
        %v6910 = vadd.f32 %v6874, %v6897
        %vm6911 = vcmp.ge.f32.partialorder %v6899, 0.0
        %vm6912 = vcmp.ge.f32.partialorder %v6900, 0.0
        %vm6913 = vcmp.ge.f32.partialorder %v6901, 0.0
        %vm6914 = vcmp.ge.f32.partialorder %v6902, 0.0
        %vm6915 = vcmp.ge.f32.partialorder %v6903, 0.0
        %vm6916 = vcmp.ge.f32.partialorder %v6904, 0.0
        %vm6917 = vcmp.ge.f32.partialorder %v6905, 0.0
        %vm6918 = vcmp.ge.f32.partialorder %v6906, 0.0
        %vm6919 = vcmp.ge.f32.partialorder %v6907, 0.0
        %vm6920 = vcmp.ge.f32.partialorder %v6908, 0.0
        %vm6921 = vcmp.ge.f32.partialorder %v6909, 0.0
        %vm6922 = vcmp.ge.f32.partialorder %v6910, 0.0
        %v6923 = vmul.f32 %v6899, 0.01
        %v6924 = vmul.f32 %v6900, 0.01
        %v6925 = vmul.f32 %v6901, 0.01
        %v6926 = vmul.f32 %v6902, 0.01
        %v6927 = vmul.f32 %v6903, 0.01
        %v6928 = vmul.f32 %v6904, 0.01
        %v6929 = vmul.f32 %v6905, 0.01
        %v6930 = vmul.f32 %v6906, 0.01
        %v6931 = vmul.f32 %v6907, 0.01
        %v6932 = vmul.f32 %v6908, 0.01
        %v6933 = vmul.f32 %v6909, 0.01
        %v6934 = vmul.f32 %v6910, 0.01
        %v6935 = vsel %vm6911, %v6899, %v6923
        %v6936 = vsel %vm6912, %v6900, %v6924
        %v6937 = vsel %vm6913, %v6901, %v6925
        %v6938 = vsel %vm6914, %v6902, %v6926
        %v6939 = vsel %vm6915, %v6903, %v6927
        %v6940 = vsel %vm6916, %v6904, %v6928
        %v6941 = vsel %vm6917, %v6905, %v6929
        %v6942 = vsel %vm6918, %v6906, %v6930
        %v6943 = vsel %vm6919, %v6907, %v6931
        %v6944 = vsel %vm6920, %v6908, %v6932
        %v6945 = vsel %vm6921, %v6909, %v6933
        %v6946 = vsel %vm6922, %v6910, %v6934
        %v6947 = vmul.f32 %v6935, %v2037
        %v6948 = vmul.f32 %v6936, %v2041
        %v6949 = vmul.f32 %v6937, %v2045
        %v6950 = vmul.f32 %v6938, %v2037
        %v6951 = vmul.f32 %v6939, %v2041
        %v6952 = vmul.f32 %v6940, %v2045
        %v6953 = vmul.f32 %v6941, %v2037
        %v6954 = vmul.f32 %v6942, %v2041
        %v6955 = vmul.f32 %v6943, %v2045
        %v6956 = vmul.f32 %v6944, %v2037
        %v6957 = vmul.f32 %v6945, %v2041
        %v6958 = vmul.f32 %v6946, %v2045
        %6959 = vst [vmem:[#allocation2 + $0x180] sm:$0xff] %v6947
        %6960 = vst [vmem:[#allocation2 + $0x188] sm:$0xff] %v6948
        %6961 = vst [vmem:[#allocation2 + $0x190] sm:$0xff] %v6949
        %6962 = vst [vmem:[#allocation2 + $0x198] sm:$0xff] %v6950
        %6963 = vst [vmem:[#allocation2 + $0x1a0] sm:$0xff] %v6951
        %6964 = vst [vmem:[#allocation2 + $0x1a8] sm:$0xff] %v6952
        %6965 = vst [vmem:[#allocation2 + $0x1b0] sm:$0xff] %v6953
        %6966 = vst [vmem:[#allocation2 + $0x1b8] sm:$0xff] %v6954
        %6967 = vst [vmem:[#allocation2 + $0x1c0] sm:$0xff] %v6955
        %6968 = vst [vmem:[#allocation2 + $0x1c8] sm:$0xff] %v6956
        %6969 = vst [vmem:[#allocation2 + $0x1d0] sm:$0xff] %v6957
        %6970 = vst [vmem:[#allocation2 + $0x1d8] sm:$0xff] %v6958
        %v6971 = vld [vmem:[#allocation2] sm:$0xff]
        %v6972 = vld [vmem:[#allocation2 + $0x8] sm:$0xff]
        %v6973 = vld [vmem:[#allocation2 + $0x10] sm:$0xff]
        %v6974 = vld [vmem:[#allocation2 + $0x18] sm:$0xff]
        %v6975 = vld [vmem:[#allocation2 + $0x20] sm:$0xff]
        %v6976 = vld [vmem:[#allocation2 + $0x28] sm:$0xff]
        %v6977 = vld [vmem:[#allocation2 + $0x30] sm:$0xff]
        %v6978 = vld [vmem:[#allocation2 + $0x38] sm:$0xff]
        %v6979 = vld [vmem:[#allocation2 + $0x40] sm:$0xff]
        %v6980 = vld [vmem:[#allocation2 + $0x48] sm:$0xff]
        %v6981 = vld [vmem:[#allocation2 + $0x50] sm:$0xff]
        %v6982 = vld [vmem:[#allocation2 + $0x58] sm:$0xff]
        %v6983 = vld [vmem:[#allocation2 + $0x60] sm:$0xff]
        %v6984 = vld [vmem:[#allocation2 + $0x68] sm:$0xff]
        %v6985 = vld [vmem:[#allocation2 + $0x70] sm:$0xff]
        %v6986 = vld [vmem:[#allocation2 + $0x78] sm:$0xff]
        %v6987 = vld [vmem:[#allocation2 + $0x80] sm:$0xff]
        %v6988 = vld [vmem:[#allocation2 + $0x88] sm:$0xff]
        %v6989 = vld [vmem:[#allocation2 + $0x90] sm:$0xff]
        %v6990 = vld [vmem:[#allocation2 + $0x98] sm:$0xff]
        %v6991 = vld [vmem:[#allocation2 + $0xa0] sm:$0xff]
        %v6992 = vld [vmem:[#allocation2 + $0xa8] sm:$0xff]
        %v6993 = vld [vmem:[#allocation2 + $0xb0] sm:$0xff]
        %v6994 = vld [vmem:[#allocation2 + $0xb8] sm:$0xff]
        %v6995 = vld [vmem:[#allocation2 + $0xc0] sm:$0xff]
        %v6996 = vld [vmem:[#allocation2 + $0xc8] sm:$0xff]
        %v6997 = vld [vmem:[#allocation2 + $0xd0] sm:$0xff]
        %v6998 = vld [vmem:[#allocation2 + $0xd8] sm:$0xff]
        %v6999 = vld [vmem:[#allocation2 + $0xe0] sm:$0xff]
        %v7000 = vld [vmem:[#allocation2 + $0xe8] sm:$0xff]
        %v7001 = vld [vmem:[#allocation2 + $0xf0] sm:$0xff]
        %v7002 = vld [vmem:[#allocation2 + $0xf8] sm:$0xff]
        %v7003 = vld [vmem:[#allocation2 + $0x100] sm:$0xff]
        %v7004 = vld [vmem:[#allocation2 + $0x108] sm:$0xff]
        %v7005 = vld [vmem:[#allocation2 + $0x110] sm:$0xff]
        %v7006 = vld [vmem:[#allocation2 + $0x118] sm:$0xff]
        %v7007 = vld [vmem:[#allocation2 + $0x120] sm:$0xff]
        %v7008 = vld [vmem:[#allocation2 + $0x128] sm:$0xff]
        %v7009 = vld [vmem:[#allocation2 + $0x130] sm:$0xff]
        %v7010 = vld [vmem:[#allocation2 + $0x138] sm:$0xff]
        %v7011 = vld [vmem:[#allocation2 + $0x140] sm:$0xff]
        %v7012 = vld [vmem:[#allocation2 + $0x148] sm:$0xff]
        %v7013 = vld [vmem:[#allocation2 + $0x150] sm:$0xff]
        %v7014 = vld [vmem:[#allocation2 + $0x158] sm:$0xff]
        %v7015 = vld [vmem:[#allocation2 + $0x160] sm:$0xff]
        %v7016 = vld [vmem:[#allocation2 + $0x168] sm:$0xff]
        %v7017 = vld [vmem:[#allocation2 + $0x170] sm:$0xff]
        %v7018 = vld [vmem:[#allocation2 + $0x178] sm:$0xff]
        %v7019 = vld [vmem:[#allocation2 + $0x180] sm:$0xff]
        %v7020 = vld [vmem:[#allocation2 + $0x188] sm:$0xff]
        %v7021 = vld [vmem:[#allocation2 + $0x190] sm:$0xff]
        %v7022 = vld [vmem:[#allocation2 + $0x198] sm:$0xff]
        %v7023 = vld [vmem:[#allocation2 + $0x1a0] sm:$0xff]
        %v7024 = vld [vmem:[#allocation2 + $0x1a8] sm:$0xff]
        %v7025 = vld [vmem:[#allocation2 + $0x1b0] sm:$0xff]
        %v7026 = vld [vmem:[#allocation2 + $0x1b8] sm:$0xff]
        %v7027 = vld [vmem:[#allocation2 + $0x1c0] sm:$0xff]
        %v7028 = vld [vmem:[#allocation2 + $0x1c8] sm:$0xff]
        %v7029 = vld [vmem:[#allocation2 + $0x1d0] sm:$0xff]
        %v7030 = vld [vmem:[#allocation2 + $0x1d8] sm:$0xff]
        %v7031 = vpack.c.bf16 %v6974, %v6971
        %v7032 = vpack.c.bf16 %v6975, %v6972
        %v7033 = vpack.c.bf16 %v6976, %v6973
        %v7034 = vpack.c.bf16 %v6980, %v6977
        %v7035 = vpack.c.bf16 %v6981, %v6978
        %v7036 = vpack.c.bf16 %v6982, %v6979
        %v7037 = vpack.c.bf16 %v6986, %v6983
        %v7038 = vpack.c.bf16 %v6987, %v6984
        %v7039 = vpack.c.bf16 %v6988, %v6985
        %v7040 = vpack.c.bf16 %v6992, %v6989
        %v7041 = vpack.c.bf16 %v6993, %v6990
        %v7042 = vpack.c.bf16 %v6994, %v6991
        %v7043 = vpack.c.bf16 %v6998, %v6995
        %v7044 = vpack.c.bf16 %v6999, %v6996
        %v7045 = vpack.c.bf16 %v7000, %v6997
        %v7046 = vpack.c.bf16 %v7004, %v7001
        %v7047 = vpack.c.bf16 %v7005, %v7002
        %v7048 = vpack.c.bf16 %v7006, %v7003
        %v7049 = vpack.c.bf16 %v7010, %v7007
        %v7050 = vpack.c.bf16 %v7011, %v7008
        %v7051 = vpack.c.bf16 %v7012, %v7009
        %v7052 = vpack.c.bf16 %v7016, %v7013
        %v7053 = vpack.c.bf16 %v7017, %v7014
        %v7054 = vpack.c.bf16 %v7018, %v7015
        %v7055 = vpack.c.bf16 %v7022, %v7019
        %v7056 = vpack.c.bf16 %v7023, %v7020
        %v7057 = vpack.c.bf16 %v7024, %v7021
        %v7058 = vpack.c.bf16 %v7028, %v7025
        %v7059 = vpack.c.bf16 %v7029, %v7026
        %v7060 = vpack.c.bf16 %v7030, %v7027
        %v7061 = vld [vmem:[%s10] sm:$0xff]
        %v7062 = vld [vmem:[%s10 + $0x8] sm:$0xff]
        %v7063 = vld [vmem:[%s10 + $0x10] sm:$0xff]
        %v7064 = vld [vmem:[%s10 + $0x18] sm:$0xff]
        %v7069 = vunpack.c.l.b16 %v7061
        %v7070 = vunpack.c.h.b16 %v7061
        %v7071 = vunpack.c.l.b16 %v7062
        %v7072 = vunpack.c.h.b16 %v7062
        %v7073 = vunpack.c.l.b16 %v7063
        %v7074 = vunpack.c.h.b16 %v7063
        %v7075 = vunpack.c.l.b16 %v7064
        %v7076 = vunpack.c.h.b16 %v7064
        %v7077 = vpack.c.b16 %v7071, %v7069
        %v7078 = vpack.c.b16 %v7072, %v7070
        %v7079 = vpack.c.b16 %v7075, %v7073
        %v7080 = vpack.c.b16 %v7076, %v7074
        %v7084 = vsel %vm470, %v7078, 0
        %v7087 = vsel %vm470, %v7080, 0
        %7089 = vmatprep.subr.bf16.mxu0 %v7032
        %7090 = vmatpush1.bf16.msra.mxu0 %v7031
        %7091 = vmatprep.subr.bf16.mxu0 %v7035
        %7092 = vmatpush1.bf16.msra.mxu0 %v7034
        %7093 = vmatprep.subr.bf16.mxu0 %v7038
        %7094 = vmatpush1.bf16.msra.mxu0 %v7037
        %7095 = vmatprep.subr.bf16.mxu0 %v7041
        %7096 = vmatpush1.bf16.msra.mxu0 %v7040
        %7097 = vmatprep.subr.bf16.mxu0 %v7044
        %7098 = vmatpush1.bf16.msra.mxu0 %v7043
        %7099 = vmatprep.subr.bf16.mxu0 %v7047
        %7100 = vmatpush1.bf16.msra.mxu0 %v7046
        %7101 = vmatprep.subr.bf16.mxu0 %v7050
        %7102 = vmatpush1.bf16.msra.mxu0 %v7049
        %7103 = vmatprep.subr.bf16.mxu0 %v7053
        %7104 = vmatpush1.bf16.msra.mxu0 %v7052
        %7105 = vmatprep.subr.bf16.mxu0 %v7056
        %7106 = vmatpush1.bf16.msra.mxu0 %v7055
        %7107 = vmatprep.subr.bf16.mxu0 %v7059
        %7108 = vmatpush1.bf16.msra.mxu0 %v7058
        %7109 = vmatprep.subr.bf16.mxu0 0
        %7110 = vmatpush1.bf16.msra.mxu0 0
        %7111 = vmatprep.subr.bf16.mxu0 0
        %7112 = vmatpush1.bf16.msra.mxu0 0
        %7113 = vmatprep.subr.bf16.mxu0 0
        %7114 = vmatpush1.bf16.msra.mxu0 0
        %7115 = vmatprep.subr.bf16.mxu0 0
        %7116 = vmatpush1.bf16.msra.mxu0 0
        %7117 = vmatprep.subr.bf16.mxu0 0
        %7118 = vmatpush1.bf16.msra.mxu0 0
        %7119 = vmatprep.subr.bf16.mxu0 0
        %7120 = vmatpush1.bf16.msra.mxu0 0
        %7121 = vmatprep.mubr.bf16.mxu0 %v7084
        %7122 = vmatmul.mubr.bf16.gmra.mrb[0].mxu0 %v7077
        %v7123 = vpop.f32.mrb[0].mxu0
        %v7124 = vadd.f32 0.0, %v7123
        %v7125 = vpop.f32.mrb[0].mxu0
        %v7126 = vadd.f32 0.0, %v7125
        %v7127 = vpop.f32.mrb[0].mxu0
        %v7128 = vadd.f32 0.0, %v7127
        %v7129 = vpop.f32.mrb[0].mxu0
        %v7130 = vadd.f32 0.0, %v7129
        %7131 = vmatprep.mubr.bf16.mxu0 %v7087
        %7132 = vmatmul.mubr.bf16.gmra.mrb[0].mxu0 %v7079
        %v7133 = vpop.f32.mrb[0].mxu0
        %v7134 = vadd.f32 0.0, %v7133
        %v7135 = vpop.f32.mrb[0].mxu0
        %v7136 = vadd.f32 0.0, %v7135
        %v7137 = vpop.f32.mrb[0].mxu0
        %v7138 = vadd.f32 0.0, %v7137
        %v7139 = vpop.f32.mrb[0].mxu0
        %v7140 = vadd.f32 0.0, %v7139
        %7141 = vdwg.mxu0
        %7142 = vmatprep.subr.bf16.mxu0 0
        %7143 = vmatpush1.bf16.msra.mxu0 %v7033
        %7144 = vmatprep.subr.bf16.mxu0 0
        %7145 = vmatpush1.bf16.msra.mxu0 %v7036
        %7146 = vmatprep.subr.bf16.mxu0 0
        %7147 = vmatpush1.bf16.msra.mxu0 %v7039
        %7148 = vmatprep.subr.bf16.mxu0 0
        %7149 = vmatpush1.bf16.msra.mxu0 %v7042
        %7150 = vmatprep.subr.bf16.mxu0 0
        %7151 = vmatpush1.bf16.msra.mxu0 %v7045
        %7152 = vmatprep.subr.bf16.mxu0 0
        %7153 = vmatpush1.bf16.msra.mxu0 %v7048
        %7154 = vmatprep.subr.bf16.mxu0 0
        %7155 = vmatpush1.bf16.msra.mxu0 %v7051
        %7156 = vmatprep.subr.bf16.mxu0 0
        %7157 = vmatpush1.bf16.msra.mxu0 %v7054
        %7158 = vmatprep.subr.bf16.mxu0 0
        %7159 = vmatpush1.bf16.msra.mxu0 %v7057
        %7160 = vmatprep.subr.bf16.mxu0 0
        %7161 = vmatpush1.bf16.msra.mxu0 %v7060
        %7162 = vmatprep.subr.bf16.mxu0 0
        %7163 = vmatpush1.bf16.msra.mxu0 0
        %7164 = vmatprep.subr.bf16.mxu0 0
        %7165 = vmatpush1.bf16.msra.mxu0 0
        %7166 = vmatprep.subr.bf16.mxu0 0
        %7167 = vmatpush1.bf16.msra.mxu0 0
        %7168 = vmatprep.subr.bf16.mxu0 0
        %7169 = vmatpush1.bf16.msra.mxu0 0
        %7170 = vmatprep.subr.bf16.mxu0 0
        %7171 = vmatpush1.bf16.msra.mxu0 0
        %7172 = vmatprep.subr.bf16.mxu0 0
        %7173 = vmatpush1.bf16.msra.mxu0 0
        %7174 = vmatprep.mubr.bf16.mxu0 %v7084
        %7175 = vmatmul.mubr.bf16.gmra.mrb[0].mxu0 %v7077
        %v7176 = vpop.f32.mrb[0].mxu0
        %v7177 = vadd.f32 0.0, %v7176
        %v7178 = vpop.f32.mrb[0].mxu0
        %v7179 = vpop.f32.mrb[0].mxu0
        %v7180 = vadd.f32 0.0, %v7179
        %v7181 = vpop.f32.mrb[0].mxu0
        %7182 = vmatprep.mubr.bf16.mxu0 %v7087
        %7183 = vmatmul.mubr.bf16.gmra.mrb[0].mxu0 %v7079
        %v7184 = vpop.f32.mrb[0].mxu0
        %v7185 = vadd.f32 0.0, %v7184
        %v7186 = vpop.f32.mrb[0].mxu0
        %v7187 = vpop.f32.mrb[0].mxu0
        %v7188 = vadd.f32 0.0, %v7187
        %v7189 = vpop.f32.mrb[0].mxu0
        %7190 = vdwg.mxu0
        %7191 = vrot.lane.b32.xlu0 %v7124, 19
        %v7192 = vpop.permute.xlu0 %7191
        %7193 = vrot.lane.b32.xlu0 %v7128, 19
        %v7194 = vpop.permute.xlu0 %7193
        %7195 = vrot.lane.b32.xlu0 %v7134, 19
        %v7196 = vpop.permute.xlu0 %7195
        %7197 = vrot.lane.b32.xlu0 %v7138, 19
        %v7198 = vpop.permute.xlu0 %7197
        %7199 = vrot.lane.b32.xlu0 %v7126, 19
        %v7200 = vpop.permute.xlu0 %7199
        %7201 = vrot.lane.b32.xlu0 %v7130, 19
        %v7202 = vpop.permute.xlu0 %7201
        %7203 = vrot.lane.b32.xlu0 %v7136, 19
        %v7204 = vpop.permute.xlu0 %7203
        %7205 = vrot.lane.b32.xlu0 %v7140, 19
        %v7206 = vpop.permute.xlu0 %7205
        %7207 = vrot.lane.b32.xlu0 %v7177, 19
        %v7208 = vpop.permute.xlu0 %7207
        %7209 = vrot.lane.b32.xlu0 %v7180, 19
        %v7210 = vpop.permute.xlu0 %7209
        %7211 = vrot.lane.b32.xlu0 %v7185, 19
        %v7212 = vpop.permute.xlu0 %7211
        %7213 = vrot.lane.b32.xlu0 %v7188, 19
        %v7214 = vpop.permute.xlu0 %7213
        %v7215 = vsel %vm605, %v7200, %v7208
        %v7216 = vsel %vm605, %v7202, %v7210
        %v7217 = vsel %vm605, %v7204, %v7212
        %v7218 = vsel %vm605, %v7206, %v7214
        %v7219 = vsel %vm605, %v7192, %v7200
        %v7220 = vsel %vm605, %v7194, %v7202
        %v7221 = vsel %vm605, %v7196, %v7204
        %v7222 = vsel %vm605, %v7198, %v7206
        %v7223 = vsel %vm605, %v7208, %v7192
        %v7224 = vsel %vm605, %v7210, %v7194
        %v7225 = vsel %vm605, %v7212, %v7196
        %v7226 = vsel %vm605, %v7214, %v7198
        %v7227 = vadd.f32 %v7223, 0.0
        %v7228 = vadd.f32 %v7219, 0.0
        %v7229 = vadd.f32 %v7215, 0.0
        %v7230 = vadd.f32 %v7224, 0.0
        %v7231 = vadd.f32 %v7220, 0.0
        %v7232 = vadd.f32 %v7216, 0.0
        %v7233 = vadd.f32 %v7225, 0.0
        %v7234 = vadd.f32 %v7221, 0.0
        %v7235 = vadd.f32 %v7217, 0.0
        %v7236 = vadd.f32 %v7226, 0.0
        %v7237 = vadd.f32 %v7222, 0.0
        %v7238 = vadd.f32 %v7218, 0.0
        %v7239 = vld [vmem:[%s10 + $0x20] sm:$0xff]
        %v7240 = vld [vmem:[%s10 + $0x28] sm:$0xff]
        %v7241 = vld [vmem:[%s10 + $0x30] sm:$0xff]
        %v7242 = vld [vmem:[%s10 + $0x38] sm:$0xff]
        %v7247 = vunpack.c.l.b16 %v7239
        %v7248 = vunpack.c.h.b16 %v7239
        %v7249 = vunpack.c.l.b16 %v7240
        %v7250 = vunpack.c.h.b16 %v7240
        %v7251 = vunpack.c.l.b16 %v7241
        %v7252 = vunpack.c.h.b16 %v7241
        %v7253 = vunpack.c.l.b16 %v7242
        %v7254 = vunpack.c.h.b16 %v7242
        %v7255 = vpack.c.b16 %v7249, %v7247
        %v7256 = vpack.c.b16 %v7250, %v7248
        %v7257 = vpack.c.b16 %v7253, %v7251
        %v7258 = vpack.c.b16 %v7254, %v7252
        %v7262 = vsel %vm470, %v7256, 0
        %v7265 = vsel %vm470, %v7258, 0
        %7267 = vmatprep.subr.bf16.mxu0 %v7032
        %7268 = vmatpush1.bf16.msra.mxu0 %v7031
        %7269 = vmatprep.subr.bf16.mxu0 %v7035
        %7270 = vmatpush1.bf16.msra.mxu0 %v7034
        %7271 = vmatprep.subr.bf16.mxu0 %v7038
        %7272 = vmatpush1.bf16.msra.mxu0 %v7037
        %7273 = vmatprep.subr.bf16.mxu0 %v7041
        %7274 = vmatpush1.bf16.msra.mxu0 %v7040
        %7275 = vmatprep.subr.bf16.mxu0 %v7044
        %7276 = vmatpush1.bf16.msra.mxu0 %v7043
        %7277 = vmatprep.subr.bf16.mxu0 %v7047
        %7278 = vmatpush1.bf16.msra.mxu0 %v7046
        %7279 = vmatprep.subr.bf16.mxu0 %v7050
        %7280 = vmatpush1.bf16.msra.mxu0 %v7049
        %7281 = vmatprep.subr.bf16.mxu0 %v7053
        %7282 = vmatpush1.bf16.msra.mxu0 %v7052
        %7283 = vmatprep.subr.bf16.mxu0 %v7056
        %7284 = vmatpush1.bf16.msra.mxu0 %v7055
        %7285 = vmatprep.subr.bf16.mxu0 %v7059
        %7286 = vmatpush1.bf16.msra.mxu0 %v7058
        %7287 = vmatprep.subr.bf16.mxu0 0
        %7288 = vmatpush1.bf16.msra.mxu0 0
        %7289 = vmatprep.subr.bf16.mxu0 0
        %7290 = vmatpush1.bf16.msra.mxu0 0
        %7291 = vmatprep.subr.bf16.mxu0 0
        %7292 = vmatpush1.bf16.msra.mxu0 0
        %7293 = vmatprep.subr.bf16.mxu0 0
        %7294 = vmatpush1.bf16.msra.mxu0 0
        %7295 = vmatprep.subr.bf16.mxu0 0
        %7296 = vmatpush1.bf16.msra.mxu0 0
        %7297 = vmatprep.subr.bf16.mxu0 0
        %7298 = vmatpush1.bf16.msra.mxu0 0
        %7299 = vmatprep.mubr.bf16.mxu0 %v7262
        %7300 = vmatmul.mubr.bf16.gmra.mrb[0].mxu0 %v7255
        %v7301 = vpop.f32.mrb[0].mxu0
        %v7302 = vadd.f32 0.0, %v7301
        %v7303 = vpop.f32.mrb[0].mxu0
        %v7304 = vadd.f32 0.0, %v7303
        %v7305 = vpop.f32.mrb[0].mxu0
        %v7306 = vadd.f32 0.0, %v7305
        %v7307 = vpop.f32.mrb[0].mxu0
        %v7308 = vadd.f32 0.0, %v7307
        %7309 = vmatprep.mubr.bf16.mxu0 %v7265
        %7310 = vmatmul.mubr.bf16.gmra.mrb[0].mxu0 %v7257
        %v7311 = vpop.f32.mrb[0].mxu0
        %v7312 = vadd.f32 0.0, %v7311
        %v7313 = vpop.f32.mrb[0].mxu0
        %v7314 = vadd.f32 0.0, %v7313
        %v7315 = vpop.f32.mrb[0].mxu0
        %v7316 = vadd.f32 0.0, %v7315
        %v7317 = vpop.f32.mrb[0].mxu0
        %v7318 = vadd.f32 0.0, %v7317
        %7319 = vdwg.mxu0
        %7320 = vmatprep.subr.bf16.mxu0 0
        %7321 = vmatpush1.bf16.msra.mxu0 %v7033
        %7322 = vmatprep.subr.bf16.mxu0 0
        %7323 = vmatpush1.bf16.msra.mxu0 %v7036
        %7324 = vmatprep.subr.bf16.mxu0 0
        %7325 = vmatpush1.bf16.msra.mxu0 %v7039
        %7326 = vmatprep.subr.bf16.mxu0 0
        %7327 = vmatpush1.bf16.msra.mxu0 %v7042
        %7328 = vmatprep.subr.bf16.mxu0 0
        %7329 = vmatpush1.bf16.msra.mxu0 %v7045
        %7330 = vmatprep.subr.bf16.mxu0 0
        %7331 = vmatpush1.bf16.msra.mxu0 %v7048
        %7332 = vmatprep.subr.bf16.mxu0 0
        %7333 = vmatpush1.bf16.msra.mxu0 %v7051
        %7334 = vmatprep.subr.bf16.mxu0 0
        %7335 = vmatpush1.bf16.msra.mxu0 %v7054
        %7336 = vmatprep.subr.bf16.mxu0 0
        %7337 = vmatpush1.bf16.msra.mxu0 %v7057
        %7338 = vmatprep.subr.bf16.mxu0 0
        %7339 = vmatpush1.bf16.msra.mxu0 %v7060
        %7340 = vmatprep.subr.bf16.mxu0 0
        %7341 = vmatpush1.bf16.msra.mxu0 0
        %7342 = vmatprep.subr.bf16.mxu0 0
        %7343 = vmatpush1.bf16.msra.mxu0 0
        %7344 = vmatprep.subr.bf16.mxu0 0
        %7345 = vmatpush1.bf16.msra.mxu0 0
        %7346 = vmatprep.subr.bf16.mxu0 0
        %7347 = vmatpush1.bf16.msra.mxu0 0
        %7348 = vmatprep.subr.bf16.mxu0 0
        %7349 = vmatpush1.bf16.msra.mxu0 0
        %7350 = vmatprep.subr.bf16.mxu0 0
        %7351 = vmatpush1.bf16.msra.mxu0 0
        %7352 = vmatprep.mubr.bf16.mxu0 %v7262
        %7353 = vmatmul.mubr.bf16.gmra.mrb[0].mxu0 %v7255
        %v7354 = vpop.f32.mrb[0].mxu0
        %v7355 = vadd.f32 0.0, %v7354
        %v7356 = vpop.f32.mrb[0].mxu0
        %v7357 = vpop.f32.mrb[0].mxu0
        %v7358 = vadd.f32 0.0, %v7357
        %v7359 = vpop.f32.mrb[0].mxu0
        %7360 = vmatprep.mubr.bf16.mxu0 %v7265
        %7361 = vmatmul.mubr.bf16.gmra.mrb[0].mxu0 %v7257
        %v7362 = vpop.f32.mrb[0].mxu0
        %v7363 = vadd.f32 0.0, %v7362
        %v7364 = vpop.f32.mrb[0].mxu0
        %v7365 = vpop.f32.mrb[0].mxu0
        %v7366 = vadd.f32 0.0, %v7365
        %v7367 = vpop.f32.mrb[0].mxu0
        %7368 = vdwg.mxu0
        %7369 = vrot.lane.b32.xlu0 %v7302, 18
        %v7370 = vpop.permute.xlu0 %7369
        %7371 = vrot.lane.b32.xlu0 %v7306, 18
        %v7372 = vpop.permute.xlu0 %7371
        %7373 = vrot.lane.b32.xlu0 %v7312, 18
        %v7374 = vpop.permute.xlu0 %7373
        %7375 = vrot.lane.b32.xlu0 %v7316, 18
        %v7376 = vpop.permute.xlu0 %7375
        %7377 = vrot.lane.b32.xlu0 %v7304, 18
        %v7378 = vpop.permute.xlu0 %7377
        %7379 = vrot.lane.b32.xlu0 %v7308, 18
        %v7380 = vpop.permute.xlu0 %7379
        %7381 = vrot.lane.b32.xlu0 %v7314, 18
        %v7382 = vpop.permute.xlu0 %7381
        %7383 = vrot.lane.b32.xlu0 %v7318, 18
        %v7384 = vpop.permute.xlu0 %7383
        %7385 = vrot.lane.b32.xlu0 %v7355, 18
        %v7386 = vpop.permute.xlu0 %7385
        %7387 = vrot.lane.b32.xlu0 %v7358, 18
        %v7388 = vpop.permute.xlu0 %7387
        %7389 = vrot.lane.b32.xlu0 %v7363, 18
        %v7390 = vpop.permute.xlu0 %7389
        %7391 = vrot.lane.b32.xlu0 %v7366, 18
        %v7392 = vpop.permute.xlu0 %7391
        %v7393 = vsel %vm776, %v7378, %v7386
        %v7394 = vsel %vm776, %v7380, %v7388
        %v7395 = vsel %vm776, %v7382, %v7390
        %v7396 = vsel %vm776, %v7384, %v7392
        %v7397 = vsel %vm776, %v7370, %v7378
        %v7398 = vsel %vm776, %v7372, %v7380
        %v7399 = vsel %vm776, %v7374, %v7382
        %v7400 = vsel %vm776, %v7376, %v7384
        %v7401 = vsel %vm776, %v7386, %v7370
        %v7402 = vsel %vm776, %v7388, %v7372
        %v7403 = vsel %vm776, %v7390, %v7374
        %v7404 = vsel %vm776, %v7392, %v7376
        %v7405 = vadd.f32 %v7227, %v7401
        %v7406 = vadd.f32 %v7228, %v7397
        %v7407 = vadd.f32 %v7229, %v7393
        %v7408 = vadd.f32 %v7230, %v7402
        %v7409 = vadd.f32 %v7231, %v7398
        %v7410 = vadd.f32 %v7232, %v7394
        %v7411 = vadd.f32 %v7233, %v7403
        %v7412 = vadd.f32 %v7234, %v7399
        %v7413 = vadd.f32 %v7235, %v7395
        %v7414 = vadd.f32 %v7236, %v7404
        %v7415 = vadd.f32 %v7237, %v7400
        %v7416 = vadd.f32 %v7238, %v7396
        %v7417 = vld [vmem:[%s10 + $0x40] sm:$0xff]
        %v7418 = vld [vmem:[%s10 + $0x48] sm:$0xff]
        %v7419 = vld [vmem:[%s10 + $0x50] sm:$0xff]
        %v7420 = vld [vmem:[%s10 + $0x58] sm:$0xff]
        %v7425 = vunpack.c.l.b16 %v7417
        %v7426 = vunpack.c.h.b16 %v7417
        %v7427 = vunpack.c.l.b16 %v7418
        %v7428 = vunpack.c.h.b16 %v7418
        %v7429 = vunpack.c.l.b16 %v7419
        %v7430 = vunpack.c.h.b16 %v7419
        %v7431 = vunpack.c.l.b16 %v7420
        %v7432 = vunpack.c.h.b16 %v7420
        %v7433 = vpack.c.b16 %v7427, %v7425
        %v7434 = vpack.c.b16 %v7428, %v7426
        %v7435 = vpack.c.b16 %v7431, %v7429
        %v7436 = vpack.c.b16 %v7432, %v7430
        %v7440 = vsel %vm470, %v7434, 0
        %v7443 = vsel %vm470, %v7436, 0
        %7445 = vmatprep.subr.bf16.mxu0 %v7032
        %7446 = vmatpush1.bf16.msra.mxu0 %v7031
        %7447 = vmatprep.subr.bf16.mxu0 %v7035
        %7448 = vmatpush1.bf16.msra.mxu0 %v7034
        %7449 = vmatprep.subr.bf16.mxu0 %v7038
        %7450 = vmatpush1.bf16.msra.mxu0 %v7037
        %7451 = vmatprep.subr.bf16.mxu0 %v7041
        %7452 = vmatpush1.bf16.msra.mxu0 %v7040
        %7453 = vmatprep.subr.bf16.mxu0 %v7044
        %7454 = vmatpush1.bf16.msra.mxu0 %v7043
        %7455 = vmatprep.subr.bf16.mxu0 %v7047
        %7456 = vmatpush1.bf16.msra.mxu0 %v7046
        %7457 = vmatprep.subr.bf16.mxu0 %v7050
        %7458 = vmatpush1.bf16.msra.mxu0 %v7049
        %7459 = vmatprep.subr.bf16.mxu0 %v7053
        %7460 = vmatpush1.bf16.msra.mxu0 %v7052
        %7461 = vmatprep.subr.bf16.mxu0 %v7056
        %7462 = vmatpush1.bf16.msra.mxu0 %v7055
        %7463 = vmatprep.subr.bf16.mxu0 %v7059
        %7464 = vmatpush1.bf16.msra.mxu0 %v7058
        %7465 = vmatprep.subr.bf16.mxu0 0
        %7466 = vmatpush1.bf16.msra.mxu0 0
        %7467 = vmatprep.subr.bf16.mxu0 0
        %7468 = vmatpush1.bf16.msra.mxu0 0
        %7469 = vmatprep.subr.bf16.mxu0 0
        %7470 = vmatpush1.bf16.msra.mxu0 0
        %7471 = vmatprep.subr.bf16.mxu0 0
        %7472 = vmatpush1.bf16.msra.mxu0 0
        %7473 = vmatprep.subr.bf16.mxu0 0
        %7474 = vmatpush1.bf16.msra.mxu0 0
        %7475 = vmatprep.subr.bf16.mxu0 0
        %7476 = vmatpush1.bf16.msra.mxu0 0
        %7477 = vmatprep.mubr.bf16.mxu0 %v7440
        %7478 = vmatmul.mubr.bf16.gmra.mrb[0].mxu0 %v7433
        %v7479 = vpop.f32.mrb[0].mxu0
        %v7480 = vadd.f32 0.0, %v7479
        %v7481 = vpop.f32.mrb[0].mxu0
        %v7482 = vadd.f32 0.0, %v7481
        %v7483 = vpop.f32.mrb[0].mxu0
        %v7484 = vadd.f32 0.0, %v7483
        %v7485 = vpop.f32.mrb[0].mxu0
        %v7486 = vadd.f32 0.0, %v7485
        %7487 = vmatprep.mubr.bf16.mxu0 %v7443
        %7488 = vmatmul.mubr.bf16.gmra.mrb[0].mxu0 %v7435
        %v7489 = vpop.f32.mrb[0].mxu0
        %v7490 = vadd.f32 0.0, %v7489
        %v7491 = vpop.f32.mrb[0].mxu0
        %v7492 = vadd.f32 0.0, %v7491
        %v7493 = vpop.f32.mrb[0].mxu0
        %v7494 = vadd.f32 0.0, %v7493
        %v7495 = vpop.f32.mrb[0].mxu0
        %v7496 = vadd.f32 0.0, %v7495
        %7497 = vdwg.mxu0
        %7498 = vmatprep.subr.bf16.mxu0 0
        %7499 = vmatpush1.bf16.msra.mxu0 %v7033
        %7500 = vmatprep.subr.bf16.mxu0 0
        %7501 = vmatpush1.bf16.msra.mxu0 %v7036
        %7502 = vmatprep.subr.bf16.mxu0 0
        %7503 = vmatpush1.bf16.msra.mxu0 %v7039
        %7504 = vmatprep.subr.bf16.mxu0 0
        %7505 = vmatpush1.bf16.msra.mxu0 %v7042
        %7506 = vmatprep.subr.bf16.mxu0 0
        %7507 = vmatpush1.bf16.msra.mxu0 %v7045
        %7508 = vmatprep.subr.bf16.mxu0 0
        %7509 = vmatpush1.bf16.msra.mxu0 %v7048
        %7510 = vmatprep.subr.bf16.mxu0 0
        %7511 = vmatpush1.bf16.msra.mxu0 %v7051
        %7512 = vmatprep.subr.bf16.mxu0 0
        %7513 = vmatpush1.bf16.msra.mxu0 %v7054
        %7514 = vmatprep.subr.bf16.mxu0 0
        %7515 = vmatpush1.bf16.msra.mxu0 %v7057
        %7516 = vmatprep.subr.bf16.mxu0 0
        %7517 = vmatpush1.bf16.msra.mxu0 %v7060
        %7518 = vmatprep.subr.bf16.mxu0 0
        %7519 = vmatpush1.bf16.msra.mxu0 0
        %7520 = vmatprep.subr.bf16.mxu0 0
        %7521 = vmatpush1.bf16.msra.mxu0 0
        %7522 = vmatprep.subr.bf16.mxu0 0
        %7523 = vmatpush1.bf16.msra.mxu0 0
        %7524 = vmatprep.subr.bf16.mxu0 0
        %7525 = vmatpush1.bf16.msra.mxu0 0
        %7526 = vmatprep.subr.bf16.mxu0 0
        %7527 = vmatpush1.bf16.msra.mxu0 0
        %7528 = vmatprep.subr.bf16.mxu0 0
        %7529 = vmatpush1.bf16.msra.mxu0 0
        %7530 = vmatprep.mubr.bf16.mxu0 %v7440
        %7531 = vmatmul.mubr.bf16.gmra.mrb[0].mxu0 %v7433
        %v7532 = vpop.f32.mrb[0].mxu0
        %v7533 = vadd.f32 0.0, %v7532
        %v7534 = vpop.f32.mrb[0].mxu0
        %v7535 = vpop.f32.mrb[0].mxu0
        %v7536 = vadd.f32 0.0, %v7535
        %v7537 = vpop.f32.mrb[0].mxu0
        %7538 = vmatprep.mubr.bf16.mxu0 %v7443
        %7539 = vmatmul.mubr.bf16.gmra.mrb[0].mxu0 %v7435
        %v7540 = vpop.f32.mrb[0].mxu0
        %v7541 = vadd.f32 0.0, %v7540
        %v7542 = vpop.f32.mrb[0].mxu0
        %v7543 = vpop.f32.mrb[0].mxu0
        %v7544 = vadd.f32 0.0, %v7543
        %v7545 = vpop.f32.mrb[0].mxu0
        %7546 = vdwg.mxu0
        %7547 = vrot.lane.b32.xlu0 %v7480, 17
        %v7548 = vpop.permute.xlu0 %7547
        %7549 = vrot.lane.b32.xlu0 %v7484, 17
        %v7550 = vpop.permute.xlu0 %7549
        %7551 = vrot.lane.b32.xlu0 %v7490, 17
        %v7552 = vpop.permute.xlu0 %7551
        %7553 = vrot.lane.b32.xlu0 %v7494, 17
        %v7554 = vpop.permute.xlu0 %7553
        %7555 = vrot.lane.b32.xlu0 %v7482, 17
        %v7556 = vpop.permute.xlu0 %7555
        %7557 = vrot.lane.b32.xlu0 %v7486, 17
        %v7558 = vpop.permute.xlu0 %7557
        %7559 = vrot.lane.b32.xlu0 %v7492, 17
        %v7560 = vpop.permute.xlu0 %7559
        %7561 = vrot.lane.b32.xlu0 %v7496, 17
        %v7562 = vpop.permute.xlu0 %7561
        %7563 = vrot.lane.b32.xlu0 %v7533, 17
        %v7564 = vpop.permute.xlu0 %7563
        %7565 = vrot.lane.b32.xlu0 %v7536, 17
        %v7566 = vpop.permute.xlu0 %7565
        %7567 = vrot.lane.b32.xlu0 %v7541, 17
        %v7568 = vpop.permute.xlu0 %7567
        %7569 = vrot.lane.b32.xlu0 %v7544, 17
        %v7570 = vpop.permute.xlu0 %7569
        %v7571 = vsel %vm947, %v7556, %v7564
        %v7572 = vsel %vm947, %v7558, %v7566
        %v7573 = vsel %vm947, %v7560, %v7568
        %v7574 = vsel %vm947, %v7562, %v7570
        %v7575 = vsel %vm947, %v7548, %v7556
        %v7576 = vsel %vm947, %v7550, %v7558
        %v7577 = vsel %vm947, %v7552, %v7560
        %v7578 = vsel %vm947, %v7554, %v7562
        %v7579 = vsel %vm947, %v7564, %v7548
        %v7580 = vsel %vm947, %v7566, %v7550
        %v7581 = vsel %vm947, %v7568, %v7552
        %v7582 = vsel %vm947, %v7570, %v7554
        %v7583 = vadd.f32 %v7405, %v7579
        %v7584 = vadd.f32 %v7406, %v7575
        %v7585 = vadd.f32 %v7407, %v7571
        %v7586 = vadd.f32 %v7408, %v7580
        %v7587 = vadd.f32 %v7409, %v7576
        %v7588 = vadd.f32 %v7410, %v7572
        %v7589 = vadd.f32 %v7411, %v7581
        %v7590 = vadd.f32 %v7412, %v7577
        %v7591 = vadd.f32 %v7413, %v7573
        %v7592 = vadd.f32 %v7414, %v7582
        %v7593 = vadd.f32 %v7415, %v7578
        %v7594 = vadd.f32 %v7416, %v7574
        %v7595 = vld [vmem:[%s10 + $0x60] sm:$0xff]
        %v7596 = vld [vmem:[%s10 + $0x68] sm:$0xff]
        %v7597 = vld [vmem:[%s10 + $0x70] sm:$0xff]
        %v7598 = vld [vmem:[%s10 + $0x78] sm:$0xff]
        %v7603 = vunpack.c.l.b16 %v7595
        %v7604 = vunpack.c.h.b16 %v7595
        %v7605 = vunpack.c.l.b16 %v7596
        %v7606 = vunpack.c.h.b16 %v7596
        %v7607 = vunpack.c.l.b16 %v7597
        %v7608 = vunpack.c.h.b16 %v7597
        %v7609 = vunpack.c.l.b16 %v7598
        %v7610 = vunpack.c.h.b16 %v7598
        %v7611 = vpack.c.b16 %v7605, %v7603
        %v7612 = vpack.c.b16 %v7606, %v7604
        %v7613 = vpack.c.b16 %v7609, %v7607
        %v7614 = vpack.c.b16 %v7610, %v7608
        %v7618 = vsel %vm470, %v7612, 0
        %v7621 = vsel %vm470, %v7614, 0
        %7623 = vmatprep.subr.bf16.mxu0 %v7032
        %7624 = vmatpush1.bf16.msra.mxu0 %v7031
        %7625 = vmatprep.subr.bf16.mxu0 %v7035
        %7626 = vmatpush1.bf16.msra.mxu0 %v7034
        %7627 = vmatprep.subr.bf16.mxu0 %v7038
        %7628 = vmatpush1.bf16.msra.mxu0 %v7037
        %7629 = vmatprep.subr.bf16.mxu0 %v7041
        %7630 = vmatpush1.bf16.msra.mxu0 %v7040
        %7631 = vmatprep.subr.bf16.mxu0 %v7044
        %7632 = vmatpush1.bf16.msra.mxu0 %v7043
        %7633 = vmatprep.subr.bf16.mxu0 %v7047
        %7634 = vmatpush1.bf16.msra.mxu0 %v7046
        %7635 = vmatprep.subr.bf16.mxu0 %v7050
        %7636 = vmatpush1.bf16.msra.mxu0 %v7049
        %7637 = vmatprep.subr.bf16.mxu0 %v7053
        %7638 = vmatpush1.bf16.msra.mxu0 %v7052
        %7639 = vmatprep.subr.bf16.mxu0 %v7056
        %7640 = vmatpush1.bf16.msra.mxu0 %v7055
        %7641 = vmatprep.subr.bf16.mxu0 %v7059
        %7642 = vmatpush1.bf16.msra.mxu0 %v7058
        %7643 = vmatprep.subr.bf16.mxu0 0
        %7644 = vmatpush1.bf16.msra.mxu0 0
        %7645 = vmatprep.subr.bf16.mxu0 0
        %7646 = vmatpush1.bf16.msra.mxu0 0
        %7647 = vmatprep.subr.bf16.mxu0 0
        %7648 = vmatpush1.bf16.msra.mxu0 0
        %7649 = vmatprep.subr.bf16.mxu0 0
        %7650 = vmatpush1.bf16.msra.mxu0 0
        %7651 = vmatprep.subr.bf16.mxu0 0
        %7652 = vmatpush1.bf16.msra.mxu0 0
        %7653 = vmatprep.subr.bf16.mxu0 0
        %7654 = vmatpush1.bf16.msra.mxu0 0
        %7655 = vmatprep.mubr.bf16.mxu0 %v7618
        %7656 = vmatmul.mubr.bf16.gmra.mrb[0].mxu0 %v7611
        %v7657 = vpop.f32.mrb[0].mxu0
        %v7658 = vadd.f32 0.0, %v7657
        %v7659 = vpop.f32.mrb[0].mxu0
        %v7660 = vadd.f32 0.0, %v7659
        %v7661 = vpop.f32.mrb[0].mxu0
        %v7662 = vadd.f32 0.0, %v7661
        %v7663 = vpop.f32.mrb[0].mxu0
        %v7664 = vadd.f32 0.0, %v7663
        %7665 = vmatprep.mubr.bf16.mxu0 %v7621
        %7666 = vmatmul.mubr.bf16.gmra.mrb[0].mxu0 %v7613
        %v7667 = vpop.f32.mrb[0].mxu0
        %v7668 = vadd.f32 0.0, %v7667
        %v7669 = vpop.f32.mrb[0].mxu0
        %v7670 = vadd.f32 0.0, %v7669
        %v7671 = vpop.f32.mrb[0].mxu0
        %v7672 = vadd.f32 0.0, %v7671
        %v7673 = vpop.f32.mrb[0].mxu0
        %v7674 = vadd.f32 0.0, %v7673
        %7675 = vdwg.mxu0
        %7676 = vmatprep.subr.bf16.mxu0 0
        %7677 = vmatpush1.bf16.msra.mxu0 %v7033
        %7678 = vmatprep.subr.bf16.mxu0 0
        %7679 = vmatpush1.bf16.msra.mxu0 %v7036
        %7680 = vmatprep.subr.bf16.mxu0 0
        %7681 = vmatpush1.bf16.msra.mxu0 %v7039
        %7682 = vmatprep.subr.bf16.mxu0 0
        %7683 = vmatpush1.bf16.msra.mxu0 %v7042
        %7684 = vmatprep.subr.bf16.mxu0 0
        %7685 = vmatpush1.bf16.msra.mxu0 %v7045
        %7686 = vmatprep.subr.bf16.mxu0 0
        %7687 = vmatpush1.bf16.msra.mxu0 %v7048
        %7688 = vmatprep.subr.bf16.mxu0 0
        %7689 = vmatpush1.bf16.msra.mxu0 %v7051
        %7690 = vmatprep.subr.bf16.mxu0 0
        %7691 = vmatpush1.bf16.msra.mxu0 %v7054
        %7692 = vmatprep.subr.bf16.mxu0 0
        %7693 = vmatpush1.bf16.msra.mxu0 %v7057
        %7694 = vmatprep.subr.bf16.mxu0 0
        %7695 = vmatpush1.bf16.msra.mxu0 %v7060
        %7696 = vmatprep.subr.bf16.mxu0 0
        %7697 = vmatpush1.bf16.msra.mxu0 0
        %7698 = vmatprep.subr.bf16.mxu0 0
        %7699 = vmatpush1.bf16.msra.mxu0 0
        %7700 = vmatprep.subr.bf16.mxu0 0
        %7701 = vmatpush1.bf16.msra.mxu0 0
        %7702 = vmatprep.subr.bf16.mxu0 0
        %7703 = vmatpush1.bf16.msra.mxu0 0
        %7704 = vmatprep.subr.bf16.mxu0 0
        %7705 = vmatpush1.bf16.msra.mxu0 0
        %7706 = vmatprep.subr.bf16.mxu0 0
        %7707 = vmatpush1.bf16.msra.mxu0 0
        %7708 = vmatprep.mubr.bf16.mxu0 %v7618
        %7709 = vmatmul.mubr.bf16.gmra.mrb[0].mxu0 %v7611
        %v7710 = vpop.f32.mrb[0].mxu0
        %v7711 = vadd.f32 0.0, %v7710
        %v7712 = vpop.f32.mrb[0].mxu0
        %v7713 = vpop.f32.mrb[0].mxu0
        %v7714 = vadd.f32 0.0, %v7713
        %v7715 = vpop.f32.mrb[0].mxu0
        %7716 = vmatprep.mubr.bf16.mxu0 %v7621
        %7717 = vmatmul.mubr.bf16.gmra.mrb[0].mxu0 %v7613
        %v7718 = vpop.f32.mrb[0].mxu0
        %v7719 = vadd.f32 0.0, %v7718
        %v7720 = vpop.f32.mrb[0].mxu0
        %v7721 = vpop.f32.mrb[0].mxu0
        %v7722 = vadd.f32 0.0, %v7721
        %v7723 = vpop.f32.mrb[0].mxu0
        %7724 = vdwg.mxu0
        %7725 = vrot.lane.b32.xlu0 %v7658, 1
        %v7726 = vpop.permute.xlu0 %7725
        %7727 = vrot.lane.b32.xlu0 %v7662, 1
        %v7728 = vpop.permute.xlu0 %7727
        %7729 = vrot.lane.b32.xlu0 %v7668, 1
        %v7730 = vpop.permute.xlu0 %7729
        %7731 = vrot.lane.b32.xlu0 %v7672, 1
        %v7732 = vpop.permute.xlu0 %7731
        %7733 = vrot.lane.b32.xlu0 %v7660, 1
        %v7734 = vpop.permute.xlu0 %7733
        %7735 = vrot.lane.b32.xlu0 %v7664, 1
        %v7736 = vpop.permute.xlu0 %7735
        %7737 = vrot.lane.b32.xlu0 %v7670, 1
        %v7738 = vpop.permute.xlu0 %7737
        %7739 = vrot.lane.b32.xlu0 %v7674, 1
        %v7740 = vpop.permute.xlu0 %7739
        %7741 = vrot.lane.b32.xlu0 %v7711, 1
        %v7742 = vpop.permute.xlu0 %7741
        %7743 = vrot.lane.b32.xlu0 %v7714, 1
        %v7744 = vpop.permute.xlu0 %7743
        %7745 = vrot.lane.b32.xlu0 %v7719, 1
        %v7746 = vpop.permute.xlu0 %7745
        %7747 = vrot.lane.b32.xlu0 %v7722, 1
        %v7748 = vpop.permute.xlu0 %7747
        %v7749 = vsel %vm1118, %v7734, %v7742
        %v7750 = vsel %vm1118, %v7736, %v7744
        %v7751 = vsel %vm1118, %v7738, %v7746
        %v7752 = vsel %vm1118, %v7740, %v7748
        %v7753 = vsel %vm1118, %v7726, %v7734
        %v7754 = vsel %vm1118, %v7728, %v7736
        %v7755 = vsel %vm1118, %v7730, %v7738
        %v7756 = vsel %vm1118, %v7732, %v7740
        %v7757 = vsel %vm1118, %v7742, %v7726
        %v7758 = vsel %vm1118, %v7744, %v7728
        %v7759 = vsel %vm1118, %v7746, %v7730
        %v7760 = vsel %vm1118, %v7748, %v7732
        %v7761 = vadd.f32 %v7583, %v7757
        %v7762 = vadd.f32 %v7584, %v7753
        %v7763 = vadd.f32 %v7585, %v7749
        %v7764 = vadd.f32 %v7586, %v7758
        %v7765 = vadd.f32 %v7587, %v7754
        %v7766 = vadd.f32 %v7588, %v7750
        %v7767 = vadd.f32 %v7589, %v7759
        %v7768 = vadd.f32 %v7590, %v7755
        %v7769 = vadd.f32 %v7591, %v7751
        %v7770 = vadd.f32 %v7592, %v7760
        %v7771 = vadd.f32 %v7593, %v7756
        %v7772 = vadd.f32 %v7594, %v7752
        %v7773 = vld [vmem:[%s10 + $0x80] sm:$0xff]
        %v7774 = vld [vmem:[%s10 + $0x88] sm:$0xff]
        %v7775 = vld [vmem:[%s10 + $0x90] sm:$0xff]
        %v7776 = vld [vmem:[%s10 + $0x98] sm:$0xff]
        %v7781 = vunpack.c.l.b16 %v7773
        %v7782 = vunpack.c.h.b16 %v7773
        %v7783 = vunpack.c.l.b16 %v7774
        %v7784 = vunpack.c.h.b16 %v7774
        %v7785 = vunpack.c.l.b16 %v7775
        %v7786 = vunpack.c.h.b16 %v7775
        %v7787 = vunpack.c.l.b16 %v7776
        %v7788 = vunpack.c.h.b16 %v7776
        %v7789 = vpack.c.b16 %v7783, %v7781
        %v7790 = vpack.c.b16 %v7784, %v7782
        %v7791 = vpack.c.b16 %v7787, %v7785
        %v7792 = vpack.c.b16 %v7788, %v7786
        %v7796 = vsel %vm470, %v7790, 0
        %v7799 = vsel %vm470, %v7792, 0
        %7801 = vmatprep.subr.bf16.mxu0 %v7032
        %7802 = vmatpush1.bf16.msra.mxu0 %v7031
        %7803 = vmatprep.subr.bf16.mxu0 %v7035
        %7804 = vmatpush1.bf16.msra.mxu0 %v7034
        %7805 = vmatprep.subr.bf16.mxu0 %v7038
        %7806 = vmatpush1.bf16.msra.mxu0 %v7037
        %7807 = vmatprep.subr.bf16.mxu0 %v7041
        %7808 = vmatpush1.bf16.msra.mxu0 %v7040
        %7809 = vmatprep.subr.bf16.mxu0 %v7044
        %7810 = vmatpush1.bf16.msra.mxu0 %v7043
        %7811 = vmatprep.subr.bf16.mxu0 %v7047
        %7812 = vmatpush1.bf16.msra.mxu0 %v7046
        %7813 = vmatprep.subr.bf16.mxu0 %v7050
        %7814 = vmatpush1.bf16.msra.mxu0 %v7049
        %7815 = vmatprep.subr.bf16.mxu0 %v7053
        %7816 = vmatpush1.bf16.msra.mxu0 %v7052
        %7817 = vmatprep.subr.bf16.mxu0 %v7056
        %7818 = vmatpush1.bf16.msra.mxu0 %v7055
        %7819 = vmatprep.subr.bf16.mxu0 %v7059
        %7820 = vmatpush1.bf16.msra.mxu0 %v7058
        %7821 = vmatprep.subr.bf16.mxu0 0
        %7822 = vmatpush1.bf16.msra.mxu0 0
        %7823 = vmatprep.subr.bf16.mxu0 0
        %7824 = vmatpush1.bf16.msra.mxu0 0
        %7825 = vmatprep.subr.bf16.mxu0 0
        %7826 = vmatpush1.bf16.msra.mxu0 0
        %7827 = vmatprep.subr.bf16.mxu0 0
        %7828 = vmatpush1.bf16.msra.mxu0 0
        %7829 = vmatprep.subr.bf16.mxu0 0
        %7830 = vmatpush1.bf16.msra.mxu0 0
        %7831 = vmatprep.subr.bf16.mxu0 0
        %7832 = vmatpush1.bf16.msra.mxu0 0
        %7833 = vmatprep.mubr.bf16.mxu0 %v7796
        %7834 = vmatmul.mubr.bf16.gmra.mrb[0].mxu0 %v7789
        %v7835 = vpop.f32.mrb[0].mxu0
        %v7836 = vadd.f32 0.0, %v7835
        %v7837 = vpop.f32.mrb[0].mxu0
        %v7838 = vadd.f32 0.0, %v7837
        %v7839 = vpop.f32.mrb[0].mxu0
        %v7840 = vadd.f32 0.0, %v7839
        %v7841 = vpop.f32.mrb[0].mxu0
        %v7842 = vadd.f32 0.0, %v7841
        %7843 = vmatprep.mubr.bf16.mxu0 %v7799
        %7844 = vmatmul.mubr.bf16.gmra.mrb[0].mxu0 %v7791
        %v7845 = vpop.f32.mrb[0].mxu0
        %v7846 = vadd.f32 0.0, %v7845
        %v7847 = vpop.f32.mrb[0].mxu0
        %v7848 = vadd.f32 0.0, %v7847
        %v7849 = vpop.f32.mrb[0].mxu0
        %v7850 = vadd.f32 0.0, %v7849
        %v7851 = vpop.f32.mrb[0].mxu0
        %v7852 = vadd.f32 0.0, %v7851
        %7853 = vdwg.mxu0
        %7854 = vmatprep.subr.bf16.mxu0 0
        %7855 = vmatpush1.bf16.msra.mxu0 %v7033
        %7856 = vmatprep.subr.bf16.mxu0 0
        %7857 = vmatpush1.bf16.msra.mxu0 %v7036
        %7858 = vmatprep.subr.bf16.mxu0 0
        %7859 = vmatpush1.bf16.msra.mxu0 %v7039
        %7860 = vmatprep.subr.bf16.mxu0 0
        %7861 = vmatpush1.bf16.msra.mxu0 %v7042
        %7862 = vmatprep.subr.bf16.mxu0 0
        %7863 = vmatpush1.bf16.msra.mxu0 %v7045
        %7864 = vmatprep.subr.bf16.mxu0 0
        %7865 = vmatpush1.bf16.msra.mxu0 %v7048
        %7866 = vmatprep.subr.bf16.mxu0 0
        %7867 = vmatpush1.bf16.msra.mxu0 %v7051
        %7868 = vmatprep.subr.bf16.mxu0 0
        %7869 = vmatpush1.bf16.msra.mxu0 %v7054
        %7870 = vmatprep.subr.bf16.mxu0 0
        %7871 = vmatpush1.bf16.msra.mxu0 %v7057
        %7872 = vmatprep.subr.bf16.mxu0 0
        %7873 = vmatpush1.bf16.msra.mxu0 %v7060
        %7874 = vmatprep.subr.bf16.mxu0 0
        %7875 = vmatpush1.bf16.msra.mxu0 0
        %7876 = vmatprep.subr.bf16.mxu0 0
        %7877 = vmatpush1.bf16.msra.mxu0 0
        %7878 = vmatprep.subr.bf16.mxu0 0
        %7879 = vmatpush1.bf16.msra.mxu0 0
        %7880 = vmatprep.subr.bf16.mxu0 0
        %7881 = vmatpush1.bf16.msra.mxu0 0
        %7882 = vmatprep.subr.bf16.mxu0 0
        %7883 = vmatpush1.bf16.msra.mxu0 0
        %7884 = vmatprep.subr.bf16.mxu0 0
        %7885 = vmatpush1.bf16.msra.mxu0 0
        %7886 = vmatprep.mubr.bf16.mxu0 %v7796
        %7887 = vmatmul.mubr.bf16.gmra.mrb[0].mxu0 %v7789
        %v7888 = vpop.f32.mrb[0].mxu0
        %v7889 = vadd.f32 0.0, %v7888
        %v7890 = vpop.f32.mrb[0].mxu0
        %v7891 = vpop.f32.mrb[0].mxu0
        %v7892 = vadd.f32 0.0, %v7891
        %v7893 = vpop.f32.mrb[0].mxu0
        %7894 = vmatprep.mubr.bf16.mxu0 %v7799
        %7895 = vmatmul.mubr.bf16.gmra.mrb[0].mxu0 %v7791
        %v7896 = vpop.f32.mrb[0].mxu0
        %v7897 = vadd.f32 0.0, %v7896
        %v7898 = vpop.f32.mrb[0].mxu0
        %v7899 = vpop.f32.mrb[0].mxu0
        %v7900 = vadd.f32 0.0, %v7899
        %v7901 = vpop.f32.mrb[0].mxu0
        %7902 = vdwg.mxu0
        %v7903 = vadd.f32 %v7761, %v7836
        %v7904 = vadd.f32 %v7762, %v7838
        %v7905 = vadd.f32 %v7763, %v7889
        %v7906 = vadd.f32 %v7764, %v7840
        %v7907 = vadd.f32 %v7765, %v7842
        %v7908 = vadd.f32 %v7766, %v7892
        %v7909 = vadd.f32 %v7767, %v7846
        %v7910 = vadd.f32 %v7768, %v7848
        %v7911 = vadd.f32 %v7769, %v7897
        %v7912 = vadd.f32 %v7770, %v7850
        %v7913 = vadd.f32 %v7771, %v7852
        %v7914 = vadd.f32 %v7772, %v7900
        %v7915 = vld [vmem:[%s10 + $0xa0] sm:$0xff]
        %v7916 = vld [vmem:[%s10 + $0xa8] sm:$0xff]
        %v7917 = vld [vmem:[%s10 + $0xb0] sm:$0xff]
        %v7918 = vld [vmem:[%s10 + $0xb8] sm:$0xff]
        %v7923 = vunpack.c.l.b16 %v7915
        %v7924 = vunpack.c.h.b16 %v7915
        %v7925 = vunpack.c.l.b16 %v7916
        %v7926 = vunpack.c.h.b16 %v7916
        %v7927 = vunpack.c.l.b16 %v7917
        %v7928 = vunpack.c.h.b16 %v7917
        %v7929 = vunpack.c.l.b16 %v7918
        %v7930 = vunpack.c.h.b16 %v7918
        %v7931 = vpack.c.b16 %v7925, %v7923
        %v7932 = vpack.c.b16 %v7926, %v7924
        %v7933 = vpack.c.b16 %v7929, %v7927
        %v7934 = vpack.c.b16 %v7930, %v7928
        %v7938 = vsel %vm470, %v7932, 0
        %v7941 = vsel %vm470, %v7934, 0
        %7943 = vmatprep.subr.bf16.mxu0 %v7032
        %7944 = vmatpush1.bf16.msra.mxu0 %v7031
        %7945 = vmatprep.subr.bf16.mxu0 %v7035
        %7946 = vmatpush1.bf16.msra.mxu0 %v7034
        %7947 = vmatprep.subr.bf16.mxu0 %v7038
        %7948 = vmatpush1.bf16.msra.mxu0 %v7037
        %7949 = vmatprep.subr.bf16.mxu0 %v7041
        %7950 = vmatpush1.bf16.msra.mxu0 %v7040
        %7951 = vmatprep.subr.bf16.mxu0 %v7044
        %7952 = vmatpush1.bf16.msra.mxu0 %v7043
        %7953 = vmatprep.subr.bf16.mxu0 %v7047
        %7954 = vmatpush1.bf16.msra.mxu0 %v7046
        %7955 = vmatprep.subr.bf16.mxu0 %v7050
        %7956 = vmatpush1.bf16.msra.mxu0 %v7049
        %7957 = vmatprep.subr.bf16.mxu0 %v7053
        %7958 = vmatpush1.bf16.msra.mxu0 %v7052
        %7959 = vmatprep.subr.bf16.mxu0 %v7056
        %7960 = vmatpush1.bf16.msra.mxu0 %v7055
        %7961 = vmatprep.subr.bf16.mxu0 %v7059
        %7962 = vmatpush1.bf16.msra.mxu0 %v7058
        %7963 = vmatprep.subr.bf16.mxu0 0
        %7964 = vmatpush1.bf16.msra.mxu0 0
        %7965 = vmatprep.subr.bf16.mxu0 0
        %7966 = vmatpush1.bf16.msra.mxu0 0
        %7967 = vmatprep.subr.bf16.mxu0 0
        %7968 = vmatpush1.bf16.msra.mxu0 0
        %7969 = vmatprep.subr.bf16.mxu0 0
        %7970 = vmatpush1.bf16.msra.mxu0 0
        %7971 = vmatprep.subr.bf16.mxu0 0
        %7972 = vmatpush1.bf16.msra.mxu0 0
        %7973 = vmatprep.subr.bf16.mxu0 0
        %7974 = vmatpush1.bf16.msra.mxu0 0
        %7975 = vmatprep.mubr.bf16.mxu0 %v7938
        %7976 = vmatmul.mubr.bf16.gmra.mrb[0].mxu0 %v7931
        %v7977 = vpop.f32.mrb[0].mxu0
        %v7978 = vadd.f32 0.0, %v7977
        %v7979 = vpop.f32.mrb[0].mxu0
        %v7980 = vadd.f32 0.0, %v7979
        %v7981 = vpop.f32.mrb[0].mxu0
        %v7982 = vadd.f32 0.0, %v7981
        %v7983 = vpop.f32.mrb[0].mxu0
        %v7984 = vadd.f32 0.0, %v7983
        %7985 = vmatprep.mubr.bf16.mxu0 %v7941
        %7986 = vmatmul.mubr.bf16.gmra.mrb[0].mxu0 %v7933
        %v7987 = vpop.f32.mrb[0].mxu0
        %v7988 = vadd.f32 0.0, %v7987
        %v7989 = vpop.f32.mrb[0].mxu0
        %v7990 = vadd.f32 0.0, %v7989
        %v7991 = vpop.f32.mrb[0].mxu0
        %v7992 = vadd.f32 0.0, %v7991
        %v7993 = vpop.f32.mrb[0].mxu0
        %v7994 = vadd.f32 0.0, %v7993
        %7995 = vdwg.mxu0
        %7996 = vmatprep.subr.bf16.mxu0 0
        %7997 = vmatpush1.bf16.msra.mxu0 %v7033
        %7998 = vmatprep.subr.bf16.mxu0 0
        %7999 = vmatpush1.bf16.msra.mxu0 %v7036
        %8000 = vmatprep.subr.bf16.mxu0 0
        %8001 = vmatpush1.bf16.msra.mxu0 %v7039
        %8002 = vmatprep.subr.bf16.mxu0 0
        %8003 = vmatpush1.bf16.msra.mxu0 %v7042
        %8004 = vmatprep.subr.bf16.mxu0 0
        %8005 = vmatpush1.bf16.msra.mxu0 %v7045
        %8006 = vmatprep.subr.bf16.mxu0 0
        %8007 = vmatpush1.bf16.msra.mxu0 %v7048
        %8008 = vmatprep.subr.bf16.mxu0 0
        %8009 = vmatpush1.bf16.msra.mxu0 %v7051
        %8010 = vmatprep.subr.bf16.mxu0 0
        %8011 = vmatpush1.bf16.msra.mxu0 %v7054
        %8012 = vmatprep.subr.bf16.mxu0 0
        %8013 = vmatpush1.bf16.msra.mxu0 %v7057
        %8014 = vmatprep.subr.bf16.mxu0 0
        %8015 = vmatpush1.bf16.msra.mxu0 %v7060
        %8016 = vmatprep.subr.bf16.mxu0 0
        %8017 = vmatpush1.bf16.msra.mxu0 0
        %8018 = vmatprep.subr.bf16.mxu0 0
        %8019 = vmatpush1.bf16.msra.mxu0 0
        %8020 = vmatprep.subr.bf16.mxu0 0
        %8021 = vmatpush1.bf16.msra.mxu0 0
        %8022 = vmatprep.subr.bf16.mxu0 0
        %8023 = vmatpush1.bf16.msra.mxu0 0
        %8024 = vmatprep.subr.bf16.mxu0 0
        %8025 = vmatpush1.bf16.msra.mxu0 0
        %8026 = vmatprep.subr.bf16.mxu0 0
        %8027 = vmatpush1.bf16.msra.mxu0 0
        %8028 = vmatprep.mubr.bf16.mxu0 %v7938
        %8029 = vmatmul.mubr.bf16.gmra.mrb[0].mxu0 %v7931
        %v8030 = vpop.f32.mrb[0].mxu0
        %v8031 = vadd.f32 0.0, %v8030
        %v8032 = vpop.f32.mrb[0].mxu0
        %v8033 = vpop.f32.mrb[0].mxu0
        %v8034 = vadd.f32 0.0, %v8033
        %v8035 = vpop.f32.mrb[0].mxu0
        %8036 = vmatprep.mubr.bf16.mxu0 %v7941
        %8037 = vmatmul.mubr.bf16.gmra.mrb[0].mxu0 %v7933
        %v8038 = vpop.f32.mrb[0].mxu0
        %v8039 = vadd.f32 0.0, %v8038
        %v8040 = vpop.f32.mrb[0].mxu0
        %v8041 = vpop.f32.mrb[0].mxu0
        %v8042 = vadd.f32 0.0, %v8041
        %v8043 = vpop.f32.mrb[0].mxu0
        %8044 = vdwg.mxu0
        %8045 = vrot.lane.b32.xlu0 %v7978, 127
        %v8046 = vpop.permute.xlu0 %8045
        %8047 = vrot.lane.b32.xlu0 %v7982, 127
        %v8048 = vpop.permute.xlu0 %8047
        %8049 = vrot.lane.b32.xlu0 %v7988, 127
        %v8050 = vpop.permute.xlu0 %8049
        %8051 = vrot.lane.b32.xlu0 %v7992, 127
        %v8052 = vpop.permute.xlu0 %8051
        %8053 = vrot.lane.b32.xlu0 %v7980, 127
        %v8054 = vpop.permute.xlu0 %8053
        %8055 = vrot.lane.b32.xlu0 %v7984, 127
        %v8056 = vpop.permute.xlu0 %8055
        %8057 = vrot.lane.b32.xlu0 %v7990, 127
        %v8058 = vpop.permute.xlu0 %8057
        %8059 = vrot.lane.b32.xlu0 %v7994, 127
        %v8060 = vpop.permute.xlu0 %8059
        %8061 = vrot.lane.b32.xlu0 %v8031, 127
        %v8062 = vpop.permute.xlu0 %8061
        %8063 = vrot.lane.b32.xlu0 %v8034, 127
        %v8064 = vpop.permute.xlu0 %8063
        %8065 = vrot.lane.b32.xlu0 %v8039, 127
        %v8066 = vpop.permute.xlu0 %8065
        %8067 = vrot.lane.b32.xlu0 %v8042, 127
        %v8068 = vpop.permute.xlu0 %8067
        %v8069 = vsel %vm1423, %v8054, %v8062
        %v8070 = vsel %vm1423, %v8056, %v8064
        %v8071 = vsel %vm1423, %v8058, %v8066
        %v8072 = vsel %vm1423, %v8060, %v8068
        %v8073 = vsel %vm1423, %v8046, %v8054
        %v8074 = vsel %vm1423, %v8048, %v8056
        %v8075 = vsel %vm1423, %v8050, %v8058
        %v8076 = vsel %vm1423, %v8052, %v8060
        %v8077 = vsel %vm1423, %v8062, %v8046
        %v8078 = vsel %vm1423, %v8064, %v8048
        %v8079 = vsel %vm1423, %v8066, %v8050
        %v8080 = vsel %vm1423, %v8068, %v8052
        %v8081 = vadd.f32 %v7903, %v8073
        %v8082 = vadd.f32 %v7904, %v8069
        %v8083 = vadd.f32 %v7905, %v8077
        %v8084 = vadd.f32 %v7906, %v8074
        %v8085 = vadd.f32 %v7907, %v8070
        %v8086 = vadd.f32 %v7908, %v8078
        %v8087 = vadd.f32 %v7909, %v8075
        %v8088 = vadd.f32 %v7910, %v8071
        %v8089 = vadd.f32 %v7911, %v8079
        %v8090 = vadd.f32 %v7912, %v8076
        %v8091 = vadd.f32 %v7913, %v8072
        %v8092 = vadd.f32 %v7914, %v8080
        %v8093 = vld [vmem:[%s10 + $0xc0] sm:$0xff]
        %v8094 = vld [vmem:[%s10 + $0xc8] sm:$0xff]
        %v8095 = vld [vmem:[%s10 + $0xd0] sm:$0xff]
        %v8096 = vld [vmem:[%s10 + $0xd8] sm:$0xff]
        %v8101 = vunpack.c.l.b16 %v8093
        %v8102 = vunpack.c.h.b16 %v8093
        %v8103 = vunpack.c.l.b16 %v8094
        %v8104 = vunpack.c.h.b16 %v8094
        %v8105 = vunpack.c.l.b16 %v8095
        %v8106 = vunpack.c.h.b16 %v8095
        %v8107 = vunpack.c.l.b16 %v8096
        %v8108 = vunpack.c.h.b16 %v8096
        %v8109 = vpack.c.b16 %v8103, %v8101
        %v8110 = vpack.c.b16 %v8104, %v8102
        %v8111 = vpack.c.b16 %v8107, %v8105
        %v8112 = vpack.c.b16 %v8108, %v8106
        %v8116 = vsel %vm470, %v8110, 0
        %v8119 = vsel %vm470, %v8112, 0
        %8121 = vmatprep.subr.bf16.mxu0 %v7032
        %8122 = vmatpush1.bf16.msra.mxu0 %v7031
        %8123 = vmatprep.subr.bf16.mxu0 %v7035
        %8124 = vmatpush1.bf16.msra.mxu0 %v7034
        %8125 = vmatprep.subr.bf16.mxu0 %v7038
        %8126 = vmatpush1.bf16.msra.mxu0 %v7037
        %8127 = vmatprep.subr.bf16.mxu0 %v7041
        %8128 = vmatpush1.bf16.msra.mxu0 %v7040
        %8129 = vmatprep.subr.bf16.mxu0 %v7044
        %8130 = vmatpush1.bf16.msra.mxu0 %v7043
        %8131 = vmatprep.subr.bf16.mxu0 %v7047
        %8132 = vmatpush1.bf16.msra.mxu0 %v7046
        %8133 = vmatprep.subr.bf16.mxu0 %v7050
        %8134 = vmatpush1.bf16.msra.mxu0 %v7049
        %8135 = vmatprep.subr.bf16.mxu0 %v7053
        %8136 = vmatpush1.bf16.msra.mxu0 %v7052
        %8137 = vmatprep.subr.bf16.mxu0 %v7056
        %8138 = vmatpush1.bf16.msra.mxu0 %v7055
        %8139 = vmatprep.subr.bf16.mxu0 %v7059
        %8140 = vmatpush1.bf16.msra.mxu0 %v7058
        %8141 = vmatprep.subr.bf16.mxu0 0
        %8142 = vmatpush1.bf16.msra.mxu0 0
        %8143 = vmatprep.subr.bf16.mxu0 0
        %8144 = vmatpush1.bf16.msra.mxu0 0
        %8145 = vmatprep.subr.bf16.mxu0 0
        %8146 = vmatpush1.bf16.msra.mxu0 0
        %8147 = vmatprep.subr.bf16.mxu0 0
        %8148 = vmatpush1.bf16.msra.mxu0 0
        %8149 = vmatprep.subr.bf16.mxu0 0
        %8150 = vmatpush1.bf16.msra.mxu0 0
        %8151 = vmatprep.subr.bf16.mxu0 0
        %8152 = vmatpush1.bf16.msra.mxu0 0
        %8153 = vmatprep.mubr.bf16.mxu0 %v8116
        %8154 = vmatmul.mubr.bf16.gmra.mrb[0].mxu0 %v8109
        %v8155 = vpop.f32.mrb[0].mxu0
        %v8156 = vadd.f32 0.0, %v8155
        %v8157 = vpop.f32.mrb[0].mxu0
        %v8158 = vadd.f32 0.0, %v8157
        %v8159 = vpop.f32.mrb[0].mxu0
        %v8160 = vadd.f32 0.0, %v8159
        %v8161 = vpop.f32.mrb[0].mxu0
        %v8162 = vadd.f32 0.0, %v8161
        %8163 = vmatprep.mubr.bf16.mxu0 %v8119
        %8164 = vmatmul.mubr.bf16.gmra.mrb[0].mxu0 %v8111
        %v8165 = vpop.f32.mrb[0].mxu0
        %v8166 = vadd.f32 0.0, %v8165
        %v8167 = vpop.f32.mrb[0].mxu0
        %v8168 = vadd.f32 0.0, %v8167
        %v8169 = vpop.f32.mrb[0].mxu0
        %v8170 = vadd.f32 0.0, %v8169
        %v8171 = vpop.f32.mrb[0].mxu0
        %v8172 = vadd.f32 0.0, %v8171
        %8173 = vdwg.mxu0
        %8174 = vmatprep.subr.bf16.mxu0 0
        %8175 = vmatpush1.bf16.msra.mxu0 %v7033
        %8176 = vmatprep.subr.bf16.mxu0 0
        %8177 = vmatpush1.bf16.msra.mxu0 %v7036
        %8178 = vmatprep.subr.bf16.mxu0 0
        %8179 = vmatpush1.bf16.msra.mxu0 %v7039
        %8180 = vmatprep.subr.bf16.mxu0 0
        %8181 = vmatpush1.bf16.msra.mxu0 %v7042
        %8182 = vmatprep.subr.bf16.mxu0 0
        %8183 = vmatpush1.bf16.msra.mxu0 %v7045
        %8184 = vmatprep.subr.bf16.mxu0 0
        %8185 = vmatpush1.bf16.msra.mxu0 %v7048
        %8186 = vmatprep.subr.bf16.mxu0 0
        %8187 = vmatpush1.bf16.msra.mxu0 %v7051
        %8188 = vmatprep.subr.bf16.mxu0 0
        %8189 = vmatpush1.bf16.msra.mxu0 %v7054
        %8190 = vmatprep.subr.bf16.mxu0 0
        %8191 = vmatpush1.bf16.msra.mxu0 %v7057
        %8192 = vmatprep.subr.bf16.mxu0 0
        %8193 = vmatpush1.bf16.msra.mxu0 %v7060
        %8194 = vmatprep.subr.bf16.mxu0 0
        %8195 = vmatpush1.bf16.msra.mxu0 0
        %8196 = vmatprep.subr.bf16.mxu0 0
        %8197 = vmatpush1.bf16.msra.mxu0 0
        %8198 = vmatprep.subr.bf16.mxu0 0
        %8199 = vmatpush1.bf16.msra.mxu0 0
        %8200 = vmatprep.subr.bf16.mxu0 0
        %8201 = vmatpush1.bf16.msra.mxu0 0
        %8202 = vmatprep.subr.bf16.mxu0 0
        %8203 = vmatpush1.bf16.msra.mxu0 0
        %8204 = vmatprep.subr.bf16.mxu0 0
        %8205 = vmatpush1.bf16.msra.mxu0 0
        %8206 = vmatprep.mubr.bf16.mxu0 %v8116
        %8207 = vmatmul.mubr.bf16.gmra.mrb[0].mxu0 %v8109
        %v8208 = vpop.f32.mrb[0].mxu0
        %v8209 = vadd.f32 0.0, %v8208
        %v8210 = vpop.f32.mrb[0].mxu0
        %v8211 = vpop.f32.mrb[0].mxu0
        %v8212 = vadd.f32 0.0, %v8211
        %v8213 = vpop.f32.mrb[0].mxu0
        %8214 = vmatprep.mubr.bf16.mxu0 %v8119
        %8215 = vmatmul.mubr.bf16.gmra.mrb[0].mxu0 %v8111
        %v8216 = vpop.f32.mrb[0].mxu0
        %v8217 = vadd.f32 0.0, %v8216
        %v8218 = vpop.f32.mrb[0].mxu0
        %v8219 = vpop.f32.mrb[0].mxu0
        %v8220 = vadd.f32 0.0, %v8219
        %v8221 = vpop.f32.mrb[0].mxu0
        %8222 = vdwg.mxu0
        %8223 = vrot.lane.b32.xlu0 %v8156, 111
        %v8224 = vpop.permute.xlu0 %8223
        %8225 = vrot.lane.b32.xlu0 %v8160, 111
        %v8226 = vpop.permute.xlu0 %8225
        %8227 = vrot.lane.b32.xlu0 %v8166, 111
        %v8228 = vpop.permute.xlu0 %8227
        %8229 = vrot.lane.b32.xlu0 %v8170, 111
        %v8230 = vpop.permute.xlu0 %8229
        %8231 = vrot.lane.b32.xlu0 %v8158, 111
        %v8232 = vpop.permute.xlu0 %8231
        %8233 = vrot.lane.b32.xlu0 %v8162, 111
        %v8234 = vpop.permute.xlu0 %8233
        %8235 = vrot.lane.b32.xlu0 %v8168, 111
        %v8236 = vpop.permute.xlu0 %8235
        %8237 = vrot.lane.b32.xlu0 %v8172, 111
        %v8238 = vpop.permute.xlu0 %8237
        %8239 = vrot.lane.b32.xlu0 %v8209, 111
        %v8240 = vpop.permute.xlu0 %8239
        %8241 = vrot.lane.b32.xlu0 %v8212, 111
        %v8242 = vpop.permute.xlu0 %8241
        %8243 = vrot.lane.b32.xlu0 %v8217, 111
        %v8244 = vpop.permute.xlu0 %8243
        %8245 = vrot.lane.b32.xlu0 %v8220, 111
        %v8246 = vpop.permute.xlu0 %8245
        %v8247 = vsel %vm1594, %v8232, %v8240
        %v8248 = vsel %vm1594, %v8234, %v8242
        %v8249 = vsel %vm1594, %v8236, %v8244
        %v8250 = vsel %vm1594, %v8238, %v8246
        %v8251 = vsel %vm1594, %v8224, %v8232
        %v8252 = vsel %vm1594, %v8226, %v8234
        %v8253 = vsel %vm1594, %v8228, %v8236
        %v8254 = vsel %vm1594, %v8230, %v8238
        %v8255 = vsel %vm1594, %v8240, %v8224
        %v8256 = vsel %vm1594, %v8242, %v8226
        %v8257 = vsel %vm1594, %v8244, %v8228
        %v8258 = vsel %vm1594, %v8246, %v8230
        %v8259 = vadd.f32 %v8081, %v8251
        %v8260 = vadd.f32 %v8082, %v8247
        %v8261 = vadd.f32 %v8083, %v8255
        %v8262 = vadd.f32 %v8084, %v8252
        %v8263 = vadd.f32 %v8085, %v8248
        %v8264 = vadd.f32 %v8086, %v8256
        %v8265 = vadd.f32 %v8087, %v8253
        %v8266 = vadd.f32 %v8088, %v8249
        %v8267 = vadd.f32 %v8089, %v8257
        %v8268 = vadd.f32 %v8090, %v8254
        %v8269 = vadd.f32 %v8091, %v8250
        %v8270 = vadd.f32 %v8092, %v8258
        %v8271 = vld [vmem:[%s10 + $0xe0] sm:$0xff]
        %v8272 = vld [vmem:[%s10 + $0xe8] sm:$0xff]
        %v8273 = vld [vmem:[%s10 + $0xf0] sm:$0xff]
        %v8274 = vld [vmem:[%s10 + $0xf8] sm:$0xff]
        %v8279 = vunpack.c.l.b16 %v8271
        %v8280 = vunpack.c.h.b16 %v8271
        %v8281 = vunpack.c.l.b16 %v8272
        %v8282 = vunpack.c.h.b16 %v8272
        %v8283 = vunpack.c.l.b16 %v8273
        %v8284 = vunpack.c.h.b16 %v8273
        %v8285 = vunpack.c.l.b16 %v8274
        %v8286 = vunpack.c.h.b16 %v8274
        %v8287 = vpack.c.b16 %v8281, %v8279
        %v8288 = vpack.c.b16 %v8282, %v8280
        %v8289 = vpack.c.b16 %v8285, %v8283
        %v8290 = vpack.c.b16 %v8286, %v8284
        %v8294 = vsel %vm470, %v8288, 0
        %v8297 = vsel %vm470, %v8290, 0
        %8299 = vmatprep.subr.bf16.mxu0 %v7032
        %8300 = vmatpush1.bf16.msra.mxu0 %v7031
        %8301 = vmatprep.subr.bf16.mxu0 %v7035
        %8302 = vmatpush1.bf16.msra.mxu0 %v7034
        %8303 = vmatprep.subr.bf16.mxu0 %v7038
        %8304 = vmatpush1.bf16.msra.mxu0 %v7037
        %8305 = vmatprep.subr.bf16.mxu0 %v7041
        %8306 = vmatpush1.bf16.msra.mxu0 %v7040
        %8307 = vmatprep.subr.bf16.mxu0 %v7044
        %8308 = vmatpush1.bf16.msra.mxu0 %v7043
        %8309 = vmatprep.subr.bf16.mxu0 %v7047
        %8310 = vmatpush1.bf16.msra.mxu0 %v7046
        %8311 = vmatprep.subr.bf16.mxu0 %v7050
        %8312 = vmatpush1.bf16.msra.mxu0 %v7049
        %8313 = vmatprep.subr.bf16.mxu0 %v7053
        %8314 = vmatpush1.bf16.msra.mxu0 %v7052
        %8315 = vmatprep.subr.bf16.mxu0 %v7056
        %8316 = vmatpush1.bf16.msra.mxu0 %v7055
        %8317 = vmatprep.subr.bf16.mxu0 %v7059
        %8318 = vmatpush1.bf16.msra.mxu0 %v7058
        %8319 = vmatprep.subr.bf16.mxu0 0
        %8320 = vmatpush1.bf16.msra.mxu0 0
        %8321 = vmatprep.subr.bf16.mxu0 0
        %8322 = vmatpush1.bf16.msra.mxu0 0
        %8323 = vmatprep.subr.bf16.mxu0 0
        %8324 = vmatpush1.bf16.msra.mxu0 0
        %8325 = vmatprep.subr.bf16.mxu0 0
        %8326 = vmatpush1.bf16.msra.mxu0 0
        %8327 = vmatprep.subr.bf16.mxu0 0
        %8328 = vmatpush1.bf16.msra.mxu0 0
        %8329 = vmatprep.subr.bf16.mxu0 0
        %8330 = vmatpush1.bf16.msra.mxu0 0
        %8331 = vmatprep.mubr.bf16.mxu0 %v8294
        %8332 = vmatmul.mubr.bf16.gmra.mrb[0].mxu0 %v8287
        %v8333 = vpop.f32.mrb[0].mxu0
        %v8334 = vadd.f32 0.0, %v8333
        %v8335 = vpop.f32.mrb[0].mxu0
        %v8336 = vadd.f32 0.0, %v8335
        %v8337 = vpop.f32.mrb[0].mxu0
        %v8338 = vadd.f32 0.0, %v8337
        %v8339 = vpop.f32.mrb[0].mxu0
        %v8340 = vadd.f32 0.0, %v8339
        %8341 = vmatprep.mubr.bf16.mxu0 %v8297
        %8342 = vmatmul.mubr.bf16.gmra.mrb[0].mxu0 %v8289
        %v8343 = vpop.f32.mrb[0].mxu0
        %v8344 = vadd.f32 0.0, %v8343
        %v8345 = vpop.f32.mrb[0].mxu0
        %v8346 = vadd.f32 0.0, %v8345
        %v8347 = vpop.f32.mrb[0].mxu0
        %v8348 = vadd.f32 0.0, %v8347
        %v8349 = vpop.f32.mrb[0].mxu0
        %v8350 = vadd.f32 0.0, %v8349
        %8351 = vdwg.mxu0
        %8352 = vmatprep.subr.bf16.mxu0 0
        %8353 = vmatpush1.bf16.msra.mxu0 %v7033
        %8354 = vmatprep.subr.bf16.mxu0 0
        %8355 = vmatpush1.bf16.msra.mxu0 %v7036
        %8356 = vmatprep.subr.bf16.mxu0 0
        %8357 = vmatpush1.bf16.msra.mxu0 %v7039
        %8358 = vmatprep.subr.bf16.mxu0 0
        %8359 = vmatpush1.bf16.msra.mxu0 %v7042
        %8360 = vmatprep.subr.bf16.mxu0 0
        %8361 = vmatpush1.bf16.msra.mxu0 %v7045
        %8362 = vmatprep.subr.bf16.mxu0 0
        %8363 = vmatpush1.bf16.msra.mxu0 %v7048
        %8364 = vmatprep.subr.bf16.mxu0 0
        %8365 = vmatpush1.bf16.msra.mxu0 %v7051
        %8366 = vmatprep.subr.bf16.mxu0 0
        %8367 = vmatpush1.bf16.msra.mxu0 %v7054
        %8368 = vmatprep.subr.bf16.mxu0 0
        %8369 = vmatpush1.bf16.msra.mxu0 %v7057
        %8370 = vmatprep.subr.bf16.mxu0 0
        %8371 = vmatpush1.bf16.msra.mxu0 %v7060
        %8372 = vmatprep.subr.bf16.mxu0 0
        %8373 = vmatpush1.bf16.msra.mxu0 0
        %8374 = vmatprep.subr.bf16.mxu0 0
        %8375 = vmatpush1.bf16.msra.mxu0 0
        %8376 = vmatprep.subr.bf16.mxu0 0
        %8377 = vmatpush1.bf16.msra.mxu0 0
        %8378 = vmatprep.subr.bf16.mxu0 0
        %8379 = vmatpush1.bf16.msra.mxu0 0
        %8380 = vmatprep.subr.bf16.mxu0 0
        %8381 = vmatpush1.bf16.msra.mxu0 0
        %8382 = vmatprep.subr.bf16.mxu0 0
        %8383 = vmatpush1.bf16.msra.mxu0 0
        %8384 = vmatprep.mubr.bf16.mxu0 %v8294
        %8385 = vmatmul.mubr.bf16.gmra.mrb[0].mxu0 %v8287
        %v8386 = vpop.f32.mrb[0].mxu0
        %v8387 = vadd.f32 0.0, %v8386
        %v8388 = vpop.f32.mrb[0].mxu0
        %v8389 = vpop.f32.mrb[0].mxu0
        %v8390 = vadd.f32 0.0, %v8389
        %v8391 = vpop.f32.mrb[0].mxu0
        %8392 = vmatprep.mubr.bf16.mxu0 %v8297
        %8393 = vmatmul.mubr.bf16.gmra.mrb[0].mxu0 %v8289
        %v8394 = vpop.f32.mrb[0].mxu0
        %v8395 = vadd.f32 0.0, %v8394
        %v8396 = vpop.f32.mrb[0].mxu0
        %v8397 = vpop.f32.mrb[0].mxu0
        %v8398 = vadd.f32 0.0, %v8397
        %v8399 = vpop.f32.mrb[0].mxu0
        %8400 = vdwg.mxu0
        %8401 = vrot.lane.b32.xlu0 %v8334, 110
        %v8402 = vpop.permute.xlu0 %8401
        %8403 = vrot.lane.b32.xlu0 %v8338, 110
        %v8404 = vpop.permute.xlu0 %8403
        %8405 = vrot.lane.b32.xlu0 %v8344, 110
        %v8406 = vpop.permute.xlu0 %8405
        %8407 = vrot.lane.b32.xlu0 %v8348, 110
        %v8408 = vpop.permute.xlu0 %8407
        %8409 = vrot.lane.b32.xlu0 %v8336, 110
        %v8410 = vpop.permute.xlu0 %8409
        %8411 = vrot.lane.b32.xlu0 %v8340, 110
        %v8412 = vpop.permute.xlu0 %8411
        %8413 = vrot.lane.b32.xlu0 %v8346, 110
        %v8414 = vpop.permute.xlu0 %8413
        %8415 = vrot.lane.b32.xlu0 %v8350, 110
        %v8416 = vpop.permute.xlu0 %8415
        %8417 = vrot.lane.b32.xlu0 %v8387, 110
        %v8418 = vpop.permute.xlu0 %8417
        %8419 = vrot.lane.b32.xlu0 %v8390, 110
        %v8420 = vpop.permute.xlu0 %8419
        %8421 = vrot.lane.b32.xlu0 %v8395, 110
        %v8422 = vpop.permute.xlu0 %8421
        %8423 = vrot.lane.b32.xlu0 %v8398, 110
        %v8424 = vpop.permute.xlu0 %8423
        %v8425 = vsel %vm1765, %v8410, %v8418
        %v8426 = vsel %vm1765, %v8412, %v8420
        %v8427 = vsel %vm1765, %v8414, %v8422
        %v8428 = vsel %vm1765, %v8416, %v8424
        %v8429 = vsel %vm1765, %v8402, %v8410
        %v8430 = vsel %vm1765, %v8404, %v8412
        %v8431 = vsel %vm1765, %v8406, %v8414
        %v8432 = vsel %vm1765, %v8408, %v8416
        %v8433 = vsel %vm1765, %v8418, %v8402
        %v8434 = vsel %vm1765, %v8420, %v8404
        %v8435 = vsel %vm1765, %v8422, %v8406
        %v8436 = vsel %vm1765, %v8424, %v8408
        %v8437 = vadd.f32 %v8259, %v8429
        %v8438 = vadd.f32 %v8260, %v8425
        %v8439 = vadd.f32 %v8261, %v8433
        %v8440 = vadd.f32 %v8262, %v8430
        %v8441 = vadd.f32 %v8263, %v8426
        %v8442 = vadd.f32 %v8264, %v8434
        %v8443 = vadd.f32 %v8265, %v8431
        %v8444 = vadd.f32 %v8266, %v8427
        %v8445 = vadd.f32 %v8267, %v8435
        %v8446 = vadd.f32 %v8268, %v8432
        %v8447 = vadd.f32 %v8269, %v8428
        %v8448 = vadd.f32 %v8270, %v8436
        %v8449 = vld [vmem:[%s10 + $0x100] sm:$0xff]
        %v8450 = vld [vmem:[%s10 + $0x108] sm:$0xff]
        %v8451 = vld [vmem:[%s10 + $0x110] sm:$0xff]
        %v8452 = vld [vmem:[%s10 + $0x118] sm:$0xff]
        %v8457 = vunpack.c.l.b16 %v8449
        %v8458 = vunpack.c.h.b16 %v8449
        %v8459 = vunpack.c.l.b16 %v8450
        %v8460 = vunpack.c.h.b16 %v8450
        %v8461 = vunpack.c.l.b16 %v8451
        %v8462 = vunpack.c.h.b16 %v8451
        %v8463 = vunpack.c.l.b16 %v8452
        %v8464 = vunpack.c.h.b16 %v8452
        %v8465 = vpack.c.b16 %v8459, %v8457
        %v8466 = vpack.c.b16 %v8460, %v8458
        %v8467 = vpack.c.b16 %v8463, %v8461
        %v8468 = vpack.c.b16 %v8464, %v8462
        %v8472 = vsel %vm470, %v8466, 0
        %v8475 = vsel %vm470, %v8468, 0
        %8477 = vmatprep.subr.bf16.mxu0 %v7032
        %8478 = vmatpush1.bf16.msra.mxu0 %v7031
        %8479 = vmatprep.subr.bf16.mxu0 %v7035
        %8480 = vmatpush1.bf16.msra.mxu0 %v7034
        %8481 = vmatprep.subr.bf16.mxu0 %v7038
        %8482 = vmatpush1.bf16.msra.mxu0 %v7037
        %8483 = vmatprep.subr.bf16.mxu0 %v7041
        %8484 = vmatpush1.bf16.msra.mxu0 %v7040
        %8485 = vmatprep.subr.bf16.mxu0 %v7044
        %8486 = vmatpush1.bf16.msra.mxu0 %v7043
        %8487 = vmatprep.subr.bf16.mxu0 %v7047
        %8488 = vmatpush1.bf16.msra.mxu0 %v7046
        %8489 = vmatprep.subr.bf16.mxu0 %v7050
        %8490 = vmatpush1.bf16.msra.mxu0 %v7049
        %8491 = vmatprep.subr.bf16.mxu0 %v7053
        %8492 = vmatpush1.bf16.msra.mxu0 %v7052
        %8493 = vmatprep.subr.bf16.mxu0 %v7056
        %8494 = vmatpush1.bf16.msra.mxu0 %v7055
        %8495 = vmatprep.subr.bf16.mxu0 %v7059
        %8496 = vmatpush1.bf16.msra.mxu0 %v7058
        %8497 = vmatprep.subr.bf16.mxu0 0
        %8498 = vmatpush1.bf16.msra.mxu0 0
        %8499 = vmatprep.subr.bf16.mxu0 0
        %8500 = vmatpush1.bf16.msra.mxu0 0
        %8501 = vmatprep.subr.bf16.mxu0 0
        %8502 = vmatpush1.bf16.msra.mxu0 0
        %8503 = vmatprep.subr.bf16.mxu0 0
        %8504 = vmatpush1.bf16.msra.mxu0 0
        %8505 = vmatprep.subr.bf16.mxu0 0
        %8506 = vmatpush1.bf16.msra.mxu0 0
        %8507 = vmatprep.subr.bf16.mxu0 0
        %8508 = vmatpush1.bf16.msra.mxu0 0
        %8509 = vmatprep.mubr.bf16.mxu0 %v8472
        %8510 = vmatmul.mubr.bf16.gmra.mrb[0].mxu0 %v8465
        %v8511 = vpop.f32.mrb[0].mxu0
        %v8512 = vadd.f32 0.0, %v8511
        %v8513 = vpop.f32.mrb[0].mxu0
        %v8514 = vadd.f32 0.0, %v8513
        %v8515 = vpop.f32.mrb[0].mxu0
        %v8516 = vadd.f32 0.0, %v8515
        %v8517 = vpop.f32.mrb[0].mxu0
        %v8518 = vadd.f32 0.0, %v8517
        %8519 = vmatprep.mubr.bf16.mxu0 %v8475
        %8520 = vmatmul.mubr.bf16.gmra.mrb[0].mxu0 %v8467
        %v8521 = vpop.f32.mrb[0].mxu0
        %v8522 = vadd.f32 0.0, %v8521
        %v8523 = vpop.f32.mrb[0].mxu0
        %v8524 = vadd.f32 0.0, %v8523
        %v8525 = vpop.f32.mrb[0].mxu0
        %v8526 = vadd.f32 0.0, %v8525
        %v8527 = vpop.f32.mrb[0].mxu0
        %v8528 = vadd.f32 0.0, %v8527
        %8529 = vdwg.mxu0
        %8530 = vmatprep.subr.bf16.mxu0 0
        %8531 = vmatpush1.bf16.msra.mxu0 %v7033
        %8532 = vmatprep.subr.bf16.mxu0 0
        %8533 = vmatpush1.bf16.msra.mxu0 %v7036
        %8534 = vmatprep.subr.bf16.mxu0 0
        %8535 = vmatpush1.bf16.msra.mxu0 %v7039
        %8536 = vmatprep.subr.bf16.mxu0 0
        %8537 = vmatpush1.bf16.msra.mxu0 %v7042
        %8538 = vmatprep.subr.bf16.mxu0 0
        %8539 = vmatpush1.bf16.msra.mxu0 %v7045
        %8540 = vmatprep.subr.bf16.mxu0 0
        %8541 = vmatpush1.bf16.msra.mxu0 %v7048
        %8542 = vmatprep.subr.bf16.mxu0 0
        %8543 = vmatpush1.bf16.msra.mxu0 %v7051
        %8544 = vmatprep.subr.bf16.mxu0 0
        %8545 = vmatpush1.bf16.msra.mxu0 %v7054
        %8546 = vmatprep.subr.bf16.mxu0 0
        %8547 = vmatpush1.bf16.msra.mxu0 %v7057
        %8548 = vmatprep.subr.bf16.mxu0 0
        %8549 = vmatpush1.bf16.msra.mxu0 %v7060
        %8550 = vmatprep.subr.bf16.mxu0 0
        %8551 = vmatpush1.bf16.msra.mxu0 0
        %8552 = vmatprep.subr.bf16.mxu0 0
        %8553 = vmatpush1.bf16.msra.mxu0 0
        %8554 = vmatprep.subr.bf16.mxu0 0
        %8555 = vmatpush1.bf16.msra.mxu0 0
        %8556 = vmatprep.subr.bf16.mxu0 0
        %8557 = vmatpush1.bf16.msra.mxu0 0
        %8558 = vmatprep.subr.bf16.mxu0 0
        %8559 = vmatpush1.bf16.msra.mxu0 0
        %8560 = vmatprep.subr.bf16.mxu0 0
        %8561 = vmatpush1.bf16.msra.mxu0 0
        %8562 = vmatprep.mubr.bf16.mxu0 %v8472
        %8563 = vmatmul.mubr.bf16.gmra.mrb[0].mxu0 %v8465
        %v8564 = vpop.f32.mrb[0].mxu0
        %v8565 = vadd.f32 0.0, %v8564
        %v8566 = vpop.f32.mrb[0].mxu0
        %v8567 = vpop.f32.mrb[0].mxu0
        %v8568 = vadd.f32 0.0, %v8567
        %v8569 = vpop.f32.mrb[0].mxu0
        %8570 = vmatprep.mubr.bf16.mxu0 %v8475
        %8571 = vmatmul.mubr.bf16.gmra.mrb[0].mxu0 %v8467
        %v8572 = vpop.f32.mrb[0].mxu0
        %v8573 = vadd.f32 0.0, %v8572
        %v8574 = vpop.f32.mrb[0].mxu0
        %v8575 = vpop.f32.mrb[0].mxu0
        %v8576 = vadd.f32 0.0, %v8575
        %v8577 = vpop.f32.mrb[0].mxu0
        %8578 = vdwg.mxu0
        %8579 = vrot.lane.b32.xlu0 %v8512, 109
        %v8580 = vpop.permute.xlu0 %8579
        %8581 = vrot.lane.b32.xlu0 %v8516, 109
        %v8582 = vpop.permute.xlu0 %8581
        %8583 = vrot.lane.b32.xlu0 %v8522, 109
        %v8584 = vpop.permute.xlu0 %8583
        %8585 = vrot.lane.b32.xlu0 %v8526, 109
        %v8586 = vpop.permute.xlu0 %8585
        %8587 = vrot.lane.b32.xlu0 %v8514, 109
        %v8588 = vpop.permute.xlu0 %8587
        %8589 = vrot.lane.b32.xlu0 %v8518, 109
        %v8590 = vpop.permute.xlu0 %8589
        %8591 = vrot.lane.b32.xlu0 %v8524, 109
        %v8592 = vpop.permute.xlu0 %8591
        %8593 = vrot.lane.b32.xlu0 %v8528, 109
        %v8594 = vpop.permute.xlu0 %8593
        %8595 = vrot.lane.b32.xlu0 %v8565, 109
        %v8596 = vpop.permute.xlu0 %8595
        %8597 = vrot.lane.b32.xlu0 %v8568, 109
        %v8598 = vpop.permute.xlu0 %8597
        %8599 = vrot.lane.b32.xlu0 %v8573, 109
        %v8600 = vpop.permute.xlu0 %8599
        %8601 = vrot.lane.b32.xlu0 %v8576, 109
        %v8602 = vpop.permute.xlu0 %8601
        %v8603 = vsel %vm1936, %v8588, %v8596
        %v8604 = vsel %vm1936, %v8590, %v8598
        %v8605 = vsel %vm1936, %v8592, %v8600
        %v8606 = vsel %vm1936, %v8594, %v8602
        %v8607 = vsel %vm1936, %v8580, %v8588
        %v8608 = vsel %vm1936, %v8582, %v8590
        %v8609 = vsel %vm1936, %v8584, %v8592
        %v8610 = vsel %vm1936, %v8586, %v8594
        %v8611 = vsel %vm1936, %v8596, %v8580
        %v8612 = vsel %vm1936, %v8598, %v8582
        %v8613 = vsel %vm1936, %v8600, %v8584
        %v8614 = vsel %vm1936, %v8602, %v8586
        %v8615 = vadd.f32 %v8437, %v8607
        %v8616 = vadd.f32 %v8438, %v8603
        %v8617 = vadd.f32 %v8439, %v8611
        %v8618 = vadd.f32 %v8440, %v8608
        %v8619 = vadd.f32 %v8441, %v8604
        %v8620 = vadd.f32 %v8442, %v8612
        %v8621 = vadd.f32 %v8443, %v8609
        %v8622 = vadd.f32 %v8444, %v8605
        %v8623 = vadd.f32 %v8445, %v8613
        %v8624 = vadd.f32 %v8446, %v8610
        %v8625 = vadd.f32 %v8447, %v8606
        %v8626 = vadd.f32 %v8448, %v8614
        %v8627 = vld [vmem:[%s11] sm:$0xff]
        %v8628 = vld [vmem:[%s11 + $0x8] sm:$0xff]
        %v8629 = vld [vmem:[%s11 + $0x10] sm:$0xff]
        %v8630 = vld [vmem:[%s11 + $0x18] sm:$0xff]
        %8632 = vset.pattern.permute.xlu0 0
        %8633 = vperm.xlu0 %8632, %v8627
        %v8634 = vpop.permute.xlu0 %8633
        %8637 = vset.pattern.permute.xlu0 0
        %8638 = vperm.xlu0 %8637, %v8628
        %v8639 = vpop.permute.xlu0 %8638
        %8642 = vset.pattern.permute.xlu0 0
        %8643 = vperm.xlu0 %8642, %v8629
        %v8644 = vpop.permute.xlu0 %8643
        %8647 = vset.pattern.permute.xlu0 0
        %8648 = vperm.xlu0 %8647, %v8630
        %v8649 = vpop.permute.xlu0 %8648
        %v8651 = vadd.f32 %v8615, %v8634
        %v8652 = vadd.f32 %v8616, %v8634
        %v8653 = vadd.f32 %v8617, %v8634
        %v8654 = vadd.f32 %v8618, %v8639
        %v8655 = vadd.f32 %v8619, %v8639
        %v8656 = vadd.f32 %v8620, %v8639
        %v8657 = vadd.f32 %v8621, %v8644
        %v8658 = vadd.f32 %v8622, %v8644
        %v8659 = vadd.f32 %v8623, %v8644
        %v8660 = vadd.f32 %v8624, %v8649
        %v8661 = vadd.f32 %v8625, %v8649
        %v8662 = vadd.f32 %v8626, %v8649
        %vm8663 = vcmp.ge.f32.partialorder %v8651, 0.0
        %vm8664 = vcmp.ge.f32.partialorder %v8652, 0.0
        %vm8665 = vcmp.ge.f32.partialorder %v8653, 0.0
        %vm8666 = vcmp.ge.f32.partialorder %v8654, 0.0
        %vm8667 = vcmp.ge.f32.partialorder %v8655, 0.0
        %vm8668 = vcmp.ge.f32.partialorder %v8656, 0.0
        %vm8669 = vcmp.ge.f32.partialorder %v8657, 0.0
        %vm8670 = vcmp.ge.f32.partialorder %v8658, 0.0
        %vm8671 = vcmp.ge.f32.partialorder %v8659, 0.0
        %vm8672 = vcmp.ge.f32.partialorder %v8660, 0.0
        %vm8673 = vcmp.ge.f32.partialorder %v8661, 0.0
        %vm8674 = vcmp.ge.f32.partialorder %v8662, 0.0
        %v8675 = vmul.f32 %v8651, 0.01
        %v8676 = vmul.f32 %v8652, 0.01
        %v8677 = vmul.f32 %v8653, 0.01
        %v8678 = vmul.f32 %v8654, 0.01
        %v8679 = vmul.f32 %v8655, 0.01
        %v8680 = vmul.f32 %v8656, 0.01
        %v8681 = vmul.f32 %v8657, 0.01
        %v8682 = vmul.f32 %v8658, 0.01
        %v8683 = vmul.f32 %v8659, 0.01
        %v8684 = vmul.f32 %v8660, 0.01
        %v8685 = vmul.f32 %v8661, 0.01
        %v8686 = vmul.f32 %v8662, 0.01
        %v8687 = vsel %vm8663, %v8651, %v8675
        %v8688 = vsel %vm8664, %v8652, %v8676
        %v8689 = vsel %vm8665, %v8653, %v8677
        %v8690 = vsel %vm8666, %v8654, %v8678
        %v8691 = vsel %vm8667, %v8655, %v8679
        %v8692 = vsel %vm8668, %v8656, %v8680
        %v8693 = vsel %vm8669, %v8657, %v8681
        %v8694 = vsel %vm8670, %v8658, %v8682
        %v8695 = vsel %vm8671, %v8659, %v8683
        %v8696 = vsel %vm8672, %v8660, %v8684
        %v8697 = vsel %vm8673, %v8661, %v8685
        %v8698 = vsel %vm8674, %v8662, %v8686
        %v8699 = vmul.f32 %v8687, 0.2
        %v8700 = vmul.f32 %v8688, 0.2
        %v8701 = vmul.f32 %v8689, 0.2
        %v8702 = vmul.f32 %v8690, 0.2
        %v8703 = vmul.f32 %v8691, 0.2
        %v8704 = vmul.f32 %v8692, 0.2
        %v8705 = vmul.f32 %v8693, 0.2
        %v8706 = vmul.f32 %v8694, 0.2
        %v8707 = vmul.f32 %v8695, 0.2
        %v8708 = vmul.f32 %v8696, 0.2
        %v8709 = vmul.f32 %v8697, 0.2
        %v8710 = vmul.f32 %v8698, 0.2
        %v8711 = vld [vmem:[#allocation2] sm:$0xff]
        %v8712 = vld [vmem:[#allocation2 + $0x8] sm:$0xff]
        %v8713 = vld [vmem:[#allocation2 + $0x10] sm:$0xff]
        %v8714 = vld [vmem:[#allocation2 + $0x18] sm:$0xff]
        %v8715 = vld [vmem:[#allocation2 + $0x20] sm:$0xff]
        %v8716 = vld [vmem:[#allocation2 + $0x28] sm:$0xff]
        %v8717 = vld [vmem:[#allocation2 + $0x30] sm:$0xff]
        %v8718 = vld [vmem:[#allocation2 + $0x38] sm:$0xff]
        %v8719 = vld [vmem:[#allocation2 + $0x40] sm:$0xff]
        %v8720 = vld [vmem:[#allocation2 + $0x48] sm:$0xff]
        %v8721 = vld [vmem:[#allocation2 + $0x50] sm:$0xff]
        %v8722 = vld [vmem:[#allocation2 + $0x58] sm:$0xff]
        %v8723 = vadd.f32 %v8699, %v8711
        %v8724 = vadd.f32 %v8700, %v8712
        %v8725 = vadd.f32 %v8701, %v8713
        %v8726 = vadd.f32 %v8702, %v8714
        %v8727 = vadd.f32 %v8703, %v8715
        %v8728 = vadd.f32 %v8704, %v8716
        %v8729 = vadd.f32 %v8705, %v8717
        %v8730 = vadd.f32 %v8706, %v8718
        %v8731 = vadd.f32 %v8707, %v8719
        %v8732 = vadd.f32 %v8708, %v8720
        %v8733 = vadd.f32 %v8709, %v8721
        %v8734 = vadd.f32 %v8710, %v8722
        %8735 = vst [vmem:[%s406] sm:$0xff] %v8723
        %8736 = vst [vmem:[%s406 + $0x8] sm:$0xff] %v8724
        %8737 = vst [vmem:[%s406 + $0x10] sm:$0xff] %v8725
        %8738 = vst [vmem:[%s406 + $0x18] sm:$0xff] %v8726
        %8739 = vst [vmem:[%s406 + $0x20] sm:$0xff] %v8727
        %8740 = vst [vmem:[%s406 + $0x28] sm:$0xff] %v8728
        %8741 = vst [vmem:[%s406 + $0x30] sm:$0xff] %v8729
        %8742 = vst [vmem:[%s406 + $0x38] sm:$0xff] %v8730
        %8743 = vst [vmem:[%s406 + $0x40] sm:$0xff] %v8731
        %8744 = vst [vmem:[%s406 + $0x48] sm:$0xff] %v8732
        %8745 = vst [vmem:[%s406 + $0x50] sm:$0xff] %v8733
        %8746 = vst [vmem:[%s406 + $0x58] sm:$0xff] %v8734
        %s8747 = sand.u32 %s291, 1
        %s8748 = scalar_lea.sflag [#allocation4], %s8747
        %s8749 = sand.u32 %s291, 1
        %s8750 = smul.addr %s8749, 96
        %s8751 = scalar_lea.vmem [#allocation3], %s8750
        // Predicated region
        $region69: #{tpu_custom_call.1} parent=67 // pred_check
          %p8752 = pneg %p301
        $region70: #{tpu_custom_call.1} parent=67 // pred_check_branch
          %8754 = sbr.rel (%p8752) target = $region72
        $region71: #{tpu_custom_call.1} parent=67 // pred_region
          %s8756 = ssub.s32 1536, 1536
          %8757 = vsyncadd %s8748, %s8756
          %s8758 = smul.addr %s26, 12
          %s8759 = smul.addr %s8758, 128
          %s8760 = scalar_lea.hbm %s12, %s8759
          %s8761 = sshll.u32 %s8751, 4
          %s8762 = int_to_ptr.vmem [resolvable:$true] %s8761
          %8767 = dma.vmem_to_hbm [thread:$0]  %s8762, 1536, %s8760, %s8748, 384, 384, 24
        $region72: #{tpu_custom_call.1} parent=67 // pred_fallthru
          _
      $region68: #{tpu_custom_call.1} parent=5 // pred_fallthru
        _
      %p8768 = scmp.le.s32.totalorder 2, %s21
      // Predicated region
      $region73: #{tpu_custom_call.1} parent=5 // pred_check
        %p8769 = pneg %p8768
      $region74: #{tpu_custom_call.1} parent=5 // pred_check_branch
        %8771 = sbr.rel (%p8769) target = $region76
      $region75: #{tpu_custom_call.1} parent=5 // pred_region
        %s8772 = ssub.s32 %s21, 2
        // Predicated region
        $region77: #{tpu_custom_call.1} parent=75 // pred_check
          %p8773 = pneg %p307
        $region78: #{tpu_custom_call.1} parent=75 // pred_check_branch
          %8775 = sbr.rel (%p8773) target = $region80
        $region79: #{tpu_custom_call.1} parent=75 // pred_region
          %s8776 = sand.u32 %s292, 1
          %s8777 = scalar_lea.sflag [#allocation4], %s8776
          %s8778 = sand.u32 %s292, 1
          %s8779 = smul.addr %s8778, 96
          %s8780 = scalar_lea.vmem [#allocation3], %s8779
          %8781 = dma.done %s8777, 1536
        $region80: #{tpu_custom_call.1} parent=75 // pred_fallthru
          _
      $region76: #{tpu_custom_call.1} parent=5 // pred_fallthru
        _
    $region6: #{tpu_custom_call.1} parent=1 // loop_footer
      %s25 = sadd.s32 1, %s21
    $region7: #{tpu_custom_call.1} parent=1 // loop_footer_branch
      %20 = sbr.rel target = $region3
    $region8: #{tpu_custom_call.1} parent=1 // loop_exit
      _
    %8782 = vsyncpa [#allocation4], 1
    %s8783 = scalar_lea.sflag [#allocation4], 1
    %8784 = vsyncpa %s8783, 1

</llo_original>
